<compile_context>
chip_gen: v5e
topology: v5e:2x2
jax: 0.10.0
libtpu: 0.0.40
codegen_flags: <defaults>
</compile_context>

<pallas_src>
import functools

import jax
import jax.numpy as jnp
from jax import lax
from jax.experimental import pallas as pl
from jax.experimental.pallas import tpu as pltpu

_EPS = 1e-5
_LANE = 128


def _round_up(v, m):
    return -(-v // m) * m


# ------------------------------ in-kernel math ------------------------------ #
def _mish(x):
    # x * tanh(softplus(x)) with a single transcendental:
    #   t = 1 + e^x  =>  tanh(log t) = (t^2 - 1) / (t^2 + 1)
    # clamp: for x > 20 the ratio is already 1.0 to f32 precision.  The divide uses the
    # approx EUP reciprocal so the epilogue stays off the VALU/MXU critical slots.
    t = 1.0 + jnp.exp(jnp.minimum(x, 20.0))
    tt = t * t
    return x * (tt - 1.0) * pl.reciprocal(tt + 1.0, approx=True)


# ------------------------------ fused block kernel --------------------------- #
def _residual_block_kernel(x_ref, w1_ref, b1_ref, w2_ref, b2_ref, *rest,
                           stride, H, W, same_shape):
    if same_shape:
        o_ref, h1_ref, col1_ref, col2_ref = rest
        w3_ref = b3_ref = None
    else:
        w3_ref, b3_ref, o_ref, h1_ref, col1_ref, col2_ref = rest

    s = stride
    Hout, Wout = H // s, W // s
    M = Hout * Wout
    CKin = x_ref.shape[-1]
    CKout = o_ref.shape[-1]

    # ---- conv1: 3x3, stride s, pad 1 (input pre-padded & phase-decomposed) + BN + Mish
    # Stage the 9 shifted windows into one contiguous im2col slab, then a single MXU
    # matmul with K = 9*CKin.
    for kh in range(3):
        for kw in range(3):
            t = kh * 3 + kw
            col1_ref[:, :, t * CKin:(t + 1) * CKin] = x_ref[
                (kh % s) * s + (kw % s),
                kh // s: kh // s + Hout,
                kw // s: kw // s + Wout, :]
    acc1 = jnp.dot(col1_ref[...].reshape(M, 9 * CKin), w1_ref[...],
                   preferred_element_type=jnp.float32)
    h1 = _mish(acc1 + b1_ref[...])                              # (M, CKout) f32

    # ---- hand conv1 -> conv2 through a halo-padded VMEM scratch (never touches HBM) ----
    # Only the 1-pixel border is re-zeroed; the interior is fully overwritten every grid
    # step.  (Do NOT gate the zeroing on program_id==0: with a "parallel" grid a core may
    # never execute step 0.)
    h1_ref[0:1, :, :] = jnp.zeros((1, Wout + 2, CKout), h1_ref.dtype)
    h1_ref[Hout + 1:Hout + 2, :, :] = jnp.zeros((1, Wout + 2, CKout), h1_ref.dtype)
    h1_ref[:, 0:1, :] = jnp.zeros((Hout + 2, 1, CKout), h1_ref.dtype)
    h1_ref[:, Wout + 1:Wout + 2, :] = jnp.zeros((Hout + 2, 1, CKout), h1_ref.dtype)
    h1_ref[1:Hout + 1, 1:Wout + 1, :] = (
        h1.reshape(Hout, Wout, CKout).astype(h1_ref.dtype))

    # ---- conv2: 3x3, stride 1, pad 1 + BN + Mish (Mish BEFORE the residual add!) ----
    for kh in range(3):
        for kw in range(3):
            t = kh * 3 + kw
            col2_ref[:, :, t * CKout:(t + 1) * CKout] = (
                h1_ref[kh:kh + Hout, kw:kw + Wout, :])
    acc2 = jnp.dot(col2_ref[...].reshape(M, 9 * CKout), w2_ref[...],
                   preferred_element_type=jnp.float32)
    out2 = _mish(acc2 + b2_ref[...])

    # ---- shortcut: identity, or 1x1 stride-s conv3 + BN ----
    if same_shape:
        sc = x_ref[0, 1:1 + H, 1:1 + W, :].reshape(M, CKin).astype(jnp.float32)
    else:
        ph = 1 % s                      # phase of padded coordinate 1
        r0 = (1 - ph) // s              # index of that coordinate inside its phase
        win = x_ref[ph * s + ph, r0:r0 + Hout, r0:r0 + Wout, :]
        sc = jnp.dot(win.reshape(M, CKin), w3_ref[...],
                     preferred_element_type=jnp.float32) + b3_ref[...]

    # ---- fused residual add + final Mish; bf16 channel-padded output ----
    o_ref[0] = _mish(out2 + sc).reshape(Hout, Wout, CKout).astype(o_ref.dtype)


# ------------------------------ parameter packing (done once) ----------------- #
def _fold_bn(w, gamma, beta, mean, var):
    scale = gamma / jnp.sqrt(var + _EPS)
    return w * scale[:, None, None, None], beta - mean * scale


def _pack_conv_weight(w_oihw, ckin, ckout):
    """(Cout, Cin, KH, KW) -> (KH*KW*ckin, ckout) bf16 with (kh, kw, cin) row ordering."""
    Cout, Cin, KH, KW = w_oihw.shape
    w = jnp.transpose(w_oihw, (2, 3, 1, 0))                     # (KH, KW, Cin, Cout)
    w = jnp.pad(w, ((0, 0), (0, 0), (0, ckin - Cin), (0, ckout - Cout)))
    return w.reshape(KH * KW * ckin, ckout).astype(jnp.bfloat16)


def _pack_bias(b, ckout):
    return jnp.pad(b, (0, ckout - b.shape[0])).reshape(1, ckout).astype(jnp.float32)


def prepare_rasidual_block_params(params, in_channel, same_shape):
    """Fold BN and pack/pad weights once (hoisted out of the forward hot path)."""
    out_channel = int(params["conv1"][0].shape[0])
    if same_shape:
        assert in_channel == out_channel, "identity shortcut needs Cin == Cout"
    ckin = _round_up(in_channel, _LANE)
    ckout = _round_up(out_channel, _LANE)
    w1, b1 = _fold_bn(*params["conv1"])
    w2, b2 = _fold_bn(*params["conv2"])
    packed = {
        "w1": _pack_conv_weight(w1, ckin, ckout), "b1": _pack_bias(b1, ckout),
        "w2": _pack_conv_weight(w2, ckout, ckout), "b2": _pack_bias(b2, ckout),
    }
    if not same_shape:
        w3, b3 = _fold_bn(*params["conv3"])
        packed["w3"] = _pack_conv_weight(w3, ckin, ckout)      # 1x1 -> (ckin, ckout)
        packed["b3"] = _pack_bias(b3, ckout)
    meta = dict(cin=in_channel, cout=out_channel, ckin=ckin, ckout=ckout,
                same_shape=same_shape)
    return packed, meta


# ------------------------------ NHWC forward (hot path) ---------------------- #
def rasidual_block_apply_nhwc(x_nhwc, packed, meta):
    """NHWC -> NHWC forward as one fused Pallas kernel.

    Returns a CKout-padded bf16 NHWC tensor; in a full model feed it straight into the
    next block (no depad / f32 roundtrip between blocks).
    """
    N, H, W, Cin = x_nhwc.shape
    same_shape = meta["same_shape"]
    s = 1 if same_shape else 2
    CKin, CKout = meta["ckin"], meta["ckout"]
    # TODO(synk): odd H/W with stride 2 (allowed by PyTorch's conv) is not supported.
    assert H % s == 0 and W % s == 0
    Hout, Wout = H // s, W // s

    # spatial pad (=1), channel pad to CKin, space-to-depth phase split for stride s
    # TODO(synk): hoist this glue (an extra HBM pass per block) by keeping activations
    #             padded / pre-split end-to-end in a full model.
    xp = x_nhwc.astype(jnp.bfloat16)
    xp = jnp.pad(xp, ((0, 0), (1, 1), (1, 1), (0, CKin - Cin)))
    Hp, Wp = H + 2, W + 2
    Hp2, Wp2 = _round_up(Hp, s), _round_up(Wp, s)
    xp = jnp.pad(xp, ((0, 0), (0, Hp2 - Hp), (0, Wp2 - Wp), (0, 0)))
    Hs, Ws = Hp2 // s, Wp2 // s
    xph = xp.reshape(N, Hs, s, Ws, s, CKin).transpose(0, 2, 4, 1, 3, 5)
    xph = xph.reshape(N * s * s, Hs, Ws, CKin)

    in_specs = [
        pl.BlockSpec((s * s, Hs, Ws, CKin), lambda n: (n, 0, 0, 0)),
        pl.BlockSpec((9 * CKin, CKout), lambda n: (0, 0)),
        pl.BlockSpec((1, CKout), lambda n: (0, 0)),
        pl.BlockSpec((9 * CKout, CKout), lambda n: (0, 0)),
        pl.BlockSpec((1, CKout), lambda n: (0, 0)),
    ]
    args = [xph, packed["w1"], packed["b1"], packed["w2"], packed["b2"]]
    if not same_shape:
        args += [packed["w3"], packed["b3"]]
        in_specs += [pl.BlockSpec((CKin, CKout), lambda n: (0, 0)),
                     pl.BlockSpec((1, CKout), lambda n: (0, 0))]

    kernel = functools.partial(_residual_block_kernel, stride=s, H=H, W=W,
                               same_shape=same_shape)
    # TODO(synk): add a second "parallel" grid axis over Hout row tiles for production
    #             feature-map sizes (vreg-resident accumulators + work for both v7x TCs).
    return pl.pallas_call(
        kernel,
        out_shape=jax.ShapeDtypeStruct((N, Hout, Wout, CKout), jnp.bfloat16),
        grid=(N,),
        in_specs=in_specs,
        out_specs=pl.BlockSpec((1, Hout, Wout, CKout), lambda n: (n, 0, 0, 0)),
        scratch_shapes=[
            pltpu.VMEM((Hout + 2, Wout + 2, CKout), jnp.bfloat16),   # h1 + conv2 halo
            pltpu.VMEM((Hout, Wout, 9 * CKin), jnp.bfloat16),        # conv1 im2col slab
            pltpu.VMEM((Hout, Wout, 9 * CKout), jnp.bfloat16),       # conv2 im2col slab
        ],
        compiler_params=pltpu.CompilerParams(
            dimension_semantics=("parallel",),
            # within every generation's budget; leaves half of v7x's 64 MiB VMEM free
            vmem_limit_bytes=32 * 1024 * 1024),
    )(*args)


def rasidual_block_forward(x_nchw, packed, meta):
    # NCHW public API mirroring PyTorch (depads + casts back to f32).  In a full model
    # keep data NHWC / channel-padded / bf16 end-to-end and call the *_nhwc entry.
    x_nhwc = jnp.transpose(x_nchw, (0, 2, 3, 1))
    y = rasidual_block_apply_nhwc(x_nhwc, packed, meta)
    y = y[:, :, :, :meta["cout"]].astype(jnp.float32)
    return jnp.transpose(y, (0, 3, 1, 2))


# ------------------------------ pure-JAX reference --------------------------- #
def _ref_mish(x):
    return x * jnp.tanh(jax.nn.softplus(x))


def _ref_conv_bn(x, w, gamma, beta, mean, var, stride, pad, q):
    scale = gamma / jnp.sqrt(var + _EPS)
    w_f = w * scale[:, None, None, None]
    b_f = beta - mean * scale
    y = lax.conv_general_dilated(q(x), q(w_f), (stride, stride),
                                 ((pad, pad), (pad, pad)),
                                 dimension_numbers=("NCHW", "OIHW", "NCHW"))
    return y + b_f[None, :, None, None]


def _ref_forward(x, params, same_shape, mirror_bf16=True):
    # mirror_bf16=True models the kernel's bf16 MXU inputs (f32 accumulate/epilogue);
    # mirror_bf16=False is the pure-f32 PyTorch semantics.
    q = ((lambda a: a.astype(jnp.bfloat16).astype(jnp.float32)) if mirror_bf16
         else (lambda a: a))
    stride = 1 if same_shape else 2
    out = _ref_mish(_ref_conv_bn(x, *params["conv1"], stride, 1, q))
    out = _ref_mish(_ref_conv_bn(out, *params["conv2"], 1, 1, q))
    sc = _ref_conv_bn(x, *params["conv3"], stride, 0, q) if not same_shape else q(x)
    return _ref_mish(sc + out)


# ------------------------------ parameter init -------------------------------- #
def _init_conv_bn(key, cin, cout, kh, kw):
    kw_, kg, kb, km, kv = jax.random.split(key, 5)
    w = 0.1 * jax.random.normal(kw_, (cout, cin, kh, kw), jnp.float32)
    gamma = 1.0 + 0.1 * jax.random.normal(kg, (cout,), jnp.float32)
    beta = 0.1 * jax.random.normal(kb, (cout,), jnp.float32)
    mean = 0.1 * jax.random.normal(km, (cout,), jnp.float32)
    var = jax.random.uniform(kv, (cout,), jnp.float32, 0.5, 1.5)
    return (w, gamma, beta, mean, var)


def init_rasidual_block(key, in_channel, out_channel, same_shape):
    k1, k2, k3 = jax.random.split(key, 3)
    params = {
        "conv1": _init_conv_bn(k1, in_channel, out_channel, 3, 3),
        "conv2": _init_conv_bn(k2, out_channel, out_channel, 3, 3),
    }
    if not same_shape:
        params["conv3"] = _init_conv_bn(k3, in_channel, out_channel, 1, 1)
    return params


# ------------------------------------ main ------------------------------------ #
if __name__ == "__main__":
    key = jax.random.PRNGKey(0)
    kx, kp1, kp2 = jax.random.split(key, 3)

    x = jax.random.normal(kx, (2, 4, 16, 16), jnp.float32)  # NCHW like PyTorch

    # Case 1: same_shape=True (identity shortcut), 4 -> 4 channels, stride 1
    params_a = init_rasidual_block(kp1, 4, 4, same_shape=True)
    packed_a, meta_a = prepare_rasidual_block_params(params_a, 4, same_shape=True)
    y_a = jax.block_until_ready(rasidual_block_forward(x, packed_a, meta_a))
    assert y_a.shape == (2, 4, 16, 16)
    r_a = _ref_forward(x, params_a, True, mirror_bf16=True)
    assert jnp.allclose(y_a, r_a, atol=5e-2, rtol=5e-3), "mismatch vs bf16-mirrored ref (A)"
    r_a32 = _ref_forward(x, params_a, True, mirror_bf16=False)
    assert jnp.allclose(y_a, r_a32, atol=1e-1, rtol=1e-1), "mismatch vs f32 ref (A)"

    # Case 2: same_shape=False (stride-2 + 1x1 projection shortcut), 4 -> 8 channels
    params_b = init_rasidual_block(kp2, 4, 8, same_shape=False)
    packed_b, meta_b = prepare_rasidual_block_params(params_b, 4, same_shape=False)
    y_b = jax.block_until_ready(rasidual_block_forward(x, packed_b, meta_b))
    assert y_b.shape == (2, 8, 8, 8)
    r_b = _ref_forward(x, params_b, False, mirror_bf16=True)
    assert jnp.allclose(y_b, r_b, atol=5e-2, rtol=5e-3), "mismatch vs bf16-mirrored ref (B)"
    r_b32 = _ref_forward(x, params_b, False, mirror_bf16=False)
    assert jnp.allclose(y_b, r_b32, atol=1e-1, rtol=1e-1), "mismatch vs f32 ref (B)"

    print("KERNEL_OK")
</pallas_src>

<mosaic_0001>
module attributes {stable_mosaic.version = 11 : i64} {
  func.func @_residual_block_kernel(%arg0: i32, %arg1: memref<1x18x18x128xbf16, #tpu.memory_space<vmem>>, %arg2: memref<1152x128xbf16, #tpu.memory_space<vmem>>, %arg3: memref<1x128xf32, #tpu.memory_space<vmem>>, %arg4: memref<1152x128xbf16, #tpu.memory_space<vmem>>, %arg5: memref<1x128xf32, #tpu.memory_space<vmem>>, %arg6: memref<1x16x16x128xbf16, #tpu.memory_space<vmem>>, %arg7: memref<18x18x128xbf16, #tpu.memory_space<vmem>>, %arg8: memref<16x16x1152xbf16, #tpu.memory_space<vmem>>, %arg9: memref<16x16x1152xbf16, #tpu.memory_space<vmem>>) attributes {dimension_semantics = [#tpu.dimension_semantics<parallel>], iteration_bounds = array<i64: 2>, scalar_prefetch = 0 : i64, scratch_operands = 3 : i64, tpu.core_type = #tpu.core_type<tc>, window_params = [{transform_indices = @transform_0, window_bounds = array<i64: 1, 18, 18, 128>}, {pipeline_mode = #tpu.pipeline_mode<synchronous>, transform_indices = @transform_1, window_bounds = array<i64: 1152, 128>}, {pipeline_mode = #tpu.pipeline_mode<synchronous>, transform_indices = @transform_2, window_bounds = array<i64: 1, 128>}, {pipeline_mode = #tpu.pipeline_mode<synchronous>, transform_indices = @transform_3, window_bounds = array<i64: 1152, 128>}, {pipeline_mode = #tpu.pipeline_mode<synchronous>, transform_indices = @transform_4, window_bounds = array<i64: 1, 128>}, {transform_indices = @transform_5, window_bounds = array<i64: 1, 16, 16, 128>}]} {
    %c0 = arith.constant 0 : index
    %c0_0 = arith.constant 0 : index
    %c0_1 = arith.constant 0 : index
    %c0_2 = arith.constant 0 : index
    %0 = vector.load %arg1[%c0, %c0_0, %c0_1, %c0_2] : memref<1x18x18x128xbf16, #tpu.memory_space<vmem>>, vector<1x16x16x128xbf16>
    %1 = vector.shape_cast %0 : vector<1x16x16x128xbf16> to vector<16x16x128xbf16>
    %c0_3 = arith.constant 0 : index
    %c0_4 = arith.constant 0 : index
    %c0_5 = arith.constant 0 : index
    %2 = vector.load %arg8[%c0_3, %c0_4, %c0_5] : memref<16x16x1152xbf16, #tpu.memory_space<vmem>>, vector<16x16x128xbf16>
    tpu.vector_store %arg8[%c0_3, %c0_4, %c0_5], %1 {strides = array<i32>} : memref<16x16x1152xbf16, #tpu.memory_space<vmem>>, vector<16x16x128xbf16>,
    %c0_6 = arith.constant 0 : index
    %c0_7 = arith.constant 0 : index
    %c1 = arith.constant 1 : index
    %c0_8 = arith.constant 0 : index
    %3 = vector.load %arg1[%c0_6, %c0_7, %c1, %c0_8] : memref<1x18x18x128xbf16, #tpu.memory_space<vmem>>, vector<1x16x16x128xbf16>
    %4 = vector.shape_cast %3 : vector<1x16x16x128xbf16> to vector<16x16x128xbf16>
    %c0_9 = arith.constant 0 : index
    %c0_10 = arith.constant 0 : index
    %c128 = arith.constant 128 : index
    %5 = vector.load %arg8[%c0_9, %c0_10, %c128] : memref<16x16x1152xbf16, #tpu.memory_space<vmem>>, vector<16x16x128xbf16>
    tpu.vector_store %arg8[%c0_9, %c0_10, %c128], %4 {strides = array<i32>} : memref<16x16x1152xbf16, #tpu.memory_space<vmem>>, vector<16x16x128xbf16>,
    %c0_11 = arith.constant 0 : index
    %c0_12 = arith.constant 0 : index
    %c2 = arith.constant 2 : index
    %c0_13 = arith.constant 0 : index
    %6 = vector.load %arg1[%c0_11, %c0_12, %c2, %c0_13] : memref<1x18x18x128xbf16, #tpu.memory_space<vmem>>, vector<1x16x16x128xbf16>
    %7 = vector.shape_cast %6 : vector<1x16x16x128xbf16> to vector<16x16x128xbf16>
    %c0_14 = arith.constant 0 : index
    %c0_15 = arith.constant 0 : index
    %c256 = arith.constant 256 : index
    %8 = vector.load %arg8[%c0_14, %c0_15, %c256] : memref<16x16x1152xbf16, #tpu.memory_space<vmem>>, vector<16x16x128xbf16>
    tpu.vector_store %arg8[%c0_14, %c0_15, %c256], %7 {strides = array<i32>} : memref<16x16x1152xbf16, #tpu.memory_space<vmem>>, vector<16x16x128xbf16>,
    %c0_16 = arith.constant 0 : index
    %c1_17 = arith.constant 1 : index
    %c0_18 = arith.constant 0 : index
    %c0_19 = arith.constant 0 : index
    %9 = vector.load %arg1[%c0_16, %c1_17, %c0_18, %c0_19] : memref<1x18x18x128xbf16, #tpu.memory_space<vmem>>, vector<1x16x16x128xbf16>
    %10 = vector.shape_cast %9 : vector<1x16x16x128xbf16> to vector<16x16x128xbf16>
    %c0_20 = arith.constant 0 : index
    %c0_21 = arith.constant 0 : index
    %c384 = arith.constant 384 : index
    %11 = vector.load %arg8[%c0_20, %c0_21, %c384] : memref<16x16x1152xbf16, #tpu.memory_space<vmem>>, vector<16x16x128xbf16>
    tpu.vector_store %arg8[%c0_20, %c0_21, %c384], %10 {strides = array<i32>} : memref<16x16x1152xbf16, #tpu.memory_space<vmem>>, vector<16x16x128xbf16>,
    %c0_22 = arith.constant 0 : index
    %c1_23 = arith.constant 1 : index
    %c1_24 = arith.constant 1 : index
    %c0_25 = arith.constant 0 : index
    %12 = vector.load %arg1[%c0_22, %c1_23, %c1_24, %c0_25] : memref<1x18x18x128xbf16, #tpu.memory_space<vmem>>, vector<1x16x16x128xbf16>
    %13 = vector.shape_cast %12 : vector<1x16x16x128xbf16> to vector<16x16x128xbf16>
    %c0_26 = arith.constant 0 : index
    %c0_27 = arith.constant 0 : index
    %c512 = arith.constant 512 : index
    %14 = vector.load %arg8[%c0_26, %c0_27, %c512] : memref<16x16x1152xbf16, #tpu.memory_space<vmem>>, vector<16x16x128xbf16>
    tpu.vector_store %arg8[%c0_26, %c0_27, %c512], %13 {strides = array<i32>} : memref<16x16x1152xbf16, #tpu.memory_space<vmem>>, vector<16x16x128xbf16>,
    %c0_28 = arith.constant 0 : index
    %c1_29 = arith.constant 1 : index
    %c2_30 = arith.constant 2 : index
    %c0_31 = arith.constant 0 : index
    %15 = vector.load %arg1[%c0_28, %c1_29, %c2_30, %c0_31] : memref<1x18x18x128xbf16, #tpu.memory_space<vmem>>, vector<1x16x16x128xbf16>
    %16 = vector.shape_cast %15 : vector<1x16x16x128xbf16> to vector<16x16x128xbf16>
    %c0_32 = arith.constant 0 : index
    %c0_33 = arith.constant 0 : index
    %c640 = arith.constant 640 : index
    %17 = vector.load %arg8[%c0_32, %c0_33, %c640] : memref<16x16x1152xbf16, #tpu.memory_space<vmem>>, vector<16x16x128xbf16>
    tpu.vector_store %arg8[%c0_32, %c0_33, %c640], %16 {strides = array<i32>} : memref<16x16x1152xbf16, #tpu.memory_space<vmem>>, vector<16x16x128xbf16>,
    %c0_34 = arith.constant 0 : index
    %c2_35 = arith.constant 2 : index
    %c0_36 = arith.constant 0 : index
    %c0_37 = arith.constant 0 : index
    %18 = vector.load %arg1[%c0_34, %c2_35, %c0_36, %c0_37] : memref<1x18x18x128xbf16, #tpu.memory_space<vmem>>, vector<1x16x16x128xbf16>
    %19 = vector.shape_cast %18 : vector<1x16x16x128xbf16> to vector<16x16x128xbf16>
    %c0_38 = arith.constant 0 : index
    %c0_39 = arith.constant 0 : index
    %c768 = arith.constant 768 : index
    %20 = vector.load %arg8[%c0_38, %c0_39, %c768] : memref<16x16x1152xbf16, #tpu.memory_space<vmem>>, vector<16x16x128xbf16>
    tpu.vector_store %arg8[%c0_38, %c0_39, %c768], %19 {strides = array<i32>} : memref<16x16x1152xbf16, #tpu.memory_space<vmem>>, vector<16x16x128xbf16>,
    %c0_40 = arith.constant 0 : index
    %c2_41 = arith.constant 2 : index
    %c1_42 = arith.constant 1 : index
    %c0_43 = arith.constant 0 : index
    %21 = vector.load %arg1[%c0_40, %c2_41, %c1_42, %c0_43] : memref<1x18x18x128xbf16, #tpu.memory_space<vmem>>, vector<1x16x16x128xbf16>
    %22 = vector.shape_cast %21 : vector<1x16x16x128xbf16> to vector<16x16x128xbf16>
    %c0_44 = arith.constant 0 : index
    %c0_45 = arith.constant 0 : index
    %c896 = arith.constant 896 : index
    %23 = vector.load %arg8[%c0_44, %c0_45, %c896] : memref<16x16x1152xbf16, #tpu.memory_space<vmem>>, vector<16x16x128xbf16>
    tpu.vector_store %arg8[%c0_44, %c0_45, %c896], %22 {strides = array<i32>} : memref<16x16x1152xbf16, #tpu.memory_space<vmem>>, vector<16x16x128xbf16>,
    %c0_46 = arith.constant 0 : index
    %c2_47 = arith.constant 2 : index
    %c2_48 = arith.constant 2 : index
    %c0_49 = arith.constant 0 : index
    %24 = vector.load %arg1[%c0_46, %c2_47, %c2_48, %c0_49] : memref<1x18x18x128xbf16, #tpu.memory_space<vmem>>, vector<1x16x16x128xbf16>
    %25 = vector.shape_cast %24 : vector<1x16x16x128xbf16> to vector<16x16x128xbf16>
    %c0_50 = arith.constant 0 : index
    %c0_51 = arith.constant 0 : index
    %c1024 = arith.constant 1024 : index
    %26 = vector.load %arg8[%c0_50, %c0_51, %c1024] : memref<16x16x1152xbf16, #tpu.memory_space<vmem>>, vector<16x16x128xbf16>
    tpu.vector_store %arg8[%c0_50, %c0_51, %c1024], %25 {strides = array<i32>} : memref<16x16x1152xbf16, #tpu.memory_space<vmem>>, vector<16x16x128xbf16>,
    %c0_52 = arith.constant 0 : index
    %c0_53 = arith.constant 0 : index
    %c0_54 = arith.constant 0 : index
    %27 = vector.load %arg8[%c0_52, %c0_53, %c0_54] : memref<16x16x1152xbf16, #tpu.memory_space<vmem>>, vector<16x16x1152xbf16>
    %28 = vector.shape_cast %27 : vector<16x16x1152xbf16> to vector<256x1152xbf16>
    %c0_55 = arith.constant 0 : index
    %c0_56 = arith.constant 0 : index
    %29 = vector.load %arg2[%c0_55, %c0_56] : memref<1152x128xbf16, #tpu.memory_space<vmem>>, vector<1152x128xbf16>
    %cst = arith.constant dense<0.000000e+00> : vector<256x128xf32>
    %30 = tpu.matmul %28, %29, %cst {dimension_numbers = #tpu.dot_dimension_numbers<[1], [0], [0], [1], [0, 0, 1, 1], [], []>} : vector<256x1152xbf16>, vector<1152x128xbf16>, vector<256x128xf32> -> vector<256x128xf32>
    %c0_57 = arith.constant 0 : index
    %c0_58 = arith.constant 0 : index
    %31 = vector.load %arg3[%c0_57, %c0_58] : memref<1x128xf32, #tpu.memory_space<vmem>>, vector<1x128xf32>
    %32 = vector.broadcast %31 : vector<1x128xf32> to vector<256x128xf32>
    %33 = arith.addf %30, %32 : vector<256x128xf32>
    %cst_59 = arith.constant 2.000000e+01 : f32
    %34 = vector.broadcast %cst_59 : f32 to vector<256x128xf32>
    %35 = arith.minimumf %33, %34 : vector<256x128xf32>
    %36 = math.exp %35 : vector<256x128xf32>
    %cst_60 = arith.constant 1.000000e+00 : f32
    %37 = vector.broadcast %cst_60 : f32 to vector<256x128xf32>
    %38 = arith.addf %37, %36 : vector<256x128xf32>
    %39 = arith.mulf %38, %38 : vector<256x128xf32>
    %cst_61 = arith.constant 1.000000e+00 : f32
    %40 = vector.broadcast %cst_61 : f32 to vector<256x128xf32>
    %41 = arith.subf %39, %40 : vector<256x128xf32>
    %42 = arith.mulf %33, %41 : vector<256x128xf32>
    %cst_62 = arith.constant 1.000000e+00 : f32
    %43 = vector.broadcast %cst_62 : f32 to vector<256x128xf32>
    %44 = arith.addf %39, %43 : vector<256x128xf32>
    %45 = tpu.reciprocal %44 {approx = true} : vector<256x128xf32> -> vector<256x128xf32>
    %46 = arith.mulf %42, %45 : vector<256x128xf32>
    %cst_63 = arith.constant 0.000000e+00 : bf16
    %47 = vector.broadcast %cst_63 : bf16 to vector<1x18x128xbf16>
    %c0_64 = arith.constant 0 : index
    %c0_65 = arith.constant 0 : index
    %c0_66 = arith.constant 0 : index
    %48 = vector.load %arg7[%c0_64, %c0_65, %c0_66] : memref<18x18x128xbf16, #tpu.memory_space<vmem>>, vector<1x18x128xbf16>
    tpu.vector_store %arg7[%c0_64, %c0_65, %c0_66], %47 {strides = array<i32>} : memref<18x18x128xbf16, #tpu.memory_space<vmem>>, vector<1x18x128xbf16>,
    %cst_67 = arith.constant 0.000000e+00 : bf16
    %49 = vector.broadcast %cst_67 : bf16 to vector<1x18x128xbf16>
    %c17 = arith.constant 17 : index
    %c0_68 = arith.constant 0 : index
    %c0_69 = arith.constant 0 : index
    %50 = vector.load %arg7[%c17, %c0_68, %c0_69] : memref<18x18x128xbf16, #tpu.memory_space<vmem>>, vector<1x18x128xbf16>
    tpu.vector_store %arg7[%c17, %c0_68, %c0_69], %49 {strides = array<i32>} : memref<18x18x128xbf16, #tpu.memory_space<vmem>>, vector<1x18x128xbf16>,
    %cst_70 = arith.constant 0.000000e+00 : bf16
    %51 = vector.broadcast %cst_70 : bf16 to vector<18x1x128xbf16>
    %c0_71 = arith.constant 0 : index
    %c0_72 = arith.constant 0 : index
    %c0_73 = arith.constant 0 : index
    %52 = vector.load %arg7[%c0_71, %c0_72, %c0_73] : memref<18x18x128xbf16, #tpu.memory_space<vmem>>, vector<18x1x128xbf16>
    tpu.vector_store %arg7[%c0_71, %c0_72, %c0_73], %51 {strides = array<i32>} : memref<18x18x128xbf16, #tpu.memory_space<vmem>>, vector<18x1x128xbf16>,
    %cst_74 = arith.constant 0.000000e+00 : bf16
    %53 = vector.broadcast %cst_74 : bf16 to vector<18x1x128xbf16>
    %c0_75 = arith.constant 0 : index
    %c17_76 = arith.constant 17 : index
    %c0_77 = arith.constant 0 : index
    %54 = vector.load %arg7[%c0_75, %c17_76, %c0_77] : memref<18x18x128xbf16, #tpu.memory_space<vmem>>, vector<18x1x128xbf16>
    tpu.vector_store %arg7[%c0_75, %c17_76, %c0_77], %53 {strides = array<i32>} : memref<18x18x128xbf16, #tpu.memory_space<vmem>>, vector<18x1x128xbf16>,
    %55 = vector.shape_cast %46 : vector<256x128xf32> to vector<16x16x128xf32>
    %56 = arith.truncf %55 : vector<16x16x128xf32> to vector<16x16x128xbf16>
    %c1_78 = arith.constant 1 : index
    %c1_79 = arith.constant 1 : index
    %c0_80 = arith.constant 0 : index
    %57 = vector.load %arg7[%c1_78, %c1_79, %c0_80] : memref<18x18x128xbf16, #tpu.memory_space<vmem>>, vector<16x16x128xbf16>
    tpu.vector_store %arg7[%c1_78, %c1_79, %c0_80], %56 {strides = array<i32>} : memref<18x18x128xbf16, #tpu.memory_space<vmem>>, vector<16x16x128xbf16>,
    %c0_81 = arith.constant 0 : index
    %c0_82 = arith.constant 0 : index
    %c0_83 = arith.constant 0 : index
    %58 = vector.load %arg7[%c0_81, %c0_82, %c0_83] : memref<18x18x128xbf16, #tpu.memory_space<vmem>>, vector<16x16x128xbf16>
    %c0_84 = arith.constant 0 : index
    %c0_85 = arith.constant 0 : index
    %c0_86 = arith.constant 0 : index
    %59 = vector.load %arg9[%c0_84, %c0_85, %c0_86] : memref<16x16x1152xbf16, #tpu.memory_space<vmem>>, vector<16x16x128xbf16>
    tpu.vector_store %arg9[%c0_84, %c0_85, %c0_86], %58 {strides = array<i32>} : memref<16x16x1152xbf16, #tpu.memory_space<vmem>>, vector<16x16x128xbf16>,
    %c0_87 = arith.constant 0 : index
    %c1_88 = arith.constant 1 : index
    %c0_89 = arith.constant 0 : index
    %60 = vector.load %arg7[%c0_87, %c1_88, %c0_89] : memref<18x18x128xbf16, #tpu.memory_space<vmem>>, vector<16x16x128xbf16>
    %c0_90 = arith.constant 0 : index
    %c0_91 = arith.constant 0 : index
    %c128_92 = arith.constant 128 : index
    %61 = vector.load %arg9[%c0_90, %c0_91, %c128_92] : memref<16x16x1152xbf16, #tpu.memory_space<vmem>>, vector<16x16x128xbf16>
    tpu.vector_store %arg9[%c0_90, %c0_91, %c128_92], %60 {strides = array<i32>} : memref<16x16x1152xbf16, #tpu.memory_space<vmem>>, vector<16x16x128xbf16>,
    %c0_93 = arith.constant 0 : index
    %c2_94 = arith.constant 2 : index
    %c0_95 = arith.constant 0 : index
    %62 = vector.load %arg7[%c0_93, %c2_94, %c0_95] : memref<18x18x128xbf16, #tpu.memory_space<vmem>>, vector<16x16x128xbf16>
    %c0_96 = arith.constant 0 : index
    %c0_97 = arith.constant 0 : index
    %c256_98 = arith.constant 256 : index
    %63 = vector.load %arg9[%c0_96, %c0_97, %c256_98] : memref<16x16x1152xbf16, #tpu.memory_space<vmem>>, vector<16x16x128xbf16>
    tpu.vector_store %arg9[%c0_96, %c0_97, %c256_98], %62 {strides = array<i32>} : memref<16x16x1152xbf16, #tpu.memory_space<vmem>>, vector<16x16x128xbf16>,
    %c1_99 = arith.constant 1 : index
    %c0_100 = arith.constant 0 : index
    %c0_101 = arith.constant 0 : index
    %64 = vector.load %arg7[%c1_99, %c0_100, %c0_101] : memref<18x18x128xbf16, #tpu.memory_space<vmem>>, vector<16x16x128xbf16>
    %c0_102 = arith.constant 0 : index
    %c0_103 = arith.constant 0 : index
    %c384_104 = arith.constant 384 : index
    %65 = vector.load %arg9[%c0_102, %c0_103, %c384_104] : memref<16x16x1152xbf16, #tpu.memory_space<vmem>>, vector<16x16x128xbf16>
    tpu.vector_store %arg9[%c0_102, %c0_103, %c384_104], %64 {strides = array<i32>} : memref<16x16x1152xbf16, #tpu.memory_space<vmem>>, vector<16x16x128xbf16>,
    %c1_105 = arith.constant 1 : index
    %c1_106 = arith.constant 1 : index
    %c0_107 = arith.constant 0 : index
    %66 = vector.load %arg7[%c1_105, %c1_106, %c0_107] : memref<18x18x128xbf16, #tpu.memory_space<vmem>>, vector<16x16x128xbf16>
    %c0_108 = arith.constant 0 : index
    %c0_109 = arith.constant 0 : index
    %c512_110 = arith.constant 512 : index
    %67 = vector.load %arg9[%c0_108, %c0_109, %c512_110] : memref<16x16x1152xbf16, #tpu.memory_space<vmem>>, vector<16x16x128xbf16>
    tpu.vector_store %arg9[%c0_108, %c0_109, %c512_110], %66 {strides = array<i32>} : memref<16x16x1152xbf16, #tpu.memory_space<vmem>>, vector<16x16x128xbf16>,
    %c1_111 = arith.constant 1 : index
    %c2_112 = arith.constant 2 : index
    %c0_113 = arith.constant 0 : index
    %68 = vector.load %arg7[%c1_111, %c2_112, %c0_113] : memref<18x18x128xbf16, #tpu.memory_space<vmem>>, vector<16x16x128xbf16>
    %c0_114 = arith.constant 0 : index
    %c0_115 = arith.constant 0 : index
    %c640_116 = arith.constant 640 : index
    %69 = vector.load %arg9[%c0_114, %c0_115, %c640_116] : memref<16x16x1152xbf16, #tpu.memory_space<vmem>>, vector<16x16x128xbf16>
    tpu.vector_store %arg9[%c0_114, %c0_115, %c640_116], %68 {strides = array<i32>} : memref<16x16x1152xbf16, #tpu.memory_space<vmem>>, vector<16x16x128xbf16>,
    %c2_117 = arith.constant 2 : index
    %c0_118 = arith.constant 0 : index
    %c0_119 = arith.constant 0 : index
    %70 = vector.load %arg7[%c2_117, %c0_118, %c0_119] : memref<18x18x128xbf16, #tpu.memory_space<vmem>>, vector<16x16x128xbf16>
    %c0_120 = arith.constant 0 : index
    %c0_121 = arith.constant 0 : index
    %c768_122 = arith.constant 768 : index
    %71 = vector.load %arg9[%c0_120, %c0_121, %c768_122] : memref<16x16x1152xbf16, #tpu.memory_space<vmem>>, vector<16x16x128xbf16>
    tpu.vector_store %arg9[%c0_120, %c0_121, %c768_122], %70 {strides = array<i32>} : memref<16x16x1152xbf16, #tpu.memory_space<vmem>>, vector<16x16x128xbf16>,
    %c2_123 = arith.constant 2 : index
    %c1_124 = arith.constant 1 : index
    %c0_125 = arith.constant 0 : index
    %72 = vector.load %arg7[%c2_123, %c1_124, %c0_125] : memref<18x18x128xbf16, #tpu.memory_space<vmem>>, vector<16x16x128xbf16>
    %c0_126 = arith.constant 0 : index
    %c0_127 = arith.constant 0 : index
    %c896_128 = arith.constant 896 : index
    %73 = vector.load %arg9[%c0_126, %c0_127, %c896_128] : memref<16x16x1152xbf16, #tpu.memory_space<vmem>>, vector<16x16x128xbf16>
    tpu.vector_store %arg9[%c0_126, %c0_127, %c896_128], %72 {strides = array<i32>} : memref<16x16x1152xbf16, #tpu.memory_space<vmem>>, vector<16x16x128xbf16>,
    %c2_129 = arith.constant 2 : index
    %c2_130 = arith.constant 2 : index
    %c0_131 = arith.constant 0 : index
    %74 = vector.load %arg7[%c2_129, %c2_130, %c0_131] : memref<18x18x128xbf16, #tpu.memory_space<vmem>>, vector<16x16x128xbf16>
    %c0_132 = arith.constant 0 : index
    %c0_133 = arith.constant 0 : index
    %c1024_134 = arith.constant 1024 : index
    %75 = vector.load %arg9[%c0_132, %c0_133, %c1024_134] : memref<16x16x1152xbf16, #tpu.memory_space<vmem>>, vector<16x16x128xbf16>
    tpu.vector_store %arg9[%c0_132, %c0_133, %c1024_134], %74 {strides = array<i32>} : memref<16x16x1152xbf16, #tpu.memory_space<vmem>>, vector<16x16x128xbf16>,
    %c0_135 = arith.constant 0 : index
    %c0_136 = arith.constant 0 : index
    %c0_137 = arith.constant 0 : index
    %76 = vector.load %arg9[%c0_135, %c0_136, %c0_137] : memref<16x16x1152xbf16, #tpu.memory_space<vmem>>, vector<16x16x1152xbf16>
    %77 = vector.shape_cast %76 : vector<16x16x1152xbf16> to vector<256x1152xbf16>
    %c0_138 = arith.constant 0 : index
    %c0_139 = arith.constant 0 : index
    %78 = vector.load %arg4[%c0_138, %c0_139] : memref<1152x128xbf16, #tpu.memory_space<vmem>>, vector<1152x128xbf16>
    %cst_140 = arith.constant dense<0.000000e+00> : vector<256x128xf32>
    %79 = tpu.matmul %77, %78, %cst_140 {dimension_numbers = #tpu.dot_dimension_numbers<[1], [0], [0], [1], [0, 0, 1, 1], [], []>} : vector<256x1152xbf16>, vector<1152x128xbf16>, vector<256x128xf32> -> vector<256x128xf32>
    %c0_141 = arith.constant 0 : index
    %c0_142 = arith.constant 0 : index
    %80 = vector.load %arg5[%c0_141, %c0_142] : memref<1x128xf32, #tpu.memory_space<vmem>>, vector<1x128xf32>
    %81 = vector.broadcast %80 : vector<1x128xf32> to vector<256x128xf32>
    %82 = arith.addf %79, %81 : vector<256x128xf32>
    %cst_143 = arith.constant 2.000000e+01 : f32
    %83 = vector.broadcast %cst_143 : f32 to vector<256x128xf32>
    %84 = arith.minimumf %82, %83 : vector<256x128xf32>
    %85 = math.exp %84 : vector<256x128xf32>
    %cst_144 = arith.constant 1.000000e+00 : f32
    %86 = vector.broadcast %cst_144 : f32 to vector<256x128xf32>
    %87 = arith.addf %86, %85 : vector<256x128xf32>
    %88 = arith.mulf %87, %87 : vector<256x128xf32>
    %cst_145 = arith.constant 1.000000e+00 : f32
    %89 = vector.broadcast %cst_145 : f32 to vector<256x128xf32>
    %90 = arith.subf %88, %89 : vector<256x128xf32>
    %91 = arith.mulf %82, %90 : vector<256x128xf32>
    %cst_146 = arith.constant 1.000000e+00 : f32
    %92 = vector.broadcast %cst_146 : f32 to vector<256x128xf32>
    %93 = arith.addf %88, %92 : vector<256x128xf32>
    %94 = tpu.reciprocal %93 {approx = true} : vector<256x128xf32> -> vector<256x128xf32>
    %95 = arith.mulf %91, %94 : vector<256x128xf32>
    %c0_147 = arith.constant 0 : index
    %c1_148 = arith.constant 1 : index
    %c1_149 = arith.constant 1 : index
    %c0_150 = arith.constant 0 : index
    %96 = vector.load %arg1[%c0_147, %c1_148, %c1_149, %c0_150] : memref<1x18x18x128xbf16, #tpu.memory_space<vmem>>, vector<1x16x16x128xbf16>
    %97 = vector.shape_cast %96 : vector<1x16x16x128xbf16> to vector<16x16x128xbf16>
    %98 = vector.shape_cast %97 : vector<16x16x128xbf16> to vector<256x128xbf16>
    %99 = arith.extf %98 : vector<256x128xbf16> to vector<256x128xf32>
    %100 = arith.addf %95, %99 : vector<256x128xf32>
    %cst_151 = arith.constant 2.000000e+01 : f32
    %101 = vector.broadcast %cst_151 : f32 to vector<256x128xf32>
    %102 = arith.minimumf %100, %101 : vector<256x128xf32>
    %103 = math.exp %102 : vector<256x128xf32>
    %cst_152 = arith.constant 1.000000e+00 : f32
    %104 = vector.broadcast %cst_152 : f32 to vector<256x128xf32>
    %105 = arith.addf %104, %103 : vector<256x128xf32>
    %106 = arith.mulf %105, %105 : vector<256x128xf32>
    %cst_153 = arith.constant 1.000000e+00 : f32
    %107 = vector.broadcast %cst_153 : f32 to vector<256x128xf32>
    %108 = arith.subf %106, %107 : vector<256x128xf32>
    %109 = arith.mulf %100, %108 : vector<256x128xf32>
    %cst_154 = arith.constant 1.000000e+00 : f32
    %110 = vector.broadcast %cst_154 : f32 to vector<256x128xf32>
    %111 = arith.addf %106, %110 : vector<256x128xf32>
    %112 = tpu.reciprocal %111 {approx = true} : vector<256x128xf32> -> vector<256x128xf32>
    %113 = arith.mulf %109, %112 : vector<256x128xf32>
    %114 = vector.shape_cast %113 : vector<256x128xf32> to vector<16x16x128xf32>
    %115 = arith.truncf %114 : vector<16x16x128xf32> to vector<16x16x128xbf16>
    %c0_155 = arith.constant 0 : index
    %c0_156 = arith.constant 0 : index
    %c0_157 = arith.constant 0 : index
    %c0_158 = arith.constant 0 : index
    %116 = vector.load %arg6[%c0_155, %c0_156, %c0_157, %c0_158] : memref<1x16x16x128xbf16, #tpu.memory_space<vmem>>, vector<1x16x16x128xbf16>
    %117 = vector.shape_cast %116 : vector<1x16x16x128xbf16> to vector<16x16x128xbf16>
    %118 = vector.shape_cast %115 : vector<16x16x128xbf16> to vector<1x16x16x128xbf16>
    tpu.vector_store %arg6[%c0_155, %c0_156, %c0_157, %c0_158], %118 {strides = array<i32>} : memref<1x16x16x128xbf16, #tpu.memory_space<vmem>>, vector<1x16x16x128xbf16>,
    return
  }
  func.func @transform_0(%arg0: i32) -> (i32, i32, i32, i32) {
    %c0_i32 = arith.constant 0 : i32
    %c0_i32_0 = arith.constant 0 : i32
    %c0_i32_1 = arith.constant 0 : i32
    %c0_i32_2 = arith.constant 0 : i32
    return %arg0, %c0_i32, %c0_i32_0, %c0_i32_1 : i32, i32, i32, i32
  }
  func.func @transform_1(%arg0: i32) -> (i32, i32) {
    %c0_i32 = arith.constant 0 : i32
    %c0_i32_0 = arith.constant 0 : i32
    %c0_i32_1 = arith.constant 0 : i32
    return %c0_i32, %c0_i32_0 : i32, i32
  }
  func.func @transform_2(%arg0: i32) -> (i32, i32) {
    %c0_i32 = arith.constant 0 : i32
    %c0_i32_0 = arith.constant 0 : i32
    %c0_i32_1 = arith.constant 0 : i32
    return %c0_i32, %c0_i32_0 : i32, i32
  }
  func.func @transform_3(%arg0: i32) -> (i32, i32) {
    %c0_i32 = arith.constant 0 : i32
    %c0_i32_0 = arith.constant 0 : i32
    %c0_i32_1 = arith.constant 0 : i32
    return %c0_i32, %c0_i32_0 : i32, i32
  }
  func.func @transform_4(%arg0: i32) -> (i32, i32) {
    %c0_i32 = arith.constant 0 : i32
    %c0_i32_0 = arith.constant 0 : i32
    %c0_i32_1 = arith.constant 0 : i32
    return %c0_i32, %c0_i32_0 : i32, i32
  }
  func.func @transform_5(%arg0: i32) -> (i32, i32, i32, i32) {
    %c0_i32 = arith.constant 0 : i32
    %c0_i32_0 = arith.constant 0 : i32
    %c0_i32_1 = arith.constant 0 : i32
    %c0_i32_2 = arith.constant 0 : i32
    return %arg0, %c0_i32, %c0_i32_0, %c0_i32_1 : i32, i32, i32, i32
  }
}

</mosaic_0001>

<llo_original>
// kernel: tpu_custom_call.1
$region0: #{tpu_custom_call.1}
  #allocation0 [shape = 'u32[]', space=smem, size = 0x4, offset = 0x4, fixed_abs, tag = 'smem constant byte address 0x4 - core index']
  #allocation1 [shape = 'u32[72,128]{1,0:T(1,128)}', space=vmem, size = 0x9000, scoped, tag = 'internal scratch']
  #allocation2 [shape = 'bf16[18,18,128]{2,1,0:T(8,128)(2,1)}', space=vmem, size = 0x1b000, scoped, tag = 'scratch operand']
  #allocation3 [shape = 'bf16[16,16,1152]{2,1,0:T(8,128)(2,1)}', space=vmem, size = 0x90000, scoped, tag = 'scratch operand']
  #allocation4 [shape = 'bf16[16,16,1152]{2,1,0:T(8,128)(2,1)}', space=vmem, size = 0x90000, scoped, tag = 'scratch operand']
  %s0 = inlined_call_operand.vmem [shape: bf16[2,18,18,128], index: 0, kind: input, shape index: {}]
  %s1 = inlined_call_operand.vmem [shape: bf16[1152,128], index: 1, kind: input, shape index: {}]
  %s2 = inlined_call_operand.vmem [shape: f32[1,128], index: 2, kind: input, shape index: {}]
  %s3 = inlined_call_operand.hbm [shape: bf16[1152,128], index: 3, kind: input, shape index: {}]
  %s4 = inlined_call_operand.vmem [shape: f32[1,128], index: 4, kind: input, shape index: {}]
  %s5 = inlined_call_operand.hbm [shape: bf16[2,16,16,128], index: 5, kind: output, shape index: {}]
  %s6 = sld [smem:[#allocation0]]
  $region57: #{tpu_custom_call.1} parent=0
    _
  %s8 = ssub.s32 1, %s6
  %s9 = scalar_select 0, %s8, %s6
  $region1: #{tpu_custom_call.1} parent=0
    #allocation5 [shape = 'u8[294912]{0}', space=vmem, size = 0x48000, scoped, tag = 'input window, operand 3, single buffered']
    #allocation6 [shape = 's32[2]{0}', space=sflag, size = 0x8, scoped, tag = 'scoped memory for tpu_custom_call.1']
    #allocation7 [shape = 's32[2]{0}', space=sflag, size = 0x8, scoped, tag = 'scoped memory for tpu_custom_call.1']
    #allocation8 [shape = 'u8[131072]{0}', space=vmem, size = 0x20000, scoped, tag = 'output window, operand 0']
    %10 = vsyncpa [#allocation6], 0
    %11 = vsyncpa [#allocation7], 0
    %s12 = scalar_lea.sflag [#allocation7], 1
    %13 = vsyncpa %s12, 0
    loop: start=0, step=1, limit=4
    $region2: #{tpu_custom_call.1} parent=1 // loop_pre_header
      _
    $region3: #{tpu_custom_call.1} parent=1 // loop_header
      %s15 = sphi 0, %s19
      %p16 = scmp.ge.s32.totalorder %s15, 4
      %s25 = sphi 0, %s27
      %s28 = sphi 0, %s25
      %s29 = sphi 0, %s28
      %s45 = sphi 0, %s29
      %s49 = sphi 0, %s49
      %s51 = sphi 0, %s49
      %s52 = sphi 0, %s51
      %s66 = sphi 0, %s52
      %s70 = sphi 0, %s70
      %s72 = sphi 0, %s70
      %s73 = sphi 0, %s72
      %s87 = sphi 0, %s73
      %s91 = sphi 0, %s91
      %s93 = sphi 0, %s91
      %s94 = sphi 0, %s93
      %s108 = sphi 0, %s94
      %s112 = sphi 0, %s112
      %s114 = sphi 0, %s112
      %s115 = sphi 0, %s114
      %s129 = sphi 0, %s115
      %s135 = sphi 0, %s137
      %s138 = sphi 0, %s135
      %s139 = sphi 0, %s138
      %s155 = sphi 0, %s139
    $region4: #{tpu_custom_call.1} parent=1 // loop_header_branch
      %18 = sbr.rel (%p16) target = $region8
    $region5: #{tpu_custom_call.1} parent=1 // loop_body
      %s20 = ssub.s32 %s15, 1
      %s21 = ssub.s32 %s15, 2
      %s22 = sadd.s32 %s15, 1
      %s23 = ssub.s32 %s15, %s22
      %p24 = scmp.eq.s32.totalorder %s23, 0
      %s26 = sadd.s32 %s25, 1
      %s27 = scalar_select %p24, %s25, %s26
      %p30 = pneg %p24
      %p31 = scmp.eq.s32.totalorder %s15, 1
      %p32 = por %p30, %p31
      %p33 = scmp.ne.s32.totalorder %s25, %s28
      %p34 = scmp.eq.s32.totalorder %s15, 0
      %p35 = por %p33, %p34
      %p36 = scmp.ne.s32.totalorder %s25, %s28
      %p37 = scmp.eq.s32.totalorder %s20, 1
      %p38 = por %p36, %p37
      %p39 = scmp.ne.s32.totalorder %s28, %s29
      %p40 = scmp.eq.s32.totalorder %s20, 0
      %p41 = por %p39, %p40
      %p42 = scmp.ne.s32.totalorder %s28, %s29
      %p43 = scmp.eq.s32.totalorder %s21, 1
      %p44 = por %p42, %p43
      %p46 = scmp.ne.s32.totalorder %s29, %s45
      %p47 = scmp.eq.s32.totalorder %s21, 0
      %p48 = por %p46, %p47
      %s50 = sadd.s32 %s49, 1
      %p53 = scmp.eq.s32.totalorder %s15, 1
      %p54 = scmp.ne.s32.totalorder %s49, %s51
      %p55 = scmp.eq.s32.totalorder %s15, 0
      %p56 = por %p54, %p55
      %p57 = scmp.ne.s32.totalorder %s49, %s51
      %p58 = scmp.eq.s32.totalorder %s20, 1
      %p59 = por %p57, %p58
      %p60 = scmp.ne.s32.totalorder %s51, %s52
      %p61 = scmp.eq.s32.totalorder %s20, 0
      %p62 = por %p60, %p61
      %p63 = scmp.ne.s32.totalorder %s51, %s52
      %p64 = scmp.eq.s32.totalorder %s21, 1
      %p65 = por %p63, %p64
      %p67 = scmp.ne.s32.totalorder %s52, %s66
      %p68 = scmp.eq.s32.totalorder %s21, 0
      %p69 = por %p67, %p68
      %s71 = sadd.s32 %s70, 1
      %p74 = scmp.eq.s32.totalorder %s15, 1
      %p75 = scmp.ne.s32.totalorder %s70, %s72
      %p76 = scmp.eq.s32.totalorder %s15, 0
      %p77 = por %p75, %p76
      %p78 = scmp.ne.s32.totalorder %s70, %s72
      %p79 = scmp.eq.s32.totalorder %s20, 1
      %p80 = por %p78, %p79
      %p81 = scmp.ne.s32.totalorder %s72, %s73
      %p82 = scmp.eq.s32.totalorder %s20, 0
      %p83 = por %p81, %p82
      %p84 = scmp.ne.s32.totalorder %s72, %s73
      %p85 = scmp.eq.s32.totalorder %s21, 1
      %p86 = por %p84, %p85
      %p88 = scmp.ne.s32.totalorder %s73, %s87
      %p89 = scmp.eq.s32.totalorder %s21, 0
      %p90 = por %p88, %p89
      %s92 = sadd.s32 %s91, 1
      %p95 = scmp.eq.s32.totalorder %s15, 1
      %p96 = scmp.ne.s32.totalorder %s91, %s93
      %p97 = scmp.eq.s32.totalorder %s15, 0
      %p98 = por %p96, %p97
      %p99 = scmp.ne.s32.totalorder %s91, %s93
      %p100 = scmp.eq.s32.totalorder %s20, 1
      %p101 = por %p99, %p100
      %p102 = scmp.ne.s32.totalorder %s93, %s94
      %p103 = scmp.eq.s32.totalorder %s20, 0
      %p104 = por %p102, %p103
      %p105 = scmp.ne.s32.totalorder %s93, %s94
      %p106 = scmp.eq.s32.totalorder %s21, 1
      %p107 = por %p105, %p106
      %p109 = scmp.ne.s32.totalorder %s94, %s108
      %p110 = scmp.eq.s32.totalorder %s21, 0
      %p111 = por %p109, %p110
      %s113 = sadd.s32 %s112, 1
      %p116 = scmp.eq.s32.totalorder %s15, 1
      %p117 = scmp.ne.s32.totalorder %s112, %s114
      %p118 = scmp.eq.s32.totalorder %s15, 0
      %p119 = por %p117, %p118
      %p120 = scmp.ne.s32.totalorder %s112, %s114
      %p121 = scmp.eq.s32.totalorder %s20, 1
      %p122 = por %p120, %p121
      %p123 = scmp.ne.s32.totalorder %s114, %s115
      %p124 = scmp.eq.s32.totalorder %s20, 0
      %p125 = por %p123, %p124
      %p126 = scmp.ne.s32.totalorder %s114, %s115
      %p127 = scmp.eq.s32.totalorder %s21, 1
      %p128 = por %p126, %p127
      %p130 = scmp.ne.s32.totalorder %s115, %s129
      %p131 = scmp.eq.s32.totalorder %s21, 0
      %p132 = por %p130, %p131
      %s133 = ssub.s32 %s15, %s22
      %p134 = scmp.eq.s32.totalorder %s133, 0
      %s136 = sadd.s32 %s135, 1
      %s137 = scalar_select %p134, %s135, %s136
      %p140 = pneg %p134
      %p141 = scmp.eq.s32.totalorder %s15, 1
      %p142 = por %p140, %p141
      %p143 = scmp.ne.s32.totalorder %s135, %s138
      %p144 = scmp.eq.s32.totalorder %s15, 0
      %p145 = por %p143, %p144
      %p146 = scmp.ne.s32.totalorder %s135, %s138
      %p147 = scmp.eq.s32.totalorder %s20, 1
      %p148 = por %p146, %p147
      %p149 = scmp.ne.s32.totalorder %s138, %s139
      %p150 = scmp.eq.s32.totalorder %s20, 0
      %p151 = por %p149, %p150
      %p152 = scmp.ne.s32.totalorder %s138, %s139
      %p153 = scmp.eq.s32.totalorder %s21, 1
      %p154 = por %p152, %p153
      %p156 = scmp.ne.s32.totalorder %s139, %s155
      %p157 = scmp.eq.s32.totalorder %s21, 0
      %p158 = por %p156, %p157
      %p159 = scmp.le.s32.totalorder 1, %s15
      %p160 = scmp.lt.s32.totalorder %s15, 3
      %p161 = pnand %p159, %p160
      %p162 = pneg %p161
      // Predicated region
      $region9: #{tpu_custom_call.1} parent=5 // pred_check
        _
      $region10: #{tpu_custom_call.1} parent=5 // pred_check_branch
        %164 = sbr.rel (%p161) target = $region12
      $region11: #{tpu_custom_call.1} parent=5 // pred_region
        %s165 = ssub.s32 %s15, 1
        // Predicated region
        $region13: #{tpu_custom_call.1} parent=11 // pred_check
          %p166 = pneg %p62
        $region14: #{tpu_custom_call.1} parent=11 // pred_check_branch
          %168 = sbr.rel (%p166) target = $region16
        $region15: #{tpu_custom_call.1} parent=11 // pred_region
          _
        $region16: #{tpu_custom_call.1} parent=11 // pred_fallthru
          _
        // Predicated region
        $region17: #{tpu_custom_call.1} parent=11 // pred_check
          %p169 = pneg %p83
        $region18: #{tpu_custom_call.1} parent=11 // pred_check_branch
          %171 = sbr.rel (%p169) target = $region20
        $region19: #{tpu_custom_call.1} parent=11 // pred_region
          _
        $region20: #{tpu_custom_call.1} parent=11 // pred_fallthru
          _
        // Predicated region
        $region21: #{tpu_custom_call.1} parent=11 // pred_check
          %p172 = pneg %p104
        $region22: #{tpu_custom_call.1} parent=11 // pred_check_branch
          %174 = sbr.rel (%p172) target = $region24
        $region23: #{tpu_custom_call.1} parent=11 // pred_region
          %176 = vsyncadd [#allocation6], 0
          %s177 = sshll.u32 %s3, 4
          %s178 = int_to_ptr.hbm [resolvable:$true] %s177
          %s179 = sshll.u32 [#allocation5], 4
          %s180 = int_to_ptr.vmem [resolvable:$true] %s179
          %185 = dma.hbm_to_vmem [thread:$0]  %s178, 9216, %s180, [#allocation6], 64, 64, 4
        $region24: #{tpu_custom_call.1} parent=11 // pred_fallthru
          _
        // Predicated region
        $region25: #{tpu_custom_call.1} parent=11 // pred_check
          %p186 = pneg %p125
        $region26: #{tpu_custom_call.1} parent=11 // pred_check_branch
          %188 = sbr.rel (%p186) target = $region28
        $region27: #{tpu_custom_call.1} parent=11 // pred_region
          _
        $region28: #{tpu_custom_call.1} parent=11 // pred_fallthru
          _
      $region12: #{tpu_custom_call.1} parent=5 // pred_fallthru
        _
      %p189 = scmp.lt.s32.totalorder %s15, 2
      // Predicated region
      $region29: #{tpu_custom_call.1} parent=5 // pred_check
        %p190 = pneg %p189
      $region30: #{tpu_custom_call.1} parent=5 // pred_check_branch
        %192 = sbr.rel (%p190) target = $region32
      $region31: #{tpu_custom_call.1} parent=5 // pred_region
        // Predicated region
        $region33: #{tpu_custom_call.1} parent=31 // pred_check
          %p193 = pneg %p35
        $region34: #{tpu_custom_call.1} parent=31 // pred_check_branch
          %195 = sbr.rel (%p193) target = $region36
        $region35: #{tpu_custom_call.1} parent=31 // pred_region
          %p196 = scmp.lt.s32.totalorder %s15, 1
          %s197 = scalar_select %p196, %s15, 1
          %s198 = smul.addr %s197, 54
          %s199 = smul.addr %s198, 4
          %s200 = scalar_lea.vmem %s0, %s199
        $region36: #{tpu_custom_call.1} parent=31 // pred_fallthru
          _
      $region32: #{tpu_custom_call.1} parent=5 // pred_fallthru
        _
      %p201 = scmp.le.s32.totalorder 1, %s15
      %p202 = scmp.lt.s32.totalorder %s15, 3
      %p203 = pnand %p201, %p202
      %p204 = pneg %p203
      // Predicated region
      $region37: #{tpu_custom_call.1} parent=5 // pred_check
        _
      $region38: #{tpu_custom_call.1} parent=5 // pred_check_branch
        %206 = sbr.rel (%p203) target = $region40
      $region39: #{tpu_custom_call.1} parent=5 // pred_region
        %s207 = ssub.s32 %s15, 1
        // Predicated region
        $region41: #{tpu_custom_call.1} parent=39 // pred_check
          %p208 = pneg %p104
        $region42: #{tpu_custom_call.1} parent=39 // pred_check_branch
          %210 = sbr.rel (%p208) target = $region44
        $region43: #{tpu_custom_call.1} parent=39 // pred_region
          %212 = dma.done [#allocation6], 9216
        $region44: #{tpu_custom_call.1} parent=39 // pred_fallthru
          _
        %p213 = scmp.lt.s32.totalorder %s20, 1
        %s214 = scalar_select %p213, %s20, 1
        %s215 = smul.addr %s214, 54
        %s216 = smul.addr %s215, 4
        %s217 = scalar_lea.vmem %s0, %s216
        %p218 = pneg %p41
        %p219 = pneg %p38
        %p220 = pneg %p62
        %p221 = pneg %p59
        %p222 = pneg %p83
        %p223 = pneg %p80
        %p224 = pneg %p104
        %p225 = pneg %p101
        %p226 = pneg %p125
        %p227 = pneg %p122
        %p228 = pneg %p151
        %p229 = pneg %p148
        %s230 = sand.u32 %s138, 1
        %s231 = scalar_lea.sflag [#allocation7], %s230
        %s232 = sand.u32 %s138, 1
        %s233 = smul.addr %s232, 128
        %s234 = scalar_lea.vmem [#allocation8], %s233
        %p235 = scmp.lt.s32.totalorder %s20, 1
        %s236 = scalar_select %p235, %s20, 1
        %s237 = smul.addr %s236, 54
        %s238 = smul.addr %s237, 4
        %s239 = scalar_lea.vmem %s0, %s238
        %v241 = vld [vmem:[%s239] sm:$0xf]
        %v242 = vld [vmem:[%s239 + $0x4] sm:$0xf]
        %v243 = vld [vmem:[%s239 + $0xc] sm:$0xf]
        %v244 = vld [vmem:[%s239 + $0x10] sm:$0xf]
        %v245 = vld [vmem:[%s239 + $0x18] sm:$0xf]
        %v246 = vld [vmem:[%s239 + $0x1c] sm:$0xf]
        %v247 = vld [vmem:[%s239 + $0x24] sm:$0xf]
        %v248 = vld [vmem:[%s239 + $0x28] sm:$0xf]
        %v249 = vld [vmem:[%s239 + $0x30] sm:$0xf]
        %v250 = vld [vmem:[%s239 + $0x34] sm:$0xf]
        %v251 = vld [vmem:[%s239 + $0x3c] sm:$0xf]
        %v252 = vld [vmem:[%s239 + $0x40] sm:$0xf]
        %v253 = vld [vmem:[%s239 + $0x48] sm:$0xf]
        %v254 = vld [vmem:[%s239 + $0x4c] sm:$0xf]
        %v255 = vld [vmem:[%s239 + $0x54] sm:$0xf]
        %v256 = vld [vmem:[%s239 + $0x58] sm:$0xf]
        %v257 = vld [vmem:[%s239 + $0x60] sm:$0xf]
        %v258 = vld [vmem:[%s239 + $0x64] sm:$0xf]
        %v259 = vld [vmem:[%s239 + $0x6c] sm:$0xf]
        %v260 = vld [vmem:[%s239 + $0x70] sm:$0xf]
        %v261 = vld [vmem:[%s239 + $0x78] sm:$0xf]
        %v262 = vld [vmem:[%s239 + $0x7c] sm:$0xf]
        %v263 = vld [vmem:[%s239 + $0x84] sm:$0xf]
        %v264 = vld [vmem:[%s239 + $0x88] sm:$0xf]
        %v265 = vld [vmem:[%s239 + $0x90] sm:$0xf]
        %v266 = vld [vmem:[%s239 + $0x94] sm:$0xf]
        %v267 = vld [vmem:[%s239 + $0x9c] sm:$0xf]
        %v268 = vld [vmem:[%s239 + $0xa0] sm:$0xf]
        %v269 = vld [vmem:[%s239 + $0xa8] sm:$0xf]
        %v270 = vld [vmem:[%s239 + $0xac] sm:$0xf]
        %v271 = vld [vmem:[%s239 + $0xb4] sm:$0xf]
        %v272 = vld [vmem:[%s239 + $0xb8] sm:$0xf]
        %273 = vst [vmem:[#allocation3] sm:$0xf] %v241
        %274 = vst [vmem:[#allocation3 + $0x24] sm:$0xf] %v242
        %275 = vst [vmem:[#allocation3 + $0x48] sm:$0xf] %v243
        %276 = vst [vmem:[#allocation3 + $0x6c] sm:$0xf] %v244
        %277 = vst [vmem:[#allocation3 + $0x90] sm:$0xf] %v245
        %278 = vst [vmem:[#allocation3 + $0xb4] sm:$0xf] %v246
        %279 = vst [vmem:[#allocation3 + $0xd8] sm:$0xf] %v247
        %280 = vst [vmem:[#allocation3 + $0xfc] sm:$0xf] %v248
        %281 = vst [vmem:[#allocation3 + $0x120] sm:$0xf] %v249
        %282 = vst [vmem:[#allocation3 + $0x144] sm:$0xf] %v250
        %283 = vst [vmem:[#allocation3 + $0x168] sm:$0xf] %v251
        %284 = vst [vmem:[#allocation3 + $0x18c] sm:$0xf] %v252
        %285 = vst [vmem:[#allocation3 + $0x1b0] sm:$0xf] %v253
        %286 = vst [vmem:[#allocation3 + $0x1d4] sm:$0xf] %v254
        %287 = vst [vmem:[#allocation3 + $0x1f8] sm:$0xf] %v255
        %288 = vst [vmem:[#allocation3 + $0x21c] sm:$0xf] %v256
        %289 = vst [vmem:[#allocation3 + $0x240] sm:$0xf] %v257
        %290 = vst [vmem:[#allocation3 + $0x264] sm:$0xf] %v258
        %291 = vst [vmem:[#allocation3 + $0x288] sm:$0xf] %v259
        %292 = vst [vmem:[#allocation3 + $0x2ac] sm:$0xf] %v260
        %293 = vst [vmem:[#allocation3 + $0x2d0] sm:$0xf] %v261
        %294 = vst [vmem:[#allocation3 + $0x2f4] sm:$0xf] %v262
        %295 = vst [vmem:[#allocation3 + $0x318] sm:$0xf] %v263
        %296 = vst [vmem:[#allocation3 + $0x33c] sm:$0xf] %v264
        %297 = vst [vmem:[#allocation3 + $0x360] sm:$0xf] %v265
        %298 = vst [vmem:[#allocation3 + $0x384] sm:$0xf] %v266
        %299 = vst [vmem:[#allocation3 + $0x3a8] sm:$0xf] %v267
        %300 = vst [vmem:[#allocation3 + $0x3cc] sm:$0xf] %v268
        %301 = vst [vmem:[#allocation3 + $0x3f0] sm:$0xf] %v269
        %302 = vst [vmem:[#allocation3 + $0x414] sm:$0xf] %v270
        %303 = vst [vmem:[#allocation3 + $0x438] sm:$0xf] %v271
        %304 = vst [vmem:[#allocation3 + $0x45c] sm:$0xf] %v272
        %v305 = vld [vmem:[%s239] sm:$0xf]
        %v306 = vld [vmem:[%s239 + $0x4] sm:$0xf]
        %v307 = vld [vmem:[%s239 + $0x8] sm:$0x1]
        %v308 = vld [vmem:[%s239 + $0xc] sm:$0xf]
        %v309 = vld [vmem:[%s239 + $0x10] sm:$0xf]
        %v310 = vld [vmem:[%s239 + $0x14] sm:$0x1]
        %v311 = vld [vmem:[%s239 + $0x18] sm:$0xf]
        %v312 = vld [vmem:[%s239 + $0x1c] sm:$0xf]
        %v313 = vld [vmem:[%s239 + $0x20] sm:$0x1]
        %v314 = vld [vmem:[%s239 + $0x24] sm:$0xf]
        %v315 = vld [vmem:[%s239 + $0x28] sm:$0xf]
        %v316 = vld [vmem:[%s239 + $0x2c] sm:$0x1]
        %v317 = vld [vmem:[%s239 + $0x30] sm:$0xf]
        %v318 = vld [vmem:[%s239 + $0x34] sm:$0xf]
        %v319 = vld [vmem:[%s239 + $0x38] sm:$0x1]
        %v320 = vld [vmem:[%s239 + $0x3c] sm:$0xf]
        %v321 = vld [vmem:[%s239 + $0x40] sm:$0xf]
        %v322 = vld [vmem:[%s239 + $0x44] sm:$0x1]
        %v323 = vld [vmem:[%s239 + $0x48] sm:$0xf]
        %v324 = vld [vmem:[%s239 + $0x4c] sm:$0xf]
        %v325 = vld [vmem:[%s239 + $0x50] sm:$0x1]
        %v326 = vld [vmem:[%s239 + $0x54] sm:$0xf]
        %v327 = vld [vmem:[%s239 + $0x58] sm:$0xf]
        %v328 = vld [vmem:[%s239 + $0x5c] sm:$0x1]
        %v329 = vld [vmem:[%s239 + $0x60] sm:$0xf]
        %v330 = vld [vmem:[%s239 + $0x64] sm:$0xf]
        %v331 = vld [vmem:[%s239 + $0x68] sm:$0x1]
        %v332 = vld [vmem:[%s239 + $0x6c] sm:$0xf]
        %v333 = vld [vmem:[%s239 + $0x70] sm:$0xf]
        %v334 = vld [vmem:[%s239 + $0x74] sm:$0x1]
        %v335 = vld [vmem:[%s239 + $0x78] sm:$0xf]
        %v336 = vld [vmem:[%s239 + $0x7c] sm:$0xf]
        %v337 = vld [vmem:[%s239 + $0x80] sm:$0x1]
        %v338 = vld [vmem:[%s239 + $0x84] sm:$0xf]
        %v339 = vld [vmem:[%s239 + $0x88] sm:$0xf]
        %v340 = vld [vmem:[%s239 + $0x8c] sm:$0x1]
        %v341 = vld [vmem:[%s239 + $0x90] sm:$0xf]
        %v342 = vld [vmem:[%s239 + $0x94] sm:$0xf]
        %v343 = vld [vmem:[%s239 + $0x98] sm:$0x1]
        %v344 = vld [vmem:[%s239 + $0x9c] sm:$0xf]
        %v345 = vld [vmem:[%s239 + $0xa0] sm:$0xf]
        %v346 = vld [vmem:[%s239 + $0xa4] sm:$0x1]
        %v347 = vld [vmem:[%s239 + $0xa8] sm:$0xf]
        %v348 = vld [vmem:[%s239 + $0xac] sm:$0xf]
        %v349 = vld [vmem:[%s239 + $0xb0] sm:$0x1]
        %v350 = vld [vmem:[%s239 + $0xb4] sm:$0xf]
        %v351 = vld [vmem:[%s239 + $0xb8] sm:$0xf]
        %v352 = vld [vmem:[%s239 + $0xbc] sm:$0x1]
        %vm353 = vsmask.f32 3328
        %vm354 = vsmask.f32 7440
        %vm355 = vmor %vm353, %vm354
        %v357 = vshrl.u32 %v305, 16
        %v359 = vrot.slane %v357, 4
        %v360 = vshll.u32 %v305, 16
        %v362 = vrot.slane %v360, 5
        %v363 = vor.u32 %v359, %v362
        %v364 = vrot.slane %v363, 4
        %v366 = vshll.u32 %v306, 16
        %v368 = vrot.slane %v366, 5
        %v369 = vsel %vm355, %v364, %v368
        %v370 = vshrl.u32 %v306, 16
        %v372 = vrot.slane %v370, 4
        %v373 = vor.u32 %v372, %v368
        %v374 = vrot.slane %v373, 4
        %v376 = vshll.u32 %v307, 16
        %v378 = vrot.slane %v376, 5
        %v379 = vsel %vm355, %v374, %v378
        %v381 = vshrl.u32 %v308, 16
        %v383 = vrot.slane %v381, 4
        %v384 = vshll.u32 %v308, 16
        %v386 = vrot.slane %v384, 5
        %v387 = vor.u32 %v383, %v386
        %v388 = vrot.slane %v387, 4
        %v390 = vshll.u32 %v309, 16
        %v392 = vrot.slane %v390, 5
        %v393 = vsel %vm355, %v388, %v392
        %v394 = vshrl.u32 %v309, 16
        %v396 = vrot.slane %v394, 4
        %v397 = vor.u32 %v396, %v392
        %v398 = vrot.slane %v397, 4
        %v400 = vshll.u32 %v310, 16
        %v402 = vrot.slane %v400, 5
        %v403 = vsel %vm355, %v398, %v402
        %v405 = vshrl.u32 %v311, 16
        %v407 = vrot.slane %v405, 4
        %v408 = vshll.u32 %v311, 16
        %v410 = vrot.slane %v408, 5
        %v411 = vor.u32 %v407, %v410
        %v412 = vrot.slane %v411, 4
        %v414 = vshll.u32 %v312, 16
        %v416 = vrot.slane %v414, 5
        %v417 = vsel %vm355, %v412, %v416
        %v418 = vshrl.u32 %v312, 16
        %v420 = vrot.slane %v418, 4
        %v421 = vor.u32 %v420, %v416
        %v422 = vrot.slane %v421, 4
        %v424 = vshll.u32 %v313, 16
        %v426 = vrot.slane %v424, 5
        %v427 = vsel %vm355, %v422, %v426
        %v429 = vshrl.u32 %v314, 16
        %v431 = vrot.slane %v429, 4
        %v432 = vshll.u32 %v314, 16
        %v434 = vrot.slane %v432, 5
        %v435 = vor.u32 %v431, %v434
        %v436 = vrot.slane %v435, 4
        %v438 = vshll.u32 %v315, 16
        %v440 = vrot.slane %v438, 5
        %v441 = vsel %vm355, %v436, %v440
        %v442 = vshrl.u32 %v315, 16
        %v444 = vrot.slane %v442, 4
        %v445 = vor.u32 %v444, %v440
        %v446 = vrot.slane %v445, 4
        %v448 = vshll.u32 %v316, 16
        %v450 = vrot.slane %v448, 5
        %v451 = vsel %vm355, %v446, %v450
        %v453 = vshrl.u32 %v317, 16
        %v455 = vrot.slane %v453, 4
        %v456 = vshll.u32 %v317, 16
        %v458 = vrot.slane %v456, 5
        %v459 = vor.u32 %v455, %v458
        %v460 = vrot.slane %v459, 4
        %v462 = vshll.u32 %v318, 16
        %v464 = vrot.slane %v462, 5
        %v465 = vsel %vm355, %v460, %v464
        %v466 = vshrl.u32 %v318, 16
        %v468 = vrot.slane %v466, 4
        %v469 = vor.u32 %v468, %v464
        %v470 = vrot.slane %v469, 4
        %v472 = vshll.u32 %v319, 16
        %v474 = vrot.slane %v472, 5
        %v475 = vsel %vm355, %v470, %v474
        %v477 = vshrl.u32 %v320, 16
        %v479 = vrot.slane %v477, 4
        %v480 = vshll.u32 %v320, 16
        %v482 = vrot.slane %v480, 5
        %v483 = vor.u32 %v479, %v482
        %v484 = vrot.slane %v483, 4
        %v486 = vshll.u32 %v321, 16
        %v488 = vrot.slane %v486, 5
        %v489 = vsel %vm355, %v484, %v488
        %v490 = vshrl.u32 %v321, 16
        %v492 = vrot.slane %v490, 4
        %v493 = vor.u32 %v492, %v488
        %v494 = vrot.slane %v493, 4
        %v496 = vshll.u32 %v322, 16
        %v498 = vrot.slane %v496, 5
        %v499 = vsel %vm355, %v494, %v498
        %v501 = vshrl.u32 %v323, 16
        %v503 = vrot.slane %v501, 4
        %v504 = vshll.u32 %v323, 16
        %v506 = vrot.slane %v504, 5
        %v507 = vor.u32 %v503, %v506
        %v508 = vrot.slane %v507, 4
        %v510 = vshll.u32 %v324, 16
        %v512 = vrot.slane %v510, 5
        %v513 = vsel %vm355, %v508, %v512
        %v514 = vshrl.u32 %v324, 16
        %v516 = vrot.slane %v514, 4
        %v517 = vor.u32 %v516, %v512
        %v518 = vrot.slane %v517, 4
        %v520 = vshll.u32 %v325, 16
        %v522 = vrot.slane %v520, 5
        %v523 = vsel %vm355, %v518, %v522
        %v525 = vshrl.u32 %v326, 16
        %v527 = vrot.slane %v525, 4
        %v528 = vshll.u32 %v326, 16
        %v530 = vrot.slane %v528, 5
        %v531 = vor.u32 %v527, %v530
        %v532 = vrot.slane %v531, 4
        %v534 = vshll.u32 %v327, 16
        %v536 = vrot.slane %v534, 5
        %v537 = vsel %vm355, %v532, %v536
        %v538 = vshrl.u32 %v327, 16
        %v540 = vrot.slane %v538, 4
        %v541 = vor.u32 %v540, %v536
        %v542 = vrot.slane %v541, 4
        %v544 = vshll.u32 %v328, 16
        %v546 = vrot.slane %v544, 5
        %v547 = vsel %vm355, %v542, %v546
        %v549 = vshrl.u32 %v329, 16
        %v551 = vrot.slane %v549, 4
        %v552 = vshll.u32 %v329, 16
        %v554 = vrot.slane %v552, 5
        %v555 = vor.u32 %v551, %v554
        %v556 = vrot.slane %v555, 4
        %v558 = vshll.u32 %v330, 16
        %v560 = vrot.slane %v558, 5
        %v561 = vsel %vm355, %v556, %v560
        %v562 = vshrl.u32 %v330, 16
        %v564 = vrot.slane %v562, 4
        %v565 = vor.u32 %v564, %v560
        %v566 = vrot.slane %v565, 4
        %v568 = vshll.u32 %v331, 16
        %v570 = vrot.slane %v568, 5
        %v571 = vsel %vm355, %v566, %v570
        %v573 = vshrl.u32 %v332, 16
        %v575 = vrot.slane %v573, 4
        %v576 = vshll.u32 %v332, 16
        %v578 = vrot.slane %v576, 5
        %v579 = vor.u32 %v575, %v578
        %v580 = vrot.slane %v579, 4
        %v582 = vshll.u32 %v333, 16
        %v584 = vrot.slane %v582, 5
        %v585 = vsel %vm355, %v580, %v584
        %v586 = vshrl.u32 %v333, 16
        %v588 = vrot.slane %v586, 4
        %v589 = vor.u32 %v588, %v584
        %v590 = vrot.slane %v589, 4
        %v592 = vshll.u32 %v334, 16
        %v594 = vrot.slane %v592, 5
        %v595 = vsel %vm355, %v590, %v594
        %v597 = vshrl.u32 %v335, 16
        %v599 = vrot.slane %v597, 4
        %v600 = vshll.u32 %v335, 16
        %v602 = vrot.slane %v600, 5
        %v603 = vor.u32 %v599, %v602
        %v604 = vrot.slane %v603, 4
        %v606 = vshll.u32 %v336, 16
        %v608 = vrot.slane %v606, 5
        %v609 = vsel %vm355, %v604, %v608
        %v610 = vshrl.u32 %v336, 16
        %v612 = vrot.slane %v610, 4
        %v613 = vor.u32 %v612, %v608
        %v614 = vrot.slane %v613, 4
        %v616 = vshll.u32 %v337, 16
        %v618 = vrot.slane %v616, 5
        %v619 = vsel %vm355, %v614, %v618
        %v621 = vshrl.u32 %v338, 16
        %v623 = vrot.slane %v621, 4
        %v624 = vshll.u32 %v338, 16
        %v626 = vrot.slane %v624, 5
        %v627 = vor.u32 %v623, %v626
        %v628 = vrot.slane %v627, 4
        %v630 = vshll.u32 %v339, 16
        %v632 = vrot.slane %v630, 5
        %v633 = vsel %vm355, %v628, %v632
        %v634 = vshrl.u32 %v339, 16
        %v636 = vrot.slane %v634, 4
        %v637 = vor.u32 %v636, %v632
        %v638 = vrot.slane %v637, 4
        %v640 = vshll.u32 %v340, 16
        %v642 = vrot.slane %v640, 5
        %v643 = vsel %vm355, %v638, %v642
        %v645 = vshrl.u32 %v341, 16
        %v647 = vrot.slane %v645, 4
        %v648 = vshll.u32 %v341, 16
        %v650 = vrot.slane %v648, 5
        %v651 = vor.u32 %v647, %v650
        %v652 = vrot.slane %v651, 4
        %v654 = vshll.u32 %v342, 16
        %v656 = vrot.slane %v654, 5
        %v657 = vsel %vm355, %v652, %v656
        %v658 = vshrl.u32 %v342, 16
        %v660 = vrot.slane %v658, 4
        %v661 = vor.u32 %v660, %v656
        %v662 = vrot.slane %v661, 4
        %v664 = vshll.u32 %v343, 16
        %v666 = vrot.slane %v664, 5
        %v667 = vsel %vm355, %v662, %v666
        %v669 = vshrl.u32 %v344, 16
        %v671 = vrot.slane %v669, 4
        %v672 = vshll.u32 %v344, 16
        %v674 = vrot.slane %v672, 5
        %v675 = vor.u32 %v671, %v674
        %v676 = vrot.slane %v675, 4
        %v678 = vshll.u32 %v345, 16
        %v680 = vrot.slane %v678, 5
        %v681 = vsel %vm355, %v676, %v680
        %v682 = vshrl.u32 %v345, 16
        %v684 = vrot.slane %v682, 4
        %v685 = vor.u32 %v684, %v680
        %v686 = vrot.slane %v685, 4
        %v688 = vshll.u32 %v346, 16
        %v690 = vrot.slane %v688, 5
        %v691 = vsel %vm355, %v686, %v690
        %v693 = vshrl.u32 %v347, 16
        %v695 = vrot.slane %v693, 4
        %v696 = vshll.u32 %v347, 16
        %v698 = vrot.slane %v696, 5
        %v699 = vor.u32 %v695, %v698
        %v700 = vrot.slane %v699, 4
        %v702 = vshll.u32 %v348, 16
        %v704 = vrot.slane %v702, 5
        %v705 = vsel %vm355, %v700, %v704
        %v706 = vshrl.u32 %v348, 16
        %v708 = vrot.slane %v706, 4
        %v709 = vor.u32 %v708, %v704
        %v710 = vrot.slane %v709, 4
        %v712 = vshll.u32 %v349, 16
        %v714 = vrot.slane %v712, 5
        %v715 = vsel %vm355, %v710, %v714
        %v717 = vshrl.u32 %v350, 16
        %v719 = vrot.slane %v717, 4
        %v720 = vshll.u32 %v350, 16
        %v722 = vrot.slane %v720, 5
        %v723 = vor.u32 %v719, %v722
        %v724 = vrot.slane %v723, 4
        %v726 = vshll.u32 %v351, 16
        %v728 = vrot.slane %v726, 5
        %v729 = vsel %vm355, %v724, %v728
        %v730 = vshrl.u32 %v351, 16
        %v732 = vrot.slane %v730, 4
        %v733 = vor.u32 %v732, %v728
        %v734 = vrot.slane %v733, 4
        %v736 = vshll.u32 %v352, 16
        %v738 = vrot.slane %v736, 5
        %v739 = vsel %vm355, %v734, %v738
        %772 = vst [vmem:[#allocation3 + $0x4] sm:$0xf] %v369
        %773 = vst [vmem:[#allocation3 + $0x28] sm:$0xf] %v379
        %774 = vst [vmem:[#allocation3 + $0x4c] sm:$0xf] %v393
        %775 = vst [vmem:[#allocation3 + $0x70] sm:$0xf] %v403
        %776 = vst [vmem:[#allocation3 + $0x94] sm:$0xf] %v417
        %777 = vst [vmem:[#allocation3 + $0xb8] sm:$0xf] %v427
        %778 = vst [vmem:[#allocation3 + $0xdc] sm:$0xf] %v441
        %779 = vst [vmem:[#allocation3 + $0x100] sm:$0xf] %v451
        %780 = vst [vmem:[#allocation3 + $0x124] sm:$0xf] %v465
        %781 = vst [vmem:[#allocation3 + $0x148] sm:$0xf] %v475
        %782 = vst [vmem:[#allocation3 + $0x16c] sm:$0xf] %v489
        %783 = vst [vmem:[#allocation3 + $0x190] sm:$0xf] %v499
        %784 = vst [vmem:[#allocation3 + $0x1b4] sm:$0xf] %v513
        %785 = vst [vmem:[#allocation3 + $0x1d8] sm:$0xf] %v523
        %786 = vst [vmem:[#allocation3 + $0x1fc] sm:$0xf] %v537
        %787 = vst [vmem:[#allocation3 + $0x220] sm:$0xf] %v547
        %788 = vst [vmem:[#allocation3 + $0x244] sm:$0xf] %v561
        %789 = vst [vmem:[#allocation3 + $0x268] sm:$0xf] %v571
        %790 = vst [vmem:[#allocation3 + $0x28c] sm:$0xf] %v585
        %791 = vst [vmem:[#allocation3 + $0x2b0] sm:$0xf] %v595
        %792 = vst [vmem:[#allocation3 + $0x2d4] sm:$0xf] %v609
        %793 = vst [vmem:[#allocation3 + $0x2f8] sm:$0xf] %v619
        %794 = vst [vmem:[#allocation3 + $0x31c] sm:$0xf] %v633
        %795 = vst [vmem:[#allocation3 + $0x340] sm:$0xf] %v643
        %796 = vst [vmem:[#allocation3 + $0x364] sm:$0xf] %v657
        %797 = vst [vmem:[#allocation3 + $0x388] sm:$0xf] %v667
        %798 = vst [vmem:[#allocation3 + $0x3ac] sm:$0xf] %v681
        %799 = vst [vmem:[#allocation3 + $0x3d0] sm:$0xf] %v691
        %800 = vst [vmem:[#allocation3 + $0x3f4] sm:$0xf] %v705
        %801 = vst [vmem:[#allocation3 + $0x418] sm:$0xf] %v715
        %802 = vst [vmem:[#allocation3 + $0x43c] sm:$0xf] %v729
        %803 = vst [vmem:[#allocation3 + $0x460] sm:$0xf] %v739
        %v804 = vld [vmem:[%s239] sm:$0xe]
        %v805 = vld [vmem:[%s239 + $0x4] sm:$0xf]
        %v806 = vld [vmem:[%s239 + $0x8] sm:$0x1]
        %v807 = vld [vmem:[%s239 + $0xc] sm:$0xe]
        %v808 = vld [vmem:[%s239 + $0x10] sm:$0xf]
        %v809 = vld [vmem:[%s239 + $0x14] sm:$0x1]
        %v810 = vld [vmem:[%s239 + $0x18] sm:$0xe]
        %v811 = vld [vmem:[%s239 + $0x1c] sm:$0xf]
        %v812 = vld [vmem:[%s239 + $0x20] sm:$0x1]
        %v813 = vld [vmem:[%s239 + $0x24] sm:$0xe]
        %v814 = vld [vmem:[%s239 + $0x28] sm:$0xf]
        %v815 = vld [vmem:[%s239 + $0x2c] sm:$0x1]
        %v816 = vld [vmem:[%s239 + $0x30] sm:$0xe]
        %v817 = vld [vmem:[%s239 + $0x34] sm:$0xf]
        %v818 = vld [vmem:[%s239 + $0x38] sm:$0x1]
        %v819 = vld [vmem:[%s239 + $0x3c] sm:$0xe]
        %v820 = vld [vmem:[%s239 + $0x40] sm:$0xf]
        %v821 = vld [vmem:[%s239 + $0x44] sm:$0x1]
        %v822 = vld [vmem:[%s239 + $0x48] sm:$0xe]
        %v823 = vld [vmem:[%s239 + $0x4c] sm:$0xf]
        %v824 = vld [vmem:[%s239 + $0x50] sm:$0x1]
        %v825 = vld [vmem:[%s239 + $0x54] sm:$0xe]
        %v826 = vld [vmem:[%s239 + $0x58] sm:$0xf]
        %v827 = vld [vmem:[%s239 + $0x5c] sm:$0x1]
        %v828 = vld [vmem:[%s239 + $0x60] sm:$0xe]
        %v829 = vld [vmem:[%s239 + $0x64] sm:$0xf]
        %v830 = vld [vmem:[%s239 + $0x68] sm:$0x1]
        %v831 = vld [vmem:[%s239 + $0x6c] sm:$0xe]
        %v832 = vld [vmem:[%s239 + $0x70] sm:$0xf]
        %v833 = vld [vmem:[%s239 + $0x74] sm:$0x1]
        %v834 = vld [vmem:[%s239 + $0x78] sm:$0xe]
        %v835 = vld [vmem:[%s239 + $0x7c] sm:$0xf]
        %v836 = vld [vmem:[%s239 + $0x80] sm:$0x1]
        %v837 = vld [vmem:[%s239 + $0x84] sm:$0xe]
        %v838 = vld [vmem:[%s239 + $0x88] sm:$0xf]
        %v839 = vld [vmem:[%s239 + $0x8c] sm:$0x1]
        %v840 = vld [vmem:[%s239 + $0x90] sm:$0xe]
        %v841 = vld [vmem:[%s239 + $0x94] sm:$0xf]
        %v842 = vld [vmem:[%s239 + $0x98] sm:$0x1]
        %v843 = vld [vmem:[%s239 + $0x9c] sm:$0xe]
        %v844 = vld [vmem:[%s239 + $0xa0] sm:$0xf]
        %v845 = vld [vmem:[%s239 + $0xa4] sm:$0x1]
        %v846 = vld [vmem:[%s239 + $0xa8] sm:$0xe]
        %v847 = vld [vmem:[%s239 + $0xac] sm:$0xf]
        %v848 = vld [vmem:[%s239 + $0xb0] sm:$0x1]
        %v849 = vld [vmem:[%s239 + $0xb4] sm:$0xe]
        %v850 = vld [vmem:[%s239 + $0xb8] sm:$0xf]
        %v851 = vld [vmem:[%s239 + $0xbc] sm:$0x1]
        %vm900 = vcmask 1042432
        %vm901 = vcmask 1046532
        %vm902 = vmor %vm900, %vm901
        %v903 = vrot.slane %v804, 5
        %v904 = vrot.slane %v903, 4
        %v905 = vrot.slane %v805, 5
        %v906 = vsel %vm902, %v904, %v905
        %v907 = vrot.slane %v905, 4
        %v908 = vrot.slane %v806, 5
        %v909 = vsel %vm902, %v907, %v908
        %v910 = vrot.slane %v807, 5
        %v911 = vrot.slane %v910, 4
        %v912 = vrot.slane %v808, 5
        %v913 = vsel %vm902, %v911, %v912
        %v914 = vrot.slane %v912, 4
        %v915 = vrot.slane %v809, 5
        %v916 = vsel %vm902, %v914, %v915
        %v917 = vrot.slane %v810, 5
        %v918 = vrot.slane %v917, 4
        %v919 = vrot.slane %v811, 5
        %v920 = vsel %vm902, %v918, %v919
        %v921 = vrot.slane %v919, 4
        %v922 = vrot.slane %v812, 5
        %v923 = vsel %vm902, %v921, %v922
        %v924 = vrot.slane %v813, 5
        %v925 = vrot.slane %v924, 4
        %v926 = vrot.slane %v814, 5
        %v927 = vsel %vm902, %v925, %v926
        %v928 = vrot.slane %v926, 4
        %v929 = vrot.slane %v815, 5
        %v930 = vsel %vm902, %v928, %v929
        %v931 = vrot.slane %v816, 5
        %v932 = vrot.slane %v931, 4
        %v933 = vrot.slane %v817, 5
        %v934 = vsel %vm902, %v932, %v933
        %v935 = vrot.slane %v933, 4
        %v936 = vrot.slane %v818, 5
        %v937 = vsel %vm902, %v935, %v936
        %v938 = vrot.slane %v819, 5
        %v939 = vrot.slane %v938, 4
        %v940 = vrot.slane %v820, 5
        %v941 = vsel %vm902, %v939, %v940
        %v942 = vrot.slane %v940, 4
        %v943 = vrot.slane %v821, 5
        %v944 = vsel %vm902, %v942, %v943
        %v945 = vrot.slane %v822, 5
        %v946 = vrot.slane %v945, 4
        %v947 = vrot.slane %v823, 5
        %v948 = vsel %vm902, %v946, %v947
        %v949 = vrot.slane %v947, 4
        %v950 = vrot.slane %v824, 5
        %v951 = vsel %vm902, %v949, %v950
        %v952 = vrot.slane %v825, 5
        %v953 = vrot.slane %v952, 4
        %v954 = vrot.slane %v826, 5
        %v955 = vsel %vm902, %v953, %v954
        %v956 = vrot.slane %v954, 4
        %v957 = vrot.slane %v827, 5
        %v958 = vsel %vm902, %v956, %v957
        %v959 = vrot.slane %v828, 5
        %v960 = vrot.slane %v959, 4
        %v961 = vrot.slane %v829, 5
        %v962 = vsel %vm902, %v960, %v961
        %v963 = vrot.slane %v961, 4
        %v964 = vrot.slane %v830, 5
        %v965 = vsel %vm902, %v963, %v964
        %v966 = vrot.slane %v831, 5
        %v967 = vrot.slane %v966, 4
        %v968 = vrot.slane %v832, 5
        %v969 = vsel %vm902, %v967, %v968
        %v970 = vrot.slane %v968, 4
        %v971 = vrot.slane %v833, 5
        %v972 = vsel %vm902, %v970, %v971
        %v973 = vrot.slane %v834, 5
        %v974 = vrot.slane %v973, 4
        %v975 = vrot.slane %v835, 5
        %v976 = vsel %vm902, %v974, %v975
        %v977 = vrot.slane %v975, 4
        %v978 = vrot.slane %v836, 5
        %v979 = vsel %vm902, %v977, %v978
        %v980 = vrot.slane %v837, 5
        %v981 = vrot.slane %v980, 4
        %v982 = vrot.slane %v838, 5
        %v983 = vsel %vm902, %v981, %v982
        %v984 = vrot.slane %v982, 4
        %v985 = vrot.slane %v839, 5
        %v986 = vsel %vm902, %v984, %v985
        %v987 = vrot.slane %v840, 5
        %v988 = vrot.slane %v987, 4
        %v989 = vrot.slane %v841, 5
        %v990 = vsel %vm902, %v988, %v989
        %v991 = vrot.slane %v989, 4
        %v992 = vrot.slane %v842, 5
        %v993 = vsel %vm902, %v991, %v992
        %v994 = vrot.slane %v843, 5
        %v995 = vrot.slane %v994, 4
        %v996 = vrot.slane %v844, 5
        %v997 = vsel %vm902, %v995, %v996
        %v998 = vrot.slane %v996, 4
        %v999 = vrot.slane %v845, 5
        %v1000 = vsel %vm902, %v998, %v999
        %v1001 = vrot.slane %v846, 5
        %v1002 = vrot.slane %v1001, 4
        %v1003 = vrot.slane %v847, 5
        %v1004 = vsel %vm902, %v1002, %v1003
        %v1005 = vrot.slane %v1003, 4
        %v1006 = vrot.slane %v848, 5
        %v1007 = vsel %vm902, %v1005, %v1006
        %v1008 = vrot.slane %v849, 5
        %v1009 = vrot.slane %v1008, 4
        %v1010 = vrot.slane %v850, 5
        %v1011 = vsel %vm902, %v1009, %v1010
        %v1012 = vrot.slane %v1010, 4
        %v1013 = vrot.slane %v851, 5
        %v1014 = vsel %vm902, %v1012, %v1013
        %1047 = vst [vmem:[#allocation3 + $0x8] sm:$0xf] %v906
        %1048 = vst [vmem:[#allocation3 + $0x2c] sm:$0xf] %v909
        %1049 = vst [vmem:[#allocation3 + $0x50] sm:$0xf] %v913
        %1050 = vst [vmem:[#allocation3 + $0x74] sm:$0xf] %v916
        %1051 = vst [vmem:[#allocation3 + $0x98] sm:$0xf] %v920
        %1052 = vst [vmem:[#allocation3 + $0xbc] sm:$0xf] %v923
        %1053 = vst [vmem:[#allocation3 + $0xe0] sm:$0xf] %v927
        %1054 = vst [vmem:[#allocation3 + $0x104] sm:$0xf] %v930
        %1055 = vst [vmem:[#allocation3 + $0x128] sm:$0xf] %v934
        %1056 = vst [vmem:[#allocation3 + $0x14c] sm:$0xf] %v937
        %1057 = vst [vmem:[#allocation3 + $0x170] sm:$0xf] %v941
        %1058 = vst [vmem:[#allocation3 + $0x194] sm:$0xf] %v944
        %1059 = vst [vmem:[#allocation3 + $0x1b8] sm:$0xf] %v948
        %1060 = vst [vmem:[#allocation3 + $0x1dc] sm:$0xf] %v951
        %1061 = vst [vmem:[#allocation3 + $0x200] sm:$0xf] %v955
        %1062 = vst [vmem:[#allocation3 + $0x224] sm:$0xf] %v958
        %1063 = vst [vmem:[#allocation3 + $0x248] sm:$0xf] %v962
        %1064 = vst [vmem:[#allocation3 + $0x26c] sm:$0xf] %v965
        %1065 = vst [vmem:[#allocation3 + $0x290] sm:$0xf] %v969
        %1066 = vst [vmem:[#allocation3 + $0x2b4] sm:$0xf] %v972
        %1067 = vst [vmem:[#allocation3 + $0x2d8] sm:$0xf] %v976
        %1068 = vst [vmem:[#allocation3 + $0x2fc] sm:$0xf] %v979
        %1069 = vst [vmem:[#allocation3 + $0x320] sm:$0xf] %v983
        %1070 = vst [vmem:[#allocation3 + $0x344] sm:$0xf] %v986
        %1071 = vst [vmem:[#allocation3 + $0x368] sm:$0xf] %v990
        %1072 = vst [vmem:[#allocation3 + $0x38c] sm:$0xf] %v993
        %1073 = vst [vmem:[#allocation3 + $0x3b0] sm:$0xf] %v997
        %1074 = vst [vmem:[#allocation3 + $0x3d4] sm:$0xf] %v1000
        %1075 = vst [vmem:[#allocation3 + $0x3f8] sm:$0xf] %v1004
        %1076 = vst [vmem:[#allocation3 + $0x41c] sm:$0xf] %v1007
        %1077 = vst [vmem:[#allocation3 + $0x440] sm:$0xf] %v1011
        %1078 = vst [vmem:[#allocation3 + $0x464] sm:$0xf] %v1014
        %s1079 = scalar_lea.vmem %s239, 12
        %v1080 = vld [vmem:[%s1079] sm:$0xf]
        %v1081 = vld [vmem:[%s1079 + $0x4] sm:$0xf]
        %v1082 = vld [vmem:[%s1079 + $0xc] sm:$0xf]
        %v1083 = vld [vmem:[%s1079 + $0x10] sm:$0xf]
        %v1084 = vld [vmem:[%s1079 + $0x18] sm:$0xf]
        %v1085 = vld [vmem:[%s1079 + $0x1c] sm:$0xf]
        %v1086 = vld [vmem:[%s1079 + $0x24] sm:$0xf]
        %v1087 = vld [vmem:[%s1079 + $0x28] sm:$0xf]
        %v1088 = vld [vmem:[%s1079 + $0x30] sm:$0xf]
        %v1089 = vld [vmem:[%s1079 + $0x34] sm:$0xf]
        %v1090 = vld [vmem:[%s1079 + $0x3c] sm:$0xf]
        %v1091 = vld [vmem:[%s1079 + $0x40] sm:$0xf]
        %v1092 = vld [vmem:[%s1079 + $0x48] sm:$0xf]
        %v1093 = vld [vmem:[%s1079 + $0x4c] sm:$0xf]
        %v1094 = vld [vmem:[%s1079 + $0x54] sm:$0xf]
        %v1095 = vld [vmem:[%s1079 + $0x58] sm:$0xf]
        %v1096 = vld [vmem:[%s1079 + $0x60] sm:$0xf]
        %v1097 = vld [vmem:[%s1079 + $0x64] sm:$0xf]
        %v1098 = vld [vmem:[%s1079 + $0x6c] sm:$0xf]
        %v1099 = vld [vmem:[%s1079 + $0x70] sm:$0xf]
        %v1100 = vld [vmem:[%s1079 + $0x78] sm:$0xf]
        %v1101 = vld [vmem:[%s1079 + $0x7c] sm:$0xf]
        %v1102 = vld [vmem:[%s1079 + $0x84] sm:$0xf]
        %v1103 = vld [vmem:[%s1079 + $0x88] sm:$0xf]
        %v1104 = vld [vmem:[%s1079 + $0x90] sm:$0xf]
        %v1105 = vld [vmem:[%s1079 + $0x94] sm:$0xf]
        %v1106 = vld [vmem:[%s1079 + $0x9c] sm:$0xf]
        %v1107 = vld [vmem:[%s1079 + $0xa0] sm:$0xf]
        %v1108 = vld [vmem:[%s1079 + $0xa8] sm:$0xf]
        %v1109 = vld [vmem:[%s1079 + $0xac] sm:$0xf]
        %v1110 = vld [vmem:[%s1079 + $0xb4] sm:$0xf]
        %v1111 = vld [vmem:[%s1079 + $0xb8] sm:$0xf]
        %1112 = vst [vmem:[#allocation3 + $0xc] sm:$0xf] %v1080
        %1113 = vst [vmem:[#allocation3 + $0x30] sm:$0xf] %v1081
        %1114 = vst [vmem:[#allocation3 + $0x54] sm:$0xf] %v1082
        %1115 = vst [vmem:[#allocation3 + $0x78] sm:$0xf] %v1083
        %1116 = vst [vmem:[#allocation3 + $0x9c] sm:$0xf] %v1084
        %1117 = vst [vmem:[#allocation3 + $0xc0] sm:$0xf] %v1085
        %1118 = vst [vmem:[#allocation3 + $0xe4] sm:$0xf] %v1086
        %1119 = vst [vmem:[#allocation3 + $0x108] sm:$0xf] %v1087
        %1120 = vst [vmem:[#allocation3 + $0x12c] sm:$0xf] %v1088
        %1121 = vst [vmem:[#allocation3 + $0x150] sm:$0xf] %v1089
        %1122 = vst [vmem:[#allocation3 + $0x174] sm:$0xf] %v1090
        %1123 = vst [vmem:[#allocation3 + $0x198] sm:$0xf] %v1091
        %1124 = vst [vmem:[#allocation3 + $0x1bc] sm:$0xf] %v1092
        %1125 = vst [vmem:[#allocation3 + $0x1e0] sm:$0xf] %v1093
        %1126 = vst [vmem:[#allocation3 + $0x204] sm:$0xf] %v1094
        %1127 = vst [vmem:[#allocation3 + $0x228] sm:$0xf] %v1095
        %1128 = vst [vmem:[#allocation3 + $0x24c] sm:$0xf] %v1096
        %1129 = vst [vmem:[#allocation3 + $0x270] sm:$0xf] %v1097
        %1130 = vst [vmem:[#allocation3 + $0x294] sm:$0xf] %v1098
        %1131 = vst [vmem:[#allocation3 + $0x2b8] sm:$0xf] %v1099
        %1132 = vst [vmem:[#allocation3 + $0x2dc] sm:$0xf] %v1100
        %1133 = vst [vmem:[#allocation3 + $0x300] sm:$0xf] %v1101
        %1134 = vst [vmem:[#allocation3 + $0x324] sm:$0xf] %v1102
        %1135 = vst [vmem:[#allocation3 + $0x348] sm:$0xf] %v1103
        %1136 = vst [vmem:[#allocation3 + $0x36c] sm:$0xf] %v1104
        %1137 = vst [vmem:[#allocation3 + $0x390] sm:$0xf] %v1105
        %1138 = vst [vmem:[#allocation3 + $0x3b4] sm:$0xf] %v1106
        %1139 = vst [vmem:[#allocation3 + $0x3d8] sm:$0xf] %v1107
        %1140 = vst [vmem:[#allocation3 + $0x3fc] sm:$0xf] %v1108
        %1141 = vst [vmem:[#allocation3 + $0x420] sm:$0xf] %v1109
        %1142 = vst [vmem:[#allocation3 + $0x444] sm:$0xf] %v1110
        %1143 = vst [vmem:[#allocation3 + $0x468] sm:$0xf] %v1111
        %v1144 = vld [vmem:[%s1079] sm:$0xf]
        %v1145 = vld [vmem:[%s1079 + $0x4] sm:$0xf]
        %v1146 = vld [vmem:[%s1079 + $0x8] sm:$0x1]
        %v1147 = vld [vmem:[%s1079 + $0xc] sm:$0xf]
        %v1148 = vld [vmem:[%s1079 + $0x10] sm:$0xf]
        %v1149 = vld [vmem:[%s1079 + $0x14] sm:$0x1]
        %v1150 = vld [vmem:[%s1079 + $0x18] sm:$0xf]
        %v1151 = vld [vmem:[%s1079 + $0x1c] sm:$0xf]
        %v1152 = vld [vmem:[%s1079 + $0x20] sm:$0x1]
        %v1153 = vld [vmem:[%s1079 + $0x24] sm:$0xf]
        %v1154 = vld [vmem:[%s1079 + $0x28] sm:$0xf]
        %v1155 = vld [vmem:[%s1079 + $0x2c] sm:$0x1]
        %v1156 = vld [vmem:[%s1079 + $0x30] sm:$0xf]
        %v1157 = vld [vmem:[%s1079 + $0x34] sm:$0xf]
        %v1158 = vld [vmem:[%s1079 + $0x38] sm:$0x1]
        %v1159 = vld [vmem:[%s1079 + $0x3c] sm:$0xf]
        %v1160 = vld [vmem:[%s1079 + $0x40] sm:$0xf]
        %v1161 = vld [vmem:[%s1079 + $0x44] sm:$0x1]
        %v1162 = vld [vmem:[%s1079 + $0x48] sm:$0xf]
        %v1163 = vld [vmem:[%s1079 + $0x4c] sm:$0xf]
        %v1164 = vld [vmem:[%s1079 + $0x50] sm:$0x1]
        %v1165 = vld [vmem:[%s1079 + $0x54] sm:$0xf]
        %v1166 = vld [vmem:[%s1079 + $0x58] sm:$0xf]
        %v1167 = vld [vmem:[%s1079 + $0x5c] sm:$0x1]
        %v1168 = vld [vmem:[%s1079 + $0x60] sm:$0xf]
        %v1169 = vld [vmem:[%s1079 + $0x64] sm:$0xf]
        %v1170 = vld [vmem:[%s1079 + $0x68] sm:$0x1]
        %v1171 = vld [vmem:[%s1079 + $0x6c] sm:$0xf]
        %v1172 = vld [vmem:[%s1079 + $0x70] sm:$0xf]
        %v1173 = vld [vmem:[%s1079 + $0x74] sm:$0x1]
        %v1174 = vld [vmem:[%s1079 + $0x78] sm:$0xf]
        %v1175 = vld [vmem:[%s1079 + $0x7c] sm:$0xf]
        %v1176 = vld [vmem:[%s1079 + $0x80] sm:$0x1]
        %v1177 = vld [vmem:[%s1079 + $0x84] sm:$0xf]
        %v1178 = vld [vmem:[%s1079 + $0x88] sm:$0xf]
        %v1179 = vld [vmem:[%s1079 + $0x8c] sm:$0x1]
        %v1180 = vld [vmem:[%s1079 + $0x90] sm:$0xf]
        %v1181 = vld [vmem:[%s1079 + $0x94] sm:$0xf]
        %v1182 = vld [vmem:[%s1079 + $0x98] sm:$0x1]
        %v1183 = vld [vmem:[%s1079 + $0x9c] sm:$0xf]
        %v1184 = vld [vmem:[%s1079 + $0xa0] sm:$0xf]
        %v1185 = vld [vmem:[%s1079 + $0xa4] sm:$0x1]
        %v1186 = vld [vmem:[%s1079 + $0xa8] sm:$0xf]
        %v1187 = vld [vmem:[%s1079 + $0xac] sm:$0xf]
        %v1188 = vld [vmem:[%s1079 + $0xb0] sm:$0x1]
        %v1189 = vld [vmem:[%s1079 + $0xb4] sm:$0xf]
        %v1190 = vld [vmem:[%s1079 + $0xb8] sm:$0xf]
        %v1191 = vld [vmem:[%s1079 + $0xbc] sm:$0x1]
        %v1193 = vshrl.u32 %v1144, 16
        %v1195 = vrot.slane %v1193, 4
        %v1196 = vshll.u32 %v1144, 16
        %v1198 = vrot.slane %v1196, 5
        %v1199 = vor.u32 %v1195, %v1198
        %v1200 = vrot.slane %v1199, 4
        %v1202 = vshll.u32 %v1145, 16
        %v1204 = vrot.slane %v1202, 5
        %v1205 = vsel %vm355, %v1200, %v1204
        %v1206 = vshrl.u32 %v1145, 16
        %v1208 = vrot.slane %v1206, 4
        %v1209 = vor.u32 %v1208, %v1204
        %v1210 = vrot.slane %v1209, 4
        %v1212 = vshll.u32 %v1146, 16
        %v1214 = vrot.slane %v1212, 5
        %v1215 = vsel %vm355, %v1210, %v1214
        %v1217 = vshrl.u32 %v1147, 16
        %v1219 = vrot.slane %v1217, 4
        %v1220 = vshll.u32 %v1147, 16
        %v1222 = vrot.slane %v1220, 5
        %v1223 = vor.u32 %v1219, %v1222
        %v1224 = vrot.slane %v1223, 4
        %v1226 = vshll.u32 %v1148, 16
        %v1228 = vrot.slane %v1226, 5
        %v1229 = vsel %vm355, %v1224, %v1228
        %v1230 = vshrl.u32 %v1148, 16
        %v1232 = vrot.slane %v1230, 4
        %v1233 = vor.u32 %v1232, %v1228
        %v1234 = vrot.slane %v1233, 4
        %v1236 = vshll.u32 %v1149, 16
        %v1238 = vrot.slane %v1236, 5
        %v1239 = vsel %vm355, %v1234, %v1238
        %v1241 = vshrl.u32 %v1150, 16
        %v1243 = vrot.slane %v1241, 4
        %v1244 = vshll.u32 %v1150, 16
        %v1246 = vrot.slane %v1244, 5
        %v1247 = vor.u32 %v1243, %v1246
        %v1248 = vrot.slane %v1247, 4
        %v1250 = vshll.u32 %v1151, 16
        %v1252 = vrot.slane %v1250, 5
        %v1253 = vsel %vm355, %v1248, %v1252
        %v1254 = vshrl.u32 %v1151, 16
        %v1256 = vrot.slane %v1254, 4
        %v1257 = vor.u32 %v1256, %v1252
        %v1258 = vrot.slane %v1257, 4
        %v1260 = vshll.u32 %v1152, 16
        %v1262 = vrot.slane %v1260, 5
        %v1263 = vsel %vm355, %v1258, %v1262
        %v1265 = vshrl.u32 %v1153, 16
        %v1267 = vrot.slane %v1265, 4
        %v1268 = vshll.u32 %v1153, 16
        %v1270 = vrot.slane %v1268, 5
        %v1271 = vor.u32 %v1267, %v1270
        %v1272 = vrot.slane %v1271, 4
        %v1274 = vshll.u32 %v1154, 16
        %v1276 = vrot.slane %v1274, 5
        %v1277 = vsel %vm355, %v1272, %v1276
        %v1278 = vshrl.u32 %v1154, 16
        %v1280 = vrot.slane %v1278, 4
        %v1281 = vor.u32 %v1280, %v1276
        %v1282 = vrot.slane %v1281, 4
        %v1284 = vshll.u32 %v1155, 16
        %v1286 = vrot.slane %v1284, 5
        %v1287 = vsel %vm355, %v1282, %v1286
        %v1289 = vshrl.u32 %v1156, 16
        %v1291 = vrot.slane %v1289, 4
        %v1292 = vshll.u32 %v1156, 16
        %v1294 = vrot.slane %v1292, 5
        %v1295 = vor.u32 %v1291, %v1294
        %v1296 = vrot.slane %v1295, 4
        %v1298 = vshll.u32 %v1157, 16
        %v1300 = vrot.slane %v1298, 5
        %v1301 = vsel %vm355, %v1296, %v1300
        %v1302 = vshrl.u32 %v1157, 16
        %v1304 = vrot.slane %v1302, 4
        %v1305 = vor.u32 %v1304, %v1300
        %v1306 = vrot.slane %v1305, 4
        %v1308 = vshll.u32 %v1158, 16
        %v1310 = vrot.slane %v1308, 5
        %v1311 = vsel %vm355, %v1306, %v1310
        %v1313 = vshrl.u32 %v1159, 16
        %v1315 = vrot.slane %v1313, 4
        %v1316 = vshll.u32 %v1159, 16
        %v1318 = vrot.slane %v1316, 5
        %v1319 = vor.u32 %v1315, %v1318
        %v1320 = vrot.slane %v1319, 4
        %v1322 = vshll.u32 %v1160, 16
        %v1324 = vrot.slane %v1322, 5
        %v1325 = vsel %vm355, %v1320, %v1324
        %v1326 = vshrl.u32 %v1160, 16
        %v1328 = vrot.slane %v1326, 4
        %v1329 = vor.u32 %v1328, %v1324
        %v1330 = vrot.slane %v1329, 4
        %v1332 = vshll.u32 %v1161, 16
        %v1334 = vrot.slane %v1332, 5
        %v1335 = vsel %vm355, %v1330, %v1334
        %v1337 = vshrl.u32 %v1162, 16
        %v1339 = vrot.slane %v1337, 4
        %v1340 = vshll.u32 %v1162, 16
        %v1342 = vrot.slane %v1340, 5
        %v1343 = vor.u32 %v1339, %v1342
        %v1344 = vrot.slane %v1343, 4
        %v1346 = vshll.u32 %v1163, 16
        %v1348 = vrot.slane %v1346, 5
        %v1349 = vsel %vm355, %v1344, %v1348
        %v1350 = vshrl.u32 %v1163, 16
        %v1352 = vrot.slane %v1350, 4
        %v1353 = vor.u32 %v1352, %v1348
        %v1354 = vrot.slane %v1353, 4
        %v1356 = vshll.u32 %v1164, 16
        %v1358 = vrot.slane %v1356, 5
        %v1359 = vsel %vm355, %v1354, %v1358
        %v1361 = vshrl.u32 %v1165, 16
        %v1363 = vrot.slane %v1361, 4
        %v1364 = vshll.u32 %v1165, 16
        %v1366 = vrot.slane %v1364, 5
        %v1367 = vor.u32 %v1363, %v1366
        %v1368 = vrot.slane %v1367, 4
        %v1370 = vshll.u32 %v1166, 16
        %v1372 = vrot.slane %v1370, 5
        %v1373 = vsel %vm355, %v1368, %v1372
        %v1374 = vshrl.u32 %v1166, 16
        %v1376 = vrot.slane %v1374, 4
        %v1377 = vor.u32 %v1376, %v1372
        %v1378 = vrot.slane %v1377, 4
        %v1380 = vshll.u32 %v1167, 16
        %v1382 = vrot.slane %v1380, 5
        %v1383 = vsel %vm355, %v1378, %v1382
        %v1385 = vshrl.u32 %v1168, 16
        %v1387 = vrot.slane %v1385, 4
        %v1388 = vshll.u32 %v1168, 16
        %v1390 = vrot.slane %v1388, 5
        %v1391 = vor.u32 %v1387, %v1390
        %v1392 = vrot.slane %v1391, 4
        %v1394 = vshll.u32 %v1169, 16
        %v1396 = vrot.slane %v1394, 5
        %v1397 = vsel %vm355, %v1392, %v1396
        %v1398 = vshrl.u32 %v1169, 16
        %v1400 = vrot.slane %v1398, 4
        %v1401 = vor.u32 %v1400, %v1396
        %v1402 = vrot.slane %v1401, 4
        %v1404 = vshll.u32 %v1170, 16
        %v1406 = vrot.slane %v1404, 5
        %v1407 = vsel %vm355, %v1402, %v1406
        %v1409 = vshrl.u32 %v1171, 16
        %v1411 = vrot.slane %v1409, 4
        %v1412 = vshll.u32 %v1171, 16
        %v1414 = vrot.slane %v1412, 5
        %v1415 = vor.u32 %v1411, %v1414
        %v1416 = vrot.slane %v1415, 4
        %v1418 = vshll.u32 %v1172, 16
        %v1420 = vrot.slane %v1418, 5
        %v1421 = vsel %vm355, %v1416, %v1420
        %v1422 = vshrl.u32 %v1172, 16
        %v1424 = vrot.slane %v1422, 4
        %v1425 = vor.u32 %v1424, %v1420
        %v1426 = vrot.slane %v1425, 4
        %v1428 = vshll.u32 %v1173, 16
        %v1430 = vrot.slane %v1428, 5
        %v1431 = vsel %vm355, %v1426, %v1430
        %v1433 = vshrl.u32 %v1174, 16
        %v1435 = vrot.slane %v1433, 4
        %v1436 = vshll.u32 %v1174, 16
        %v1438 = vrot.slane %v1436, 5
        %v1439 = vor.u32 %v1435, %v1438
        %v1440 = vrot.slane %v1439, 4
        %v1442 = vshll.u32 %v1175, 16
        %v1444 = vrot.slane %v1442, 5
        %v1445 = vsel %vm355, %v1440, %v1444
        %v1446 = vshrl.u32 %v1175, 16
        %v1448 = vrot.slane %v1446, 4
        %v1449 = vor.u32 %v1448, %v1444
        %v1450 = vrot.slane %v1449, 4
        %v1452 = vshll.u32 %v1176, 16
        %v1454 = vrot.slane %v1452, 5
        %v1455 = vsel %vm355, %v1450, %v1454
        %v1457 = vshrl.u32 %v1177, 16
        %v1459 = vrot.slane %v1457, 4
        %v1460 = vshll.u32 %v1177, 16
        %v1462 = vrot.slane %v1460, 5
        %v1463 = vor.u32 %v1459, %v1462
        %v1464 = vrot.slane %v1463, 4
        %v1466 = vshll.u32 %v1178, 16
        %v1468 = vrot.slane %v1466, 5
        %v1469 = vsel %vm355, %v1464, %v1468
        %v1470 = vshrl.u32 %v1178, 16
        %v1472 = vrot.slane %v1470, 4
        %v1473 = vor.u32 %v1472, %v1468
        %v1474 = vrot.slane %v1473, 4
        %v1476 = vshll.u32 %v1179, 16
        %v1478 = vrot.slane %v1476, 5
        %v1479 = vsel %vm355, %v1474, %v1478
        %v1481 = vshrl.u32 %v1180, 16
        %v1483 = vrot.slane %v1481, 4
        %v1484 = vshll.u32 %v1180, 16
        %v1486 = vrot.slane %v1484, 5
        %v1487 = vor.u32 %v1483, %v1486
        %v1488 = vrot.slane %v1487, 4
        %v1490 = vshll.u32 %v1181, 16
        %v1492 = vrot.slane %v1490, 5
        %v1493 = vsel %vm355, %v1488, %v1492
        %v1494 = vshrl.u32 %v1181, 16
        %v1496 = vrot.slane %v1494, 4
        %v1497 = vor.u32 %v1496, %v1492
        %v1498 = vrot.slane %v1497, 4
        %v1500 = vshll.u32 %v1182, 16
        %v1502 = vrot.slane %v1500, 5
        %v1503 = vsel %vm355, %v1498, %v1502
        %v1505 = vshrl.u32 %v1183, 16
        %v1507 = vrot.slane %v1505, 4
        %v1508 = vshll.u32 %v1183, 16
        %v1510 = vrot.slane %v1508, 5
        %v1511 = vor.u32 %v1507, %v1510
        %v1512 = vrot.slane %v1511, 4
        %v1514 = vshll.u32 %v1184, 16
        %v1516 = vrot.slane %v1514, 5
        %v1517 = vsel %vm355, %v1512, %v1516
        %v1518 = vshrl.u32 %v1184, 16
        %v1520 = vrot.slane %v1518, 4
        %v1521 = vor.u32 %v1520, %v1516
        %v1522 = vrot.slane %v1521, 4
        %v1524 = vshll.u32 %v1185, 16
        %v1526 = vrot.slane %v1524, 5
        %v1527 = vsel %vm355, %v1522, %v1526
        %v1529 = vshrl.u32 %v1186, 16
        %v1531 = vrot.slane %v1529, 4
        %v1532 = vshll.u32 %v1186, 16
        %v1534 = vrot.slane %v1532, 5
        %v1535 = vor.u32 %v1531, %v1534
        %v1536 = vrot.slane %v1535, 4
        %v1538 = vshll.u32 %v1187, 16
        %v1540 = vrot.slane %v1538, 5
        %v1541 = vsel %vm355, %v1536, %v1540
        %v1542 = vshrl.u32 %v1187, 16
        %v1544 = vrot.slane %v1542, 4
        %v1545 = vor.u32 %v1544, %v1540
        %v1546 = vrot.slane %v1545, 4
        %v1548 = vshll.u32 %v1188, 16
        %v1550 = vrot.slane %v1548, 5
        %v1551 = vsel %vm355, %v1546, %v1550
        %v1553 = vshrl.u32 %v1189, 16
        %v1555 = vrot.slane %v1553, 4
        %v1556 = vshll.u32 %v1189, 16
        %v1558 = vrot.slane %v1556, 5
        %v1559 = vor.u32 %v1555, %v1558
        %v1560 = vrot.slane %v1559, 4
        %v1562 = vshll.u32 %v1190, 16
        %v1564 = vrot.slane %v1562, 5
        %v1565 = vsel %vm355, %v1560, %v1564
        %v1566 = vshrl.u32 %v1190, 16
        %v1568 = vrot.slane %v1566, 4
        %v1569 = vor.u32 %v1568, %v1564
        %v1570 = vrot.slane %v1569, 4
        %v1572 = vshll.u32 %v1191, 16
        %v1574 = vrot.slane %v1572, 5
        %v1575 = vsel %vm355, %v1570, %v1574
        %1608 = vst [vmem:[#allocation3 + $0x10] sm:$0xf] %v1205
        %1609 = vst [vmem:[#allocation3 + $0x34] sm:$0xf] %v1215
        %1610 = vst [vmem:[#allocation3 + $0x58] sm:$0xf] %v1229
        %1611 = vst [vmem:[#allocation3 + $0x7c] sm:$0xf] %v1239
        %1612 = vst [vmem:[#allocation3 + $0xa0] sm:$0xf] %v1253
        %1613 = vst [vmem:[#allocation3 + $0xc4] sm:$0xf] %v1263
        %1614 = vst [vmem:[#allocation3 + $0xe8] sm:$0xf] %v1277
        %1615 = vst [vmem:[#allocation3 + $0x10c] sm:$0xf] %v1287
        %1616 = vst [vmem:[#allocation3 + $0x130] sm:$0xf] %v1301
        %1617 = vst [vmem:[#allocation3 + $0x154] sm:$0xf] %v1311
        %1618 = vst [vmem:[#allocation3 + $0x178] sm:$0xf] %v1325
        %1619 = vst [vmem:[#allocation3 + $0x19c] sm:$0xf] %v1335
        %1620 = vst [vmem:[#allocation3 + $0x1c0] sm:$0xf] %v1349
        %1621 = vst [vmem:[#allocation3 + $0x1e4] sm:$0xf] %v1359
        %1622 = vst [vmem:[#allocation3 + $0x208] sm:$0xf] %v1373
        %1623 = vst [vmem:[#allocation3 + $0x22c] sm:$0xf] %v1383
        %1624 = vst [vmem:[#allocation3 + $0x250] sm:$0xf] %v1397
        %1625 = vst [vmem:[#allocation3 + $0x274] sm:$0xf] %v1407
        %1626 = vst [vmem:[#allocation3 + $0x298] sm:$0xf] %v1421
        %1627 = vst [vmem:[#allocation3 + $0x2bc] sm:$0xf] %v1431
        %1628 = vst [vmem:[#allocation3 + $0x2e0] sm:$0xf] %v1445
        %1629 = vst [vmem:[#allocation3 + $0x304] sm:$0xf] %v1455
        %1630 = vst [vmem:[#allocation3 + $0x328] sm:$0xf] %v1469
        %1631 = vst [vmem:[#allocation3 + $0x34c] sm:$0xf] %v1479
        %1632 = vst [vmem:[#allocation3 + $0x370] sm:$0xf] %v1493
        %1633 = vst [vmem:[#allocation3 + $0x394] sm:$0xf] %v1503
        %1634 = vst [vmem:[#allocation3 + $0x3b8] sm:$0xf] %v1517
        %1635 = vst [vmem:[#allocation3 + $0x3dc] sm:$0xf] %v1527
        %1636 = vst [vmem:[#allocation3 + $0x400] sm:$0xf] %v1541
        %1637 = vst [vmem:[#allocation3 + $0x424] sm:$0xf] %v1551
        %1638 = vst [vmem:[#allocation3 + $0x448] sm:$0xf] %v1565
        %1639 = vst [vmem:[#allocation3 + $0x46c] sm:$0xf] %v1575
        %v1640 = vld [vmem:[%s1079] sm:$0xe]
        %v1641 = vld [vmem:[%s1079 + $0x4] sm:$0xf]
        %v1642 = vld [vmem:[%s1079 + $0x8] sm:$0x1]
        %v1643 = vld [vmem:[%s1079 + $0xc] sm:$0xe]
        %v1644 = vld [vmem:[%s1079 + $0x10] sm:$0xf]
        %v1645 = vld [vmem:[%s1079 + $0x14] sm:$0x1]
        %v1646 = vld [vmem:[%s1079 + $0x18] sm:$0xe]
        %v1647 = vld [vmem:[%s1079 + $0x1c] sm:$0xf]
        %v1648 = vld [vmem:[%s1079 + $0x20] sm:$0x1]
        %v1649 = vld [vmem:[%s1079 + $0x24] sm:$0xe]
        %v1650 = vld [vmem:[%s1079 + $0x28] sm:$0xf]
        %v1651 = vld [vmem:[%s1079 + $0x2c] sm:$0x1]
        %v1652 = vld [vmem:[%s1079 + $0x30] sm:$0xe]
        %v1653 = vld [vmem:[%s1079 + $0x34] sm:$0xf]
        %v1654 = vld [vmem:[%s1079 + $0x38] sm:$0x1]
        %v1655 = vld [vmem:[%s1079 + $0x3c] sm:$0xe]
        %v1656 = vld [vmem:[%s1079 + $0x40] sm:$0xf]
        %v1657 = vld [vmem:[%s1079 + $0x44] sm:$0x1]
        %v1658 = vld [vmem:[%s1079 + $0x48] sm:$0xe]
        %v1659 = vld [vmem:[%s1079 + $0x4c] sm:$0xf]
        %v1660 = vld [vmem:[%s1079 + $0x50] sm:$0x1]
        %v1661 = vld [vmem:[%s1079 + $0x54] sm:$0xe]
        %v1662 = vld [vmem:[%s1079 + $0x58] sm:$0xf]
        %v1663 = vld [vmem:[%s1079 + $0x5c] sm:$0x1]
        %v1664 = vld [vmem:[%s1079 + $0x60] sm:$0xe]
        %v1665 = vld [vmem:[%s1079 + $0x64] sm:$0xf]
        %v1666 = vld [vmem:[%s1079 + $0x68] sm:$0x1]
        %v1667 = vld [vmem:[%s1079 + $0x6c] sm:$0xe]
        %v1668 = vld [vmem:[%s1079 + $0x70] sm:$0xf]
        %v1669 = vld [vmem:[%s1079 + $0x74] sm:$0x1]
        %v1670 = vld [vmem:[%s1079 + $0x78] sm:$0xe]
        %v1671 = vld [vmem:[%s1079 + $0x7c] sm:$0xf]
        %v1672 = vld [vmem:[%s1079 + $0x80] sm:$0x1]
        %v1673 = vld [vmem:[%s1079 + $0x84] sm:$0xe]
        %v1674 = vld [vmem:[%s1079 + $0x88] sm:$0xf]
        %v1675 = vld [vmem:[%s1079 + $0x8c] sm:$0x1]
        %v1676 = vld [vmem:[%s1079 + $0x90] sm:$0xe]
        %v1677 = vld [vmem:[%s1079 + $0x94] sm:$0xf]
        %v1678 = vld [vmem:[%s1079 + $0x98] sm:$0x1]
        %v1679 = vld [vmem:[%s1079 + $0x9c] sm:$0xe]
        %v1680 = vld [vmem:[%s1079 + $0xa0] sm:$0xf]
        %v1681 = vld [vmem:[%s1079 + $0xa4] sm:$0x1]
        %v1682 = vld [vmem:[%s1079 + $0xa8] sm:$0xe]
        %v1683 = vld [vmem:[%s1079 + $0xac] sm:$0xf]
        %v1684 = vld [vmem:[%s1079 + $0xb0] sm:$0x1]
        %v1685 = vld [vmem:[%s1079 + $0xb4] sm:$0xe]
        %v1686 = vld [vmem:[%s1079 + $0xb8] sm:$0xf]
        %v1687 = vld [vmem:[%s1079 + $0xbc] sm:$0x1]
        %v1736 = vrot.slane %v1640, 5
        %v1737 = vrot.slane %v1736, 4
        %v1738 = vrot.slane %v1641, 5
        %v1739 = vsel %vm902, %v1737, %v1738
        %v1740 = vrot.slane %v1738, 4
        %v1741 = vrot.slane %v1642, 5
        %v1742 = vsel %vm902, %v1740, %v1741
        %v1743 = vrot.slane %v1643, 5
        %v1744 = vrot.slane %v1743, 4
        %v1745 = vrot.slane %v1644, 5
        %v1746 = vsel %vm902, %v1744, %v1745
        %v1747 = vrot.slane %v1745, 4
        %v1748 = vrot.slane %v1645, 5
        %v1749 = vsel %vm902, %v1747, %v1748
        %v1750 = vrot.slane %v1646, 5
        %v1751 = vrot.slane %v1750, 4
        %v1752 = vrot.slane %v1647, 5
        %v1753 = vsel %vm902, %v1751, %v1752
        %v1754 = vrot.slane %v1752, 4
        %v1755 = vrot.slane %v1648, 5
        %v1756 = vsel %vm902, %v1754, %v1755
        %v1757 = vrot.slane %v1649, 5
        %v1758 = vrot.slane %v1757, 4
        %v1759 = vrot.slane %v1650, 5
        %v1760 = vsel %vm902, %v1758, %v1759
        %v1761 = vrot.slane %v1759, 4
        %v1762 = vrot.slane %v1651, 5
        %v1763 = vsel %vm902, %v1761, %v1762
        %v1764 = vrot.slane %v1652, 5
        %v1765 = vrot.slane %v1764, 4
        %v1766 = vrot.slane %v1653, 5
        %v1767 = vsel %vm902, %v1765, %v1766
        %v1768 = vrot.slane %v1766, 4
        %v1769 = vrot.slane %v1654, 5
        %v1770 = vsel %vm902, %v1768, %v1769
        %v1771 = vrot.slane %v1655, 5
        %v1772 = vrot.slane %v1771, 4
        %v1773 = vrot.slane %v1656, 5
        %v1774 = vsel %vm902, %v1772, %v1773
        %v1775 = vrot.slane %v1773, 4
        %v1776 = vrot.slane %v1657, 5
        %v1777 = vsel %vm902, %v1775, %v1776
        %v1778 = vrot.slane %v1658, 5
        %v1779 = vrot.slane %v1778, 4
        %v1780 = vrot.slane %v1659, 5
        %v1781 = vsel %vm902, %v1779, %v1780
        %v1782 = vrot.slane %v1780, 4
        %v1783 = vrot.slane %v1660, 5
        %v1784 = vsel %vm902, %v1782, %v1783
        %v1785 = vrot.slane %v1661, 5
        %v1786 = vrot.slane %v1785, 4
        %v1787 = vrot.slane %v1662, 5
        %v1788 = vsel %vm902, %v1786, %v1787
        %v1789 = vrot.slane %v1787, 4
        %v1790 = vrot.slane %v1663, 5
        %v1791 = vsel %vm902, %v1789, %v1790
        %v1792 = vrot.slane %v1664, 5
        %v1793 = vrot.slane %v1792, 4
        %v1794 = vrot.slane %v1665, 5
        %v1795 = vsel %vm902, %v1793, %v1794
        %v1796 = vrot.slane %v1794, 4
        %v1797 = vrot.slane %v1666, 5
        %v1798 = vsel %vm902, %v1796, %v1797
        %v1799 = vrot.slane %v1667, 5
        %v1800 = vrot.slane %v1799, 4
        %v1801 = vrot.slane %v1668, 5
        %v1802 = vsel %vm902, %v1800, %v1801
        %v1803 = vrot.slane %v1801, 4
        %v1804 = vrot.slane %v1669, 5
        %v1805 = vsel %vm902, %v1803, %v1804
        %v1806 = vrot.slane %v1670, 5
        %v1807 = vrot.slane %v1806, 4
        %v1808 = vrot.slane %v1671, 5
        %v1809 = vsel %vm902, %v1807, %v1808
        %v1810 = vrot.slane %v1808, 4
        %v1811 = vrot.slane %v1672, 5
        %v1812 = vsel %vm902, %v1810, %v1811
        %v1813 = vrot.slane %v1673, 5
        %v1814 = vrot.slane %v1813, 4
        %v1815 = vrot.slane %v1674, 5
        %v1816 = vsel %vm902, %v1814, %v1815
        %v1817 = vrot.slane %v1815, 4
        %v1818 = vrot.slane %v1675, 5
        %v1819 = vsel %vm902, %v1817, %v1818
        %v1820 = vrot.slane %v1676, 5
        %v1821 = vrot.slane %v1820, 4
        %v1822 = vrot.slane %v1677, 5
        %v1823 = vsel %vm902, %v1821, %v1822
        %v1824 = vrot.slane %v1822, 4
        %v1825 = vrot.slane %v1678, 5
        %v1826 = vsel %vm902, %v1824, %v1825
        %v1827 = vrot.slane %v1679, 5
        %v1828 = vrot.slane %v1827, 4
        %v1829 = vrot.slane %v1680, 5
        %v1830 = vsel %vm902, %v1828, %v1829
        %v1831 = vrot.slane %v1829, 4
        %v1832 = vrot.slane %v1681, 5
        %v1833 = vsel %vm902, %v1831, %v1832
        %v1834 = vrot.slane %v1682, 5
        %v1835 = vrot.slane %v1834, 4
        %v1836 = vrot.slane %v1683, 5
        %v1837 = vsel %vm902, %v1835, %v1836
        %v1838 = vrot.slane %v1836, 4
        %v1839 = vrot.slane %v1684, 5
        %v1840 = vsel %vm902, %v1838, %v1839
        %v1841 = vrot.slane %v1685, 5
        %v1842 = vrot.slane %v1841, 4
        %v1843 = vrot.slane %v1686, 5
        %v1844 = vsel %vm902, %v1842, %v1843
        %v1845 = vrot.slane %v1843, 4
        %v1846 = vrot.slane %v1687, 5
        %v1847 = vsel %vm902, %v1845, %v1846
        %1880 = vst [vmem:[#allocation3 + $0x14] sm:$0xf] %v1739
        %1881 = vst [vmem:[#allocation3 + $0x38] sm:$0xf] %v1742
        %1882 = vst [vmem:[#allocation3 + $0x5c] sm:$0xf] %v1746
        %1883 = vst [vmem:[#allocation3 + $0x80] sm:$0xf] %v1749
        %1884 = vst [vmem:[#allocation3 + $0xa4] sm:$0xf] %v1753
        %1885 = vst [vmem:[#allocation3 + $0xc8] sm:$0xf] %v1756
        %1886 = vst [vmem:[#allocation3 + $0xec] sm:$0xf] %v1760
        %1887 = vst [vmem:[#allocation3 + $0x110] sm:$0xf] %v1763
        %1888 = vst [vmem:[#allocation3 + $0x134] sm:$0xf] %v1767
        %1889 = vst [vmem:[#allocation3 + $0x158] sm:$0xf] %v1770
        %1890 = vst [vmem:[#allocation3 + $0x17c] sm:$0xf] %v1774
        %1891 = vst [vmem:[#allocation3 + $0x1a0] sm:$0xf] %v1777
        %1892 = vst [vmem:[#allocation3 + $0x1c4] sm:$0xf] %v1781
        %1893 = vst [vmem:[#allocation3 + $0x1e8] sm:$0xf] %v1784
        %1894 = vst [vmem:[#allocation3 + $0x20c] sm:$0xf] %v1788
        %1895 = vst [vmem:[#allocation3 + $0x230] sm:$0xf] %v1791
        %1896 = vst [vmem:[#allocation3 + $0x254] sm:$0xf] %v1795
        %1897 = vst [vmem:[#allocation3 + $0x278] sm:$0xf] %v1798
        %1898 = vst [vmem:[#allocation3 + $0x29c] sm:$0xf] %v1802
        %1899 = vst [vmem:[#allocation3 + $0x2c0] sm:$0xf] %v1805
        %1900 = vst [vmem:[#allocation3 + $0x2e4] sm:$0xf] %v1809
        %1901 = vst [vmem:[#allocation3 + $0x308] sm:$0xf] %v1812
        %1902 = vst [vmem:[#allocation3 + $0x32c] sm:$0xf] %v1816
        %1903 = vst [vmem:[#allocation3 + $0x350] sm:$0xf] %v1819
        %1904 = vst [vmem:[#allocation3 + $0x374] sm:$0xf] %v1823
        %1905 = vst [vmem:[#allocation3 + $0x398] sm:$0xf] %v1826
        %1906 = vst [vmem:[#allocation3 + $0x3bc] sm:$0xf] %v1830
        %1907 = vst [vmem:[#allocation3 + $0x3e0] sm:$0xf] %v1833
        %1908 = vst [vmem:[#allocation3 + $0x404] sm:$0xf] %v1837
        %1909 = vst [vmem:[#allocation3 + $0x428] sm:$0xf] %v1840
        %1910 = vst [vmem:[#allocation3 + $0x44c] sm:$0xf] %v1844
        %1911 = vst [vmem:[#allocation3 + $0x470] sm:$0xf] %v1847
        %s1912 = scalar_lea.vmem %s239, 24
        %v1913 = vld [vmem:[%s1912] sm:$0xf]
        %v1914 = vld [vmem:[%s1912 + $0x4] sm:$0xf]
        %v1915 = vld [vmem:[%s1912 + $0xc] sm:$0xf]
        %v1916 = vld [vmem:[%s1912 + $0x10] sm:$0xf]
        %v1917 = vld [vmem:[%s1912 + $0x18] sm:$0xf]
        %v1918 = vld [vmem:[%s1912 + $0x1c] sm:$0xf]
        %v1919 = vld [vmem:[%s1912 + $0x24] sm:$0xf]
        %v1920 = vld [vmem:[%s1912 + $0x28] sm:$0xf]
        %v1921 = vld [vmem:[%s1912 + $0x30] sm:$0xf]
        %v1922 = vld [vmem:[%s1912 + $0x34] sm:$0xf]
        %v1923 = vld [vmem:[%s1912 + $0x3c] sm:$0xf]
        %v1924 = vld [vmem:[%s1912 + $0x40] sm:$0xf]
        %v1925 = vld [vmem:[%s1912 + $0x48] sm:$0xf]
        %v1926 = vld [vmem:[%s1912 + $0x4c] sm:$0xf]
        %v1927 = vld [vmem:[%s1912 + $0x54] sm:$0xf]
        %v1928 = vld [vmem:[%s1912 + $0x58] sm:$0xf]
        %v1929 = vld [vmem:[%s1912 + $0x60] sm:$0xf]
        %v1930 = vld [vmem:[%s1912 + $0x64] sm:$0xf]
        %v1931 = vld [vmem:[%s1912 + $0x6c] sm:$0xf]
        %v1932 = vld [vmem:[%s1912 + $0x70] sm:$0xf]
        %v1933 = vld [vmem:[%s1912 + $0x78] sm:$0xf]
        %v1934 = vld [vmem:[%s1912 + $0x7c] sm:$0xf]
        %v1935 = vld [vmem:[%s1912 + $0x84] sm:$0xf]
        %v1936 = vld [vmem:[%s1912 + $0x88] sm:$0xf]
        %v1937 = vld [vmem:[%s1912 + $0x90] sm:$0xf]
        %v1938 = vld [vmem:[%s1912 + $0x94] sm:$0xf]
        %v1939 = vld [vmem:[%s1912 + $0x9c] sm:$0xf]
        %v1940 = vld [vmem:[%s1912 + $0xa0] sm:$0xf]
        %v1941 = vld [vmem:[%s1912 + $0xa8] sm:$0xf]
        %v1942 = vld [vmem:[%s1912 + $0xac] sm:$0xf]
        %v1943 = vld [vmem:[%s1912 + $0xb4] sm:$0xf]
        %v1944 = vld [vmem:[%s1912 + $0xb8] sm:$0xf]
        %1945 = vst [vmem:[#allocation3 + $0x18] sm:$0xf] %v1913
        %1946 = vst [vmem:[#allocation3 + $0x3c] sm:$0xf] %v1914
        %1947 = vst [vmem:[#allocation3 + $0x60] sm:$0xf] %v1915
        %1948 = vst [vmem:[#allocation3 + $0x84] sm:$0xf] %v1916
        %1949 = vst [vmem:[#allocation3 + $0xa8] sm:$0xf] %v1917
        %1950 = vst [vmem:[#allocation3 + $0xcc] sm:$0xf] %v1918
        %1951 = vst [vmem:[#allocation3 + $0xf0] sm:$0xf] %v1919
        %1952 = vst [vmem:[#allocation3 + $0x114] sm:$0xf] %v1920
        %1953 = vst [vmem:[#allocation3 + $0x138] sm:$0xf] %v1921
        %1954 = vst [vmem:[#allocation3 + $0x15c] sm:$0xf] %v1922
        %1955 = vst [vmem:[#allocation3 + $0x180] sm:$0xf] %v1923
        %1956 = vst [vmem:[#allocation3 + $0x1a4] sm:$0xf] %v1924
        %1957 = vst [vmem:[#allocation3 + $0x1c8] sm:$0xf] %v1925
        %1958 = vst [vmem:[#allocation3 + $0x1ec] sm:$0xf] %v1926
        %1959 = vst [vmem:[#allocation3 + $0x210] sm:$0xf] %v1927
        %1960 = vst [vmem:[#allocation3 + $0x234] sm:$0xf] %v1928
        %1961 = vst [vmem:[#allocation3 + $0x258] sm:$0xf] %v1929
        %1962 = vst [vmem:[#allocation3 + $0x27c] sm:$0xf] %v1930
        %1963 = vst [vmem:[#allocation3 + $0x2a0] sm:$0xf] %v1931
        %1964 = vst [vmem:[#allocation3 + $0x2c4] sm:$0xf] %v1932
        %1965 = vst [vmem:[#allocation3 + $0x2e8] sm:$0xf] %v1933
        %1966 = vst [vmem:[#allocation3 + $0x30c] sm:$0xf] %v1934
        %1967 = vst [vmem:[#allocation3 + $0x330] sm:$0xf] %v1935
        %1968 = vst [vmem:[#allocation3 + $0x354] sm:$0xf] %v1936
        %1969 = vst [vmem:[#allocation3 + $0x378] sm:$0xf] %v1937
        %1970 = vst [vmem:[#allocation3 + $0x39c] sm:$0xf] %v1938
        %1971 = vst [vmem:[#allocation3 + $0x3c0] sm:$0xf] %v1939
        %1972 = vst [vmem:[#allocation3 + $0x3e4] sm:$0xf] %v1940
        %1973 = vst [vmem:[#allocation3 + $0x408] sm:$0xf] %v1941
        %1974 = vst [vmem:[#allocation3 + $0x42c] sm:$0xf] %v1942
        %1975 = vst [vmem:[#allocation3 + $0x450] sm:$0xf] %v1943
        %1976 = vst [vmem:[#allocation3 + $0x474] sm:$0xf] %v1944
        %v1977 = vld [vmem:[%s1912] sm:$0xf]
        %v1978 = vld [vmem:[%s1912 + $0x4] sm:$0xf]
        %v1979 = vld [vmem:[%s1912 + $0x8] sm:$0x1]
        %v1980 = vld [vmem:[%s1912 + $0xc] sm:$0xf]
        %v1981 = vld [vmem:[%s1912 + $0x10] sm:$0xf]
        %v1982 = vld [vmem:[%s1912 + $0x14] sm:$0x1]
        %v1983 = vld [vmem:[%s1912 + $0x18] sm:$0xf]
        %v1984 = vld [vmem:[%s1912 + $0x1c] sm:$0xf]
        %v1985 = vld [vmem:[%s1912 + $0x20] sm:$0x1]
        %v1986 = vld [vmem:[%s1912 + $0x24] sm:$0xf]
        %v1987 = vld [vmem:[%s1912 + $0x28] sm:$0xf]
        %v1988 = vld [vmem:[%s1912 + $0x2c] sm:$0x1]
        %v1989 = vld [vmem:[%s1912 + $0x30] sm:$0xf]
        %v1990 = vld [vmem:[%s1912 + $0x34] sm:$0xf]
        %v1991 = vld [vmem:[%s1912 + $0x38] sm:$0x1]
        %v1992 = vld [vmem:[%s1912 + $0x3c] sm:$0xf]
        %v1993 = vld [vmem:[%s1912 + $0x40] sm:$0xf]
        %v1994 = vld [vmem:[%s1912 + $0x44] sm:$0x1]
        %v1995 = vld [vmem:[%s1912 + $0x48] sm:$0xf]
        %v1996 = vld [vmem:[%s1912 + $0x4c] sm:$0xf]
        %v1997 = vld [vmem:[%s1912 + $0x50] sm:$0x1]
        %v1998 = vld [vmem:[%s1912 + $0x54] sm:$0xf]
        %v1999 = vld [vmem:[%s1912 + $0x58] sm:$0xf]
        %v2000 = vld [vmem:[%s1912 + $0x5c] sm:$0x1]
        %v2001 = vld [vmem:[%s1912 + $0x60] sm:$0xf]
        %v2002 = vld [vmem:[%s1912 + $0x64] sm:$0xf]
        %v2003 = vld [vmem:[%s1912 + $0x68] sm:$0x1]
        %v2004 = vld [vmem:[%s1912 + $0x6c] sm:$0xf]
        %v2005 = vld [vmem:[%s1912 + $0x70] sm:$0xf]
        %v2006 = vld [vmem:[%s1912 + $0x74] sm:$0x1]
        %v2007 = vld [vmem:[%s1912 + $0x78] sm:$0xf]
        %v2008 = vld [vmem:[%s1912 + $0x7c] sm:$0xf]
        %v2009 = vld [vmem:[%s1912 + $0x80] sm:$0x1]
        %v2010 = vld [vmem:[%s1912 + $0x84] sm:$0xf]
        %v2011 = vld [vmem:[%s1912 + $0x88] sm:$0xf]
        %v2012 = vld [vmem:[%s1912 + $0x8c] sm:$0x1]
        %v2013 = vld [vmem:[%s1912 + $0x90] sm:$0xf]
        %v2014 = vld [vmem:[%s1912 + $0x94] sm:$0xf]
        %v2015 = vld [vmem:[%s1912 + $0x98] sm:$0x1]
        %v2016 = vld [vmem:[%s1912 + $0x9c] sm:$0xf]
        %v2017 = vld [vmem:[%s1912 + $0xa0] sm:$0xf]
        %v2018 = vld [vmem:[%s1912 + $0xa4] sm:$0x1]
        %v2019 = vld [vmem:[%s1912 + $0xa8] sm:$0xf]
        %v2020 = vld [vmem:[%s1912 + $0xac] sm:$0xf]
        %v2021 = vld [vmem:[%s1912 + $0xb0] sm:$0x1]
        %v2022 = vld [vmem:[%s1912 + $0xb4] sm:$0xf]
        %v2023 = vld [vmem:[%s1912 + $0xb8] sm:$0xf]
        %v2024 = vld [vmem:[%s1912 + $0xbc] sm:$0x1]
        %v2026 = vshrl.u32 %v1977, 16
        %v2028 = vrot.slane %v2026, 4
        %v2029 = vshll.u32 %v1977, 16
        %v2031 = vrot.slane %v2029, 5
        %v2032 = vor.u32 %v2028, %v2031
        %v2033 = vrot.slane %v2032, 4
        %v2035 = vshll.u32 %v1978, 16
        %v2037 = vrot.slane %v2035, 5
        %v2038 = vsel %vm355, %v2033, %v2037
        %v2039 = vshrl.u32 %v1978, 16
        %v2041 = vrot.slane %v2039, 4
        %v2042 = vor.u32 %v2041, %v2037
        %v2043 = vrot.slane %v2042, 4
        %v2045 = vshll.u32 %v1979, 16
        %v2047 = vrot.slane %v2045, 5
        %v2048 = vsel %vm355, %v2043, %v2047
        %v2050 = vshrl.u32 %v1980, 16
        %v2052 = vrot.slane %v2050, 4
        %v2053 = vshll.u32 %v1980, 16
        %v2055 = vrot.slane %v2053, 5
        %v2056 = vor.u32 %v2052, %v2055
        %v2057 = vrot.slane %v2056, 4
        %v2059 = vshll.u32 %v1981, 16
        %v2061 = vrot.slane %v2059, 5
        %v2062 = vsel %vm355, %v2057, %v2061
        %v2063 = vshrl.u32 %v1981, 16
        %v2065 = vrot.slane %v2063, 4
        %v2066 = vor.u32 %v2065, %v2061
        %v2067 = vrot.slane %v2066, 4
        %v2069 = vshll.u32 %v1982, 16
        %v2071 = vrot.slane %v2069, 5
        %v2072 = vsel %vm355, %v2067, %v2071
        %v2074 = vshrl.u32 %v1983, 16
        %v2076 = vrot.slane %v2074, 4
        %v2077 = vshll.u32 %v1983, 16
        %v2079 = vrot.slane %v2077, 5
        %v2080 = vor.u32 %v2076, %v2079
        %v2081 = vrot.slane %v2080, 4
        %v2083 = vshll.u32 %v1984, 16
        %v2085 = vrot.slane %v2083, 5
        %v2086 = vsel %vm355, %v2081, %v2085
        %v2087 = vshrl.u32 %v1984, 16
        %v2089 = vrot.slane %v2087, 4
        %v2090 = vor.u32 %v2089, %v2085
        %v2091 = vrot.slane %v2090, 4
        %v2093 = vshll.u32 %v1985, 16
        %v2095 = vrot.slane %v2093, 5
        %v2096 = vsel %vm355, %v2091, %v2095
        %v2098 = vshrl.u32 %v1986, 16
        %v2100 = vrot.slane %v2098, 4
        %v2101 = vshll.u32 %v1986, 16
        %v2103 = vrot.slane %v2101, 5
        %v2104 = vor.u32 %v2100, %v2103
        %v2105 = vrot.slane %v2104, 4
        %v2107 = vshll.u32 %v1987, 16
        %v2109 = vrot.slane %v2107, 5
        %v2110 = vsel %vm355, %v2105, %v2109
        %v2111 = vshrl.u32 %v1987, 16
        %v2113 = vrot.slane %v2111, 4
        %v2114 = vor.u32 %v2113, %v2109
        %v2115 = vrot.slane %v2114, 4
        %v2117 = vshll.u32 %v1988, 16
        %v2119 = vrot.slane %v2117, 5
        %v2120 = vsel %vm355, %v2115, %v2119
        %v2122 = vshrl.u32 %v1989, 16
        %v2124 = vrot.slane %v2122, 4
        %v2125 = vshll.u32 %v1989, 16
        %v2127 = vrot.slane %v2125, 5
        %v2128 = vor.u32 %v2124, %v2127
        %v2129 = vrot.slane %v2128, 4
        %v2131 = vshll.u32 %v1990, 16
        %v2133 = vrot.slane %v2131, 5
        %v2134 = vsel %vm355, %v2129, %v2133
        %v2135 = vshrl.u32 %v1990, 16
        %v2137 = vrot.slane %v2135, 4
        %v2138 = vor.u32 %v2137, %v2133
        %v2139 = vrot.slane %v2138, 4
        %v2141 = vshll.u32 %v1991, 16
        %v2143 = vrot.slane %v2141, 5
        %v2144 = vsel %vm355, %v2139, %v2143
        %v2146 = vshrl.u32 %v1992, 16
        %v2148 = vrot.slane %v2146, 4
        %v2149 = vshll.u32 %v1992, 16
        %v2151 = vrot.slane %v2149, 5
        %v2152 = vor.u32 %v2148, %v2151
        %v2153 = vrot.slane %v2152, 4
        %v2155 = vshll.u32 %v1993, 16
        %v2157 = vrot.slane %v2155, 5
        %v2158 = vsel %vm355, %v2153, %v2157
        %v2159 = vshrl.u32 %v1993, 16
        %v2161 = vrot.slane %v2159, 4
        %v2162 = vor.u32 %v2161, %v2157
        %v2163 = vrot.slane %v2162, 4
        %v2165 = vshll.u32 %v1994, 16
        %v2167 = vrot.slane %v2165, 5
        %v2168 = vsel %vm355, %v2163, %v2167
        %v2170 = vshrl.u32 %v1995, 16
        %v2172 = vrot.slane %v2170, 4
        %v2173 = vshll.u32 %v1995, 16
        %v2175 = vrot.slane %v2173, 5
        %v2176 = vor.u32 %v2172, %v2175
        %v2177 = vrot.slane %v2176, 4
        %v2179 = vshll.u32 %v1996, 16
        %v2181 = vrot.slane %v2179, 5
        %v2182 = vsel %vm355, %v2177, %v2181
        %v2183 = vshrl.u32 %v1996, 16
        %v2185 = vrot.slane %v2183, 4
        %v2186 = vor.u32 %v2185, %v2181
        %v2187 = vrot.slane %v2186, 4
        %v2189 = vshll.u32 %v1997, 16
        %v2191 = vrot.slane %v2189, 5
        %v2192 = vsel %vm355, %v2187, %v2191
        %v2194 = vshrl.u32 %v1998, 16
        %v2196 = vrot.slane %v2194, 4
        %v2197 = vshll.u32 %v1998, 16
        %v2199 = vrot.slane %v2197, 5
        %v2200 = vor.u32 %v2196, %v2199
        %v2201 = vrot.slane %v2200, 4
        %v2203 = vshll.u32 %v1999, 16
        %v2205 = vrot.slane %v2203, 5
        %v2206 = vsel %vm355, %v2201, %v2205
        %v2207 = vshrl.u32 %v1999, 16
        %v2209 = vrot.slane %v2207, 4
        %v2210 = vor.u32 %v2209, %v2205
        %v2211 = vrot.slane %v2210, 4
        %v2213 = vshll.u32 %v2000, 16
        %v2215 = vrot.slane %v2213, 5
        %v2216 = vsel %vm355, %v2211, %v2215
        %v2218 = vshrl.u32 %v2001, 16
        %v2220 = vrot.slane %v2218, 4
        %v2221 = vshll.u32 %v2001, 16
        %v2223 = vrot.slane %v2221, 5
        %v2224 = vor.u32 %v2220, %v2223
        %v2225 = vrot.slane %v2224, 4
        %v2227 = vshll.u32 %v2002, 16
        %v2229 = vrot.slane %v2227, 5
        %v2230 = vsel %vm355, %v2225, %v2229
        %v2231 = vshrl.u32 %v2002, 16
        %v2233 = vrot.slane %v2231, 4
        %v2234 = vor.u32 %v2233, %v2229
        %v2235 = vrot.slane %v2234, 4
        %v2237 = vshll.u32 %v2003, 16
        %v2239 = vrot.slane %v2237, 5
        %v2240 = vsel %vm355, %v2235, %v2239
        %v2242 = vshrl.u32 %v2004, 16
        %v2244 = vrot.slane %v2242, 4
        %v2245 = vshll.u32 %v2004, 16
        %v2247 = vrot.slane %v2245, 5
        %v2248 = vor.u32 %v2244, %v2247
        %v2249 = vrot.slane %v2248, 4
        %v2251 = vshll.u32 %v2005, 16
        %v2253 = vrot.slane %v2251, 5
        %v2254 = vsel %vm355, %v2249, %v2253
        %v2255 = vshrl.u32 %v2005, 16
        %v2257 = vrot.slane %v2255, 4
        %v2258 = vor.u32 %v2257, %v2253
        %v2259 = vrot.slane %v2258, 4
        %v2261 = vshll.u32 %v2006, 16
        %v2263 = vrot.slane %v2261, 5
        %v2264 = vsel %vm355, %v2259, %v2263
        %v2266 = vshrl.u32 %v2007, 16
        %v2268 = vrot.slane %v2266, 4
        %v2269 = vshll.u32 %v2007, 16
        %v2271 = vrot.slane %v2269, 5
        %v2272 = vor.u32 %v2268, %v2271
        %v2273 = vrot.slane %v2272, 4
        %v2275 = vshll.u32 %v2008, 16
        %v2277 = vrot.slane %v2275, 5
        %v2278 = vsel %vm355, %v2273, %v2277
        %v2279 = vshrl.u32 %v2008, 16
        %v2281 = vrot.slane %v2279, 4
        %v2282 = vor.u32 %v2281, %v2277
        %v2283 = vrot.slane %v2282, 4
        %v2285 = vshll.u32 %v2009, 16
        %v2287 = vrot.slane %v2285, 5
        %v2288 = vsel %vm355, %v2283, %v2287
        %v2290 = vshrl.u32 %v2010, 16
        %v2292 = vrot.slane %v2290, 4
        %v2293 = vshll.u32 %v2010, 16
        %v2295 = vrot.slane %v2293, 5
        %v2296 = vor.u32 %v2292, %v2295
        %v2297 = vrot.slane %v2296, 4
        %v2299 = vshll.u32 %v2011, 16
        %v2301 = vrot.slane %v2299, 5
        %v2302 = vsel %vm355, %v2297, %v2301
        %v2303 = vshrl.u32 %v2011, 16
        %v2305 = vrot.slane %v2303, 4
        %v2306 = vor.u32 %v2305, %v2301
        %v2307 = vrot.slane %v2306, 4
        %v2309 = vshll.u32 %v2012, 16
        %v2311 = vrot.slane %v2309, 5
        %v2312 = vsel %vm355, %v2307, %v2311
        %v2314 = vshrl.u32 %v2013, 16
        %v2316 = vrot.slane %v2314, 4
        %v2317 = vshll.u32 %v2013, 16
        %v2319 = vrot.slane %v2317, 5
        %v2320 = vor.u32 %v2316, %v2319
        %v2321 = vrot.slane %v2320, 4
        %v2323 = vshll.u32 %v2014, 16
        %v2325 = vrot.slane %v2323, 5
        %v2326 = vsel %vm355, %v2321, %v2325
        %v2327 = vshrl.u32 %v2014, 16
        %v2329 = vrot.slane %v2327, 4
        %v2330 = vor.u32 %v2329, %v2325
        %v2331 = vrot.slane %v2330, 4
        %v2333 = vshll.u32 %v2015, 16
        %v2335 = vrot.slane %v2333, 5
        %v2336 = vsel %vm355, %v2331, %v2335
        %v2338 = vshrl.u32 %v2016, 16
        %v2340 = vrot.slane %v2338, 4
        %v2341 = vshll.u32 %v2016, 16
        %v2343 = vrot.slane %v2341, 5
        %v2344 = vor.u32 %v2340, %v2343
        %v2345 = vrot.slane %v2344, 4
        %v2347 = vshll.u32 %v2017, 16
        %v2349 = vrot.slane %v2347, 5
        %v2350 = vsel %vm355, %v2345, %v2349
        %v2351 = vshrl.u32 %v2017, 16
        %v2353 = vrot.slane %v2351, 4
        %v2354 = vor.u32 %v2353, %v2349
        %v2355 = vrot.slane %v2354, 4
        %v2357 = vshll.u32 %v2018, 16
        %v2359 = vrot.slane %v2357, 5
        %v2360 = vsel %vm355, %v2355, %v2359
        %v2362 = vshrl.u32 %v2019, 16
        %v2364 = vrot.slane %v2362, 4
        %v2365 = vshll.u32 %v2019, 16
        %v2367 = vrot.slane %v2365, 5
        %v2368 = vor.u32 %v2364, %v2367
        %v2369 = vrot.slane %v2368, 4
        %v2371 = vshll.u32 %v2020, 16
        %v2373 = vrot.slane %v2371, 5
        %v2374 = vsel %vm355, %v2369, %v2373
        %v2375 = vshrl.u32 %v2020, 16
        %v2377 = vrot.slane %v2375, 4
        %v2378 = vor.u32 %v2377, %v2373
        %v2379 = vrot.slane %v2378, 4
        %v2381 = vshll.u32 %v2021, 16
        %v2383 = vrot.slane %v2381, 5
        %v2384 = vsel %vm355, %v2379, %v2383
        %v2386 = vshrl.u32 %v2022, 16
        %v2388 = vrot.slane %v2386, 4
        %v2389 = vshll.u32 %v2022, 16
        %v2391 = vrot.slane %v2389, 5
        %v2392 = vor.u32 %v2388, %v2391
        %v2393 = vrot.slane %v2392, 4
        %v2395 = vshll.u32 %v2023, 16
        %v2397 = vrot.slane %v2395, 5
        %v2398 = vsel %vm355, %v2393, %v2397
        %v2399 = vshrl.u32 %v2023, 16
        %v2401 = vrot.slane %v2399, 4
        %v2402 = vor.u32 %v2401, %v2397
        %v2403 = vrot.slane %v2402, 4
        %v2405 = vshll.u32 %v2024, 16
        %v2407 = vrot.slane %v2405, 5
        %v2408 = vsel %vm355, %v2403, %v2407
        %2441 = vst [vmem:[#allocation3 + $0x1c] sm:$0xf] %v2038
        %2442 = vst [vmem:[#allocation3 + $0x40] sm:$0xf] %v2048
        %2443 = vst [vmem:[#allocation3 + $0x64] sm:$0xf] %v2062
        %2444 = vst [vmem:[#allocation3 + $0x88] sm:$0xf] %v2072
        %2445 = vst [vmem:[#allocation3 + $0xac] sm:$0xf] %v2086
        %2446 = vst [vmem:[#allocation3 + $0xd0] sm:$0xf] %v2096
        %2447 = vst [vmem:[#allocation3 + $0xf4] sm:$0xf] %v2110
        %2448 = vst [vmem:[#allocation3 + $0x118] sm:$0xf] %v2120
        %2449 = vst [vmem:[#allocation3 + $0x13c] sm:$0xf] %v2134
        %2450 = vst [vmem:[#allocation3 + $0x160] sm:$0xf] %v2144
        %2451 = vst [vmem:[#allocation3 + $0x184] sm:$0xf] %v2158
        %2452 = vst [vmem:[#allocation3 + $0x1a8] sm:$0xf] %v2168
        %2453 = vst [vmem:[#allocation3 + $0x1cc] sm:$0xf] %v2182
        %2454 = vst [vmem:[#allocation3 + $0x1f0] sm:$0xf] %v2192
        %2455 = vst [vmem:[#allocation3 + $0x214] sm:$0xf] %v2206
        %2456 = vst [vmem:[#allocation3 + $0x238] sm:$0xf] %v2216
        %2457 = vst [vmem:[#allocation3 + $0x25c] sm:$0xf] %v2230
        %2458 = vst [vmem:[#allocation3 + $0x280] sm:$0xf] %v2240
        %2459 = vst [vmem:[#allocation3 + $0x2a4] sm:$0xf] %v2254
        %2460 = vst [vmem:[#allocation3 + $0x2c8] sm:$0xf] %v2264
        %2461 = vst [vmem:[#allocation3 + $0x2ec] sm:$0xf] %v2278
        %2462 = vst [vmem:[#allocation3 + $0x310] sm:$0xf] %v2288
        %2463 = vst [vmem:[#allocation3 + $0x334] sm:$0xf] %v2302
        %2464 = vst [vmem:[#allocation3 + $0x358] sm:$0xf] %v2312
        %2465 = vst [vmem:[#allocation3 + $0x37c] sm:$0xf] %v2326
        %2466 = vst [vmem:[#allocation3 + $0x3a0] sm:$0xf] %v2336
        %2467 = vst [vmem:[#allocation3 + $0x3c4] sm:$0xf] %v2350
        %2468 = vst [vmem:[#allocation3 + $0x3e8] sm:$0xf] %v2360
        %2469 = vst [vmem:[#allocation3 + $0x40c] sm:$0xf] %v2374
        %2470 = vst [vmem:[#allocation3 + $0x430] sm:$0xf] %v2384
        %2471 = vst [vmem:[#allocation3 + $0x454] sm:$0xf] %v2398
        %2472 = vst [vmem:[#allocation3 + $0x478] sm:$0xf] %v2408
        %v2473 = vld [vmem:[%s1912] sm:$0xe]
        %v2474 = vld [vmem:[%s1912 + $0x4] sm:$0xf]
        %v2475 = vld [vmem:[%s1912 + $0x8] sm:$0x1]
        %v2476 = vld [vmem:[%s1912 + $0xc] sm:$0xe]
        %v2477 = vld [vmem:[%s1912 + $0x10] sm:$0xf]
        %v2478 = vld [vmem:[%s1912 + $0x14] sm:$0x1]
        %v2479 = vld [vmem:[%s1912 + $0x18] sm:$0xe]
        %v2480 = vld [vmem:[%s1912 + $0x1c] sm:$0xf]
        %v2481 = vld [vmem:[%s1912 + $0x20] sm:$0x1]
        %v2482 = vld [vmem:[%s1912 + $0x24] sm:$0xe]
        %v2483 = vld [vmem:[%s1912 + $0x28] sm:$0xf]
        %v2484 = vld [vmem:[%s1912 + $0x2c] sm:$0x1]
        %v2485 = vld [vmem:[%s1912 + $0x30] sm:$0xe]
        %v2486 = vld [vmem:[%s1912 + $0x34] sm:$0xf]
        %v2487 = vld [vmem:[%s1912 + $0x38] sm:$0x1]
        %v2488 = vld [vmem:[%s1912 + $0x3c] sm:$0xe]
        %v2489 = vld [vmem:[%s1912 + $0x40] sm:$0xf]
        %v2490 = vld [vmem:[%s1912 + $0x44] sm:$0x1]
        %v2491 = vld [vmem:[%s1912 + $0x48] sm:$0xe]
        %v2492 = vld [vmem:[%s1912 + $0x4c] sm:$0xf]
        %v2493 = vld [vmem:[%s1912 + $0x50] sm:$0x1]
        %v2494 = vld [vmem:[%s1912 + $0x54] sm:$0xe]
        %v2495 = vld [vmem:[%s1912 + $0x58] sm:$0xf]
        %v2496 = vld [vmem:[%s1912 + $0x5c] sm:$0x1]
        %v2497 = vld [vmem:[%s1912 + $0x60] sm:$0xe]
        %v2498 = vld [vmem:[%s1912 + $0x64] sm:$0xf]
        %v2499 = vld [vmem:[%s1912 + $0x68] sm:$0x1]
        %v2500 = vld [vmem:[%s1912 + $0x6c] sm:$0xe]
        %v2501 = vld [vmem:[%s1912 + $0x70] sm:$0xf]
        %v2502 = vld [vmem:[%s1912 + $0x74] sm:$0x1]
        %v2503 = vld [vmem:[%s1912 + $0x78] sm:$0xe]
        %v2504 = vld [vmem:[%s1912 + $0x7c] sm:$0xf]
        %v2505 = vld [vmem:[%s1912 + $0x80] sm:$0x1]
        %v2506 = vld [vmem:[%s1912 + $0x84] sm:$0xe]
        %v2507 = vld [vmem:[%s1912 + $0x88] sm:$0xf]
        %v2508 = vld [vmem:[%s1912 + $0x8c] sm:$0x1]
        %v2509 = vld [vmem:[%s1912 + $0x90] sm:$0xe]
        %v2510 = vld [vmem:[%s1912 + $0x94] sm:$0xf]
        %v2511 = vld [vmem:[%s1912 + $0x98] sm:$0x1]
        %v2512 = vld [vmem:[%s1912 + $0x9c] sm:$0xe]
        %v2513 = vld [vmem:[%s1912 + $0xa0] sm:$0xf]
        %v2514 = vld [vmem:[%s1912 + $0xa4] sm:$0x1]
        %v2515 = vld [vmem:[%s1912 + $0xa8] sm:$0xe]
        %v2516 = vld [vmem:[%s1912 + $0xac] sm:$0xf]
        %v2517 = vld [vmem:[%s1912 + $0xb0] sm:$0x1]
        %v2518 = vld [vmem:[%s1912 + $0xb4] sm:$0xe]
        %v2519 = vld [vmem:[%s1912 + $0xb8] sm:$0xf]
        %v2520 = vld [vmem:[%s1912 + $0xbc] sm:$0x1]
        %v2569 = vrot.slane %v2473, 5
        %v2570 = vrot.slane %v2569, 4
        %v2571 = vrot.slane %v2474, 5
        %v2572 = vsel %vm902, %v2570, %v2571
        %v2573 = vrot.slane %v2571, 4
        %v2574 = vrot.slane %v2475, 5
        %v2575 = vsel %vm902, %v2573, %v2574
        %v2576 = vrot.slane %v2476, 5
        %v2577 = vrot.slane %v2576, 4
        %v2578 = vrot.slane %v2477, 5
        %v2579 = vsel %vm902, %v2577, %v2578
        %v2580 = vrot.slane %v2578, 4
        %v2581 = vrot.slane %v2478, 5
        %v2582 = vsel %vm902, %v2580, %v2581
        %v2583 = vrot.slane %v2479, 5
        %v2584 = vrot.slane %v2583, 4
        %v2585 = vrot.slane %v2480, 5
        %v2586 = vsel %vm902, %v2584, %v2585
        %v2587 = vrot.slane %v2585, 4
        %v2588 = vrot.slane %v2481, 5
        %v2589 = vsel %vm902, %v2587, %v2588
        %v2590 = vrot.slane %v2482, 5
        %v2591 = vrot.slane %v2590, 4
        %v2592 = vrot.slane %v2483, 5
        %v2593 = vsel %vm902, %v2591, %v2592
        %v2594 = vrot.slane %v2592, 4
        %v2595 = vrot.slane %v2484, 5
        %v2596 = vsel %vm902, %v2594, %v2595
        %v2597 = vrot.slane %v2485, 5
        %v2598 = vrot.slane %v2597, 4
        %v2599 = vrot.slane %v2486, 5
        %v2600 = vsel %vm902, %v2598, %v2599
        %v2601 = vrot.slane %v2599, 4
        %v2602 = vrot.slane %v2487, 5
        %v2603 = vsel %vm902, %v2601, %v2602
        %v2604 = vrot.slane %v2488, 5
        %v2605 = vrot.slane %v2604, 4
        %v2606 = vrot.slane %v2489, 5
        %v2607 = vsel %vm902, %v2605, %v2606
        %v2608 = vrot.slane %v2606, 4
        %v2609 = vrot.slane %v2490, 5
        %v2610 = vsel %vm902, %v2608, %v2609
        %v2611 = vrot.slane %v2491, 5
        %v2612 = vrot.slane %v2611, 4
        %v2613 = vrot.slane %v2492, 5
        %v2614 = vsel %vm902, %v2612, %v2613
        %v2615 = vrot.slane %v2613, 4
        %v2616 = vrot.slane %v2493, 5
        %v2617 = vsel %vm902, %v2615, %v2616
        %v2618 = vrot.slane %v2494, 5
        %v2619 = vrot.slane %v2618, 4
        %v2620 = vrot.slane %v2495, 5
        %v2621 = vsel %vm902, %v2619, %v2620
        %v2622 = vrot.slane %v2620, 4
        %v2623 = vrot.slane %v2496, 5
        %v2624 = vsel %vm902, %v2622, %v2623
        %v2625 = vrot.slane %v2497, 5
        %v2626 = vrot.slane %v2625, 4
        %v2627 = vrot.slane %v2498, 5
        %v2628 = vsel %vm902, %v2626, %v2627
        %v2629 = vrot.slane %v2627, 4
        %v2630 = vrot.slane %v2499, 5
        %v2631 = vsel %vm902, %v2629, %v2630
        %v2632 = vrot.slane %v2500, 5
        %v2633 = vrot.slane %v2632, 4
        %v2634 = vrot.slane %v2501, 5
        %v2635 = vsel %vm902, %v2633, %v2634
        %v2636 = vrot.slane %v2634, 4
        %v2637 = vrot.slane %v2502, 5
        %v2638 = vsel %vm902, %v2636, %v2637
        %v2639 = vrot.slane %v2503, 5
        %v2640 = vrot.slane %v2639, 4
        %v2641 = vrot.slane %v2504, 5
        %v2642 = vsel %vm902, %v2640, %v2641
        %v2643 = vrot.slane %v2641, 4
        %v2644 = vrot.slane %v2505, 5
        %v2645 = vsel %vm902, %v2643, %v2644
        %v2646 = vrot.slane %v2506, 5
        %v2647 = vrot.slane %v2646, 4
        %v2648 = vrot.slane %v2507, 5
        %v2649 = vsel %vm902, %v2647, %v2648
        %v2650 = vrot.slane %v2648, 4
        %v2651 = vrot.slane %v2508, 5
        %v2652 = vsel %vm902, %v2650, %v2651
        %v2653 = vrot.slane %v2509, 5
        %v2654 = vrot.slane %v2653, 4
        %v2655 = vrot.slane %v2510, 5
        %v2656 = vsel %vm902, %v2654, %v2655
        %v2657 = vrot.slane %v2655, 4
        %v2658 = vrot.slane %v2511, 5
        %v2659 = vsel %vm902, %v2657, %v2658
        %v2660 = vrot.slane %v2512, 5
        %v2661 = vrot.slane %v2660, 4
        %v2662 = vrot.slane %v2513, 5
        %v2663 = vsel %vm902, %v2661, %v2662
        %v2664 = vrot.slane %v2662, 4
        %v2665 = vrot.slane %v2514, 5
        %v2666 = vsel %vm902, %v2664, %v2665
        %v2667 = vrot.slane %v2515, 5
        %v2668 = vrot.slane %v2667, 4
        %v2669 = vrot.slane %v2516, 5
        %v2670 = vsel %vm902, %v2668, %v2669
        %v2671 = vrot.slane %v2669, 4
        %v2672 = vrot.slane %v2517, 5
        %v2673 = vsel %vm902, %v2671, %v2672
        %v2674 = vrot.slane %v2518, 5
        %v2675 = vrot.slane %v2674, 4
        %v2676 = vrot.slane %v2519, 5
        %v2677 = vsel %vm902, %v2675, %v2676
        %v2678 = vrot.slane %v2676, 4
        %v2679 = vrot.slane %v2520, 5
        %v2680 = vsel %vm902, %v2678, %v2679
        %2713 = vst [vmem:[#allocation3 + $0x20] sm:$0xf] %v2572
        %2714 = vst [vmem:[#allocation3 + $0x44] sm:$0xf] %v2575
        %2715 = vst [vmem:[#allocation3 + $0x68] sm:$0xf] %v2579
        %2716 = vst [vmem:[#allocation3 + $0x8c] sm:$0xf] %v2582
        %2717 = vst [vmem:[#allocation3 + $0xb0] sm:$0xf] %v2586
        %2718 = vst [vmem:[#allocation3 + $0xd4] sm:$0xf] %v2589
        %2719 = vst [vmem:[#allocation3 + $0xf8] sm:$0xf] %v2593
        %2720 = vst [vmem:[#allocation3 + $0x11c] sm:$0xf] %v2596
        %2721 = vst [vmem:[#allocation3 + $0x140] sm:$0xf] %v2600
        %2722 = vst [vmem:[#allocation3 + $0x164] sm:$0xf] %v2603
        %2723 = vst [vmem:[#allocation3 + $0x188] sm:$0xf] %v2607
        %2724 = vst [vmem:[#allocation3 + $0x1ac] sm:$0xf] %v2610
        %2725 = vst [vmem:[#allocation3 + $0x1d0] sm:$0xf] %v2614
        %2726 = vst [vmem:[#allocation3 + $0x1f4] sm:$0xf] %v2617
        %2727 = vst [vmem:[#allocation3 + $0x218] sm:$0xf] %v2621
        %2728 = vst [vmem:[#allocation3 + $0x23c] sm:$0xf] %v2624
        %2729 = vst [vmem:[#allocation3 + $0x260] sm:$0xf] %v2628
        %2730 = vst [vmem:[#allocation3 + $0x284] sm:$0xf] %v2631
        %2731 = vst [vmem:[#allocation3 + $0x2a8] sm:$0xf] %v2635
        %2732 = vst [vmem:[#allocation3 + $0x2cc] sm:$0xf] %v2638
        %2733 = vst [vmem:[#allocation3 + $0x2f0] sm:$0xf] %v2642
        %2734 = vst [vmem:[#allocation3 + $0x314] sm:$0xf] %v2645
        %2735 = vst [vmem:[#allocation3 + $0x338] sm:$0xf] %v2649
        %2736 = vst [vmem:[#allocation3 + $0x35c] sm:$0xf] %v2652
        %2737 = vst [vmem:[#allocation3 + $0x380] sm:$0xf] %v2656
        %2738 = vst [vmem:[#allocation3 + $0x3a4] sm:$0xf] %v2659
        %2739 = vst [vmem:[#allocation3 + $0x3c8] sm:$0xf] %v2663
        %2740 = vst [vmem:[#allocation3 + $0x3ec] sm:$0xf] %v2666
        %2741 = vst [vmem:[#allocation3 + $0x410] sm:$0xf] %v2670
        %2742 = vst [vmem:[#allocation3 + $0x434] sm:$0xf] %v2673
        %2743 = vst [vmem:[#allocation3 + $0x458] sm:$0xf] %v2677
        %2744 = vst [vmem:[#allocation3 + $0x47c] sm:$0xf] %v2680
        %v2745 = vld [vmem:[#allocation3] sm:$0xff]
        %v2746 = vld [vmem:[#allocation3 + $0x8] sm:$0xff]
        %v2747 = vld [vmem:[#allocation3 + $0x10] sm:$0xff]
        %v2748 = vld [vmem:[#allocation3 + $0x18] sm:$0xff]
        %v2749 = vld [vmem:[#allocation3 + $0x20] sm:$0xf]
        %v2750 = vld [vmem:[#allocation3 + $0x24] sm:$0xff]
        %v2751 = vld [vmem:[#allocation3 + $0x2c] sm:$0xff]
        %v2752 = vld [vmem:[#allocation3 + $0x34] sm:$0xff]
        %v2753 = vld [vmem:[#allocation3 + $0x3c] sm:$0xff]
        %v2754 = vld [vmem:[#allocation3 + $0x44] sm:$0xf]
        %v2755 = vld [vmem:[#allocation3 + $0x48] sm:$0xff]
        %v2756 = vld [vmem:[#allocation3 + $0x50] sm:$0xff]
        %v2757 = vld [vmem:[#allocation3 + $0x58] sm:$0xff]
        %v2758 = vld [vmem:[#allocation3 + $0x60] sm:$0xff]
        %v2759 = vld [vmem:[#allocation3 + $0x68] sm:$0xf]
        %v2760 = vld [vmem:[#allocation3 + $0x6c] sm:$0xff]
        %v2761 = vld [vmem:[#allocation3 + $0x74] sm:$0xff]
        %v2762 = vld [vmem:[#allocation3 + $0x7c] sm:$0xff]
        %v2763 = vld [vmem:[#allocation3 + $0x84] sm:$0xff]
        %v2764 = vld [vmem:[#allocation3 + $0x8c] sm:$0xf]
        %v2765 = vld [vmem:[#allocation3 + $0x90] sm:$0xff]
        %v2766 = vld [vmem:[#allocation3 + $0x98] sm:$0xff]
        %v2767 = vld [vmem:[#allocation3 + $0xa0] sm:$0xff]
        %v2768 = vld [vmem:[#allocation3 + $0xa8] sm:$0xff]
        %v2769 = vld [vmem:[#allocation3 + $0xb0] sm:$0xf]
        %v2770 = vld [vmem:[#allocation3 + $0xb4] sm:$0xff]
        %v2771 = vld [vmem:[#allocation3 + $0xbc] sm:$0xff]
        %v2772 = vld [vmem:[#allocation3 + $0xc4] sm:$0xff]
        %v2773 = vld [vmem:[#allocation3 + $0xcc] sm:$0xff]
        %v2774 = vld [vmem:[#allocation3 + $0xd4] sm:$0xf]
        %v2775 = vld [vmem:[#allocation3 + $0xd8] sm:$0xff]
        %v2776 = vld [vmem:[#allocation3 + $0xe0] sm:$0xff]
        %v2777 = vld [vmem:[#allocation3 + $0xe8] sm:$0xff]
        %v2778 = vld [vmem:[#allocation3 + $0xf0] sm:$0xff]
        %v2779 = vld [vmem:[#allocation3 + $0xf8] sm:$0xf]
        %v2780 = vld [vmem:[#allocation3 + $0xfc] sm:$0xff]
        %v2781 = vld [vmem:[#allocation3 + $0x104] sm:$0xff]
        %v2782 = vld [vmem:[#allocation3 + $0x10c] sm:$0xff]
        %v2783 = vld [vmem:[#allocation3 + $0x114] sm:$0xff]
        %v2784 = vld [vmem:[#allocation3 + $0x11c] sm:$0xf]
        %v2785 = vld [vmem:[#allocation3 + $0x120] sm:$0xff]
        %v2786 = vld [vmem:[#allocation3 + $0x128] sm:$0xff]
        %v2787 = vld [vmem:[#allocation3 + $0x130] sm:$0xff]
        %v2788 = vld [vmem:[#allocation3 + $0x138] sm:$0xff]
        %v2789 = vld [vmem:[#allocation3 + $0x140] sm:$0xf]
        %v2790 = vld [vmem:[#allocation3 + $0x144] sm:$0xff]
        %v2791 = vld [vmem:[#allocation3 + $0x14c] sm:$0xff]
        %v2792 = vld [vmem:[#allocation3 + $0x154] sm:$0xff]
        %v2793 = vld [vmem:[#allocation3 + $0x15c] sm:$0xff]
        %v2794 = vld [vmem:[#allocation3 + $0x164] sm:$0xf]
        %v2795 = vld [vmem:[#allocation3 + $0x168] sm:$0xff]
        %v2796 = vld [vmem:[#allocation3 + $0x170] sm:$0xff]
        %v2797 = vld [vmem:[#allocation3 + $0x178] sm:$0xff]
        %v2798 = vld [vmem:[#allocation3 + $0x180] sm:$0xff]
        %v2799 = vld [vmem:[#allocation3 + $0x188] sm:$0xf]
        %v2800 = vld [vmem:[#allocation3 + $0x18c] sm:$0xff]
        %v2801 = vld [vmem:[#allocation3 + $0x194] sm:$0xff]
        %v2802 = vld [vmem:[#allocation3 + $0x19c] sm:$0xff]
        %v2803 = vld [vmem:[#allocation3 + $0x1a4] sm:$0xff]
        %v2804 = vld [vmem:[#allocation3 + $0x1ac] sm:$0xf]
        %v2805 = vld [vmem:[#allocation3 + $0x1b0] sm:$0xff]
        %v2806 = vld [vmem:[#allocation3 + $0x1b8] sm:$0xff]
        %v2807 = vld [vmem:[#allocation3 + $0x1c0] sm:$0xff]
        %v2808 = vld [vmem:[#allocation3 + $0x1c8] sm:$0xff]
        %v2809 = vld [vmem:[#allocation3 + $0x1d0] sm:$0xf]
        %v2810 = vld [vmem:[#allocation3 + $0x1d4] sm:$0xff]
        %v2811 = vld [vmem:[#allocation3 + $0x1dc] sm:$0xff]
        %v2812 = vld [vmem:[#allocation3 + $0x1e4] sm:$0xff]
        %v2813 = vld [vmem:[#allocation3 + $0x1ec] sm:$0xff]
        %v2814 = vld [vmem:[#allocation3 + $0x1f4] sm:$0xf]
        %v2815 = vld [vmem:[#allocation3 + $0x1f8] sm:$0xff]
        %v2816 = vld [vmem:[#allocation3 + $0x200] sm:$0xff]
        %v2817 = vld [vmem:[#allocation3 + $0x208] sm:$0xff]
        %v2818 = vld [vmem:[#allocation3 + $0x210] sm:$0xff]
        %v2819 = vld [vmem:[#allocation3 + $0x218] sm:$0xf]
        %v2820 = vld [vmem:[#allocation3 + $0x21c] sm:$0xff]
        %v2821 = vld [vmem:[#allocation3 + $0x224] sm:$0xff]
        %v2822 = vld [vmem:[#allocation3 + $0x22c] sm:$0xff]
        %v2823 = vld [vmem:[#allocation3 + $0x234] sm:$0xff]
        %v2824 = vld [vmem:[#allocation3 + $0x23c] sm:$0xf]
        %v2825 = vld [vmem:[#allocation3 + $0x240] sm:$0xff]
        %v2826 = vld [vmem:[#allocation3 + $0x248] sm:$0xff]
        %v2827 = vld [vmem:[#allocation3 + $0x250] sm:$0xff]
        %v2828 = vld [vmem:[#allocation3 + $0x258] sm:$0xff]
        %v2829 = vld [vmem:[#allocation3 + $0x260] sm:$0xf]
        %v2830 = vld [vmem:[#allocation3 + $0x264] sm:$0xff]
        %v2831 = vld [vmem:[#allocation3 + $0x26c] sm:$0xff]
        %v2832 = vld [vmem:[#allocation3 + $0x274] sm:$0xff]
        %v2833 = vld [vmem:[#allocation3 + $0x27c] sm:$0xff]
        %v2834 = vld [vmem:[#allocation3 + $0x284] sm:$0xf]
        %v2835 = vld [vmem:[#allocation3 + $0x288] sm:$0xff]
        %v2836 = vld [vmem:[#allocation3 + $0x290] sm:$0xff]
        %v2837 = vld [vmem:[#allocation3 + $0x298] sm:$0xff]
        %v2838 = vld [vmem:[#allocation3 + $0x2a0] sm:$0xff]
        %v2839 = vld [vmem:[#allocation3 + $0x2a8] sm:$0xf]
        %v2840 = vld [vmem:[#allocation3 + $0x2ac] sm:$0xff]
        %v2841 = vld [vmem:[#allocation3 + $0x2b4] sm:$0xff]
        %v2842 = vld [vmem:[#allocation3 + $0x2bc] sm:$0xff]
        %v2843 = vld [vmem:[#allocation3 + $0x2c4] sm:$0xff]
        %v2844 = vld [vmem:[#allocation3 + $0x2cc] sm:$0xf]
        %v2845 = vld [vmem:[#allocation3 + $0x2d0] sm:$0xff]
        %v2846 = vld [vmem:[#allocation3 + $0x2d8] sm:$0xff]
        %v2847 = vld [vmem:[#allocation3 + $0x2e0] sm:$0xff]
        %v2848 = vld [vmem:[#allocation3 + $0x2e8] sm:$0xff]
        %v2849 = vld [vmem:[#allocation3 + $0x2f0] sm:$0xf]
        %v2850 = vld [vmem:[#allocation3 + $0x2f4] sm:$0xff]
        %v2851 = vld [vmem:[#allocation3 + $0x2fc] sm:$0xff]
        %v2852 = vld [vmem:[#allocation3 + $0x304] sm:$0xff]
        %v2853 = vld [vmem:[#allocation3 + $0x30c] sm:$0xff]
        %v2854 = vld [vmem:[#allocation3 + $0x314] sm:$0xf]
        %v2855 = vld [vmem:[#allocation3 + $0x318] sm:$0xff]
        %v2856 = vld [vmem:[#allocation3 + $0x320] sm:$0xff]
        %v2857 = vld [vmem:[#allocation3 + $0x328] sm:$0xff]
        %v2858 = vld [vmem:[#allocation3 + $0x330] sm:$0xff]
        %v2859 = vld [vmem:[#allocation3 + $0x338] sm:$0xf]
        %v2860 = vld [vmem:[#allocation3 + $0x33c] sm:$0xff]
        %v2861 = vld [vmem:[#allocation3 + $0x344] sm:$0xff]
        %v2862 = vld [vmem:[#allocation3 + $0x34c] sm:$0xff]
        %v2863 = vld [vmem:[#allocation3 + $0x354] sm:$0xff]
        %v2864 = vld [vmem:[#allocation3 + $0x35c] sm:$0xf]
        %v2865 = vld [vmem:[#allocation3 + $0x360] sm:$0xff]
        %v2866 = vld [vmem:[#allocation3 + $0x368] sm:$0xff]
        %v2867 = vld [vmem:[#allocation3 + $0x370] sm:$0xff]
        %v2868 = vld [vmem:[#allocation3 + $0x378] sm:$0xff]
        %v2869 = vld [vmem:[#allocation3 + $0x380] sm:$0xf]
        %v2870 = vld [vmem:[#allocation3 + $0x384] sm:$0xff]
        %v2871 = vld [vmem:[#allocation3 + $0x38c] sm:$0xff]
        %v2872 = vld [vmem:[#allocation3 + $0x394] sm:$0xff]
        %v2873 = vld [vmem:[#allocation3 + $0x39c] sm:$0xff]
        %v2874 = vld [vmem:[#allocation3 + $0x3a4] sm:$0xf]
        %v2875 = vld [vmem:[#allocation3 + $0x3a8] sm:$0xff]
        %v2876 = vld [vmem:[#allocation3 + $0x3b0] sm:$0xff]
        %v2877 = vld [vmem:[#allocation3 + $0x3b8] sm:$0xff]
        %v2878 = vld [vmem:[#allocation3 + $0x3c0] sm:$0xff]
        %v2879 = vld [vmem:[#allocation3 + $0x3c8] sm:$0xf]
        %v2880 = vld [vmem:[#allocation3 + $0x3cc] sm:$0xff]
        %v2881 = vld [vmem:[#allocation3 + $0x3d4] sm:$0xff]
        %v2882 = vld [vmem:[#allocation3 + $0x3dc] sm:$0xff]
        %v2883 = vld [vmem:[#allocation3 + $0x3e4] sm:$0xff]
        %v2884 = vld [vmem:[#allocation3 + $0x3ec] sm:$0xf]
        %v2885 = vld [vmem:[#allocation3 + $0x3f0] sm:$0xff]
        %v2886 = vld [vmem:[#allocation3 + $0x3f8] sm:$0xff]
        %v2887 = vld [vmem:[#allocation3 + $0x400] sm:$0xff]
        %v2888 = vld [vmem:[#allocation3 + $0x408] sm:$0xff]
        %v2889 = vld [vmem:[#allocation3 + $0x410] sm:$0xf]
        %v2890 = vld [vmem:[#allocation3 + $0x414] sm:$0xff]
        %v2891 = vld [vmem:[#allocation3 + $0x41c] sm:$0xff]
        %v2892 = vld [vmem:[#allocation3 + $0x424] sm:$0xff]
        %v2893 = vld [vmem:[#allocation3 + $0x42c] sm:$0xff]
        %v2894 = vld [vmem:[#allocation3 + $0x434] sm:$0xf]
        %v2895 = vld [vmem:[#allocation3 + $0x438] sm:$0xff]
        %v2896 = vld [vmem:[#allocation3 + $0x440] sm:$0xff]
        %v2897 = vld [vmem:[#allocation3 + $0x448] sm:$0xff]
        %v2898 = vld [vmem:[#allocation3 + $0x450] sm:$0xff]
        %v2899 = vld [vmem:[#allocation3 + $0x458] sm:$0xf]
        %v2900 = vld [vmem:[#allocation3 + $0x45c] sm:$0xff]
        %v2901 = vld [vmem:[#allocation3 + $0x464] sm:$0xff]
        %v2902 = vld [vmem:[#allocation3 + $0x46c] sm:$0xff]
        %v2903 = vld [vmem:[#allocation3 + $0x474] sm:$0xff]
        %v2904 = vld [vmem:[#allocation3 + $0x47c] sm:$0xf]
        %v2905 = vld [vmem:[%s1] sm:$0xf]
        %v2906 = vld [vmem:[%s1 + $0x4] sm:$0xf]
        %v2907 = vld [vmem:[%s1 + $0x8] sm:$0xf]
        %v2908 = vld [vmem:[%s1 + $0xc] sm:$0xf]
        %v2909 = vld [vmem:[%s1 + $0x10] sm:$0xf]
        %v2910 = vld [vmem:[%s1 + $0x14] sm:$0xf]
        %v2911 = vld [vmem:[%s1 + $0x18] sm:$0xf]
        %v2912 = vld [vmem:[%s1 + $0x1c] sm:$0xf]
        %v2913 = vld [vmem:[%s1 + $0x20] sm:$0xf]
        %v2914 = vld [vmem:[%s1 + $0x24] sm:$0xf]
        %v2915 = vld [vmem:[%s1 + $0x28] sm:$0xf]
        %v2916 = vld [vmem:[%s1 + $0x2c] sm:$0xf]
        %v2917 = vld [vmem:[%s1 + $0x30] sm:$0xf]
        %v2918 = vld [vmem:[%s1 + $0x34] sm:$0xf]
        %v2919 = vld [vmem:[%s1 + $0x38] sm:$0xf]
        %v2920 = vld [vmem:[%s1 + $0x3c] sm:$0xf]
        %v2921 = vld [vmem:[%s1 + $0x40] sm:$0xf]
        %v2922 = vld [vmem:[%s1 + $0x44] sm:$0xf]
        %v2923 = vld [vmem:[%s1 + $0x48] sm:$0xf]
        %v2924 = vld [vmem:[%s1 + $0x4c] sm:$0xf]
        %v2925 = vld [vmem:[%s1 + $0x50] sm:$0xf]
        %v2926 = vld [vmem:[%s1 + $0x54] sm:$0xf]
        %v2927 = vld [vmem:[%s1 + $0x58] sm:$0xf]
        %v2928 = vld [vmem:[%s1 + $0x5c] sm:$0xf]
        %v2929 = vld [vmem:[%s1 + $0x60] sm:$0xf]
        %v2930 = vld [vmem:[%s1 + $0x64] sm:$0xf]
        %v2931 = vld [vmem:[%s1 + $0x68] sm:$0xf]
        %v2932 = vld [vmem:[%s1 + $0x6c] sm:$0xf]
        %v2933 = vld [vmem:[%s1 + $0x70] sm:$0xf]
        %v2934 = vld [vmem:[%s1 + $0x74] sm:$0xf]
        %v2935 = vld [vmem:[%s1 + $0x78] sm:$0xf]
        %v2936 = vld [vmem:[%s1 + $0x7c] sm:$0xf]
        %v2937 = vld [vmem:[%s1 + $0x80] sm:$0xf]
        %v2938 = vld [vmem:[%s1 + $0x84] sm:$0xf]
        %v2939 = vld [vmem:[%s1 + $0x88] sm:$0xf]
        %v2940 = vld [vmem:[%s1 + $0x8c] sm:$0xf]
        %v2941 = vld [vmem:[%s1 + $0x90] sm:$0xf]
        %v2942 = vld [vmem:[%s1 + $0x94] sm:$0xf]
        %v2943 = vld [vmem:[%s1 + $0x98] sm:$0xf]
        %v2944 = vld [vmem:[%s1 + $0x9c] sm:$0xf]
        %v2945 = vld [vmem:[%s1 + $0xa0] sm:$0xf]
        %v2946 = vld [vmem:[%s1 + $0xa4] sm:$0xf]
        %v2947 = vld [vmem:[%s1 + $0xa8] sm:$0xf]
        %v2948 = vld [vmem:[%s1 + $0xac] sm:$0xf]
        %v2949 = vld [vmem:[%s1 + $0xb0] sm:$0xf]
        %v2950 = vld [vmem:[%s1 + $0xb4] sm:$0xf]
        %v2951 = vld [vmem:[%s1 + $0xb8] sm:$0xf]
        %v2952 = vld [vmem:[%s1 + $0xbc] sm:$0xf]
        %v2953 = vld [vmem:[%s1 + $0xc0] sm:$0xf]
        %v2954 = vld [vmem:[%s1 + $0xc4] sm:$0xf]
        %v2955 = vld [vmem:[%s1 + $0xc8] sm:$0xf]
        %v2956 = vld [vmem:[%s1 + $0xcc] sm:$0xf]
        %v2957 = vld [vmem:[%s1 + $0xd0] sm:$0xf]
        %v2958 = vld [vmem:[%s1 + $0xd4] sm:$0xf]
        %v2959 = vld [vmem:[%s1 + $0xd8] sm:$0xf]
        %v2960 = vld [vmem:[%s1 + $0xdc] sm:$0xf]
        %v2961 = vld [vmem:[%s1 + $0xe0] sm:$0xf]
        %v2962 = vld [vmem:[%s1 + $0xe4] sm:$0xf]
        %v2963 = vld [vmem:[%s1 + $0xe8] sm:$0xf]
        %v2964 = vld [vmem:[%s1 + $0xec] sm:$0xf]
        %v2965 = vld [vmem:[%s1 + $0xf0] sm:$0xf]
        %v2966 = vld [vmem:[%s1 + $0xf4] sm:$0xf]
        %v2967 = vld [vmem:[%s1 + $0xf8] sm:$0xf]
        %v2968 = vld [vmem:[%s1 + $0xfc] sm:$0xf]
        %v2969 = vld [vmem:[%s1 + $0x100] sm:$0xf]
        %v2970 = vld [vmem:[%s1 + $0x104] sm:$0xf]
        %v2971 = vld [vmem:[%s1 + $0x108] sm:$0xf]
        %v2972 = vld [vmem:[%s1 + $0x10c] sm:$0xf]
        %v2973 = vld [vmem:[%s1 + $0x110] sm:$0xf]
        %v2974 = vld [vmem:[%s1 + $0x114] sm:$0xf]
        %v2975 = vld [vmem:[%s1 + $0x118] sm:$0xf]
        %v2976 = vld [vmem:[%s1 + $0x11c] sm:$0xf]
        %v2977 = vld [vmem:[%s1 + $0x120] sm:$0xf]
        %v2978 = vld [vmem:[%s1 + $0x124] sm:$0xf]
        %v2979 = vld [vmem:[%s1 + $0x128] sm:$0xf]
        %v2980 = vld [vmem:[%s1 + $0x12c] sm:$0xf]
        %v2981 = vld [vmem:[%s1 + $0x130] sm:$0xf]
        %v2982 = vld [vmem:[%s1 + $0x134] sm:$0xf]
        %v2983 = vld [vmem:[%s1 + $0x138] sm:$0xf]
        %v2984 = vld [vmem:[%s1 + $0x13c] sm:$0xf]
        %v2985 = vld [vmem:[%s1 + $0x140] sm:$0xf]
        %v2986 = vld [vmem:[%s1 + $0x144] sm:$0xf]
        %v2987 = vld [vmem:[%s1 + $0x148] sm:$0xf]
        %v2988 = vld [vmem:[%s1 + $0x14c] sm:$0xf]
        %v2989 = vld [vmem:[%s1 + $0x150] sm:$0xf]
        %v2990 = vld [vmem:[%s1 + $0x154] sm:$0xf]
        %v2991 = vld [vmem:[%s1 + $0x158] sm:$0xf]
        %v2992 = vld [vmem:[%s1 + $0x15c] sm:$0xf]
        %v2993 = vld [vmem:[%s1 + $0x160] sm:$0xf]
        %v2994 = vld [vmem:[%s1 + $0x164] sm:$0xf]
        %v2995 = vld [vmem:[%s1 + $0x168] sm:$0xf]
        %v2996 = vld [vmem:[%s1 + $0x16c] sm:$0xf]
        %v2997 = vld [vmem:[%s1 + $0x170] sm:$0xf]
        %v2998 = vld [vmem:[%s1 + $0x174] sm:$0xf]
        %v2999 = vld [vmem:[%s1 + $0x178] sm:$0xf]
        %v3000 = vld [vmem:[%s1 + $0x17c] sm:$0xf]
        %v3001 = vld [vmem:[%s1 + $0x180] sm:$0xf]
        %v3002 = vld [vmem:[%s1 + $0x184] sm:$0xf]
        %v3003 = vld [vmem:[%s1 + $0x188] sm:$0xf]
        %v3004 = vld [vmem:[%s1 + $0x18c] sm:$0xf]
        %v3005 = vld [vmem:[%s1 + $0x190] sm:$0xf]
        %v3006 = vld [vmem:[%s1 + $0x194] sm:$0xf]
        %v3007 = vld [vmem:[%s1 + $0x198] sm:$0xf]
        %v3008 = vld [vmem:[%s1 + $0x19c] sm:$0xf]
        %v3009 = vld [vmem:[%s1 + $0x1a0] sm:$0xf]
        %v3010 = vld [vmem:[%s1 + $0x1a4] sm:$0xf]
        %v3011 = vld [vmem:[%s1 + $0x1a8] sm:$0xf]
        %v3012 = vld [vmem:[%s1 + $0x1ac] sm:$0xf]
        %v3013 = vld [vmem:[%s1 + $0x1b0] sm:$0xf]
        %v3014 = vld [vmem:[%s1 + $0x1b4] sm:$0xf]
        %v3015 = vld [vmem:[%s1 + $0x1b8] sm:$0xf]
        %v3016 = vld [vmem:[%s1 + $0x1bc] sm:$0xf]
        %v3017 = vld [vmem:[%s1 + $0x1c0] sm:$0xf]
        %v3018 = vld [vmem:[%s1 + $0x1c4] sm:$0xf]
        %v3019 = vld [vmem:[%s1 + $0x1c8] sm:$0xf]
        %v3020 = vld [vmem:[%s1 + $0x1cc] sm:$0xf]
        %v3021 = vld [vmem:[%s1 + $0x1d0] sm:$0xf]
        %v3022 = vld [vmem:[%s1 + $0x1d4] sm:$0xf]
        %v3023 = vld [vmem:[%s1 + $0x1d8] sm:$0xf]
        %v3024 = vld [vmem:[%s1 + $0x1dc] sm:$0xf]
        %v3025 = vld [vmem:[%s1 + $0x1e0] sm:$0xf]
        %v3026 = vld [vmem:[%s1 + $0x1e4] sm:$0xf]
        %v3027 = vld [vmem:[%s1 + $0x1e8] sm:$0xf]
        %v3028 = vld [vmem:[%s1 + $0x1ec] sm:$0xf]
        %v3029 = vld [vmem:[%s1 + $0x1f0] sm:$0xf]
        %v3030 = vld [vmem:[%s1 + $0x1f4] sm:$0xf]
        %v3031 = vld [vmem:[%s1 + $0x1f8] sm:$0xf]
        %v3032 = vld [vmem:[%s1 + $0x1fc] sm:$0xf]
        %v3033 = vld [vmem:[%s1 + $0x200] sm:$0xf]
        %v3034 = vld [vmem:[%s1 + $0x204] sm:$0xf]
        %v3035 = vld [vmem:[%s1 + $0x208] sm:$0xf]
        %v3036 = vld [vmem:[%s1 + $0x20c] sm:$0xf]
        %v3037 = vld [vmem:[%s1 + $0x210] sm:$0xf]
        %v3038 = vld [vmem:[%s1 + $0x214] sm:$0xf]
        %v3039 = vld [vmem:[%s1 + $0x218] sm:$0xf]
        %v3040 = vld [vmem:[%s1 + $0x21c] sm:$0xf]
        %v3041 = vld [vmem:[%s1 + $0x220] sm:$0xf]
        %v3042 = vld [vmem:[%s1 + $0x224] sm:$0xf]
        %v3043 = vld [vmem:[%s1 + $0x228] sm:$0xf]
        %v3044 = vld [vmem:[%s1 + $0x22c] sm:$0xf]
        %v3045 = vld [vmem:[%s1 + $0x230] sm:$0xf]
        %v3046 = vld [vmem:[%s1 + $0x234] sm:$0xf]
        %v3047 = vld [vmem:[%s1 + $0x238] sm:$0xf]
        %v3048 = vld [vmem:[%s1 + $0x23c] sm:$0xf]
        %v3049 = vld [vmem:[%s2] sm:$0x1]
        %v3051 = vperm.slane %v3049, 0
        %v3213 = vunpack.c.l.b16 %v2745
        %v3214 = vunpack.c.h.b16 %v2745
        %v3215 = vunpack.c.l.b16 %v2746
        %v3216 = vunpack.c.h.b16 %v2746
        %v3217 = vunpack.c.l.b16 %v2747
        %v3218 = vunpack.c.h.b16 %v2747
        %v3219 = vunpack.c.l.b16 %v2748
        %v3220 = vunpack.c.h.b16 %v2748
        %v3221 = vunpack.c.l.b16 %v2749
        %v3222 = vunpack.c.l.b16 %v2750
        %v3223 = vunpack.c.h.b16 %v2750
        %v3224 = vunpack.c.l.b16 %v2751
        %v3225 = vunpack.c.h.b16 %v2751
        %v3226 = vunpack.c.l.b16 %v2752
        %v3227 = vunpack.c.h.b16 %v2752
        %v3228 = vunpack.c.l.b16 %v2753
        %v3229 = vunpack.c.h.b16 %v2753
        %v3230 = vunpack.c.l.b16 %v2754
        %v3231 = vunpack.c.l.b16 %v2755
        %v3232 = vunpack.c.h.b16 %v2755
        %v3233 = vunpack.c.l.b16 %v2756
        %v3234 = vunpack.c.h.b16 %v2756
        %v3235 = vunpack.c.l.b16 %v2757
        %v3236 = vunpack.c.h.b16 %v2757
        %v3237 = vunpack.c.l.b16 %v2758
        %v3238 = vunpack.c.h.b16 %v2758
        %v3239 = vunpack.c.l.b16 %v2759
        %v3240 = vunpack.c.l.b16 %v2760
        %v3241 = vunpack.c.h.b16 %v2760
        %v3242 = vunpack.c.l.b16 %v2761
        %v3243 = vunpack.c.h.b16 %v2761
        %v3244 = vunpack.c.l.b16 %v2762
        %v3245 = vunpack.c.h.b16 %v2762
        %v3246 = vunpack.c.l.b16 %v2763
        %v3247 = vunpack.c.h.b16 %v2763
        %v3248 = vunpack.c.l.b16 %v2764
        %v3249 = vunpack.c.l.b16 %v2765
        %v3250 = vunpack.c.h.b16 %v2765
        %v3251 = vunpack.c.l.b16 %v2766
        %v3252 = vunpack.c.h.b16 %v2766
        %v3253 = vunpack.c.l.b16 %v2767
        %v3254 = vunpack.c.h.b16 %v2767
        %v3255 = vunpack.c.l.b16 %v2768
        %v3256 = vunpack.c.h.b16 %v2768
        %v3257 = vunpack.c.l.b16 %v2769
        %v3258 = vunpack.c.l.b16 %v2770
        %v3259 = vunpack.c.h.b16 %v2770
        %v3260 = vunpack.c.l.b16 %v2771
        %v3261 = vunpack.c.h.b16 %v2771
        %v3262 = vunpack.c.l.b16 %v2772
        %v3263 = vunpack.c.h.b16 %v2772
        %v3264 = vunpack.c.l.b16 %v2773
        %v3265 = vunpack.c.h.b16 %v2773
        %v3266 = vunpack.c.l.b16 %v2774
        %v3267 = vunpack.c.l.b16 %v2775
        %v3268 = vunpack.c.h.b16 %v2775
        %v3269 = vunpack.c.l.b16 %v2776
        %v3270 = vunpack.c.h.b16 %v2776
        %v3271 = vunpack.c.l.b16 %v2777
        %v3272 = vunpack.c.h.b16 %v2777
        %v3273 = vunpack.c.l.b16 %v2778
        %v3274 = vunpack.c.h.b16 %v2778
        %v3275 = vunpack.c.l.b16 %v2779
        %v3276 = vunpack.c.l.b16 %v2780
        %v3277 = vunpack.c.h.b16 %v2780
        %v3278 = vunpack.c.l.b16 %v2781
        %v3279 = vunpack.c.h.b16 %v2781
        %v3280 = vunpack.c.l.b16 %v2782
        %v3281 = vunpack.c.h.b16 %v2782
        %v3282 = vunpack.c.l.b16 %v2783
        %v3283 = vunpack.c.h.b16 %v2783
        %v3284 = vunpack.c.l.b16 %v2784
        %v3285 = vunpack.c.l.b16 %v2785
        %v3286 = vunpack.c.h.b16 %v2785
        %v3287 = vunpack.c.l.b16 %v2786
        %v3288 = vunpack.c.h.b16 %v2786
        %v3289 = vunpack.c.l.b16 %v2787
        %v3290 = vunpack.c.h.b16 %v2787
        %v3291 = vunpack.c.l.b16 %v2788
        %v3292 = vunpack.c.h.b16 %v2788
        %v3293 = vunpack.c.l.b16 %v2789
        %v3294 = vunpack.c.l.b16 %v2790
        %v3295 = vunpack.c.h.b16 %v2790
        %v3296 = vunpack.c.l.b16 %v2791
        %v3297 = vunpack.c.h.b16 %v2791
        %v3298 = vunpack.c.l.b16 %v2792
        %v3299 = vunpack.c.h.b16 %v2792
        %v3300 = vunpack.c.l.b16 %v2793
        %v3301 = vunpack.c.h.b16 %v2793
        %v3302 = vunpack.c.l.b16 %v2794
        %v3303 = vunpack.c.l.b16 %v2795
        %v3304 = vunpack.c.h.b16 %v2795
        %v3305 = vunpack.c.l.b16 %v2796
        %v3306 = vunpack.c.h.b16 %v2796
        %v3307 = vunpack.c.l.b16 %v2797
        %v3308 = vunpack.c.h.b16 %v2797
        %v3309 = vunpack.c.l.b16 %v2798
        %v3310 = vunpack.c.h.b16 %v2798
        %v3311 = vunpack.c.l.b16 %v2799
        %v3312 = vunpack.c.l.b16 %v2800
        %v3313 = vunpack.c.h.b16 %v2800
        %v3314 = vunpack.c.l.b16 %v2801
        %v3315 = vunpack.c.h.b16 %v2801
        %v3316 = vunpack.c.l.b16 %v2802
        %v3317 = vunpack.c.h.b16 %v2802
        %v3318 = vunpack.c.l.b16 %v2803
        %v3319 = vunpack.c.h.b16 %v2803
        %v3320 = vunpack.c.l.b16 %v2804
        %v3321 = vunpack.c.l.b16 %v2805
        %v3322 = vunpack.c.h.b16 %v2805
        %v3323 = vunpack.c.l.b16 %v2806
        %v3324 = vunpack.c.h.b16 %v2806
        %v3325 = vunpack.c.l.b16 %v2807
        %v3326 = vunpack.c.h.b16 %v2807
        %v3327 = vunpack.c.l.b16 %v2808
        %v3328 = vunpack.c.h.b16 %v2808
        %v3329 = vunpack.c.l.b16 %v2809
        %v3330 = vunpack.c.l.b16 %v2810
        %v3331 = vunpack.c.h.b16 %v2810
        %v3332 = vunpack.c.l.b16 %v2811
        %v3333 = vunpack.c.h.b16 %v2811
        %v3334 = vunpack.c.l.b16 %v2812
        %v3335 = vunpack.c.h.b16 %v2812
        %v3336 = vunpack.c.l.b16 %v2813
        %v3337 = vunpack.c.h.b16 %v2813
        %v3338 = vunpack.c.l.b16 %v2814
        %v3339 = vunpack.c.l.b16 %v2815
        %v3340 = vunpack.c.h.b16 %v2815
        %v3341 = vunpack.c.l.b16 %v2816
        %v3342 = vunpack.c.h.b16 %v2816
        %v3343 = vunpack.c.l.b16 %v2817
        %v3344 = vunpack.c.h.b16 %v2817
        %v3345 = vunpack.c.l.b16 %v2818
        %v3346 = vunpack.c.h.b16 %v2818
        %v3347 = vunpack.c.l.b16 %v2819
        %v3348 = vunpack.c.l.b16 %v2820
        %v3349 = vunpack.c.h.b16 %v2820
        %v3350 = vunpack.c.l.b16 %v2821
        %v3351 = vunpack.c.h.b16 %v2821
        %v3352 = vunpack.c.l.b16 %v2822
        %v3353 = vunpack.c.h.b16 %v2822
        %v3354 = vunpack.c.l.b16 %v2823
        %v3355 = vunpack.c.h.b16 %v2823
        %v3356 = vunpack.c.l.b16 %v2824
        %v3357 = vunpack.c.l.b16 %v2825
        %v3358 = vunpack.c.h.b16 %v2825
        %v3359 = vunpack.c.l.b16 %v2826
        %v3360 = vunpack.c.h.b16 %v2826
        %v3361 = vunpack.c.l.b16 %v2827
        %v3362 = vunpack.c.h.b16 %v2827
        %v3363 = vunpack.c.l.b16 %v2828
        %v3364 = vunpack.c.h.b16 %v2828
        %v3365 = vunpack.c.l.b16 %v2829
        %v3366 = vunpack.c.l.b16 %v2830
        %v3367 = vunpack.c.h.b16 %v2830
        %v3368 = vunpack.c.l.b16 %v2831
        %v3369 = vunpack.c.h.b16 %v2831
        %v3370 = vunpack.c.l.b16 %v2832
        %v3371 = vunpack.c.h.b16 %v2832
        %v3372 = vunpack.c.l.b16 %v2833
        %v3373 = vunpack.c.h.b16 %v2833
        %v3374 = vunpack.c.l.b16 %v2834
        %v3375 = vunpack.c.l.b16 %v2835
        %v3376 = vunpack.c.h.b16 %v2835
        %v3377 = vunpack.c.l.b16 %v2836
        %v3378 = vunpack.c.h.b16 %v2836
        %v3379 = vunpack.c.l.b16 %v2837
        %v3380 = vunpack.c.h.b16 %v2837
        %v3381 = vunpack.c.l.b16 %v2838
        %v3382 = vunpack.c.h.b16 %v2838
        %v3383 = vunpack.c.l.b16 %v2839
        %v3384 = vunpack.c.l.b16 %v2840
        %v3385 = vunpack.c.h.b16 %v2840
        %v3386 = vunpack.c.l.b16 %v2841
        %v3387 = vunpack.c.h.b16 %v2841
        %v3388 = vunpack.c.l.b16 %v2842
        %v3389 = vunpack.c.h.b16 %v2842
        %v3390 = vunpack.c.l.b16 %v2843
        %v3391 = vunpack.c.h.b16 %v2843
        %v3392 = vunpack.c.l.b16 %v2844
        %v3393 = vunpack.c.l.b16 %v2845
        %v3394 = vunpack.c.h.b16 %v2845
        %v3395 = vunpack.c.l.b16 %v2846
        %v3396 = vunpack.c.h.b16 %v2846
        %v3397 = vunpack.c.l.b16 %v2847
        %v3398 = vunpack.c.h.b16 %v2847
        %v3399 = vunpack.c.l.b16 %v2848
        %v3400 = vunpack.c.h.b16 %v2848
        %v3401 = vunpack.c.l.b16 %v2849
        %v3402 = vunpack.c.l.b16 %v2850
        %v3403 = vunpack.c.h.b16 %v2850
        %v3404 = vunpack.c.l.b16 %v2851
        %v3405 = vunpack.c.h.b16 %v2851
        %v3406 = vunpack.c.l.b16 %v2852
        %v3407 = vunpack.c.h.b16 %v2852
        %v3408 = vunpack.c.l.b16 %v2853
        %v3409 = vunpack.c.h.b16 %v2853
        %v3410 = vunpack.c.l.b16 %v2854
        %v3411 = vunpack.c.l.b16 %v2855
        %v3412 = vunpack.c.h.b16 %v2855
        %v3413 = vunpack.c.l.b16 %v2856
        %v3414 = vunpack.c.h.b16 %v2856
        %v3415 = vunpack.c.l.b16 %v2857
        %v3416 = vunpack.c.h.b16 %v2857
        %v3417 = vunpack.c.l.b16 %v2858
        %v3418 = vunpack.c.h.b16 %v2858
        %v3419 = vunpack.c.l.b16 %v2859
        %v3420 = vunpack.c.l.b16 %v2860
        %v3421 = vunpack.c.h.b16 %v2860
        %v3422 = vunpack.c.l.b16 %v2861
        %v3423 = vunpack.c.h.b16 %v2861
        %v3424 = vunpack.c.l.b16 %v2862
        %v3425 = vunpack.c.h.b16 %v2862
        %v3426 = vunpack.c.l.b16 %v2863
        %v3427 = vunpack.c.h.b16 %v2863
        %v3428 = vunpack.c.l.b16 %v2864
        %v3429 = vunpack.c.l.b16 %v2865
        %v3430 = vunpack.c.h.b16 %v2865
        %v3431 = vunpack.c.l.b16 %v2866
        %v3432 = vunpack.c.h.b16 %v2866
        %v3433 = vunpack.c.l.b16 %v2867
        %v3434 = vunpack.c.h.b16 %v2867
        %v3435 = vunpack.c.l.b16 %v2868
        %v3436 = vunpack.c.h.b16 %v2868
        %v3437 = vunpack.c.l.b16 %v2869
        %v3438 = vunpack.c.l.b16 %v2870
        %v3439 = vunpack.c.h.b16 %v2870
        %v3440 = vunpack.c.l.b16 %v2871
        %v3441 = vunpack.c.h.b16 %v2871
        %v3442 = vunpack.c.l.b16 %v2872
        %v3443 = vunpack.c.h.b16 %v2872
        %v3444 = vunpack.c.l.b16 %v2873
        %v3445 = vunpack.c.h.b16 %v2873
        %v3446 = vunpack.c.l.b16 %v2874
        %v3447 = vunpack.c.l.b16 %v2875
        %v3448 = vunpack.c.h.b16 %v2875
        %v3449 = vunpack.c.l.b16 %v2876
        %v3450 = vunpack.c.h.b16 %v2876
        %v3451 = vunpack.c.l.b16 %v2877
        %v3452 = vunpack.c.h.b16 %v2877
        %v3453 = vunpack.c.l.b16 %v2878
        %v3454 = vunpack.c.h.b16 %v2878
        %v3455 = vunpack.c.l.b16 %v2879
        %v3456 = vunpack.c.l.b16 %v2880
        %v3457 = vunpack.c.h.b16 %v2880
        %v3458 = vunpack.c.l.b16 %v2881
        %v3459 = vunpack.c.h.b16 %v2881
        %v3460 = vunpack.c.l.b16 %v2882
        %v3461 = vunpack.c.h.b16 %v2882
        %v3462 = vunpack.c.l.b16 %v2883
        %v3463 = vunpack.c.h.b16 %v2883
        %v3464 = vunpack.c.l.b16 %v2884
        %v3465 = vunpack.c.l.b16 %v2885
        %v3466 = vunpack.c.h.b16 %v2885
        %v3467 = vunpack.c.l.b16 %v2886
        %v3468 = vunpack.c.h.b16 %v2886
        %v3469 = vunpack.c.l.b16 %v2887
        %v3470 = vunpack.c.h.b16 %v2887
        %v3471 = vunpack.c.l.b16 %v2888
        %v3472 = vunpack.c.h.b16 %v2888
        %v3473 = vunpack.c.l.b16 %v2889
        %v3474 = vunpack.c.l.b16 %v2890
        %v3475 = vunpack.c.h.b16 %v2890
        %v3476 = vunpack.c.l.b16 %v2891
        %v3477 = vunpack.c.h.b16 %v2891
        %v3478 = vunpack.c.l.b16 %v2892
        %v3479 = vunpack.c.h.b16 %v2892
        %v3480 = vunpack.c.l.b16 %v2893
        %v3481 = vunpack.c.h.b16 %v2893
        %v3482 = vunpack.c.l.b16 %v2894
        %v3483 = vunpack.c.l.b16 %v2895
        %v3484 = vunpack.c.h.b16 %v2895
        %v3485 = vunpack.c.l.b16 %v2896
        %v3486 = vunpack.c.h.b16 %v2896
        %v3487 = vunpack.c.l.b16 %v2897
        %v3488 = vunpack.c.h.b16 %v2897
        %v3489 = vunpack.c.l.b16 %v2898
        %v3490 = vunpack.c.h.b16 %v2898
        %v3491 = vunpack.c.l.b16 %v2899
        %v3492 = vunpack.c.l.b16 %v2900
        %v3493 = vunpack.c.h.b16 %v2900
        %v3494 = vunpack.c.l.b16 %v2901
        %v3495 = vunpack.c.h.b16 %v2901
        %v3496 = vunpack.c.l.b16 %v2902
        %v3497 = vunpack.c.h.b16 %v2902
        %v3498 = vunpack.c.l.b16 %v2903
        %v3499 = vunpack.c.h.b16 %v2903
        %v3500 = vunpack.c.l.b16 %v2904
        %v3501 = vpack.c.b16 %v3222, %v3213
        %v3502 = vpack.c.b16 %v3223, %v3214
        %v3503 = vpack.c.b16 %v3224, %v3215
        %v3504 = vpack.c.b16 %v3225, %v3216
        %v3505 = vpack.c.b16 %v3226, %v3217
        %v3506 = vpack.c.b16 %v3227, %v3218
        %v3507 = vpack.c.b16 %v3228, %v3219
        %v3508 = vpack.c.b16 %v3229, %v3220
        %v3509 = vpack.c.b16 %v3230, %v3221
        %v3510 = vpack.c.b16 %v3240, %v3231
        %v3511 = vpack.c.b16 %v3241, %v3232
        %v3512 = vpack.c.b16 %v3242, %v3233
        %v3513 = vpack.c.b16 %v3243, %v3234
        %v3514 = vpack.c.b16 %v3244, %v3235
        %v3515 = vpack.c.b16 %v3245, %v3236
        %v3516 = vpack.c.b16 %v3246, %v3237
        %v3517 = vpack.c.b16 %v3247, %v3238
        %v3518 = vpack.c.b16 %v3248, %v3239
        %v3519 = vpack.c.b16 %v3258, %v3249
        %v3520 = vpack.c.b16 %v3259, %v3250
        %v3521 = vpack.c.b16 %v3260, %v3251
        %v3522 = vpack.c.b16 %v3261, %v3252
        %v3523 = vpack.c.b16 %v3262, %v3253
        %v3524 = vpack.c.b16 %v3263, %v3254
        %v3525 = vpack.c.b16 %v3264, %v3255
        %v3526 = vpack.c.b16 %v3265, %v3256
        %v3527 = vpack.c.b16 %v3266, %v3257
        %v3528 = vpack.c.b16 %v3276, %v3267
        %v3529 = vpack.c.b16 %v3277, %v3268
        %v3530 = vpack.c.b16 %v3278, %v3269
        %v3531 = vpack.c.b16 %v3279, %v3270
        %v3532 = vpack.c.b16 %v3280, %v3271
        %v3533 = vpack.c.b16 %v3281, %v3272
        %v3534 = vpack.c.b16 %v3282, %v3273
        %v3535 = vpack.c.b16 %v3283, %v3274
        %v3536 = vpack.c.b16 %v3284, %v3275
        %v3537 = vpack.c.b16 %v3294, %v3285
        %v3538 = vpack.c.b16 %v3295, %v3286
        %v3539 = vpack.c.b16 %v3296, %v3287
        %v3540 = vpack.c.b16 %v3297, %v3288
        %v3541 = vpack.c.b16 %v3298, %v3289
        %v3542 = vpack.c.b16 %v3299, %v3290
        %v3543 = vpack.c.b16 %v3300, %v3291
        %v3544 = vpack.c.b16 %v3301, %v3292
        %v3545 = vpack.c.b16 %v3302, %v3293
        %v3546 = vpack.c.b16 %v3312, %v3303
        %v3547 = vpack.c.b16 %v3313, %v3304
        %v3548 = vpack.c.b16 %v3314, %v3305
        %v3549 = vpack.c.b16 %v3315, %v3306
        %v3550 = vpack.c.b16 %v3316, %v3307
        %v3551 = vpack.c.b16 %v3317, %v3308
        %v3552 = vpack.c.b16 %v3318, %v3309
        %v3553 = vpack.c.b16 %v3319, %v3310
        %v3554 = vpack.c.b16 %v3320, %v3311
        %v3555 = vpack.c.b16 %v3330, %v3321
        %v3556 = vpack.c.b16 %v3331, %v3322
        %v3557 = vpack.c.b16 %v3332, %v3323
        %v3558 = vpack.c.b16 %v3333, %v3324
        %v3559 = vpack.c.b16 %v3334, %v3325
        %v3560 = vpack.c.b16 %v3335, %v3326
        %v3561 = vpack.c.b16 %v3336, %v3327
        %v3562 = vpack.c.b16 %v3337, %v3328
        %v3563 = vpack.c.b16 %v3338, %v3329
        %v3564 = vpack.c.b16 %v3348, %v3339
        %v3565 = vpack.c.b16 %v3349, %v3340
        %v3566 = vpack.c.b16 %v3350, %v3341
        %v3567 = vpack.c.b16 %v3351, %v3342
        %v3568 = vpack.c.b16 %v3352, %v3343
        %v3569 = vpack.c.b16 %v3353, %v3344
        %v3570 = vpack.c.b16 %v3354, %v3345
        %v3571 = vpack.c.b16 %v3355, %v3346
        %v3572 = vpack.c.b16 %v3356, %v3347
        %v3573 = vpack.c.b16 %v3366, %v3357
        %v3574 = vpack.c.b16 %v3367, %v3358
        %v3575 = vpack.c.b16 %v3368, %v3359
        %v3576 = vpack.c.b16 %v3369, %v3360
        %v3577 = vpack.c.b16 %v3370, %v3361
        %v3578 = vpack.c.b16 %v3371, %v3362
        %v3579 = vpack.c.b16 %v3372, %v3363
        %v3580 = vpack.c.b16 %v3373, %v3364
        %v3581 = vpack.c.b16 %v3374, %v3365
        %v3582 = vpack.c.b16 %v3384, %v3375
        %v3583 = vpack.c.b16 %v3385, %v3376
        %v3584 = vpack.c.b16 %v3386, %v3377
        %v3585 = vpack.c.b16 %v3387, %v3378
        %v3586 = vpack.c.b16 %v3388, %v3379
        %v3587 = vpack.c.b16 %v3389, %v3380
        %v3588 = vpack.c.b16 %v3390, %v3381
        %v3589 = vpack.c.b16 %v3391, %v3382
        %v3590 = vpack.c.b16 %v3392, %v3383
        %v3591 = vpack.c.b16 %v3402, %v3393
        %v3592 = vpack.c.b16 %v3403, %v3394
        %v3593 = vpack.c.b16 %v3404, %v3395
        %v3594 = vpack.c.b16 %v3405, %v3396
        %v3595 = vpack.c.b16 %v3406, %v3397
        %v3596 = vpack.c.b16 %v3407, %v3398
        %v3597 = vpack.c.b16 %v3408, %v3399
        %v3598 = vpack.c.b16 %v3409, %v3400
        %v3599 = vpack.c.b16 %v3410, %v3401
        %v3600 = vpack.c.b16 %v3420, %v3411
        %v3601 = vpack.c.b16 %v3421, %v3412
        %v3602 = vpack.c.b16 %v3422, %v3413
        %v3603 = vpack.c.b16 %v3423, %v3414
        %v3604 = vpack.c.b16 %v3424, %v3415
        %v3605 = vpack.c.b16 %v3425, %v3416
        %v3606 = vpack.c.b16 %v3426, %v3417
        %v3607 = vpack.c.b16 %v3427, %v3418
        %v3608 = vpack.c.b16 %v3428, %v3419
        %v3609 = vpack.c.b16 %v3438, %v3429
        %v3610 = vpack.c.b16 %v3439, %v3430
        %v3611 = vpack.c.b16 %v3440, %v3431
        %v3612 = vpack.c.b16 %v3441, %v3432
        %v3613 = vpack.c.b16 %v3442, %v3433
        %v3614 = vpack.c.b16 %v3443, %v3434
        %v3615 = vpack.c.b16 %v3444, %v3435
        %v3616 = vpack.c.b16 %v3445, %v3436
        %v3617 = vpack.c.b16 %v3446, %v3437
        %v3618 = vpack.c.b16 %v3456, %v3447
        %v3619 = vpack.c.b16 %v3457, %v3448
        %v3620 = vpack.c.b16 %v3458, %v3449
        %v3621 = vpack.c.b16 %v3459, %v3450
        %v3622 = vpack.c.b16 %v3460, %v3451
        %v3623 = vpack.c.b16 %v3461, %v3452
        %v3624 = vpack.c.b16 %v3462, %v3453
        %v3625 = vpack.c.b16 %v3463, %v3454
        %v3626 = vpack.c.b16 %v3464, %v3455
        %v3627 = vpack.c.b16 %v3474, %v3465
        %v3628 = vpack.c.b16 %v3475, %v3466
        %v3629 = vpack.c.b16 %v3476, %v3467
        %v3630 = vpack.c.b16 %v3477, %v3468
        %v3631 = vpack.c.b16 %v3478, %v3469
        %v3632 = vpack.c.b16 %v3479, %v3470
        %v3633 = vpack.c.b16 %v3480, %v3471
        %v3634 = vpack.c.b16 %v3481, %v3472
        %v3635 = vpack.c.b16 %v3482, %v3473
        %v3636 = vpack.c.b16 %v3492, %v3483
        %v3637 = vpack.c.b16 %v3493, %v3484
        %v3638 = vpack.c.b16 %v3494, %v3485
        %v3639 = vpack.c.b16 %v3495, %v3486
        %v3640 = vpack.c.b16 %v3496, %v3487
        %v3641 = vpack.c.b16 %v3497, %v3488
        %v3642 = vpack.c.b16 %v3498, %v3489
        %v3643 = vpack.c.b16 %v3499, %v3490
        %v3644 = vpack.c.b16 %v3500, %v3491
        %v3933 = vunpack.c.l.b16 %v2905
        %v3934 = vunpack.c.l.b16 %v2906
        %v3935 = vunpack.c.l.b16 %v2907
        %v3936 = vunpack.c.l.b16 %v2908
        %v3937 = vunpack.c.l.b16 %v2909
        %v3938 = vunpack.c.l.b16 %v2910
        %v3939 = vunpack.c.l.b16 %v2911
        %v3940 = vunpack.c.l.b16 %v2912
        %v3941 = vunpack.c.l.b16 %v2913
        %v3942 = vunpack.c.l.b16 %v2914
        %v3943 = vunpack.c.l.b16 %v2915
        %v3944 = vunpack.c.l.b16 %v2916
        %v3945 = vunpack.c.l.b16 %v2917
        %v3946 = vunpack.c.l.b16 %v2918
        %v3947 = vunpack.c.l.b16 %v2919
        %v3948 = vunpack.c.l.b16 %v2920
        %v3949 = vunpack.c.l.b16 %v2921
        %v3950 = vunpack.c.l.b16 %v2922
        %v3951 = vunpack.c.l.b16 %v2923
        %v3952 = vunpack.c.l.b16 %v2924
        %v3953 = vunpack.c.l.b16 %v2925
        %v3954 = vunpack.c.l.b16 %v2926
        %v3955 = vunpack.c.l.b16 %v2927
        %v3956 = vunpack.c.l.b16 %v2928
        %v3957 = vunpack.c.l.b16 %v2929
        %v3958 = vunpack.c.l.b16 %v2930
        %v3959 = vunpack.c.l.b16 %v2931
        %v3960 = vunpack.c.l.b16 %v2932
        %v3961 = vunpack.c.l.b16 %v2933
        %v3962 = vunpack.c.l.b16 %v2934
        %v3963 = vunpack.c.l.b16 %v2935
        %v3964 = vunpack.c.l.b16 %v2936
        %v3965 = vunpack.c.l.b16 %v2937
        %v3966 = vunpack.c.l.b16 %v2938
        %v3967 = vunpack.c.l.b16 %v2939
        %v3968 = vunpack.c.l.b16 %v2940
        %v3969 = vunpack.c.l.b16 %v2941
        %v3970 = vunpack.c.l.b16 %v2942
        %v3971 = vunpack.c.l.b16 %v2943
        %v3972 = vunpack.c.l.b16 %v2944
        %v3973 = vunpack.c.l.b16 %v2945
        %v3974 = vunpack.c.l.b16 %v2946
        %v3975 = vunpack.c.l.b16 %v2947
        %v3976 = vunpack.c.l.b16 %v2948
        %v3977 = vunpack.c.l.b16 %v2949
        %v3978 = vunpack.c.l.b16 %v2950
        %v3979 = vunpack.c.l.b16 %v2951
        %v3980 = vunpack.c.l.b16 %v2952
        %v3981 = vunpack.c.l.b16 %v2953
        %v3982 = vunpack.c.l.b16 %v2954
        %v3983 = vunpack.c.l.b16 %v2955
        %v3984 = vunpack.c.l.b16 %v2956
        %v3985 = vunpack.c.l.b16 %v2957
        %v3986 = vunpack.c.l.b16 %v2958
        %v3987 = vunpack.c.l.b16 %v2959
        %v3988 = vunpack.c.l.b16 %v2960
        %v3989 = vunpack.c.l.b16 %v2961
        %v3990 = vunpack.c.l.b16 %v2962
        %v3991 = vunpack.c.l.b16 %v2963
        %v3992 = vunpack.c.l.b16 %v2964
        %v3993 = vunpack.c.l.b16 %v2965
        %v3994 = vunpack.c.l.b16 %v2966
        %v3995 = vunpack.c.l.b16 %v2967
        %v3996 = vunpack.c.l.b16 %v2968
        %v3997 = vunpack.c.l.b16 %v2969
        %v3998 = vunpack.c.l.b16 %v2970
        %v3999 = vunpack.c.l.b16 %v2971
        %v4000 = vunpack.c.l.b16 %v2972
        %v4001 = vunpack.c.l.b16 %v2973
        %v4002 = vunpack.c.l.b16 %v2974
        %v4003 = vunpack.c.l.b16 %v2975
        %v4004 = vunpack.c.l.b16 %v2976
        %v4005 = vunpack.c.l.b16 %v2977
        %v4006 = vunpack.c.l.b16 %v2978
        %v4007 = vunpack.c.l.b16 %v2979
        %v4008 = vunpack.c.l.b16 %v2980
        %v4009 = vunpack.c.l.b16 %v2981
        %v4010 = vunpack.c.l.b16 %v2982
        %v4011 = vunpack.c.l.b16 %v2983
        %v4012 = vunpack.c.l.b16 %v2984
        %v4013 = vunpack.c.l.b16 %v2985
        %v4014 = vunpack.c.l.b16 %v2986
        %v4015 = vunpack.c.l.b16 %v2987
        %v4016 = vunpack.c.l.b16 %v2988
        %v4017 = vunpack.c.l.b16 %v2989
        %v4018 = vunpack.c.l.b16 %v2990
        %v4019 = vunpack.c.l.b16 %v2991
        %v4020 = vunpack.c.l.b16 %v2992
        %v4021 = vunpack.c.l.b16 %v2993
        %v4022 = vunpack.c.l.b16 %v2994
        %v4023 = vunpack.c.l.b16 %v2995
        %v4024 = vunpack.c.l.b16 %v2996
        %v4025 = vunpack.c.l.b16 %v2997
        %v4026 = vunpack.c.l.b16 %v2998
        %v4027 = vunpack.c.l.b16 %v2999
        %v4028 = vunpack.c.l.b16 %v3000
        %v4029 = vunpack.c.l.b16 %v3001
        %v4030 = vunpack.c.l.b16 %v3002
        %v4031 = vunpack.c.l.b16 %v3003
        %v4032 = vunpack.c.l.b16 %v3004
        %v4033 = vunpack.c.l.b16 %v3005
        %v4034 = vunpack.c.l.b16 %v3006
        %v4035 = vunpack.c.l.b16 %v3007
        %v4036 = vunpack.c.l.b16 %v3008
        %v4037 = vunpack.c.l.b16 %v3009
        %v4038 = vunpack.c.l.b16 %v3010
        %v4039 = vunpack.c.l.b16 %v3011
        %v4040 = vunpack.c.l.b16 %v3012
        %v4041 = vunpack.c.l.b16 %v3013
        %v4042 = vunpack.c.l.b16 %v3014
        %v4043 = vunpack.c.l.b16 %v3015
        %v4044 = vunpack.c.l.b16 %v3016
        %v4045 = vunpack.c.l.b16 %v3017
        %v4046 = vunpack.c.l.b16 %v3018
        %v4047 = vunpack.c.l.b16 %v3019
        %v4048 = vunpack.c.l.b16 %v3020
        %v4049 = vunpack.c.l.b16 %v3021
        %v4050 = vunpack.c.l.b16 %v3022
        %v4051 = vunpack.c.l.b16 %v3023
        %v4052 = vunpack.c.l.b16 %v3024
        %v4053 = vunpack.c.l.b16 %v3025
        %v4054 = vunpack.c.l.b16 %v3026
        %v4055 = vunpack.c.l.b16 %v3027
        %v4056 = vunpack.c.l.b16 %v3028
        %v4057 = vunpack.c.l.b16 %v3029
        %v4058 = vunpack.c.l.b16 %v3030
        %v4059 = vunpack.c.l.b16 %v3031
        %v4060 = vunpack.c.l.b16 %v3032
        %v4061 = vunpack.c.l.b16 %v3033
        %v4062 = vunpack.c.l.b16 %v3034
        %v4063 = vunpack.c.l.b16 %v3035
        %v4064 = vunpack.c.l.b16 %v3036
        %v4065 = vunpack.c.l.b16 %v3037
        %v4066 = vunpack.c.l.b16 %v3038
        %v4067 = vunpack.c.l.b16 %v3039
        %v4068 = vunpack.c.l.b16 %v3040
        %v4069 = vunpack.c.l.b16 %v3041
        %v4070 = vunpack.c.l.b16 %v3042
        %v4071 = vunpack.c.l.b16 %v3043
        %v4072 = vunpack.c.l.b16 %v3044
        %v4073 = vunpack.c.l.b16 %v3045
        %v4074 = vunpack.c.l.b16 %v3046
        %v4075 = vunpack.c.l.b16 %v3047
        %v4076 = vunpack.c.l.b16 %v3048
        %v4077 = vpack.c.b16 %v3934, %v3933
        %v4078 = vpack.c.b16 %v3936, %v3935
        %v4079 = vpack.c.b16 %v3938, %v3937
        %v4080 = vpack.c.b16 %v3940, %v3939
        %v4081 = vpack.c.b16 %v3942, %v3941
        %v4082 = vpack.c.b16 %v3944, %v3943
        %v4083 = vpack.c.b16 %v3946, %v3945
        %v4084 = vpack.c.b16 %v3948, %v3947
        %v4085 = vpack.c.b16 %v3950, %v3949
        %v4086 = vpack.c.b16 %v3952, %v3951
        %v4087 = vpack.c.b16 %v3954, %v3953
        %v4088 = vpack.c.b16 %v3956, %v3955
        %v4089 = vpack.c.b16 %v3958, %v3957
        %v4090 = vpack.c.b16 %v3960, %v3959
        %v4091 = vpack.c.b16 %v3962, %v3961
        %v4092 = vpack.c.b16 %v3964, %v3963
        %v4093 = vpack.c.b16 %v3966, %v3965
        %v4094 = vpack.c.b16 %v3968, %v3967
        %v4095 = vpack.c.b16 %v3970, %v3969
        %v4096 = vpack.c.b16 %v3972, %v3971
        %v4097 = vpack.c.b16 %v3974, %v3973
        %v4098 = vpack.c.b16 %v3976, %v3975
        %v4099 = vpack.c.b16 %v3978, %v3977
        %v4100 = vpack.c.b16 %v3980, %v3979
        %v4101 = vpack.c.b16 %v3982, %v3981
        %v4102 = vpack.c.b16 %v3984, %v3983
        %v4103 = vpack.c.b16 %v3986, %v3985
        %v4104 = vpack.c.b16 %v3988, %v3987
        %v4105 = vpack.c.b16 %v3990, %v3989
        %v4106 = vpack.c.b16 %v3992, %v3991
        %v4107 = vpack.c.b16 %v3994, %v3993
        %v4108 = vpack.c.b16 %v3996, %v3995
        %v4109 = vpack.c.b16 %v3998, %v3997
        %v4110 = vpack.c.b16 %v4000, %v3999
        %v4111 = vpack.c.b16 %v4002, %v4001
        %v4112 = vpack.c.b16 %v4004, %v4003
        %v4113 = vpack.c.b16 %v4006, %v4005
        %v4114 = vpack.c.b16 %v4008, %v4007
        %v4115 = vpack.c.b16 %v4010, %v4009
        %v4116 = vpack.c.b16 %v4012, %v4011
        %v4117 = vpack.c.b16 %v4014, %v4013
        %v4118 = vpack.c.b16 %v4016, %v4015
        %v4119 = vpack.c.b16 %v4018, %v4017
        %v4120 = vpack.c.b16 %v4020, %v4019
        %v4121 = vpack.c.b16 %v4022, %v4021
        %v4122 = vpack.c.b16 %v4024, %v4023
        %v4123 = vpack.c.b16 %v4026, %v4025
        %v4124 = vpack.c.b16 %v4028, %v4027
        %v4125 = vpack.c.b16 %v4030, %v4029
        %v4126 = vpack.c.b16 %v4032, %v4031
        %v4127 = vpack.c.b16 %v4034, %v4033
        %v4128 = vpack.c.b16 %v4036, %v4035
        %v4129 = vpack.c.b16 %v4038, %v4037
        %v4130 = vpack.c.b16 %v4040, %v4039
        %v4131 = vpack.c.b16 %v4042, %v4041
        %v4132 = vpack.c.b16 %v4044, %v4043
        %v4133 = vpack.c.b16 %v4046, %v4045
        %v4134 = vpack.c.b16 %v4048, %v4047
        %v4135 = vpack.c.b16 %v4050, %v4049
        %v4136 = vpack.c.b16 %v4052, %v4051
        %v4137 = vpack.c.b16 %v4054, %v4053
        %v4138 = vpack.c.b16 %v4056, %v4055
        %v4139 = vpack.c.b16 %v4058, %v4057
        %v4140 = vpack.c.b16 %v4060, %v4059
        %v4141 = vpack.c.b16 %v4062, %v4061
        %v4142 = vpack.c.b16 %v4064, %v4063
        %v4143 = vpack.c.b16 %v4066, %v4065
        %v4144 = vpack.c.b16 %v4068, %v4067
        %v4145 = vpack.c.b16 %v4070, %v4069
        %v4146 = vpack.c.b16 %v4072, %v4071
        %v4147 = vpack.c.b16 %v4074, %v4073
        %v4148 = vpack.c.b16 %v4076, %v4075
        %4221 = vmatpush.bf16.msra.mxu0 %v4084
        %4222 = vmatpush.bf16.msra.mxu0 %v4083
        %4223 = vmatpush.bf16.msra.mxu0 %v4082
        %4224 = vmatpush.bf16.msra.mxu0 %v4081
        %4225 = vmatpush.bf16.msra.mxu0 %v4080
        %4226 = vmatpush.bf16.msra.mxu0 %v4079
        %4227 = vmatpush.bf16.msra.mxu0 %v4078
        %4228 = vmatpush.bf16.msra.mxu0 %v4077
        %4229 = vmatmul.bf16.gmra.mxu0 %v3501
        %v4230 = vpop.f32.mrf.mxu0
        %v4231 = vadd.f32 %v3051, %v4230
        %v4232 = vpop.f32.mrf.mxu0
        %v4233 = vadd.f32 %v3051, %v4232
        %4234 = vmatmul.bf16.gmra.mxu0 %v3510
        %v4235 = vpop.f32.mrf.mxu0
        %v4236 = vadd.f32 %v3051, %v4235
        %v4237 = vpop.f32.mrf.mxu0
        %v4238 = vadd.f32 %v3051, %v4237
        %4239 = vmatmul.bf16.gmra.mxu0 %v3519
        %v4240 = vpop.f32.mrf.mxu0
        %v4241 = vadd.f32 %v3051, %v4240
        %v4242 = vpop.f32.mrf.mxu0
        %v4243 = vadd.f32 %v3051, %v4242
        %4244 = vmatmul.bf16.gmra.mxu0 %v3528
        %v4245 = vpop.f32.mrf.mxu0
        %v4246 = vadd.f32 %v3051, %v4245
        %v4247 = vpop.f32.mrf.mxu0
        %v4248 = vadd.f32 %v3051, %v4247
        %4249 = vmatmul.bf16.gmra.mxu0 %v3537
        %v4250 = vpop.f32.mrf.mxu0
        %v4251 = vadd.f32 %v3051, %v4250
        %v4252 = vpop.f32.mrf.mxu0
        %v4253 = vadd.f32 %v3051, %v4252
        %4254 = vmatmul.bf16.gmra.mxu0 %v3546
        %v4255 = vpop.f32.mrf.mxu0
        %v4256 = vadd.f32 %v3051, %v4255
        %v4257 = vpop.f32.mrf.mxu0
        %v4258 = vadd.f32 %v3051, %v4257
        %4259 = vmatmul.bf16.gmra.mxu0 %v3555
        %v4260 = vpop.f32.mrf.mxu0
        %v4261 = vadd.f32 %v3051, %v4260
        %v4262 = vpop.f32.mrf.mxu0
        %v4263 = vadd.f32 %v3051, %v4262
        %4264 = vmatmul.bf16.gmra.mxu0 %v3564
        %v4265 = vpop.f32.mrf.mxu0
        %v4266 = vadd.f32 %v3051, %v4265
        %v4267 = vpop.f32.mrf.mxu0
        %v4268 = vadd.f32 %v3051, %v4267
        %4269 = vmatmul.bf16.gmra.mxu0 %v3573
        %v4270 = vpop.f32.mrf.mxu0
        %v4271 = vadd.f32 %v3051, %v4270
        %v4272 = vpop.f32.mrf.mxu0
        %v4273 = vadd.f32 %v3051, %v4272
        %4274 = vmatmul.bf16.gmra.mxu0 %v3582
        %v4275 = vpop.f32.mrf.mxu0
        %v4276 = vadd.f32 %v3051, %v4275
        %v4277 = vpop.f32.mrf.mxu0
        %v4278 = vadd.f32 %v3051, %v4277
        %4279 = vmatmul.bf16.gmra.mxu0 %v3591
        %v4280 = vpop.f32.mrf.mxu0
        %v4281 = vadd.f32 %v3051, %v4280
        %v4282 = vpop.f32.mrf.mxu0
        %v4283 = vadd.f32 %v3051, %v4282
        %4284 = vmatmul.bf16.gmra.mxu0 %v3600
        %v4285 = vpop.f32.mrf.mxu0
        %v4286 = vadd.f32 %v3051, %v4285
        %v4287 = vpop.f32.mrf.mxu0
        %v4288 = vadd.f32 %v3051, %v4287
        %4289 = vmatmul.bf16.gmra.mxu0 %v3609
        %v4290 = vpop.f32.mrf.mxu0
        %v4291 = vadd.f32 %v3051, %v4290
        %v4292 = vpop.f32.mrf.mxu0
        %v4293 = vadd.f32 %v3051, %v4292
        %4294 = vmatmul.bf16.gmra.mxu0 %v3618
        %v4295 = vpop.f32.mrf.mxu0
        %v4296 = vadd.f32 %v3051, %v4295
        %v4297 = vpop.f32.mrf.mxu0
        %v4298 = vadd.f32 %v3051, %v4297
        %4299 = vmatmul.bf16.gmra.mxu0 %v3627
        %v4300 = vpop.f32.mrf.mxu0
        %v4301 = vadd.f32 %v3051, %v4300
        %v4302 = vpop.f32.mrf.mxu0
        %v4303 = vadd.f32 %v3051, %v4302
        %4304 = vmatmul.bf16.gmra.mxu0 %v3636
        %v4305 = vpop.f32.mrf.mxu0
        %v4306 = vadd.f32 %v3051, %v4305
        %v4307 = vpop.f32.mrf.mxu0
        %v4308 = vadd.f32 %v3051, %v4307
        %4309 = vdwg.mxu0
        %4310 = vmatpush.bf16.msra.mxu0 %v4092
        %4311 = vmatpush.bf16.msra.mxu0 %v4091
        %4312 = vmatpush.bf16.msra.mxu0 %v4090
        %4313 = vmatpush.bf16.msra.mxu0 %v4089
        %4314 = vmatpush.bf16.msra.mxu0 %v4088
        %4315 = vmatpush.bf16.msra.mxu0 %v4087
        %4316 = vmatpush.bf16.msra.mxu0 %v4086
        %4317 = vmatpush.bf16.msra.mxu0 %v4085
        %4318 = vmatmul.bf16.gmra.mxu0 %v3502
        %v4319 = vpop.f32.mrf.mxu0
        %v4320 = vadd.f32 %v4231, %v4319
        %v4321 = vpop.f32.mrf.mxu0
        %v4322 = vadd.f32 %v4233, %v4321
        %4323 = vmatmul.bf16.gmra.mxu0 %v3511
        %v4324 = vpop.f32.mrf.mxu0
        %v4325 = vadd.f32 %v4236, %v4324
        %v4326 = vpop.f32.mrf.mxu0
        %v4327 = vadd.f32 %v4238, %v4326
        %4328 = vmatmul.bf16.gmra.mxu0 %v3520
        %v4329 = vpop.f32.mrf.mxu0
        %v4330 = vadd.f32 %v4241, %v4329
        %v4331 = vpop.f32.mrf.mxu0
        %v4332 = vadd.f32 %v4243, %v4331
        %4333 = vmatmul.bf16.gmra.mxu0 %v3529
        %v4334 = vpop.f32.mrf.mxu0
        %v4335 = vadd.f32 %v4246, %v4334
        %v4336 = vpop.f32.mrf.mxu0
        %v4337 = vadd.f32 %v4248, %v4336
        %4338 = vmatmul.bf16.gmra.mxu0 %v3538
        %v4339 = vpop.f32.mrf.mxu0
        %v4340 = vadd.f32 %v4251, %v4339
        %v4341 = vpop.f32.mrf.mxu0
        %v4342 = vadd.f32 %v4253, %v4341
        %4343 = vmatmul.bf16.gmra.mxu0 %v3547
        %v4344 = vpop.f32.mrf.mxu0
        %v4345 = vadd.f32 %v4256, %v4344
        %v4346 = vpop.f32.mrf.mxu0
        %v4347 = vadd.f32 %v4258, %v4346
        %4348 = vmatmul.bf16.gmra.mxu0 %v3556
        %v4349 = vpop.f32.mrf.mxu0
        %v4350 = vadd.f32 %v4261, %v4349
        %v4351 = vpop.f32.mrf.mxu0
        %v4352 = vadd.f32 %v4263, %v4351
        %4353 = vmatmul.bf16.gmra.mxu0 %v3565
        %v4354 = vpop.f32.mrf.mxu0
        %v4355 = vadd.f32 %v4266, %v4354
        %v4356 = vpop.f32.mrf.mxu0
        %v4357 = vadd.f32 %v4268, %v4356
        %4358 = vmatmul.bf16.gmra.mxu0 %v3574
        %v4359 = vpop.f32.mrf.mxu0
        %v4360 = vadd.f32 %v4271, %v4359
        %v4361 = vpop.f32.mrf.mxu0
        %v4362 = vadd.f32 %v4273, %v4361
        %4363 = vmatmul.bf16.gmra.mxu0 %v3583
        %v4364 = vpop.f32.mrf.mxu0
        %v4365 = vadd.f32 %v4276, %v4364
        %v4366 = vpop.f32.mrf.mxu0
        %v4367 = vadd.f32 %v4278, %v4366
        %4368 = vmatmul.bf16.gmra.mxu0 %v3592
        %v4369 = vpop.f32.mrf.mxu0
        %v4370 = vadd.f32 %v4281, %v4369
        %v4371 = vpop.f32.mrf.mxu0
        %v4372 = vadd.f32 %v4283, %v4371
        %4373 = vmatmul.bf16.gmra.mxu0 %v3601
        %v4374 = vpop.f32.mrf.mxu0
        %v4375 = vadd.f32 %v4286, %v4374
        %v4376 = vpop.f32.mrf.mxu0
        %v4377 = vadd.f32 %v4288, %v4376
        %4378 = vmatmul.bf16.gmra.mxu0 %v3610
        %v4379 = vpop.f32.mrf.mxu0
        %v4380 = vadd.f32 %v4291, %v4379
        %v4381 = vpop.f32.mrf.mxu0
        %v4382 = vadd.f32 %v4293, %v4381
        %4383 = vmatmul.bf16.gmra.mxu0 %v3619
        %v4384 = vpop.f32.mrf.mxu0
        %v4385 = vadd.f32 %v4296, %v4384
        %v4386 = vpop.f32.mrf.mxu0
        %v4387 = vadd.f32 %v4298, %v4386
        %4388 = vmatmul.bf16.gmra.mxu0 %v3628
        %v4389 = vpop.f32.mrf.mxu0
        %v4390 = vadd.f32 %v4301, %v4389
        %v4391 = vpop.f32.mrf.mxu0
        %v4392 = vadd.f32 %v4303, %v4391
        %4393 = vmatmul.bf16.gmra.mxu0 %v3637
        %v4394 = vpop.f32.mrf.mxu0
        %v4395 = vadd.f32 %v4306, %v4394
        %v4396 = vpop.f32.mrf.mxu0
        %v4397 = vadd.f32 %v4308, %v4396
        %4398 = vdwg.mxu0
        %4399 = vmatpush.bf16.msra.mxu0 %v4100
        %4400 = vmatpush.bf16.msra.mxu0 %v4099
        %4401 = vmatpush.bf16.msra.mxu0 %v4098
        %4402 = vmatpush.bf16.msra.mxu0 %v4097
        %4403 = vmatpush.bf16.msra.mxu0 %v4096
        %4404 = vmatpush.bf16.msra.mxu0 %v4095
        %4405 = vmatpush.bf16.msra.mxu0 %v4094
        %4406 = vmatpush.bf16.msra.mxu0 %v4093
        %4407 = vmatmul.bf16.gmra.mxu0 %v3503
        %v4408 = vpop.f32.mrf.mxu0
        %v4409 = vadd.f32 %v4320, %v4408
        %v4410 = vpop.f32.mrf.mxu0
        %v4411 = vadd.f32 %v4322, %v4410
        %4412 = vmatmul.bf16.gmra.mxu0 %v3512
        %v4413 = vpop.f32.mrf.mxu0
        %v4414 = vadd.f32 %v4325, %v4413
        %v4415 = vpop.f32.mrf.mxu0
        %v4416 = vadd.f32 %v4327, %v4415
        %4417 = vmatmul.bf16.gmra.mxu0 %v3521
        %v4418 = vpop.f32.mrf.mxu0
        %v4419 = vadd.f32 %v4330, %v4418
        %v4420 = vpop.f32.mrf.mxu0
        %v4421 = vadd.f32 %v4332, %v4420
        %4422 = vmatmul.bf16.gmra.mxu0 %v3530
        %v4423 = vpop.f32.mrf.mxu0
        %v4424 = vadd.f32 %v4335, %v4423
        %v4425 = vpop.f32.mrf.mxu0
        %v4426 = vadd.f32 %v4337, %v4425
        %4427 = vmatmul.bf16.gmra.mxu0 %v3539
        %v4428 = vpop.f32.mrf.mxu0
        %v4429 = vadd.f32 %v4340, %v4428
        %v4430 = vpop.f32.mrf.mxu0
        %v4431 = vadd.f32 %v4342, %v4430
        %4432 = vmatmul.bf16.gmra.mxu0 %v3548
        %v4433 = vpop.f32.mrf.mxu0
        %v4434 = vadd.f32 %v4345, %v4433
        %v4435 = vpop.f32.mrf.mxu0
        %v4436 = vadd.f32 %v4347, %v4435
        %4437 = vmatmul.bf16.gmra.mxu0 %v3557
        %v4438 = vpop.f32.mrf.mxu0
        %v4439 = vadd.f32 %v4350, %v4438
        %v4440 = vpop.f32.mrf.mxu0
        %v4441 = vadd.f32 %v4352, %v4440
        %4442 = vmatmul.bf16.gmra.mxu0 %v3566
        %v4443 = vpop.f32.mrf.mxu0
        %v4444 = vadd.f32 %v4355, %v4443
        %v4445 = vpop.f32.mrf.mxu0
        %v4446 = vadd.f32 %v4357, %v4445
        %4447 = vmatmul.bf16.gmra.mxu0 %v3575
        %v4448 = vpop.f32.mrf.mxu0
        %v4449 = vadd.f32 %v4360, %v4448
        %v4450 = vpop.f32.mrf.mxu0
        %v4451 = vadd.f32 %v4362, %v4450
        %4452 = vmatmul.bf16.gmra.mxu0 %v3584
        %v4453 = vpop.f32.mrf.mxu0
        %v4454 = vadd.f32 %v4365, %v4453
        %v4455 = vpop.f32.mrf.mxu0
        %v4456 = vadd.f32 %v4367, %v4455
        %4457 = vmatmul.bf16.gmra.mxu0 %v3593
        %v4458 = vpop.f32.mrf.mxu0
        %v4459 = vadd.f32 %v4370, %v4458
        %v4460 = vpop.f32.mrf.mxu0
        %v4461 = vadd.f32 %v4372, %v4460
        %4462 = vmatmul.bf16.gmra.mxu0 %v3602
        %v4463 = vpop.f32.mrf.mxu0
        %v4464 = vadd.f32 %v4375, %v4463
        %v4465 = vpop.f32.mrf.mxu0
        %v4466 = vadd.f32 %v4377, %v4465
        %4467 = vmatmul.bf16.gmra.mxu0 %v3611
        %v4468 = vpop.f32.mrf.mxu0
        %v4469 = vadd.f32 %v4380, %v4468
        %v4470 = vpop.f32.mrf.mxu0
        %v4471 = vadd.f32 %v4382, %v4470
        %4472 = vmatmul.bf16.gmra.mxu0 %v3620
        %v4473 = vpop.f32.mrf.mxu0
        %v4474 = vadd.f32 %v4385, %v4473
        %v4475 = vpop.f32.mrf.mxu0
        %v4476 = vadd.f32 %v4387, %v4475
        %4477 = vmatmul.bf16.gmra.mxu0 %v3629
        %v4478 = vpop.f32.mrf.mxu0
        %v4479 = vadd.f32 %v4390, %v4478
        %v4480 = vpop.f32.mrf.mxu0
        %v4481 = vadd.f32 %v4392, %v4480
        %4482 = vmatmul.bf16.gmra.mxu0 %v3638
        %v4483 = vpop.f32.mrf.mxu0
        %v4484 = vadd.f32 %v4395, %v4483
        %v4485 = vpop.f32.mrf.mxu0
        %v4486 = vadd.f32 %v4397, %v4485
        %4487 = vdwg.mxu0
        %4488 = vmatpush.bf16.msra.mxu0 %v4108
        %4489 = vmatpush.bf16.msra.mxu0 %v4107
        %4490 = vmatpush.bf16.msra.mxu0 %v4106
        %4491 = vmatpush.bf16.msra.mxu0 %v4105
        %4492 = vmatpush.bf16.msra.mxu0 %v4104
        %4493 = vmatpush.bf16.msra.mxu0 %v4103
        %4494 = vmatpush.bf16.msra.mxu0 %v4102
        %4495 = vmatpush.bf16.msra.mxu0 %v4101
        %4496 = vmatmul.bf16.gmra.mxu0 %v3504
        %v4497 = vpop.f32.mrf.mxu0
        %v4498 = vadd.f32 %v4409, %v4497
        %v4499 = vpop.f32.mrf.mxu0
        %v4500 = vadd.f32 %v4411, %v4499
        %4501 = vmatmul.bf16.gmra.mxu0 %v3513
        %v4502 = vpop.f32.mrf.mxu0
        %v4503 = vadd.f32 %v4414, %v4502
        %v4504 = vpop.f32.mrf.mxu0
        %v4505 = vadd.f32 %v4416, %v4504
        %4506 = vmatmul.bf16.gmra.mxu0 %v3522
        %v4507 = vpop.f32.mrf.mxu0
        %v4508 = vadd.f32 %v4419, %v4507
        %v4509 = vpop.f32.mrf.mxu0
        %v4510 = vadd.f32 %v4421, %v4509
        %4511 = vmatmul.bf16.gmra.mxu0 %v3531
        %v4512 = vpop.f32.mrf.mxu0
        %v4513 = vadd.f32 %v4424, %v4512
        %v4514 = vpop.f32.mrf.mxu0
        %v4515 = vadd.f32 %v4426, %v4514
        %4516 = vmatmul.bf16.gmra.mxu0 %v3540
        %v4517 = vpop.f32.mrf.mxu0
        %v4518 = vadd.f32 %v4429, %v4517
        %v4519 = vpop.f32.mrf.mxu0
        %v4520 = vadd.f32 %v4431, %v4519
        %4521 = vmatmul.bf16.gmra.mxu0 %v3549
        %v4522 = vpop.f32.mrf.mxu0
        %v4523 = vadd.f32 %v4434, %v4522
        %v4524 = vpop.f32.mrf.mxu0
        %v4525 = vadd.f32 %v4436, %v4524
        %4526 = vmatmul.bf16.gmra.mxu0 %v3558
        %v4527 = vpop.f32.mrf.mxu0
        %v4528 = vadd.f32 %v4439, %v4527
        %v4529 = vpop.f32.mrf.mxu0
        %v4530 = vadd.f32 %v4441, %v4529
        %4531 = vmatmul.bf16.gmra.mxu0 %v3567
        %v4532 = vpop.f32.mrf.mxu0
        %v4533 = vadd.f32 %v4444, %v4532
        %v4534 = vpop.f32.mrf.mxu0
        %v4535 = vadd.f32 %v4446, %v4534
        %4536 = vmatmul.bf16.gmra.mxu0 %v3576
        %v4537 = vpop.f32.mrf.mxu0
        %v4538 = vadd.f32 %v4449, %v4537
        %v4539 = vpop.f32.mrf.mxu0
        %v4540 = vadd.f32 %v4451, %v4539
        %4541 = vmatmul.bf16.gmra.mxu0 %v3585
        %v4542 = vpop.f32.mrf.mxu0
        %v4543 = vadd.f32 %v4454, %v4542
        %v4544 = vpop.f32.mrf.mxu0
        %v4545 = vadd.f32 %v4456, %v4544
        %4546 = vmatmul.bf16.gmra.mxu0 %v3594
        %v4547 = vpop.f32.mrf.mxu0
        %v4548 = vadd.f32 %v4459, %v4547
        %v4549 = vpop.f32.mrf.mxu0
        %v4550 = vadd.f32 %v4461, %v4549
        %4551 = vmatmul.bf16.gmra.mxu0 %v3603
        %v4552 = vpop.f32.mrf.mxu0
        %v4553 = vadd.f32 %v4464, %v4552
        %v4554 = vpop.f32.mrf.mxu0
        %v4555 = vadd.f32 %v4466, %v4554
        %4556 = vmatmul.bf16.gmra.mxu0 %v3612
        %v4557 = vpop.f32.mrf.mxu0
        %v4558 = vadd.f32 %v4469, %v4557
        %v4559 = vpop.f32.mrf.mxu0
        %v4560 = vadd.f32 %v4471, %v4559
        %4561 = vmatmul.bf16.gmra.mxu0 %v3621
        %v4562 = vpop.f32.mrf.mxu0
        %v4563 = vadd.f32 %v4474, %v4562
        %v4564 = vpop.f32.mrf.mxu0
        %v4565 = vadd.f32 %v4476, %v4564
        %4566 = vmatmul.bf16.gmra.mxu0 %v3630
        %v4567 = vpop.f32.mrf.mxu0
        %v4568 = vadd.f32 %v4479, %v4567
        %v4569 = vpop.f32.mrf.mxu0
        %v4570 = vadd.f32 %v4481, %v4569
        %4571 = vmatmul.bf16.gmra.mxu0 %v3639
        %v4572 = vpop.f32.mrf.mxu0
        %v4573 = vadd.f32 %v4484, %v4572
        %v4574 = vpop.f32.mrf.mxu0
        %v4575 = vadd.f32 %v4486, %v4574
        %4576 = vdwg.mxu0
        %4577 = vmatpush.bf16.msra.mxu0 %v4116
        %4578 = vmatpush.bf16.msra.mxu0 %v4115
        %4579 = vmatpush.bf16.msra.mxu0 %v4114
        %4580 = vmatpush.bf16.msra.mxu0 %v4113
        %4581 = vmatpush.bf16.msra.mxu0 %v4112
        %4582 = vmatpush.bf16.msra.mxu0 %v4111
        %4583 = vmatpush.bf16.msra.mxu0 %v4110
        %4584 = vmatpush.bf16.msra.mxu0 %v4109
        %4585 = vmatmul.bf16.gmra.mxu0 %v3505
        %v4586 = vpop.f32.mrf.mxu0
        %v4587 = vadd.f32 %v4498, %v4586
        %v4588 = vpop.f32.mrf.mxu0
        %v4589 = vadd.f32 %v4500, %v4588
        %4590 = vmatmul.bf16.gmra.mxu0 %v3514
        %v4591 = vpop.f32.mrf.mxu0
        %v4592 = vadd.f32 %v4503, %v4591
        %v4593 = vpop.f32.mrf.mxu0
        %v4594 = vadd.f32 %v4505, %v4593
        %4595 = vmatmul.bf16.gmra.mxu0 %v3523
        %v4596 = vpop.f32.mrf.mxu0
        %v4597 = vadd.f32 %v4508, %v4596
        %v4598 = vpop.f32.mrf.mxu0
        %v4599 = vadd.f32 %v4510, %v4598
        %4600 = vmatmul.bf16.gmra.mxu0 %v3532
        %v4601 = vpop.f32.mrf.mxu0
        %v4602 = vadd.f32 %v4513, %v4601
        %v4603 = vpop.f32.mrf.mxu0
        %v4604 = vadd.f32 %v4515, %v4603
        %4605 = vmatmul.bf16.gmra.mxu0 %v3541
        %v4606 = vpop.f32.mrf.mxu0
        %v4607 = vadd.f32 %v4518, %v4606
        %v4608 = vpop.f32.mrf.mxu0
        %v4609 = vadd.f32 %v4520, %v4608
        %4610 = vmatmul.bf16.gmra.mxu0 %v3550
        %v4611 = vpop.f32.mrf.mxu0
        %v4612 = vadd.f32 %v4523, %v4611
        %v4613 = vpop.f32.mrf.mxu0
        %v4614 = vadd.f32 %v4525, %v4613
        %4615 = vmatmul.bf16.gmra.mxu0 %v3559
        %v4616 = vpop.f32.mrf.mxu0
        %v4617 = vadd.f32 %v4528, %v4616
        %v4618 = vpop.f32.mrf.mxu0
        %v4619 = vadd.f32 %v4530, %v4618
        %4620 = vmatmul.bf16.gmra.mxu0 %v3568
        %v4621 = vpop.f32.mrf.mxu0
        %v4622 = vadd.f32 %v4533, %v4621
        %v4623 = vpop.f32.mrf.mxu0
        %v4624 = vadd.f32 %v4535, %v4623
        %4625 = vmatmul.bf16.gmra.mxu0 %v3577
        %v4626 = vpop.f32.mrf.mxu0
        %v4627 = vadd.f32 %v4538, %v4626
        %v4628 = vpop.f32.mrf.mxu0
        %v4629 = vadd.f32 %v4540, %v4628
        %4630 = vmatmul.bf16.gmra.mxu0 %v3586
        %v4631 = vpop.f32.mrf.mxu0
        %v4632 = vadd.f32 %v4543, %v4631
        %v4633 = vpop.f32.mrf.mxu0
        %v4634 = vadd.f32 %v4545, %v4633
        %4635 = vmatmul.bf16.gmra.mxu0 %v3595
        %v4636 = vpop.f32.mrf.mxu0
        %v4637 = vadd.f32 %v4548, %v4636
        %v4638 = vpop.f32.mrf.mxu0
        %v4639 = vadd.f32 %v4550, %v4638
        %4640 = vmatmul.bf16.gmra.mxu0 %v3604
        %v4641 = vpop.f32.mrf.mxu0
        %v4642 = vadd.f32 %v4553, %v4641
        %v4643 = vpop.f32.mrf.mxu0
        %v4644 = vadd.f32 %v4555, %v4643
        %4645 = vmatmul.bf16.gmra.mxu0 %v3613
        %v4646 = vpop.f32.mrf.mxu0
        %v4647 = vadd.f32 %v4558, %v4646
        %v4648 = vpop.f32.mrf.mxu0
        %v4649 = vadd.f32 %v4560, %v4648
        %4650 = vmatmul.bf16.gmra.mxu0 %v3622
        %v4651 = vpop.f32.mrf.mxu0
        %v4652 = vadd.f32 %v4563, %v4651
        %v4653 = vpop.f32.mrf.mxu0
        %v4654 = vadd.f32 %v4565, %v4653
        %4655 = vmatmul.bf16.gmra.mxu0 %v3631
        %v4656 = vpop.f32.mrf.mxu0
        %v4657 = vadd.f32 %v4568, %v4656
        %v4658 = vpop.f32.mrf.mxu0
        %v4659 = vadd.f32 %v4570, %v4658
        %4660 = vmatmul.bf16.gmra.mxu0 %v3640
        %v4661 = vpop.f32.mrf.mxu0
        %v4662 = vadd.f32 %v4573, %v4661
        %v4663 = vpop.f32.mrf.mxu0
        %v4664 = vadd.f32 %v4575, %v4663
        %4665 = vdwg.mxu0
        %4666 = vmatpush.bf16.msra.mxu0 %v4124
        %4667 = vmatpush.bf16.msra.mxu0 %v4123
        %4668 = vmatpush.bf16.msra.mxu0 %v4122
        %4669 = vmatpush.bf16.msra.mxu0 %v4121
        %4670 = vmatpush.bf16.msra.mxu0 %v4120
        %4671 = vmatpush.bf16.msra.mxu0 %v4119
        %4672 = vmatpush.bf16.msra.mxu0 %v4118
        %4673 = vmatpush.bf16.msra.mxu0 %v4117
        %4674 = vmatmul.bf16.gmra.mxu0 %v3506
        %v4675 = vpop.f32.mrf.mxu0
        %v4676 = vadd.f32 %v4587, %v4675
        %v4677 = vpop.f32.mrf.mxu0
        %v4678 = vadd.f32 %v4589, %v4677
        %4679 = vmatmul.bf16.gmra.mxu0 %v3515
        %v4680 = vpop.f32.mrf.mxu0
        %v4681 = vadd.f32 %v4592, %v4680
        %v4682 = vpop.f32.mrf.mxu0
        %v4683 = vadd.f32 %v4594, %v4682
        %4684 = vmatmul.bf16.gmra.mxu0 %v3524
        %v4685 = vpop.f32.mrf.mxu0
        %v4686 = vadd.f32 %v4597, %v4685
        %v4687 = vpop.f32.mrf.mxu0
        %v4688 = vadd.f32 %v4599, %v4687
        %4689 = vmatmul.bf16.gmra.mxu0 %v3533
        %v4690 = vpop.f32.mrf.mxu0
        %v4691 = vadd.f32 %v4602, %v4690
        %v4692 = vpop.f32.mrf.mxu0
        %v4693 = vadd.f32 %v4604, %v4692
        %4694 = vmatmul.bf16.gmra.mxu0 %v3542
        %v4695 = vpop.f32.mrf.mxu0
        %v4696 = vadd.f32 %v4607, %v4695
        %v4697 = vpop.f32.mrf.mxu0
        %v4698 = vadd.f32 %v4609, %v4697
        %4699 = vmatmul.bf16.gmra.mxu0 %v3551
        %v4700 = vpop.f32.mrf.mxu0
        %v4701 = vadd.f32 %v4612, %v4700
        %v4702 = vpop.f32.mrf.mxu0
        %v4703 = vadd.f32 %v4614, %v4702
        %4704 = vmatmul.bf16.gmra.mxu0 %v3560
        %v4705 = vpop.f32.mrf.mxu0
        %v4706 = vadd.f32 %v4617, %v4705
        %v4707 = vpop.f32.mrf.mxu0
        %v4708 = vadd.f32 %v4619, %v4707
        %4709 = vmatmul.bf16.gmra.mxu0 %v3569
        %v4710 = vpop.f32.mrf.mxu0
        %v4711 = vadd.f32 %v4622, %v4710
        %v4712 = vpop.f32.mrf.mxu0
        %v4713 = vadd.f32 %v4624, %v4712
        %4714 = vmatmul.bf16.gmra.mxu0 %v3578
        %v4715 = vpop.f32.mrf.mxu0
        %v4716 = vadd.f32 %v4627, %v4715
        %v4717 = vpop.f32.mrf.mxu0
        %v4718 = vadd.f32 %v4629, %v4717
        %4719 = vmatmul.bf16.gmra.mxu0 %v3587
        %v4720 = vpop.f32.mrf.mxu0
        %v4721 = vadd.f32 %v4632, %v4720
        %v4722 = vpop.f32.mrf.mxu0
        %v4723 = vadd.f32 %v4634, %v4722
        %4724 = vmatmul.bf16.gmra.mxu0 %v3596
        %v4725 = vpop.f32.mrf.mxu0
        %v4726 = vadd.f32 %v4637, %v4725
        %v4727 = vpop.f32.mrf.mxu0
        %v4728 = vadd.f32 %v4639, %v4727
        %4729 = vmatmul.bf16.gmra.mxu0 %v3605
        %v4730 = vpop.f32.mrf.mxu0
        %v4731 = vadd.f32 %v4642, %v4730
        %v4732 = vpop.f32.mrf.mxu0
        %v4733 = vadd.f32 %v4644, %v4732
        %4734 = vmatmul.bf16.gmra.mxu0 %v3614
        %v4735 = vpop.f32.mrf.mxu0
        %v4736 = vadd.f32 %v4647, %v4735
        %v4737 = vpop.f32.mrf.mxu0
        %v4738 = vadd.f32 %v4649, %v4737
        %4739 = vmatmul.bf16.gmra.mxu0 %v3623
        %v4740 = vpop.f32.mrf.mxu0
        %v4741 = vadd.f32 %v4652, %v4740
        %v4742 = vpop.f32.mrf.mxu0
        %v4743 = vadd.f32 %v4654, %v4742
        %4744 = vmatmul.bf16.gmra.mxu0 %v3632
        %v4745 = vpop.f32.mrf.mxu0
        %v4746 = vadd.f32 %v4657, %v4745
        %v4747 = vpop.f32.mrf.mxu0
        %v4748 = vadd.f32 %v4659, %v4747
        %4749 = vmatmul.bf16.gmra.mxu0 %v3641
        %v4750 = vpop.f32.mrf.mxu0
        %v4751 = vadd.f32 %v4662, %v4750
        %v4752 = vpop.f32.mrf.mxu0
        %v4753 = vadd.f32 %v4664, %v4752
        %4754 = vdwg.mxu0
        %4755 = vmatpush.bf16.msra.mxu0 %v4132
        %4756 = vmatpush.bf16.msra.mxu0 %v4131
        %4757 = vmatpush.bf16.msra.mxu0 %v4130
        %4758 = vmatpush.bf16.msra.mxu0 %v4129
        %4759 = vmatpush.bf16.msra.mxu0 %v4128
        %4760 = vmatpush.bf16.msra.mxu0 %v4127
        %4761 = vmatpush.bf16.msra.mxu0 %v4126
        %4762 = vmatpush.bf16.msra.mxu0 %v4125
        %4763 = vmatmul.bf16.gmra.mxu0 %v3507
        %v4764 = vpop.f32.mrf.mxu0
        %v4765 = vadd.f32 %v4676, %v4764
        %v4766 = vpop.f32.mrf.mxu0
        %v4767 = vadd.f32 %v4678, %v4766
        %4768 = vmatmul.bf16.gmra.mxu0 %v3516
        %v4769 = vpop.f32.mrf.mxu0
        %v4770 = vadd.f32 %v4681, %v4769
        %v4771 = vpop.f32.mrf.mxu0
        %v4772 = vadd.f32 %v4683, %v4771
        %4773 = vmatmul.bf16.gmra.mxu0 %v3525
        %v4774 = vpop.f32.mrf.mxu0
        %v4775 = vadd.f32 %v4686, %v4774
        %v4776 = vpop.f32.mrf.mxu0
        %v4777 = vadd.f32 %v4688, %v4776
        %4778 = vmatmul.bf16.gmra.mxu0 %v3534
        %v4779 = vpop.f32.mrf.mxu0
        %v4780 = vadd.f32 %v4691, %v4779
        %v4781 = vpop.f32.mrf.mxu0
        %v4782 = vadd.f32 %v4693, %v4781
        %4783 = vmatmul.bf16.gmra.mxu0 %v3543
        %v4784 = vpop.f32.mrf.mxu0
        %v4785 = vadd.f32 %v4696, %v4784
        %v4786 = vpop.f32.mrf.mxu0
        %v4787 = vadd.f32 %v4698, %v4786
        %4788 = vmatmul.bf16.gmra.mxu0 %v3552
        %v4789 = vpop.f32.mrf.mxu0
        %v4790 = vadd.f32 %v4701, %v4789
        %v4791 = vpop.f32.mrf.mxu0
        %v4792 = vadd.f32 %v4703, %v4791
        %4793 = vmatmul.bf16.gmra.mxu0 %v3561
        %v4794 = vpop.f32.mrf.mxu0
        %v4795 = vadd.f32 %v4706, %v4794
        %v4796 = vpop.f32.mrf.mxu0
        %v4797 = vadd.f32 %v4708, %v4796
        %4798 = vmatmul.bf16.gmra.mxu0 %v3570
        %v4799 = vpop.f32.mrf.mxu0
        %v4800 = vadd.f32 %v4711, %v4799
        %v4801 = vpop.f32.mrf.mxu0
        %v4802 = vadd.f32 %v4713, %v4801
        %4803 = vmatmul.bf16.gmra.mxu0 %v3579
        %v4804 = vpop.f32.mrf.mxu0
        %v4805 = vadd.f32 %v4716, %v4804
        %v4806 = vpop.f32.mrf.mxu0
        %v4807 = vadd.f32 %v4718, %v4806
        %4808 = vmatmul.bf16.gmra.mxu0 %v3588
        %v4809 = vpop.f32.mrf.mxu0
        %v4810 = vadd.f32 %v4721, %v4809
        %v4811 = vpop.f32.mrf.mxu0
        %v4812 = vadd.f32 %v4723, %v4811
        %4813 = vmatmul.bf16.gmra.mxu0 %v3597
        %v4814 = vpop.f32.mrf.mxu0
        %v4815 = vadd.f32 %v4726, %v4814
        %v4816 = vpop.f32.mrf.mxu0
        %v4817 = vadd.f32 %v4728, %v4816
        %4818 = vmatmul.bf16.gmra.mxu0 %v3606
        %v4819 = vpop.f32.mrf.mxu0
        %v4820 = vadd.f32 %v4731, %v4819
        %v4821 = vpop.f32.mrf.mxu0
        %v4822 = vadd.f32 %v4733, %v4821
        %4823 = vmatmul.bf16.gmra.mxu0 %v3615
        %v4824 = vpop.f32.mrf.mxu0
        %v4825 = vadd.f32 %v4736, %v4824
        %v4826 = vpop.f32.mrf.mxu0
        %v4827 = vadd.f32 %v4738, %v4826
        %4828 = vmatmul.bf16.gmra.mxu0 %v3624
        %v4829 = vpop.f32.mrf.mxu0
        %v4830 = vadd.f32 %v4741, %v4829
        %v4831 = vpop.f32.mrf.mxu0
        %v4832 = vadd.f32 %v4743, %v4831
        %4833 = vmatmul.bf16.gmra.mxu0 %v3633
        %v4834 = vpop.f32.mrf.mxu0
        %v4835 = vadd.f32 %v4746, %v4834
        %v4836 = vpop.f32.mrf.mxu0
        %v4837 = vadd.f32 %v4748, %v4836
        %4838 = vmatmul.bf16.gmra.mxu0 %v3642
        %v4839 = vpop.f32.mrf.mxu0
        %v4840 = vadd.f32 %v4751, %v4839
        %v4841 = vpop.f32.mrf.mxu0
        %v4842 = vadd.f32 %v4753, %v4841
        %4843 = vdwg.mxu0
        %4844 = vmatpush.bf16.msra.mxu0 %v4140
        %4845 = vmatpush.bf16.msra.mxu0 %v4139
        %4846 = vmatpush.bf16.msra.mxu0 %v4138
        %4847 = vmatpush.bf16.msra.mxu0 %v4137
        %4848 = vmatpush.bf16.msra.mxu0 %v4136
        %4849 = vmatpush.bf16.msra.mxu0 %v4135
        %4850 = vmatpush.bf16.msra.mxu0 %v4134
        %4851 = vmatpush.bf16.msra.mxu0 %v4133
        %4852 = vmatmul.bf16.gmra.mxu0 %v3508
        %v4853 = vpop.f32.mrf.mxu0
        %v4854 = vadd.f32 %v4765, %v4853
        %v4855 = vpop.f32.mrf.mxu0
        %v4856 = vadd.f32 %v4767, %v4855
        %4857 = vmatmul.bf16.gmra.mxu0 %v3517
        %v4858 = vpop.f32.mrf.mxu0
        %v4859 = vadd.f32 %v4770, %v4858
        %v4860 = vpop.f32.mrf.mxu0
        %v4861 = vadd.f32 %v4772, %v4860
        %4862 = vmatmul.bf16.gmra.mxu0 %v3526
        %v4863 = vpop.f32.mrf.mxu0
        %v4864 = vadd.f32 %v4775, %v4863
        %v4865 = vpop.f32.mrf.mxu0
        %v4866 = vadd.f32 %v4777, %v4865
        %4867 = vmatmul.bf16.gmra.mxu0 %v3535
        %v4868 = vpop.f32.mrf.mxu0
        %v4869 = vadd.f32 %v4780, %v4868
        %v4870 = vpop.f32.mrf.mxu0
        %v4871 = vadd.f32 %v4782, %v4870
        %4872 = vmatmul.bf16.gmra.mxu0 %v3544
        %v4873 = vpop.f32.mrf.mxu0
        %v4874 = vadd.f32 %v4785, %v4873
        %v4875 = vpop.f32.mrf.mxu0
        %v4876 = vadd.f32 %v4787, %v4875
        %4877 = vmatmul.bf16.gmra.mxu0 %v3553
        %v4878 = vpop.f32.mrf.mxu0
        %v4879 = vadd.f32 %v4790, %v4878
        %v4880 = vpop.f32.mrf.mxu0
        %v4881 = vadd.f32 %v4792, %v4880
        %4882 = vmatmul.bf16.gmra.mxu0 %v3562
        %v4883 = vpop.f32.mrf.mxu0
        %v4884 = vadd.f32 %v4795, %v4883
        %v4885 = vpop.f32.mrf.mxu0
        %v4886 = vadd.f32 %v4797, %v4885
        %4887 = vmatmul.bf16.gmra.mxu0 %v3571
        %v4888 = vpop.f32.mrf.mxu0
        %v4889 = vadd.f32 %v4800, %v4888
        %v4890 = vpop.f32.mrf.mxu0
        %v4891 = vadd.f32 %v4802, %v4890
        %4892 = vmatmul.bf16.gmra.mxu0 %v3580
        %v4893 = vpop.f32.mrf.mxu0
        %v4894 = vadd.f32 %v4805, %v4893
        %v4895 = vpop.f32.mrf.mxu0
        %v4896 = vadd.f32 %v4807, %v4895
        %4897 = vmatmul.bf16.gmra.mxu0 %v3589
        %v4898 = vpop.f32.mrf.mxu0
        %v4899 = vadd.f32 %v4810, %v4898
        %v4900 = vpop.f32.mrf.mxu0
        %v4901 = vadd.f32 %v4812, %v4900
        %4902 = vmatmul.bf16.gmra.mxu0 %v3598
        %v4903 = vpop.f32.mrf.mxu0
        %v4904 = vadd.f32 %v4815, %v4903
        %v4905 = vpop.f32.mrf.mxu0
        %v4906 = vadd.f32 %v4817, %v4905
        %4907 = vmatmul.bf16.gmra.mxu0 %v3607
        %v4908 = vpop.f32.mrf.mxu0
        %v4909 = vadd.f32 %v4820, %v4908
        %v4910 = vpop.f32.mrf.mxu0
        %v4911 = vadd.f32 %v4822, %v4910
        %4912 = vmatmul.bf16.gmra.mxu0 %v3616
        %v4913 = vpop.f32.mrf.mxu0
        %v4914 = vadd.f32 %v4825, %v4913
        %v4915 = vpop.f32.mrf.mxu0
        %v4916 = vadd.f32 %v4827, %v4915
        %4917 = vmatmul.bf16.gmra.mxu0 %v3625
        %v4918 = vpop.f32.mrf.mxu0
        %v4919 = vadd.f32 %v4830, %v4918
        %v4920 = vpop.f32.mrf.mxu0
        %v4921 = vadd.f32 %v4832, %v4920
        %4922 = vmatmul.bf16.gmra.mxu0 %v3634
        %v4923 = vpop.f32.mrf.mxu0
        %v4924 = vadd.f32 %v4835, %v4923
        %v4925 = vpop.f32.mrf.mxu0
        %v4926 = vadd.f32 %v4837, %v4925
        %4927 = vmatmul.bf16.gmra.mxu0 %v3643
        %v4928 = vpop.f32.mrf.mxu0
        %v4929 = vadd.f32 %v4840, %v4928
        %v4930 = vpop.f32.mrf.mxu0
        %v4931 = vadd.f32 %v4842, %v4930
        %4932 = vdwg.mxu0
        %4933 = vmatpush.bf16.msra.mxu0 %v4148
        %4934 = vmatpush.bf16.msra.mxu0 %v4147
        %4935 = vmatpush.bf16.msra.mxu0 %v4146
        %4936 = vmatpush.bf16.msra.mxu0 %v4145
        %4937 = vmatpush.bf16.msra.mxu0 %v4144
        %4938 = vmatpush.bf16.msra.mxu0 %v4143
        %4939 = vmatpush.bf16.msra.mxu0 %v4142
        %4940 = vmatpush.bf16.msra.mxu0 %v4141
        %4941 = vmatmul.bf16.gmra.mxu0 %v3509
        %v4942 = vpop.f32.mrf.mxu0
        %v4943 = vadd.f32 %v4854, %v4942
        %v4944 = vpop.f32.mrf.mxu0
        %v4945 = vadd.f32 %v4856, %v4944
        %4946 = vmatmul.bf16.gmra.mxu0 %v3518
        %v4947 = vpop.f32.mrf.mxu0
        %v4948 = vadd.f32 %v4859, %v4947
        %v4949 = vpop.f32.mrf.mxu0
        %v4950 = vadd.f32 %v4861, %v4949
        %4951 = vmatmul.bf16.gmra.mxu0 %v3527
        %v4952 = vpop.f32.mrf.mxu0
        %v4953 = vadd.f32 %v4864, %v4952
        %v4954 = vpop.f32.mrf.mxu0
        %v4955 = vadd.f32 %v4866, %v4954
        %4956 = vmatmul.bf16.gmra.mxu0 %v3536
        %v4957 = vpop.f32.mrf.mxu0
        %v4958 = vadd.f32 %v4869, %v4957
        %v4959 = vpop.f32.mrf.mxu0
        %v4960 = vadd.f32 %v4871, %v4959
        %4961 = vmatmul.bf16.gmra.mxu0 %v3545
        %v4962 = vpop.f32.mrf.mxu0
        %v4963 = vadd.f32 %v4874, %v4962
        %v4964 = vpop.f32.mrf.mxu0
        %v4965 = vadd.f32 %v4876, %v4964
        %4966 = vmatmul.bf16.gmra.mxu0 %v3554
        %v4967 = vpop.f32.mrf.mxu0
        %v4968 = vadd.f32 %v4879, %v4967
        %v4969 = vpop.f32.mrf.mxu0
        %v4970 = vadd.f32 %v4881, %v4969
        %4971 = vmatmul.bf16.gmra.mxu0 %v3563
        %v4972 = vpop.f32.mrf.mxu0
        %v4973 = vadd.f32 %v4884, %v4972
        %v4974 = vpop.f32.mrf.mxu0
        %v4975 = vadd.f32 %v4886, %v4974
        %4976 = vmatmul.bf16.gmra.mxu0 %v3572
        %v4977 = vpop.f32.mrf.mxu0
        %v4978 = vadd.f32 %v4889, %v4977
        %v4979 = vpop.f32.mrf.mxu0
        %v4980 = vadd.f32 %v4891, %v4979
        %4981 = vmatmul.bf16.gmra.mxu0 %v3581
        %v4982 = vpop.f32.mrf.mxu0
        %v4983 = vadd.f32 %v4894, %v4982
        %v4984 = vpop.f32.mrf.mxu0
        %v4985 = vadd.f32 %v4896, %v4984
        %4986 = vmatmul.bf16.gmra.mxu0 %v3590
        %v4987 = vpop.f32.mrf.mxu0
        %v4988 = vadd.f32 %v4899, %v4987
        %v4989 = vpop.f32.mrf.mxu0
        %v4990 = vadd.f32 %v4901, %v4989
        %4991 = vmatmul.bf16.gmra.mxu0 %v3599
        %v4992 = vpop.f32.mrf.mxu0
        %v4993 = vadd.f32 %v4904, %v4992
        %v4994 = vpop.f32.mrf.mxu0
        %v4995 = vadd.f32 %v4906, %v4994
        %4996 = vmatmul.bf16.gmra.mxu0 %v3608
        %v4997 = vpop.f32.mrf.mxu0
        %v4998 = vadd.f32 %v4909, %v4997
        %v4999 = vpop.f32.mrf.mxu0
        %v5000 = vadd.f32 %v4911, %v4999
        %5001 = vmatmul.bf16.gmra.mxu0 %v3617
        %v5002 = vpop.f32.mrf.mxu0
        %v5003 = vadd.f32 %v4914, %v5002
        %v5004 = vpop.f32.mrf.mxu0
        %v5005 = vadd.f32 %v4916, %v5004
        %5006 = vmatmul.bf16.gmra.mxu0 %v3626
        %v5007 = vpop.f32.mrf.mxu0
        %v5008 = vadd.f32 %v4919, %v5007
        %v5009 = vpop.f32.mrf.mxu0
        %v5010 = vadd.f32 %v4921, %v5009
        %5011 = vmatmul.bf16.gmra.mxu0 %v3635
        %v5012 = vpop.f32.mrf.mxu0
        %v5013 = vadd.f32 %v4924, %v5012
        %v5014 = vpop.f32.mrf.mxu0
        %v5015 = vadd.f32 %v4926, %v5014
        %5016 = vmatmul.bf16.gmra.mxu0 %v3644
        %v5017 = vpop.f32.mrf.mxu0
        %v5018 = vadd.f32 %v4929, %v5017
        %v5019 = vpop.f32.mrf.mxu0
        %v5020 = vadd.f32 %v4931, %v5019
        %5021 = vdwg.mxu0
        %v5022 = vmin.f32 %v4943, 20.0
        %v5023 = vmin.f32 %v4945, 20.0
        %v5024 = vmin.f32 %v4948, 20.0
        %v5025 = vmin.f32 %v4950, 20.0
        %v5026 = vmin.f32 %v4953, 20.0
        %v5027 = vmin.f32 %v4955, 20.0
        %v5028 = vmin.f32 %v4958, 20.0
        %v5029 = vmin.f32 %v4960, 20.0
        %v5030 = vmin.f32 %v4963, 20.0
        %v5031 = vmin.f32 %v4965, 20.0
        %v5032 = vmin.f32 %v4968, 20.0
        %v5033 = vmin.f32 %v4970, 20.0
        %v5034 = vmin.f32 %v4973, 20.0
        %v5035 = vmin.f32 %v4975, 20.0
        %v5036 = vmin.f32 %v4978, 20.0
        %v5037 = vmin.f32 %v4980, 20.0
        %v5038 = vmin.f32 %v4983, 20.0
        %v5039 = vmin.f32 %v4985, 20.0
        %v5040 = vmin.f32 %v4988, 20.0
        %v5041 = vmin.f32 %v4990, 20.0
        %v5042 = vmin.f32 %v4993, 20.0
        %v5043 = vmin.f32 %v4995, 20.0
        %v5044 = vmin.f32 %v4998, 20.0
        %v5045 = vmin.f32 %v5000, 20.0
        %v5046 = vmin.f32 %v5003, 20.0
        %v5047 = vmin.f32 %v5005, 20.0
        %v5048 = vmin.f32 %v5008, 20.0
        %v5049 = vmin.f32 %v5010, 20.0
        %v5050 = vmin.f32 %v5013, 20.0
        %v5051 = vmin.f32 %v5015, 20.0
        %v5052 = vmin.f32 %v5018, 20.0
        %v5053 = vmin.f32 %v5020, 20.0
        %v5054 = vmul.f32 %v5022, 1.442695
        %v5055 = vpow.pop %v5054
        %v5056 = vmul.f32 %v5023, 1.442695
        %v5057 = vpow.pop %v5056
        %v5058 = vmul.f32 %v5024, 1.442695
        %v5059 = vpow.pop %v5058
        %v5060 = vmul.f32 %v5025, 1.442695
        %v5061 = vpow.pop %v5060
        %v5062 = vmul.f32 %v5026, 1.442695
        %v5063 = vpow.pop %v5062
        %v5064 = vmul.f32 %v5027, 1.442695
        %v5065 = vpow.pop %v5064
        %v5066 = vmul.f32 %v5028, 1.442695
        %v5067 = vpow.pop %v5066
        %v5068 = vmul.f32 %v5029, 1.442695
        %v5069 = vpow.pop %v5068
        %v5070 = vmul.f32 %v5030, 1.442695
        %v5071 = vpow.pop %v5070
        %v5072 = vmul.f32 %v5031, 1.442695
        %v5073 = vpow.pop %v5072
        %v5074 = vmul.f32 %v5032, 1.442695
        %v5075 = vpow.pop %v5074
        %v5076 = vmul.f32 %v5033, 1.442695
        %v5077 = vpow.pop %v5076
        %v5078 = vmul.f32 %v5034, 1.442695
        %v5079 = vpow.pop %v5078
        %v5080 = vmul.f32 %v5035, 1.442695
        %v5081 = vpow.pop %v5080
        %v5082 = vmul.f32 %v5036, 1.442695
        %v5083 = vpow.pop %v5082
        %v5084 = vmul.f32 %v5037, 1.442695
        %v5085 = vpow.pop %v5084
        %v5086 = vmul.f32 %v5038, 1.442695
        %v5087 = vpow.pop %v5086
        %v5088 = vmul.f32 %v5039, 1.442695
        %v5089 = vpow.pop %v5088
        %v5090 = vmul.f32 %v5040, 1.442695
        %v5091 = vpow.pop %v5090
        %v5092 = vmul.f32 %v5041, 1.442695
        %v5093 = vpow.pop %v5092
        %v5094 = vmul.f32 %v5042, 1.442695
        %v5095 = vpow.pop %v5094
        %v5096 = vmul.f32 %v5043, 1.442695
        %v5097 = vpow.pop %v5096
        %v5098 = vmul.f32 %v5044, 1.442695
        %v5099 = vpow.pop %v5098
        %v5100 = vmul.f32 %v5045, 1.442695
        %v5101 = vpow.pop %v5100
        %v5102 = vmul.f32 %v5046, 1.442695
        %v5103 = vpow.pop %v5102
        %v5104 = vmul.f32 %v5047, 1.442695
        %v5105 = vpow.pop %v5104
        %v5106 = vmul.f32 %v5048, 1.442695
        %v5107 = vpow.pop %v5106
        %v5108 = vmul.f32 %v5049, 1.442695
        %v5109 = vpow.pop %v5108
        %v5110 = vmul.f32 %v5050, 1.442695
        %v5111 = vpow.pop %v5110
        %v5112 = vmul.f32 %v5051, 1.442695
        %v5113 = vpow.pop %v5112
        %v5114 = vmul.f32 %v5052, 1.442695
        %v5115 = vpow.pop %v5114
        %v5116 = vmul.f32 %v5053, 1.442695
        %v5117 = vpow.pop %v5116
        %v5118 = vadd.f32 %v5055, 1.0
        %v5119 = vadd.f32 %v5057, 1.0
        %v5120 = vadd.f32 %v5059, 1.0
        %v5121 = vadd.f32 %v5061, 1.0
        %v5122 = vadd.f32 %v5063, 1.0
        %v5123 = vadd.f32 %v5065, 1.0
        %v5124 = vadd.f32 %v5067, 1.0
        %v5125 = vadd.f32 %v5069, 1.0
        %v5126 = vadd.f32 %v5071, 1.0
        %v5127 = vadd.f32 %v5073, 1.0
        %v5128 = vadd.f32 %v5075, 1.0
        %v5129 = vadd.f32 %v5077, 1.0
        %v5130 = vadd.f32 %v5079, 1.0
        %v5131 = vadd.f32 %v5081, 1.0
        %v5132 = vadd.f32 %v5083, 1.0
        %v5133 = vadd.f32 %v5085, 1.0
        %v5134 = vadd.f32 %v5087, 1.0
        %v5135 = vadd.f32 %v5089, 1.0
        %v5136 = vadd.f32 %v5091, 1.0
        %v5137 = vadd.f32 %v5093, 1.0
        %v5138 = vadd.f32 %v5095, 1.0
        %v5139 = vadd.f32 %v5097, 1.0
        %v5140 = vadd.f32 %v5099, 1.0
        %v5141 = vadd.f32 %v5101, 1.0
        %v5142 = vadd.f32 %v5103, 1.0
        %v5143 = vadd.f32 %v5105, 1.0
        %v5144 = vadd.f32 %v5107, 1.0
        %v5145 = vadd.f32 %v5109, 1.0
        %v5146 = vadd.f32 %v5111, 1.0
        %v5147 = vadd.f32 %v5113, 1.0
        %v5148 = vadd.f32 %v5115, 1.0
        %v5149 = vadd.f32 %v5117, 1.0
        %v5150 = vmul.f32 %v5118, %v5118
        %v5151 = vmul.f32 %v5119, %v5119
        %v5152 = vmul.f32 %v5120, %v5120
        %v5153 = vmul.f32 %v5121, %v5121
        %v5154 = vmul.f32 %v5122, %v5122
        %v5155 = vmul.f32 %v5123, %v5123
        %v5156 = vmul.f32 %v5124, %v5124
        %v5157 = vmul.f32 %v5125, %v5125
        %v5158 = vmul.f32 %v5126, %v5126
        %v5159 = vmul.f32 %v5127, %v5127
        %v5160 = vmul.f32 %v5128, %v5128
        %v5161 = vmul.f32 %v5129, %v5129
        %v5162 = vmul.f32 %v5130, %v5130
        %v5163 = vmul.f32 %v5131, %v5131
        %v5164 = vmul.f32 %v5132, %v5132
        %v5165 = vmul.f32 %v5133, %v5133
        %v5166 = vmul.f32 %v5134, %v5134
        %v5167 = vmul.f32 %v5135, %v5135
        %v5168 = vmul.f32 %v5136, %v5136
        %v5169 = vmul.f32 %v5137, %v5137
        %v5170 = vmul.f32 %v5138, %v5138
        %v5171 = vmul.f32 %v5139, %v5139
        %v5172 = vmul.f32 %v5140, %v5140
        %v5173 = vmul.f32 %v5141, %v5141
        %v5174 = vmul.f32 %v5142, %v5142
        %v5175 = vmul.f32 %v5143, %v5143
        %v5176 = vmul.f32 %v5144, %v5144
        %v5177 = vmul.f32 %v5145, %v5145
        %v5178 = vmul.f32 %v5146, %v5146
        %v5179 = vmul.f32 %v5147, %v5147
        %v5180 = vmul.f32 %v5148, %v5148
        %v5181 = vmul.f32 %v5149, %v5149
        %v5182 = vsub.f32 %v5150, 1.0
        %v5183 = vsub.f32 %v5151, 1.0
        %v5184 = vsub.f32 %v5152, 1.0
        %v5185 = vsub.f32 %v5153, 1.0
        %v5186 = vsub.f32 %v5154, 1.0
        %v5187 = vsub.f32 %v5155, 1.0
        %v5188 = vsub.f32 %v5156, 1.0
        %v5189 = vsub.f32 %v5157, 1.0
        %v5190 = vsub.f32 %v5158, 1.0
        %v5191 = vsub.f32 %v5159, 1.0
        %v5192 = vsub.f32 %v5160, 1.0
        %v5193 = vsub.f32 %v5161, 1.0
        %v5194 = vsub.f32 %v5162, 1.0
        %v5195 = vsub.f32 %v5163, 1.0
        %v5196 = vsub.f32 %v5164, 1.0
        %v5197 = vsub.f32 %v5165, 1.0
        %v5198 = vsub.f32 %v5166, 1.0
        %v5199 = vsub.f32 %v5167, 1.0
        %v5200 = vsub.f32 %v5168, 1.0
        %v5201 = vsub.f32 %v5169, 1.0
        %v5202 = vsub.f32 %v5170, 1.0
        %v5203 = vsub.f32 %v5171, 1.0
        %v5204 = vsub.f32 %v5172, 1.0
        %v5205 = vsub.f32 %v5173, 1.0
        %v5206 = vsub.f32 %v5174, 1.0
        %v5207 = vsub.f32 %v5175, 1.0
        %v5208 = vsub.f32 %v5176, 1.0
        %v5209 = vsub.f32 %v5177, 1.0
        %v5210 = vsub.f32 %v5178, 1.0
        %v5211 = vsub.f32 %v5179, 1.0
        %v5212 = vsub.f32 %v5180, 1.0
        %v5213 = vsub.f32 %v5181, 1.0
        %v5214 = vmul.f32 %v4943, %v5182
        %v5215 = vmul.f32 %v4945, %v5183
        %v5216 = vmul.f32 %v4948, %v5184
        %v5217 = vmul.f32 %v4950, %v5185
        %v5218 = vmul.f32 %v4953, %v5186
        %v5219 = vmul.f32 %v4955, %v5187
        %v5220 = vmul.f32 %v4958, %v5188
        %v5221 = vmul.f32 %v4960, %v5189
        %v5222 = vmul.f32 %v4963, %v5190
        %v5223 = vmul.f32 %v4965, %v5191
        %v5224 = vmul.f32 %v4968, %v5192
        %v5225 = vmul.f32 %v4970, %v5193
        %v5226 = vmul.f32 %v4973, %v5194
        %v5227 = vmul.f32 %v4975, %v5195
        %v5228 = vmul.f32 %v4978, %v5196
        %v5229 = vmul.f32 %v4980, %v5197
        %v5230 = vmul.f32 %v4983, %v5198
        %v5231 = vmul.f32 %v4985, %v5199
        %v5232 = vmul.f32 %v4988, %v5200
        %v5233 = vmul.f32 %v4990, %v5201
        %v5234 = vmul.f32 %v4993, %v5202
        %v5235 = vmul.f32 %v4995, %v5203
        %v5236 = vmul.f32 %v4998, %v5204
        %v5237 = vmul.f32 %v5000, %v5205
        %v5238 = vmul.f32 %v5003, %v5206
        %v5239 = vmul.f32 %v5005, %v5207
        %v5240 = vmul.f32 %v5008, %v5208
        %v5241 = vmul.f32 %v5010, %v5209
        %v5242 = vmul.f32 %v5013, %v5210
        %v5243 = vmul.f32 %v5015, %v5211
        %v5244 = vmul.f32 %v5018, %v5212
        %v5245 = vmul.f32 %v5020, %v5213
        %v5246 = vadd.f32 %v5150, 1.0
        %v5247 = vadd.f32 %v5151, 1.0
        %v5248 = vadd.f32 %v5152, 1.0
        %v5249 = vadd.f32 %v5153, 1.0
        %v5250 = vadd.f32 %v5154, 1.0
        %v5251 = vadd.f32 %v5155, 1.0
        %v5252 = vadd.f32 %v5156, 1.0
        %v5253 = vadd.f32 %v5157, 1.0
        %v5254 = vadd.f32 %v5158, 1.0
        %v5255 = vadd.f32 %v5159, 1.0
        %v5256 = vadd.f32 %v5160, 1.0
        %v5257 = vadd.f32 %v5161, 1.0
        %v5258 = vadd.f32 %v5162, 1.0
        %v5259 = vadd.f32 %v5163, 1.0
        %v5260 = vadd.f32 %v5164, 1.0
        %v5261 = vadd.f32 %v5165, 1.0
        %v5262 = vadd.f32 %v5166, 1.0
        %v5263 = vadd.f32 %v5167, 1.0
        %v5264 = vadd.f32 %v5168, 1.0
        %v5265 = vadd.f32 %v5169, 1.0
        %v5266 = vadd.f32 %v5170, 1.0
        %v5267 = vadd.f32 %v5171, 1.0
        %v5268 = vadd.f32 %v5172, 1.0
        %v5269 = vadd.f32 %v5173, 1.0
        %v5270 = vadd.f32 %v5174, 1.0
        %v5271 = vadd.f32 %v5175, 1.0
        %v5272 = vadd.f32 %v5176, 1.0
        %v5273 = vadd.f32 %v5177, 1.0
        %v5274 = vadd.f32 %v5178, 1.0
        %v5275 = vadd.f32 %v5179, 1.0
        %v5276 = vadd.f32 %v5180, 1.0
        %v5277 = vadd.f32 %v5181, 1.0
        %v5278 = vrcp.pop %v5246
        %v5279 = vrcp.pop %v5247
        %v5280 = vrcp.pop %v5248
        %v5281 = vrcp.pop %v5249
        %v5282 = vrcp.pop %v5250
        %v5283 = vrcp.pop %v5251
        %v5284 = vrcp.pop %v5252
        %v5285 = vrcp.pop %v5253
        %v5286 = vrcp.pop %v5254
        %v5287 = vrcp.pop %v5255
        %v5288 = vrcp.pop %v5256
        %v5289 = vrcp.pop %v5257
        %v5290 = vrcp.pop %v5258
        %v5291 = vrcp.pop %v5259
        %v5292 = vrcp.pop %v5260
        %v5293 = vrcp.pop %v5261
        %v5294 = vrcp.pop %v5262
        %v5295 = vrcp.pop %v5263
        %v5296 = vrcp.pop %v5264
        %v5297 = vrcp.pop %v5265
        %v5298 = vrcp.pop %v5266
        %v5299 = vrcp.pop %v5267
        %v5300 = vrcp.pop %v5268
        %v5301 = vrcp.pop %v5269
        %v5302 = vrcp.pop %v5270
        %v5303 = vrcp.pop %v5271
        %v5304 = vrcp.pop %v5272
        %v5305 = vrcp.pop %v5273
        %v5306 = vrcp.pop %v5274
        %v5307 = vrcp.pop %v5275
        %v5308 = vrcp.pop %v5276
        %v5309 = vrcp.pop %v5277
        %v5310 = vmul.f32 %v5214, %v5278
        %v5311 = vmul.f32 %v5215, %v5279
        %v5312 = vmul.f32 %v5216, %v5280
        %v5313 = vmul.f32 %v5217, %v5281
        %v5314 = vmul.f32 %v5218, %v5282
        %v5315 = vmul.f32 %v5219, %v5283
        %v5316 = vmul.f32 %v5220, %v5284
        %v5317 = vmul.f32 %v5221, %v5285
        %v5318 = vmul.f32 %v5222, %v5286
        %v5319 = vmul.f32 %v5223, %v5287
        %v5320 = vmul.f32 %v5224, %v5288
        %v5321 = vmul.f32 %v5225, %v5289
        %v5322 = vmul.f32 %v5226, %v5290
        %v5323 = vmul.f32 %v5227, %v5291
        %v5324 = vmul.f32 %v5228, %v5292
        %v5325 = vmul.f32 %v5229, %v5293
        %v5326 = vmul.f32 %v5230, %v5294
        %v5327 = vmul.f32 %v5231, %v5295
        %v5328 = vmul.f32 %v5232, %v5296
        %v5329 = vmul.f32 %v5233, %v5297
        %v5330 = vmul.f32 %v5234, %v5298
        %v5331 = vmul.f32 %v5235, %v5299
        %v5332 = vmul.f32 %v5236, %v5300
        %v5333 = vmul.f32 %v5237, %v5301
        %v5334 = vmul.f32 %v5238, %v5302
        %v5335 = vmul.f32 %v5239, %v5303
        %v5336 = vmul.f32 %v5240, %v5304
        %v5337 = vmul.f32 %v5241, %v5305
        %v5338 = vmul.f32 %v5242, %v5306
        %v5339 = vmul.f32 %v5243, %v5307
        %v5340 = vmul.f32 %v5244, %v5308
        %v5341 = vmul.f32 %v5245, %v5309
        %5342 = vst [vmem:[#allocation2] sm:$0xf] 0
        %5343 = vst [vmem:[#allocation2 + $0x4] sm:$0xf] 0
        %5344 = vst [vmem:[#allocation2 + $0x8] sm:$0x1] 0
        %s5345 = scalar_lea.vmem [#allocation2], 204
        %5346 = vst [vmem:[%s5345] sm:$0xf] 0
        %5347 = vst [vmem:[%s5345 + $0x4] sm:$0xf] 0
        %5348 = vst [vmem:[%s5345 + $0x8] sm:$0x1] 0
        %vm5349 = vcmask 1040384
        %vm5350 = vsmask.f32 256
        %vm5351 = vmand %vm5349, %vm5350
        %v5352 = vld [vmem:[#allocation2] sm:$0x1]
        %v5353 = vsel %vm5351, 0, %v5352
        %5354 = vst [vmem:[#allocation2] sm:$0x1] %v5353
        %v5355 = vld [vmem:[#allocation2 + $0xc] sm:$0x1]
        %v5356 = vsel %vm5351, 0, %v5355
        %5357 = vst [vmem:[#allocation2 + $0xc] sm:$0x1] %v5356
        %v5358 = vld [vmem:[#allocation2 + $0x18] sm:$0x1]
        %v5359 = vsel %vm5351, 0, %v5358
        %5360 = vst [vmem:[#allocation2 + $0x18] sm:$0x1] %v5359
        %v5361 = vld [vmem:[#allocation2 + $0x24] sm:$0x1]
        %v5362 = vsel %vm5351, 0, %v5361
        %5363 = vst [vmem:[#allocation2 + $0x24] sm:$0x1] %v5362
        %v5364 = vld [vmem:[#allocation2 + $0x30] sm:$0x1]
        %v5365 = vsel %vm5351, 0, %v5364
        %5366 = vst [vmem:[#allocation2 + $0x30] sm:$0x1] %v5365
        %v5367 = vld [vmem:[#allocation2 + $0x3c] sm:$0x1]
        %v5368 = vsel %vm5351, 0, %v5367
        %5369 = vst [vmem:[#allocation2 + $0x3c] sm:$0x1] %v5368
        %v5370 = vld [vmem:[#allocation2 + $0x48] sm:$0x1]
        %v5371 = vsel %vm5351, 0, %v5370
        %5372 = vst [vmem:[#allocation2 + $0x48] sm:$0x1] %v5371
        %v5373 = vld [vmem:[#allocation2 + $0x54] sm:$0x1]
        %v5374 = vsel %vm5351, 0, %v5373
        %5375 = vst [vmem:[#allocation2 + $0x54] sm:$0x1] %v5374
        %v5376 = vld [vmem:[#allocation2 + $0x60] sm:$0x1]
        %v5377 = vsel %vm5351, 0, %v5376
        %5378 = vst [vmem:[#allocation2 + $0x60] sm:$0x1] %v5377
        %v5379 = vld [vmem:[#allocation2 + $0x6c] sm:$0x1]
        %v5380 = vsel %vm5351, 0, %v5379
        %5381 = vst [vmem:[#allocation2 + $0x6c] sm:$0x1] %v5380
        %v5382 = vld [vmem:[#allocation2 + $0x78] sm:$0x1]
        %v5383 = vsel %vm5351, 0, %v5382
        %5384 = vst [vmem:[#allocation2 + $0x78] sm:$0x1] %v5383
        %v5385 = vld [vmem:[#allocation2 + $0x84] sm:$0x1]
        %v5386 = vsel %vm5351, 0, %v5385
        %5387 = vst [vmem:[#allocation2 + $0x84] sm:$0x1] %v5386
        %v5388 = vld [vmem:[#allocation2 + $0x90] sm:$0x1]
        %v5389 = vsel %vm5351, 0, %v5388
        %5390 = vst [vmem:[#allocation2 + $0x90] sm:$0x1] %v5389
        %v5391 = vld [vmem:[#allocation2 + $0x9c] sm:$0x1]
        %v5392 = vsel %vm5351, 0, %v5391
        %5393 = vst [vmem:[#allocation2 + $0x9c] sm:$0x1] %v5392
        %v5394 = vld [vmem:[#allocation2 + $0xa8] sm:$0x1]
        %v5395 = vsel %vm5351, 0, %v5394
        %5396 = vst [vmem:[#allocation2 + $0xa8] sm:$0x1] %v5395
        %v5397 = vld [vmem:[#allocation2 + $0xb4] sm:$0x1]
        %v5398 = vsel %vm5351, 0, %v5397
        %5399 = vst [vmem:[#allocation2 + $0xb4] sm:$0x1] %v5398
        %v5400 = vld [vmem:[#allocation2 + $0xc0] sm:$0x1]
        %v5401 = vsel %vm5351, 0, %v5400
        %5402 = vst [vmem:[#allocation2 + $0xc0] sm:$0x1] %v5401
        %v5403 = vld [vmem:[#allocation2 + $0xcc] sm:$0x1]
        %v5404 = vsel %vm5351, 0, %v5403
        %5405 = vst [vmem:[#allocation2 + $0xcc] sm:$0x1] %v5404
        %vm5406 = vsmask.f32 7938
        %vm5407 = vmand %vm5349, %vm5406
        %v5408 = vld [vmem:[#allocation2 + $0x8] sm:$0x1]
        %v5409 = vsel %vm5407, 0, %v5408
        %5410 = vst [vmem:[#allocation2 + $0x8] sm:$0x1] %v5409
        %v5411 = vld [vmem:[#allocation2 + $0x14] sm:$0x1]
        %v5412 = vsel %vm5407, 0, %v5411
        %5413 = vst [vmem:[#allocation2 + $0x14] sm:$0x1] %v5412
        %v5414 = vld [vmem:[#allocation2 + $0x20] sm:$0x1]
        %v5415 = vsel %vm5407, 0, %v5414
        %5416 = vst [vmem:[#allocation2 + $0x20] sm:$0x1] %v5415
        %v5417 = vld [vmem:[#allocation2 + $0x2c] sm:$0x1]
        %v5418 = vsel %vm5407, 0, %v5417
        %5419 = vst [vmem:[#allocation2 + $0x2c] sm:$0x1] %v5418
        %v5420 = vld [vmem:[#allocation2 + $0x38] sm:$0x1]
        %v5421 = vsel %vm5407, 0, %v5420
        %5422 = vst [vmem:[#allocation2 + $0x38] sm:$0x1] %v5421
        %v5423 = vld [vmem:[#allocation2 + $0x44] sm:$0x1]
        %v5424 = vsel %vm5407, 0, %v5423
        %5425 = vst [vmem:[#allocation2 + $0x44] sm:$0x1] %v5424
        %v5426 = vld [vmem:[#allocation2 + $0x50] sm:$0x1]
        %v5427 = vsel %vm5407, 0, %v5426
        %5428 = vst [vmem:[#allocation2 + $0x50] sm:$0x1] %v5427
        %v5429 = vld [vmem:[#allocation2 + $0x5c] sm:$0x1]
        %v5430 = vsel %vm5407, 0, %v5429
        %5431 = vst [vmem:[#allocation2 + $0x5c] sm:$0x1] %v5430
        %v5432 = vld [vmem:[#allocation2 + $0x68] sm:$0x1]
        %v5433 = vsel %vm5407, 0, %v5432
        %5434 = vst [vmem:[#allocation2 + $0x68] sm:$0x1] %v5433
        %v5435 = vld [vmem:[#allocation2 + $0x74] sm:$0x1]
        %v5436 = vsel %vm5407, 0, %v5435
        %5437 = vst [vmem:[#allocation2 + $0x74] sm:$0x1] %v5436
        %v5438 = vld [vmem:[#allocation2 + $0x80] sm:$0x1]
        %v5439 = vsel %vm5407, 0, %v5438
        %5440 = vst [vmem:[#allocation2 + $0x80] sm:$0x1] %v5439
        %v5441 = vld [vmem:[#allocation2 + $0x8c] sm:$0x1]
        %v5442 = vsel %vm5407, 0, %v5441
        %5443 = vst [vmem:[#allocation2 + $0x8c] sm:$0x1] %v5442
        %v5444 = vld [vmem:[#allocation2 + $0x98] sm:$0x1]
        %v5445 = vsel %vm5407, 0, %v5444
        %5446 = vst [vmem:[#allocation2 + $0x98] sm:$0x1] %v5445
        %v5447 = vld [vmem:[#allocation2 + $0xa4] sm:$0x1]
        %v5448 = vsel %vm5407, 0, %v5447
        %5449 = vst [vmem:[#allocation2 + $0xa4] sm:$0x1] %v5448
        %v5450 = vld [vmem:[#allocation2 + $0xb0] sm:$0x1]
        %v5451 = vsel %vm5407, 0, %v5450
        %5452 = vst [vmem:[#allocation2 + $0xb0] sm:$0x1] %v5451
        %v5453 = vld [vmem:[#allocation2 + $0xbc] sm:$0x1]
        %v5454 = vsel %vm5407, 0, %v5453
        %5455 = vst [vmem:[#allocation2 + $0xbc] sm:$0x1] %v5454
        %v5456 = vld [vmem:[#allocation2 + $0xc8] sm:$0x1]
        %v5457 = vsel %vm5407, 0, %v5456
        %5458 = vst [vmem:[#allocation2 + $0xc8] sm:$0x1] %v5457
        %v5459 = vld [vmem:[#allocation2 + $0xd4] sm:$0x1]
        %v5460 = vsel %vm5407, 0, %v5459
        %5461 = vst [vmem:[#allocation2 + $0xd4] sm:$0x1] %v5460
        %v5462 = vpack.c.bf16 %v5310, %v5310
        %v5463 = vpack.c.bf16 %v5311, %v5311
        %v5464 = vpack.c.bf16 %v5312, %v5312
        %v5465 = vpack.c.bf16 %v5313, %v5313
        %v5466 = vpack.c.bf16 %v5314, %v5314
        %v5467 = vpack.c.bf16 %v5315, %v5315
        %v5468 = vpack.c.bf16 %v5316, %v5316
        %v5469 = vpack.c.bf16 %v5317, %v5317
        %v5470 = vpack.c.bf16 %v5318, %v5318
        %v5471 = vpack.c.bf16 %v5319, %v5319
        %v5472 = vpack.c.bf16 %v5320, %v5320
        %v5473 = vpack.c.bf16 %v5321, %v5321
        %v5474 = vpack.c.bf16 %v5322, %v5322
        %v5475 = vpack.c.bf16 %v5323, %v5323
        %v5476 = vpack.c.bf16 %v5324, %v5324
        %v5477 = vpack.c.bf16 %v5325, %v5325
        %v5478 = vpack.c.bf16 %v5326, %v5326
        %v5479 = vpack.c.bf16 %v5327, %v5327
        %v5480 = vpack.c.bf16 %v5328, %v5328
        %v5481 = vpack.c.bf16 %v5329, %v5329
        %v5482 = vpack.c.bf16 %v5330, %v5330
        %v5483 = vpack.c.bf16 %v5331, %v5331
        %v5484 = vpack.c.bf16 %v5332, %v5332
        %v5485 = vpack.c.bf16 %v5333, %v5333
        %v5486 = vpack.c.bf16 %v5334, %v5334
        %v5487 = vpack.c.bf16 %v5335, %v5335
        %v5488 = vpack.c.bf16 %v5336, %v5336
        %v5489 = vpack.c.bf16 %v5337, %v5337
        %v5490 = vpack.c.bf16 %v5338, %v5338
        %v5491 = vpack.c.bf16 %v5339, %v5339
        %v5492 = vpack.c.bf16 %v5340, %v5340
        %v5493 = vpack.c.bf16 %v5341, %v5341
        %vm5494 = vsmask.f32 4368
        %vm5495 = vmor %vm5350, %vm5494
        %v5497 = vshrl.u32 %v5462, 16
        %v5499 = vrot.slane %v5497, 7
        %v5500 = vshll.u32 %v5462, 16
        %v5502 = vor.u32 %v5499, %v5500
        %v5503 = vrot.slane %v5499, 4
        %v5505 = vshrl.u32 %v5463, 16
        %v5507 = vrot.slane %v5505, 7
        %v5508 = vshll.u32 %v5463, 16
        %v5510 = vor.u32 %v5507, %v5508
        %v5511 = vsel %vm5495, %v5503, %v5510
        %v5512 = vrot.slane %v5507, 4
        %v5514 = vshrl.u32 %v5464, 16
        %v5516 = vrot.slane %v5514, 7
        %v5517 = vshll.u32 %v5464, 16
        %v5519 = vor.u32 %v5516, %v5517
        %v5520 = vrot.slane %v5516, 4
        %v5522 = vshrl.u32 %v5465, 16
        %v5524 = vrot.slane %v5522, 7
        %v5525 = vshll.u32 %v5465, 16
        %v5527 = vor.u32 %v5524, %v5525
        %v5528 = vsel %vm5495, %v5520, %v5527
        %v5529 = vrot.slane %v5524, 4
        %v5531 = vshrl.u32 %v5466, 16
        %v5533 = vrot.slane %v5531, 7
        %v5534 = vshll.u32 %v5466, 16
        %v5536 = vor.u32 %v5533, %v5534
        %v5537 = vrot.slane %v5533, 4
        %v5539 = vshrl.u32 %v5467, 16
        %v5541 = vrot.slane %v5539, 7
        %v5542 = vshll.u32 %v5467, 16
        %v5544 = vor.u32 %v5541, %v5542
        %v5545 = vsel %vm5495, %v5537, %v5544
        %v5546 = vrot.slane %v5541, 4
        %v5548 = vshrl.u32 %v5468, 16
        %v5550 = vrot.slane %v5548, 7
        %v5551 = vshll.u32 %v5468, 16
        %v5553 = vor.u32 %v5550, %v5551
        %v5554 = vrot.slane %v5550, 4
        %v5556 = vshrl.u32 %v5469, 16
        %v5558 = vrot.slane %v5556, 7
        %v5559 = vshll.u32 %v5469, 16
        %v5561 = vor.u32 %v5558, %v5559
        %v5562 = vsel %vm5495, %v5554, %v5561
        %v5563 = vrot.slane %v5558, 4
        %v5565 = vshrl.u32 %v5470, 16
        %v5567 = vrot.slane %v5565, 7
        %v5568 = vshll.u32 %v5470, 16
        %v5570 = vor.u32 %v5567, %v5568
        %v5571 = vrot.slane %v5567, 4
        %v5573 = vshrl.u32 %v5471, 16
        %v5575 = vrot.slane %v5573, 7
        %v5576 = vshll.u32 %v5471, 16
        %v5578 = vor.u32 %v5575, %v5576
        %v5579 = vsel %vm5495, %v5571, %v5578
        %v5580 = vrot.slane %v5575, 4
        %v5582 = vshrl.u32 %v5472, 16
        %v5584 = vrot.slane %v5582, 7
        %v5585 = vshll.u32 %v5472, 16
        %v5587 = vor.u32 %v5584, %v5585
        %v5588 = vrot.slane %v5584, 4
        %v5590 = vshrl.u32 %v5473, 16
        %v5592 = vrot.slane %v5590, 7
        %v5593 = vshll.u32 %v5473, 16
        %v5595 = vor.u32 %v5592, %v5593
        %v5596 = vsel %vm5495, %v5588, %v5595
        %v5597 = vrot.slane %v5592, 4
        %v5599 = vshrl.u32 %v5474, 16
        %v5601 = vrot.slane %v5599, 7
        %v5602 = vshll.u32 %v5474, 16
        %v5604 = vor.u32 %v5601, %v5602
        %v5605 = vrot.slane %v5601, 4
        %v5607 = vshrl.u32 %v5475, 16
        %v5609 = vrot.slane %v5607, 7
        %v5610 = vshll.u32 %v5475, 16
        %v5612 = vor.u32 %v5609, %v5610
        %v5613 = vsel %vm5495, %v5605, %v5612
        %v5614 = vrot.slane %v5609, 4
        %v5616 = vshrl.u32 %v5476, 16
        %v5618 = vrot.slane %v5616, 7
        %v5619 = vshll.u32 %v5476, 16
        %v5621 = vor.u32 %v5618, %v5619
        %v5622 = vrot.slane %v5618, 4
        %v5624 = vshrl.u32 %v5477, 16
        %v5626 = vrot.slane %v5624, 7
        %v5627 = vshll.u32 %v5477, 16
        %v5629 = vor.u32 %v5626, %v5627
        %v5630 = vsel %vm5495, %v5622, %v5629
        %v5631 = vrot.slane %v5626, 4
        %v5633 = vshrl.u32 %v5478, 16
        %v5635 = vrot.slane %v5633, 7
        %v5636 = vshll.u32 %v5478, 16
        %v5638 = vor.u32 %v5635, %v5636
        %v5639 = vrot.slane %v5635, 4
        %v5641 = vshrl.u32 %v5479, 16
        %v5643 = vrot.slane %v5641, 7
        %v5644 = vshll.u32 %v5479, 16
        %v5646 = vor.u32 %v5643, %v5644
        %v5647 = vsel %vm5495, %v5639, %v5646
        %v5648 = vrot.slane %v5643, 4
        %v5650 = vshrl.u32 %v5480, 16
        %v5652 = vrot.slane %v5650, 7
        %v5653 = vshll.u32 %v5480, 16
        %v5655 = vor.u32 %v5652, %v5653
        %v5656 = vrot.slane %v5652, 4
        %v5658 = vshrl.u32 %v5481, 16
        %v5660 = vrot.slane %v5658, 7
        %v5661 = vshll.u32 %v5481, 16
        %v5663 = vor.u32 %v5660, %v5661
        %v5664 = vsel %vm5495, %v5656, %v5663
        %v5665 = vrot.slane %v5660, 4
        %v5667 = vshrl.u32 %v5482, 16
        %v5669 = vrot.slane %v5667, 7
        %v5670 = vshll.u32 %v5482, 16
        %v5672 = vor.u32 %v5669, %v5670
        %v5673 = vrot.slane %v5669, 4
        %v5675 = vshrl.u32 %v5483, 16
        %v5677 = vrot.slane %v5675, 7
        %v5678 = vshll.u32 %v5483, 16
        %v5680 = vor.u32 %v5677, %v5678
        %v5681 = vsel %vm5495, %v5673, %v5680
        %v5682 = vrot.slane %v5677, 4
        %v5684 = vshrl.u32 %v5484, 16
        %v5686 = vrot.slane %v5684, 7
        %v5687 = vshll.u32 %v5484, 16
        %v5689 = vor.u32 %v5686, %v5687
        %v5690 = vrot.slane %v5686, 4
        %v5692 = vshrl.u32 %v5485, 16
        %v5694 = vrot.slane %v5692, 7
        %v5695 = vshll.u32 %v5485, 16
        %v5697 = vor.u32 %v5694, %v5695
        %v5698 = vsel %vm5495, %v5690, %v5697
        %v5699 = vrot.slane %v5694, 4
        %v5701 = vshrl.u32 %v5486, 16
        %v5703 = vrot.slane %v5701, 7
        %v5704 = vshll.u32 %v5486, 16
        %v5706 = vor.u32 %v5703, %v5704
        %v5707 = vrot.slane %v5703, 4
        %v5709 = vshrl.u32 %v5487, 16
        %v5711 = vrot.slane %v5709, 7
        %v5712 = vshll.u32 %v5487, 16
        %v5714 = vor.u32 %v5711, %v5712
        %v5715 = vsel %vm5495, %v5707, %v5714
        %v5716 = vrot.slane %v5711, 4
        %v5718 = vshrl.u32 %v5488, 16
        %v5720 = vrot.slane %v5718, 7
        %v5721 = vshll.u32 %v5488, 16
        %v5723 = vor.u32 %v5720, %v5721
        %v5724 = vrot.slane %v5720, 4
        %v5726 = vshrl.u32 %v5489, 16
        %v5728 = vrot.slane %v5726, 7
        %v5729 = vshll.u32 %v5489, 16
        %v5731 = vor.u32 %v5728, %v5729
        %v5732 = vsel %vm5495, %v5724, %v5731
        %v5733 = vrot.slane %v5728, 4
        %v5735 = vshrl.u32 %v5490, 16
        %v5737 = vrot.slane %v5735, 7
        %v5738 = vshll.u32 %v5490, 16
        %v5740 = vor.u32 %v5737, %v5738
        %v5741 = vrot.slane %v5737, 4
        %v5743 = vshrl.u32 %v5491, 16
        %v5745 = vrot.slane %v5743, 7
        %v5746 = vshll.u32 %v5491, 16
        %v5748 = vor.u32 %v5745, %v5746
        %v5749 = vsel %vm5495, %v5741, %v5748
        %v5750 = vrot.slane %v5745, 4
        %v5752 = vshrl.u32 %v5492, 16
        %v5754 = vrot.slane %v5752, 7
        %v5755 = vshll.u32 %v5492, 16
        %v5757 = vor.u32 %v5754, %v5755
        %v5758 = vrot.slane %v5754, 4
        %v5760 = vshrl.u32 %v5493, 16
        %v5762 = vrot.slane %v5760, 7
        %v5763 = vshll.u32 %v5493, 16
        %v5765 = vor.u32 %v5762, %v5763
        %v5766 = vsel %vm5495, %v5758, %v5765
        %v5767 = vrot.slane %v5762, 4
        %s5816 = scalar_lea.vmem [#allocation2], 12
        %vm5817 = vcmask 1043456
        %vm5818 = vmand %vm5817, %vm5406
        %v5819 = vld [vmem:[%s5816] sm:$0xf]
        %v5820 = vsel %vm5818, %v5502, %v5819
        %5821 = vst [vmem:[%s5816] sm:$0xf] %v5820
        %5822 = vst [vmem:[%s5816 + $0x4] sm:$0xf] %v5511
        %v5823 = vld [vmem:[%s5816 + $0x8] sm:$0x1]
        %v5824 = vsel %vm5351, %v5512, %v5823
        %5825 = vst [vmem:[%s5816 + $0x8] sm:$0x1] %v5824
        %v5826 = vld [vmem:[%s5816 + $0xc] sm:$0xf]
        %v5827 = vsel %vm5818, %v5519, %v5826
        %5828 = vst [vmem:[%s5816 + $0xc] sm:$0xf] %v5827
        %5829 = vst [vmem:[%s5816 + $0x10] sm:$0xf] %v5528
        %v5830 = vld [vmem:[%s5816 + $0x14] sm:$0x1]
        %v5831 = vsel %vm5351, %v5529, %v5830
        %5832 = vst [vmem:[%s5816 + $0x14] sm:$0x1] %v5831
        %v5833 = vld [vmem:[%s5816 + $0x18] sm:$0xf]
        %v5834 = vsel %vm5818, %v5536, %v5833
        %5835 = vst [vmem:[%s5816 + $0x18] sm:$0xf] %v5834
        %5836 = vst [vmem:[%s5816 + $0x1c] sm:$0xf] %v5545
        %v5837 = vld [vmem:[%s5816 + $0x20] sm:$0x1]
        %v5838 = vsel %vm5351, %v5546, %v5837
        %5839 = vst [vmem:[%s5816 + $0x20] sm:$0x1] %v5838
        %v5840 = vld [vmem:[%s5816 + $0x24] sm:$0xf]
        %v5841 = vsel %vm5818, %v5553, %v5840
        %5842 = vst [vmem:[%s5816 + $0x24] sm:$0xf] %v5841
        %5843 = vst [vmem:[%s5816 + $0x28] sm:$0xf] %v5562
        %v5844 = vld [vmem:[%s5816 + $0x2c] sm:$0x1]
        %v5845 = vsel %vm5351, %v5563, %v5844
        %5846 = vst [vmem:[%s5816 + $0x2c] sm:$0x1] %v5845
        %v5847 = vld [vmem:[%s5816 + $0x30] sm:$0xf]
        %v5848 = vsel %vm5818, %v5570, %v5847
        %5849 = vst [vmem:[%s5816 + $0x30] sm:$0xf] %v5848
        %5850 = vst [vmem:[%s5816 + $0x34] sm:$0xf] %v5579
        %v5851 = vld [vmem:[%s5816 + $0x38] sm:$0x1]
        %v5852 = vsel %vm5351, %v5580, %v5851
        %5853 = vst [vmem:[%s5816 + $0x38] sm:$0x1] %v5852
        %v5854 = vld [vmem:[%s5816 + $0x3c] sm:$0xf]
        %v5855 = vsel %vm5818, %v5587, %v5854
        %5856 = vst [vmem:[%s5816 + $0x3c] sm:$0xf] %v5855
        %5857 = vst [vmem:[%s5816 + $0x40] sm:$0xf] %v5596
        %v5858 = vld [vmem:[%s5816 + $0x44] sm:$0x1]
        %v5859 = vsel %vm5351, %v5597, %v5858
        %5860 = vst [vmem:[%s5816 + $0x44] sm:$0x1] %v5859
        %v5861 = vld [vmem:[%s5816 + $0x48] sm:$0xf]
        %v5862 = vsel %vm5818, %v5604, %v5861
        %5863 = vst [vmem:[%s5816 + $0x48] sm:$0xf] %v5862
        %5864 = vst [vmem:[%s5816 + $0x4c] sm:$0xf] %v5613
        %v5865 = vld [vmem:[%s5816 + $0x50] sm:$0x1]
        %v5866 = vsel %vm5351, %v5614, %v5865
        %5867 = vst [vmem:[%s5816 + $0x50] sm:$0x1] %v5866
        %v5868 = vld [vmem:[%s5816 + $0x54] sm:$0xf]
        %v5869 = vsel %vm5818, %v5621, %v5868
        %5870 = vst [vmem:[%s5816 + $0x54] sm:$0xf] %v5869
        %5871 = vst [vmem:[%s5816 + $0x58] sm:$0xf] %v5630
        %v5872 = vld [vmem:[%s5816 + $0x5c] sm:$0x1]
        %v5873 = vsel %vm5351, %v5631, %v5872
        %5874 = vst [vmem:[%s5816 + $0x5c] sm:$0x1] %v5873
        %v5875 = vld [vmem:[%s5816 + $0x60] sm:$0xf]
        %v5876 = vsel %vm5818, %v5638, %v5875
        %5877 = vst [vmem:[%s5816 + $0x60] sm:$0xf] %v5876
        %5878 = vst [vmem:[%s5816 + $0x64] sm:$0xf] %v5647
        %v5879 = vld [vmem:[%s5816 + $0x68] sm:$0x1]
        %v5880 = vsel %vm5351, %v5648, %v5879
        %5881 = vst [vmem:[%s5816 + $0x68] sm:$0x1] %v5880
        %v5882 = vld [vmem:[%s5816 + $0x6c] sm:$0xf]
        %v5883 = vsel %vm5818, %v5655, %v5882
        %5884 = vst [vmem:[%s5816 + $0x6c] sm:$0xf] %v5883
        %5885 = vst [vmem:[%s5816 + $0x70] sm:$0xf] %v5664
        %v5886 = vld [vmem:[%s5816 + $0x74] sm:$0x1]
        %v5887 = vsel %vm5351, %v5665, %v5886
        %5888 = vst [vmem:[%s5816 + $0x74] sm:$0x1] %v5887
        %v5889 = vld [vmem:[%s5816 + $0x78] sm:$0xf]
        %v5890 = vsel %vm5818, %v5672, %v5889
        %5891 = vst [vmem:[%s5816 + $0x78] sm:$0xf] %v5890
        %5892 = vst [vmem:[%s5816 + $0x7c] sm:$0xf] %v5681
        %v5893 = vld [vmem:[%s5816 + $0x80] sm:$0x1]
        %v5894 = vsel %vm5351, %v5682, %v5893
        %5895 = vst [vmem:[%s5816 + $0x80] sm:$0x1] %v5894
        %v5896 = vld [vmem:[%s5816 + $0x84] sm:$0xf]
        %v5897 = vsel %vm5818, %v5689, %v5896
        %5898 = vst [vmem:[%s5816 + $0x84] sm:$0xf] %v5897
        %5899 = vst [vmem:[%s5816 + $0x88] sm:$0xf] %v5698
        %v5900 = vld [vmem:[%s5816 + $0x8c] sm:$0x1]
        %v5901 = vsel %vm5351, %v5699, %v5900
        %5902 = vst [vmem:[%s5816 + $0x8c] sm:$0x1] %v5901
        %v5903 = vld [vmem:[%s5816 + $0x90] sm:$0xf]
        %v5904 = vsel %vm5818, %v5706, %v5903
        %5905 = vst [vmem:[%s5816 + $0x90] sm:$0xf] %v5904
        %5906 = vst [vmem:[%s5816 + $0x94] sm:$0xf] %v5715
        %v5907 = vld [vmem:[%s5816 + $0x98] sm:$0x1]
        %v5908 = vsel %vm5351, %v5716, %v5907
        %5909 = vst [vmem:[%s5816 + $0x98] sm:$0x1] %v5908
        %v5910 = vld [vmem:[%s5816 + $0x9c] sm:$0xf]
        %v5911 = vsel %vm5818, %v5723, %v5910
        %5912 = vst [vmem:[%s5816 + $0x9c] sm:$0xf] %v5911
        %5913 = vst [vmem:[%s5816 + $0xa0] sm:$0xf] %v5732
        %v5914 = vld [vmem:[%s5816 + $0xa4] sm:$0x1]
        %v5915 = vsel %vm5351, %v5733, %v5914
        %5916 = vst [vmem:[%s5816 + $0xa4] sm:$0x1] %v5915
        %v5917 = vld [vmem:[%s5816 + $0xa8] sm:$0xf]
        %v5918 = vsel %vm5818, %v5740, %v5917
        %5919 = vst [vmem:[%s5816 + $0xa8] sm:$0xf] %v5918
        %5920 = vst [vmem:[%s5816 + $0xac] sm:$0xf] %v5749
        %v5921 = vld [vmem:[%s5816 + $0xb0] sm:$0x1]
        %v5922 = vsel %vm5351, %v5750, %v5921
        %5923 = vst [vmem:[%s5816 + $0xb0] sm:$0x1] %v5922
        %v5924 = vld [vmem:[%s5816 + $0xb4] sm:$0xf]
        %v5925 = vsel %vm5818, %v5757, %v5924
        %5926 = vst [vmem:[%s5816 + $0xb4] sm:$0xf] %v5925
        %5927 = vst [vmem:[%s5816 + $0xb8] sm:$0xf] %v5766
        %v5928 = vld [vmem:[%s5816 + $0xbc] sm:$0x1]
        %v5929 = vsel %vm5351, %v5767, %v5928
        %5930 = vst [vmem:[%s5816 + $0xbc] sm:$0x1] %v5929
        %v5931 = vld [vmem:[#allocation2] sm:$0xf]
        %v5932 = vld [vmem:[#allocation2 + $0x4] sm:$0xf]
        %v5933 = vld [vmem:[#allocation2 + $0xc] sm:$0xf]
        %v5934 = vld [vmem:[#allocation2 + $0x10] sm:$0xf]
        %v5935 = vld [vmem:[#allocation2 + $0x18] sm:$0xf]
        %v5936 = vld [vmem:[#allocation2 + $0x1c] sm:$0xf]
        %v5937 = vld [vmem:[#allocation2 + $0x24] sm:$0xf]
        %v5938 = vld [vmem:[#allocation2 + $0x28] sm:$0xf]
        %v5939 = vld [vmem:[#allocation2 + $0x30] sm:$0xf]
        %v5940 = vld [vmem:[#allocation2 + $0x34] sm:$0xf]
        %v5941 = vld [vmem:[#allocation2 + $0x3c] sm:$0xf]
        %v5942 = vld [vmem:[#allocation2 + $0x40] sm:$0xf]
        %v5943 = vld [vmem:[#allocation2 + $0x48] sm:$0xf]
        %v5944 = vld [vmem:[#allocation2 + $0x4c] sm:$0xf]
        %v5945 = vld [vmem:[#allocation2 + $0x54] sm:$0xf]
        %v5946 = vld [vmem:[#allocation2 + $0x58] sm:$0xf]
        %v5947 = vld [vmem:[#allocation2 + $0x60] sm:$0xf]
        %v5948 = vld [vmem:[#allocation2 + $0x64] sm:$0xf]
        %v5949 = vld [vmem:[#allocation2 + $0x6c] sm:$0xf]
        %v5950 = vld [vmem:[#allocation2 + $0x70] sm:$0xf]
        %v5951 = vld [vmem:[#allocation2 + $0x78] sm:$0xf]
        %v5952 = vld [vmem:[#allocation2 + $0x7c] sm:$0xf]
        %v5953 = vld [vmem:[#allocation2 + $0x84] sm:$0xf]
        %v5954 = vld [vmem:[#allocation2 + $0x88] sm:$0xf]
        %v5955 = vld [vmem:[#allocation2 + $0x90] sm:$0xf]
        %v5956 = vld [vmem:[#allocation2 + $0x94] sm:$0xf]
        %v5957 = vld [vmem:[#allocation2 + $0x9c] sm:$0xf]
        %v5958 = vld [vmem:[#allocation2 + $0xa0] sm:$0xf]
        %v5959 = vld [vmem:[#allocation2 + $0xa8] sm:$0xf]
        %v5960 = vld [vmem:[#allocation2 + $0xac] sm:$0xf]
        %v5961 = vld [vmem:[#allocation2 + $0xb4] sm:$0xf]
        %v5962 = vld [vmem:[#allocation2 + $0xb8] sm:$0xf]
        %5963 = vst [vmem:[#allocation4] sm:$0xf] %v5931
        %5964 = vst [vmem:[#allocation4 + $0x24] sm:$0xf] %v5932
        %5965 = vst [vmem:[#allocation4 + $0x48] sm:$0xf] %v5933
        %5966 = vst [vmem:[#allocation4 + $0x6c] sm:$0xf] %v5934
        %5967 = vst [vmem:[#allocation4 + $0x90] sm:$0xf] %v5935
        %5968 = vst [vmem:[#allocation4 + $0xb4] sm:$0xf] %v5936
        %5969 = vst [vmem:[#allocation4 + $0xd8] sm:$0xf] %v5937
        %5970 = vst [vmem:[#allocation4 + $0xfc] sm:$0xf] %v5938
        %5971 = vst [vmem:[#allocation4 + $0x120] sm:$0xf] %v5939
        %5972 = vst [vmem:[#allocation4 + $0x144] sm:$0xf] %v5940
        %5973 = vst [vmem:[#allocation4 + $0x168] sm:$0xf] %v5941
        %5974 = vst [vmem:[#allocation4 + $0x18c] sm:$0xf] %v5942
        %5975 = vst [vmem:[#allocation4 + $0x1b0] sm:$0xf] %v5943
        %5976 = vst [vmem:[#allocation4 + $0x1d4] sm:$0xf] %v5944
        %5977 = vst [vmem:[#allocation4 + $0x1f8] sm:$0xf] %v5945
        %5978 = vst [vmem:[#allocation4 + $0x21c] sm:$0xf] %v5946
        %5979 = vst [vmem:[#allocation4 + $0x240] sm:$0xf] %v5947
        %5980 = vst [vmem:[#allocation4 + $0x264] sm:$0xf] %v5948
        %5981 = vst [vmem:[#allocation4 + $0x288] sm:$0xf] %v5949
        %5982 = vst [vmem:[#allocation4 + $0x2ac] sm:$0xf] %v5950
        %5983 = vst [vmem:[#allocation4 + $0x2d0] sm:$0xf] %v5951
        %5984 = vst [vmem:[#allocation4 + $0x2f4] sm:$0xf] %v5952
        %5985 = vst [vmem:[#allocation4 + $0x318] sm:$0xf] %v5953
        %5986 = vst [vmem:[#allocation4 + $0x33c] sm:$0xf] %v5954
        %5987 = vst [vmem:[#allocation4 + $0x360] sm:$0xf] %v5955
        %5988 = vst [vmem:[#allocation4 + $0x384] sm:$0xf] %v5956
        %5989 = vst [vmem:[#allocation4 + $0x3a8] sm:$0xf] %v5957
        %5990 = vst [vmem:[#allocation4 + $0x3cc] sm:$0xf] %v5958
        %5991 = vst [vmem:[#allocation4 + $0x3f0] sm:$0xf] %v5959
        %5992 = vst [vmem:[#allocation4 + $0x414] sm:$0xf] %v5960
        %5993 = vst [vmem:[#allocation4 + $0x438] sm:$0xf] %v5961
        %5994 = vst [vmem:[#allocation4 + $0x45c] sm:$0xf] %v5962
        %v5995 = vld [vmem:[#allocation2] sm:$0xf]
        %v5996 = vld [vmem:[#allocation2 + $0x4] sm:$0xf]
        %v5997 = vld [vmem:[#allocation2 + $0x8] sm:$0x1]
        %v5998 = vld [vmem:[#allocation2 + $0xc] sm:$0xf]
        %v5999 = vld [vmem:[#allocation2 + $0x10] sm:$0xf]
        %v6000 = vld [vmem:[#allocation2 + $0x14] sm:$0x1]
        %v6001 = vld [vmem:[#allocation2 + $0x18] sm:$0xf]
        %v6002 = vld [vmem:[#allocation2 + $0x1c] sm:$0xf]
        %v6003 = vld [vmem:[#allocation2 + $0x20] sm:$0x1]
        %v6004 = vld [vmem:[#allocation2 + $0x24] sm:$0xf]
        %v6005 = vld [vmem:[#allocation2 + $0x28] sm:$0xf]
        %v6006 = vld [vmem:[#allocation2 + $0x2c] sm:$0x1]
        %v6007 = vld [vmem:[#allocation2 + $0x30] sm:$0xf]
        %v6008 = vld [vmem:[#allocation2 + $0x34] sm:$0xf]
        %v6009 = vld [vmem:[#allocation2 + $0x38] sm:$0x1]
        %v6010 = vld [vmem:[#allocation2 + $0x3c] sm:$0xf]
        %v6011 = vld [vmem:[#allocation2 + $0x40] sm:$0xf]
        %v6012 = vld [vmem:[#allocation2 + $0x44] sm:$0x1]
        %v6013 = vld [vmem:[#allocation2 + $0x48] sm:$0xf]
        %v6014 = vld [vmem:[#allocation2 + $0x4c] sm:$0xf]
        %v6015 = vld [vmem:[#allocation2 + $0x50] sm:$0x1]
        %v6016 = vld [vmem:[#allocation2 + $0x54] sm:$0xf]
        %v6017 = vld [vmem:[#allocation2 + $0x58] sm:$0xf]
        %v6018 = vld [vmem:[#allocation2 + $0x5c] sm:$0x1]
        %v6019 = vld [vmem:[#allocation2 + $0x60] sm:$0xf]
        %v6020 = vld [vmem:[#allocation2 + $0x64] sm:$0xf]
        %v6021 = vld [vmem:[#allocation2 + $0x68] sm:$0x1]
        %v6022 = vld [vmem:[#allocation2 + $0x6c] sm:$0xf]
        %v6023 = vld [vmem:[#allocation2 + $0x70] sm:$0xf]
        %v6024 = vld [vmem:[#allocation2 + $0x74] sm:$0x1]
        %v6025 = vld [vmem:[#allocation2 + $0x78] sm:$0xf]
        %v6026 = vld [vmem:[#allocation2 + $0x7c] sm:$0xf]
        %v6027 = vld [vmem:[#allocation2 + $0x80] sm:$0x1]
        %v6028 = vld [vmem:[#allocation2 + $0x84] sm:$0xf]
        %v6029 = vld [vmem:[#allocation2 + $0x88] sm:$0xf]
        %v6030 = vld [vmem:[#allocation2 + $0x8c] sm:$0x1]
        %v6031 = vld [vmem:[#allocation2 + $0x90] sm:$0xf]
        %v6032 = vld [vmem:[#allocation2 + $0x94] sm:$0xf]
        %v6033 = vld [vmem:[#allocation2 + $0x98] sm:$0x1]
        %v6034 = vld [vmem:[#allocation2 + $0x9c] sm:$0xf]
        %v6035 = vld [vmem:[#allocation2 + $0xa0] sm:$0xf]
        %v6036 = vld [vmem:[#allocation2 + $0xa4] sm:$0x1]
        %v6037 = vld [vmem:[#allocation2 + $0xa8] sm:$0xf]
        %v6038 = vld [vmem:[#allocation2 + $0xac] sm:$0xf]
        %v6039 = vld [vmem:[#allocation2 + $0xb0] sm:$0x1]
        %v6040 = vld [vmem:[#allocation2 + $0xb4] sm:$0xf]
        %v6041 = vld [vmem:[#allocation2 + $0xb8] sm:$0xf]
        %v6042 = vld [vmem:[#allocation2 + $0xbc] sm:$0x1]
        %v6044 = vshrl.u32 %v5995, 16
        %v6046 = vrot.slane %v6044, 4
        %v6047 = vshll.u32 %v5995, 16
        %v6049 = vrot.slane %v6047, 5
        %v6050 = vor.u32 %v6046, %v6049
        %v6051 = vrot.slane %v6050, 4
        %v6053 = vshll.u32 %v5996, 16
        %v6055 = vrot.slane %v6053, 5
        %v6056 = vsel %vm355, %v6051, %v6055
        %v6057 = vshrl.u32 %v5996, 16
        %v6059 = vrot.slane %v6057, 4
        %v6060 = vor.u32 %v6059, %v6055
        %v6061 = vrot.slane %v6060, 4
        %v6063 = vshll.u32 %v5997, 16
        %v6065 = vrot.slane %v6063, 5
        %v6066 = vsel %vm355, %v6061, %v6065
        %v6068 = vshrl.u32 %v5998, 16
        %v6070 = vrot.slane %v6068, 4
        %v6071 = vshll.u32 %v5998, 16
        %v6073 = vrot.slane %v6071, 5
        %v6074 = vor.u32 %v6070, %v6073
        %v6075 = vrot.slane %v6074, 4
        %v6077 = vshll.u32 %v5999, 16
        %v6079 = vrot.slane %v6077, 5
        %v6080 = vsel %vm355, %v6075, %v6079
        %v6081 = vshrl.u32 %v5999, 16
        %v6083 = vrot.slane %v6081, 4
        %v6084 = vor.u32 %v6083, %v6079
        %v6085 = vrot.slane %v6084, 4
        %v6087 = vshll.u32 %v6000, 16
        %v6089 = vrot.slane %v6087, 5
        %v6090 = vsel %vm355, %v6085, %v6089
        %v6092 = vshrl.u32 %v6001, 16
        %v6094 = vrot.slane %v6092, 4
        %v6095 = vshll.u32 %v6001, 16
        %v6097 = vrot.slane %v6095, 5
        %v6098 = vor.u32 %v6094, %v6097
        %v6099 = vrot.slane %v6098, 4
        %v6101 = vshll.u32 %v6002, 16
        %v6103 = vrot.slane %v6101, 5
        %v6104 = vsel %vm355, %v6099, %v6103
        %v6105 = vshrl.u32 %v6002, 16
        %v6107 = vrot.slane %v6105, 4
        %v6108 = vor.u32 %v6107, %v6103
        %v6109 = vrot.slane %v6108, 4
        %v6111 = vshll.u32 %v6003, 16
        %v6113 = vrot.slane %v6111, 5
        %v6114 = vsel %vm355, %v6109, %v6113
        %v6116 = vshrl.u32 %v6004, 16
        %v6118 = vrot.slane %v6116, 4
        %v6119 = vshll.u32 %v6004, 16
        %v6121 = vrot.slane %v6119, 5
        %v6122 = vor.u32 %v6118, %v6121
        %v6123 = vrot.slane %v6122, 4
        %v6125 = vshll.u32 %v6005, 16
        %v6127 = vrot.slane %v6125, 5
        %v6128 = vsel %vm355, %v6123, %v6127
        %v6129 = vshrl.u32 %v6005, 16
        %v6131 = vrot.slane %v6129, 4
        %v6132 = vor.u32 %v6131, %v6127
        %v6133 = vrot.slane %v6132, 4
        %v6135 = vshll.u32 %v6006, 16
        %v6137 = vrot.slane %v6135, 5
        %v6138 = vsel %vm355, %v6133, %v6137
        %v6140 = vshrl.u32 %v6007, 16
        %v6142 = vrot.slane %v6140, 4
        %v6143 = vshll.u32 %v6007, 16
        %v6145 = vrot.slane %v6143, 5
        %v6146 = vor.u32 %v6142, %v6145
        %v6147 = vrot.slane %v6146, 4
        %v6149 = vshll.u32 %v6008, 16
        %v6151 = vrot.slane %v6149, 5
        %v6152 = vsel %vm355, %v6147, %v6151
        %v6153 = vshrl.u32 %v6008, 16
        %v6155 = vrot.slane %v6153, 4
        %v6156 = vor.u32 %v6155, %v6151
        %v6157 = vrot.slane %v6156, 4
        %v6159 = vshll.u32 %v6009, 16
        %v6161 = vrot.slane %v6159, 5
        %v6162 = vsel %vm355, %v6157, %v6161
        %v6164 = vshrl.u32 %v6010, 16
        %v6166 = vrot.slane %v6164, 4
        %v6167 = vshll.u32 %v6010, 16
        %v6169 = vrot.slane %v6167, 5
        %v6170 = vor.u32 %v6166, %v6169
        %v6171 = vrot.slane %v6170, 4
        %v6173 = vshll.u32 %v6011, 16
        %v6175 = vrot.slane %v6173, 5
        %v6176 = vsel %vm355, %v6171, %v6175
        %v6177 = vshrl.u32 %v6011, 16
        %v6179 = vrot.slane %v6177, 4
        %v6180 = vor.u32 %v6179, %v6175
        %v6181 = vrot.slane %v6180, 4
        %v6183 = vshll.u32 %v6012, 16
        %v6185 = vrot.slane %v6183, 5
        %v6186 = vsel %vm355, %v6181, %v6185
        %v6188 = vshrl.u32 %v6013, 16
        %v6190 = vrot.slane %v6188, 4
        %v6191 = vshll.u32 %v6013, 16
        %v6193 = vrot.slane %v6191, 5
        %v6194 = vor.u32 %v6190, %v6193
        %v6195 = vrot.slane %v6194, 4
        %v6197 = vshll.u32 %v6014, 16
        %v6199 = vrot.slane %v6197, 5
        %v6200 = vsel %vm355, %v6195, %v6199
        %v6201 = vshrl.u32 %v6014, 16
        %v6203 = vrot.slane %v6201, 4
        %v6204 = vor.u32 %v6203, %v6199
        %v6205 = vrot.slane %v6204, 4
        %v6207 = vshll.u32 %v6015, 16
        %v6209 = vrot.slane %v6207, 5
        %v6210 = vsel %vm355, %v6205, %v6209
        %v6212 = vshrl.u32 %v6016, 16
        %v6214 = vrot.slane %v6212, 4
        %v6215 = vshll.u32 %v6016, 16
        %v6217 = vrot.slane %v6215, 5
        %v6218 = vor.u32 %v6214, %v6217
        %v6219 = vrot.slane %v6218, 4
        %v6221 = vshll.u32 %v6017, 16
        %v6223 = vrot.slane %v6221, 5
        %v6224 = vsel %vm355, %v6219, %v6223
        %v6225 = vshrl.u32 %v6017, 16
        %v6227 = vrot.slane %v6225, 4
        %v6228 = vor.u32 %v6227, %v6223
        %v6229 = vrot.slane %v6228, 4
        %v6231 = vshll.u32 %v6018, 16
        %v6233 = vrot.slane %v6231, 5
        %v6234 = vsel %vm355, %v6229, %v6233
        %v6236 = vshrl.u32 %v6019, 16
        %v6238 = vrot.slane %v6236, 4
        %v6239 = vshll.u32 %v6019, 16
        %v6241 = vrot.slane %v6239, 5
        %v6242 = vor.u32 %v6238, %v6241
        %v6243 = vrot.slane %v6242, 4
        %v6245 = vshll.u32 %v6020, 16
        %v6247 = vrot.slane %v6245, 5
        %v6248 = vsel %vm355, %v6243, %v6247
        %v6249 = vshrl.u32 %v6020, 16
        %v6251 = vrot.slane %v6249, 4
        %v6252 = vor.u32 %v6251, %v6247
        %v6253 = vrot.slane %v6252, 4
        %v6255 = vshll.u32 %v6021, 16
        %v6257 = vrot.slane %v6255, 5
        %v6258 = vsel %vm355, %v6253, %v6257
        %v6260 = vshrl.u32 %v6022, 16
        %v6262 = vrot.slane %v6260, 4
        %v6263 = vshll.u32 %v6022, 16
        %v6265 = vrot.slane %v6263, 5
        %v6266 = vor.u32 %v6262, %v6265
        %v6267 = vrot.slane %v6266, 4
        %v6269 = vshll.u32 %v6023, 16
        %v6271 = vrot.slane %v6269, 5
        %v6272 = vsel %vm355, %v6267, %v6271
        %v6273 = vshrl.u32 %v6023, 16
        %v6275 = vrot.slane %v6273, 4
        %v6276 = vor.u32 %v6275, %v6271
        %v6277 = vrot.slane %v6276, 4
        %v6279 = vshll.u32 %v6024, 16
        %v6281 = vrot.slane %v6279, 5
        %v6282 = vsel %vm355, %v6277, %v6281
        %v6284 = vshrl.u32 %v6025, 16
        %v6286 = vrot.slane %v6284, 4
        %v6287 = vshll.u32 %v6025, 16
        %v6289 = vrot.slane %v6287, 5
        %v6290 = vor.u32 %v6286, %v6289
        %v6291 = vrot.slane %v6290, 4
        %v6293 = vshll.u32 %v6026, 16
        %v6295 = vrot.slane %v6293, 5
        %v6296 = vsel %vm355, %v6291, %v6295
        %v6297 = vshrl.u32 %v6026, 16
        %v6299 = vrot.slane %v6297, 4
        %v6300 = vor.u32 %v6299, %v6295
        %v6301 = vrot.slane %v6300, 4
        %v6303 = vshll.u32 %v6027, 16
        %v6305 = vrot.slane %v6303, 5
        %v6306 = vsel %vm355, %v6301, %v6305
        %v6308 = vshrl.u32 %v6028, 16
        %v6310 = vrot.slane %v6308, 4
        %v6311 = vshll.u32 %v6028, 16
        %v6313 = vrot.slane %v6311, 5
        %v6314 = vor.u32 %v6310, %v6313
        %v6315 = vrot.slane %v6314, 4
        %v6317 = vshll.u32 %v6029, 16
        %v6319 = vrot.slane %v6317, 5
        %v6320 = vsel %vm355, %v6315, %v6319
        %v6321 = vshrl.u32 %v6029, 16
        %v6323 = vrot.slane %v6321, 4
        %v6324 = vor.u32 %v6323, %v6319
        %v6325 = vrot.slane %v6324, 4
        %v6327 = vshll.u32 %v6030, 16
        %v6329 = vrot.slane %v6327, 5
        %v6330 = vsel %vm355, %v6325, %v6329
        %v6332 = vshrl.u32 %v6031, 16
        %v6334 = vrot.slane %v6332, 4
        %v6335 = vshll.u32 %v6031, 16
        %v6337 = vrot.slane %v6335, 5
        %v6338 = vor.u32 %v6334, %v6337
        %v6339 = vrot.slane %v6338, 4
        %v6341 = vshll.u32 %v6032, 16
        %v6343 = vrot.slane %v6341, 5
        %v6344 = vsel %vm355, %v6339, %v6343
        %v6345 = vshrl.u32 %v6032, 16
        %v6347 = vrot.slane %v6345, 4
        %v6348 = vor.u32 %v6347, %v6343
        %v6349 = vrot.slane %v6348, 4
        %v6351 = vshll.u32 %v6033, 16
        %v6353 = vrot.slane %v6351, 5
        %v6354 = vsel %vm355, %v6349, %v6353
        %v6356 = vshrl.u32 %v6034, 16
        %v6358 = vrot.slane %v6356, 4
        %v6359 = vshll.u32 %v6034, 16
        %v6361 = vrot.slane %v6359, 5
        %v6362 = vor.u32 %v6358, %v6361
        %v6363 = vrot.slane %v6362, 4
        %v6365 = vshll.u32 %v6035, 16
        %v6367 = vrot.slane %v6365, 5
        %v6368 = vsel %vm355, %v6363, %v6367
        %v6369 = vshrl.u32 %v6035, 16
        %v6371 = vrot.slane %v6369, 4
        %v6372 = vor.u32 %v6371, %v6367
        %v6373 = vrot.slane %v6372, 4
        %v6375 = vshll.u32 %v6036, 16
        %v6377 = vrot.slane %v6375, 5
        %v6378 = vsel %vm355, %v6373, %v6377
        %v6380 = vshrl.u32 %v6037, 16
        %v6382 = vrot.slane %v6380, 4
        %v6383 = vshll.u32 %v6037, 16
        %v6385 = vrot.slane %v6383, 5
        %v6386 = vor.u32 %v6382, %v6385
        %v6387 = vrot.slane %v6386, 4
        %v6389 = vshll.u32 %v6038, 16
        %v6391 = vrot.slane %v6389, 5
        %v6392 = vsel %vm355, %v6387, %v6391
        %v6393 = vshrl.u32 %v6038, 16
        %v6395 = vrot.slane %v6393, 4
        %v6396 = vor.u32 %v6395, %v6391
        %v6397 = vrot.slane %v6396, 4
        %v6399 = vshll.u32 %v6039, 16
        %v6401 = vrot.slane %v6399, 5
        %v6402 = vsel %vm355, %v6397, %v6401
        %v6404 = vshrl.u32 %v6040, 16
        %v6406 = vrot.slane %v6404, 4
        %v6407 = vshll.u32 %v6040, 16
        %v6409 = vrot.slane %v6407, 5
        %v6410 = vor.u32 %v6406, %v6409
        %v6411 = vrot.slane %v6410, 4
        %v6413 = vshll.u32 %v6041, 16
        %v6415 = vrot.slane %v6413, 5
        %v6416 = vsel %vm355, %v6411, %v6415
        %v6417 = vshrl.u32 %v6041, 16
        %v6419 = vrot.slane %v6417, 4
        %v6420 = vor.u32 %v6419, %v6415
        %v6421 = vrot.slane %v6420, 4
        %v6423 = vshll.u32 %v6042, 16
        %v6425 = vrot.slane %v6423, 5
        %v6426 = vsel %vm355, %v6421, %v6425
        %6459 = vst [vmem:[#allocation4 + $0x4] sm:$0xf] %v6056
        %6460 = vst [vmem:[#allocation4 + $0x28] sm:$0xf] %v6066
        %6461 = vst [vmem:[#allocation4 + $0x4c] sm:$0xf] %v6080
        %6462 = vst [vmem:[#allocation4 + $0x70] sm:$0xf] %v6090
        %6463 = vst [vmem:[#allocation4 + $0x94] sm:$0xf] %v6104
        %6464 = vst [vmem:[#allocation4 + $0xb8] sm:$0xf] %v6114
        %6465 = vst [vmem:[#allocation4 + $0xdc] sm:$0xf] %v6128
        %6466 = vst [vmem:[#allocation4 + $0x100] sm:$0xf] %v6138
        %6467 = vst [vmem:[#allocation4 + $0x124] sm:$0xf] %v6152
        %6468 = vst [vmem:[#allocation4 + $0x148] sm:$0xf] %v6162
        %6469 = vst [vmem:[#allocation4 + $0x16c] sm:$0xf] %v6176
        %6470 = vst [vmem:[#allocation4 + $0x190] sm:$0xf] %v6186
        %6471 = vst [vmem:[#allocation4 + $0x1b4] sm:$0xf] %v6200
        %6472 = vst [vmem:[#allocation4 + $0x1d8] sm:$0xf] %v6210
        %6473 = vst [vmem:[#allocation4 + $0x1fc] sm:$0xf] %v6224
        %6474 = vst [vmem:[#allocation4 + $0x220] sm:$0xf] %v6234
        %6475 = vst [vmem:[#allocation4 + $0x244] sm:$0xf] %v6248
        %6476 = vst [vmem:[#allocation4 + $0x268] sm:$0xf] %v6258
        %6477 = vst [vmem:[#allocation4 + $0x28c] sm:$0xf] %v6272
        %6478 = vst [vmem:[#allocation4 + $0x2b0] sm:$0xf] %v6282
        %6479 = vst [vmem:[#allocation4 + $0x2d4] sm:$0xf] %v6296
        %6480 = vst [vmem:[#allocation4 + $0x2f8] sm:$0xf] %v6306
        %6481 = vst [vmem:[#allocation4 + $0x31c] sm:$0xf] %v6320
        %6482 = vst [vmem:[#allocation4 + $0x340] sm:$0xf] %v6330
        %6483 = vst [vmem:[#allocation4 + $0x364] sm:$0xf] %v6344
        %6484 = vst [vmem:[#allocation4 + $0x388] sm:$0xf] %v6354
        %6485 = vst [vmem:[#allocation4 + $0x3ac] sm:$0xf] %v6368
        %6486 = vst [vmem:[#allocation4 + $0x3d0] sm:$0xf] %v6378
        %6487 = vst [vmem:[#allocation4 + $0x3f4] sm:$0xf] %v6392
        %6488 = vst [vmem:[#allocation4 + $0x418] sm:$0xf] %v6402
        %6489 = vst [vmem:[#allocation4 + $0x43c] sm:$0xf] %v6416
        %6490 = vst [vmem:[#allocation4 + $0x460] sm:$0xf] %v6426
        %v6491 = vld [vmem:[#allocation2] sm:$0xe]
        %v6492 = vld [vmem:[#allocation2 + $0x4] sm:$0xf]
        %v6493 = vld [vmem:[#allocation2 + $0x8] sm:$0x1]
        %v6494 = vld [vmem:[#allocation2 + $0xc] sm:$0xe]
        %v6495 = vld [vmem:[#allocation2 + $0x10] sm:$0xf]
        %v6496 = vld [vmem:[#allocation2 + $0x14] sm:$0x1]
        %v6497 = vld [vmem:[#allocation2 + $0x18] sm:$0xe]
        %v6498 = vld [vmem:[#allocation2 + $0x1c] sm:$0xf]
        %v6499 = vld [vmem:[#allocation2 + $0x20] sm:$0x1]
        %v6500 = vld [vmem:[#allocation2 + $0x24] sm:$0xe]
        %v6501 = vld [vmem:[#allocation2 + $0x28] sm:$0xf]
        %v6502 = vld [vmem:[#allocation2 + $0x2c] sm:$0x1]
        %v6503 = vld [vmem:[#allocation2 + $0x30] sm:$0xe]
        %v6504 = vld [vmem:[#allocation2 + $0x34] sm:$0xf]
        %v6505 = vld [vmem:[#allocation2 + $0x38] sm:$0x1]
        %v6506 = vld [vmem:[#allocation2 + $0x3c] sm:$0xe]
        %v6507 = vld [vmem:[#allocation2 + $0x40] sm:$0xf]
        %v6508 = vld [vmem:[#allocation2 + $0x44] sm:$0x1]
        %v6509 = vld [vmem:[#allocation2 + $0x48] sm:$0xe]
        %v6510 = vld [vmem:[#allocation2 + $0x4c] sm:$0xf]
        %v6511 = vld [vmem:[#allocation2 + $0x50] sm:$0x1]
        %v6512 = vld [vmem:[#allocation2 + $0x54] sm:$0xe]
        %v6513 = vld [vmem:[#allocation2 + $0x58] sm:$0xf]
        %v6514 = vld [vmem:[#allocation2 + $0x5c] sm:$0x1]
        %v6515 = vld [vmem:[#allocation2 + $0x60] sm:$0xe]
        %v6516 = vld [vmem:[#allocation2 + $0x64] sm:$0xf]
        %v6517 = vld [vmem:[#allocation2 + $0x68] sm:$0x1]
        %v6518 = vld [vmem:[#allocation2 + $0x6c] sm:$0xe]
        %v6519 = vld [vmem:[#allocation2 + $0x70] sm:$0xf]
        %v6520 = vld [vmem:[#allocation2 + $0x74] sm:$0x1]
        %v6521 = vld [vmem:[#allocation2 + $0x78] sm:$0xe]
        %v6522 = vld [vmem:[#allocation2 + $0x7c] sm:$0xf]
        %v6523 = vld [vmem:[#allocation2 + $0x80] sm:$0x1]
        %v6524 = vld [vmem:[#allocation2 + $0x84] sm:$0xe]
        %v6525 = vld [vmem:[#allocation2 + $0x88] sm:$0xf]
        %v6526 = vld [vmem:[#allocation2 + $0x8c] sm:$0x1]
        %v6527 = vld [vmem:[#allocation2 + $0x90] sm:$0xe]
        %v6528 = vld [vmem:[#allocation2 + $0x94] sm:$0xf]
        %v6529 = vld [vmem:[#allocation2 + $0x98] sm:$0x1]
        %v6530 = vld [vmem:[#allocation2 + $0x9c] sm:$0xe]
        %v6531 = vld [vmem:[#allocation2 + $0xa0] sm:$0xf]
        %v6532 = vld [vmem:[#allocation2 + $0xa4] sm:$0x1]
        %v6533 = vld [vmem:[#allocation2 + $0xa8] sm:$0xe]
        %v6534 = vld [vmem:[#allocation2 + $0xac] sm:$0xf]
        %v6535 = vld [vmem:[#allocation2 + $0xb0] sm:$0x1]
        %v6536 = vld [vmem:[#allocation2 + $0xb4] sm:$0xe]
        %v6537 = vld [vmem:[#allocation2 + $0xb8] sm:$0xf]
        %v6538 = vld [vmem:[#allocation2 + $0xbc] sm:$0x1]
        %v6587 = vrot.slane %v6491, 5
        %v6588 = vrot.slane %v6587, 4
        %v6589 = vrot.slane %v6492, 5
        %v6590 = vsel %vm902, %v6588, %v6589
        %v6591 = vrot.slane %v6589, 4
        %v6592 = vrot.slane %v6493, 5
        %v6593 = vsel %vm902, %v6591, %v6592
        %v6594 = vrot.slane %v6494, 5
        %v6595 = vrot.slane %v6594, 4
        %v6596 = vrot.slane %v6495, 5
        %v6597 = vsel %vm902, %v6595, %v6596
        %v6598 = vrot.slane %v6596, 4
        %v6599 = vrot.slane %v6496, 5
        %v6600 = vsel %vm902, %v6598, %v6599
        %v6601 = vrot.slane %v6497, 5
        %v6602 = vrot.slane %v6601, 4
        %v6603 = vrot.slane %v6498, 5
        %v6604 = vsel %vm902, %v6602, %v6603
        %v6605 = vrot.slane %v6603, 4
        %v6606 = vrot.slane %v6499, 5
        %v6607 = vsel %vm902, %v6605, %v6606
        %v6608 = vrot.slane %v6500, 5
        %v6609 = vrot.slane %v6608, 4
        %v6610 = vrot.slane %v6501, 5
        %v6611 = vsel %vm902, %v6609, %v6610
        %v6612 = vrot.slane %v6610, 4
        %v6613 = vrot.slane %v6502, 5
        %v6614 = vsel %vm902, %v6612, %v6613
        %v6615 = vrot.slane %v6503, 5
        %v6616 = vrot.slane %v6615, 4
        %v6617 = vrot.slane %v6504, 5
        %v6618 = vsel %vm902, %v6616, %v6617
        %v6619 = vrot.slane %v6617, 4
        %v6620 = vrot.slane %v6505, 5
        %v6621 = vsel %vm902, %v6619, %v6620
        %v6622 = vrot.slane %v6506, 5
        %v6623 = vrot.slane %v6622, 4
        %v6624 = vrot.slane %v6507, 5
        %v6625 = vsel %vm902, %v6623, %v6624
        %v6626 = vrot.slane %v6624, 4
        %v6627 = vrot.slane %v6508, 5
        %v6628 = vsel %vm902, %v6626, %v6627
        %v6629 = vrot.slane %v6509, 5
        %v6630 = vrot.slane %v6629, 4
        %v6631 = vrot.slane %v6510, 5
        %v6632 = vsel %vm902, %v6630, %v6631
        %v6633 = vrot.slane %v6631, 4
        %v6634 = vrot.slane %v6511, 5
        %v6635 = vsel %vm902, %v6633, %v6634
        %v6636 = vrot.slane %v6512, 5
        %v6637 = vrot.slane %v6636, 4
        %v6638 = vrot.slane %v6513, 5
        %v6639 = vsel %vm902, %v6637, %v6638
        %v6640 = vrot.slane %v6638, 4
        %v6641 = vrot.slane %v6514, 5
        %v6642 = vsel %vm902, %v6640, %v6641
        %v6643 = vrot.slane %v6515, 5
        %v6644 = vrot.slane %v6643, 4
        %v6645 = vrot.slane %v6516, 5
        %v6646 = vsel %vm902, %v6644, %v6645
        %v6647 = vrot.slane %v6645, 4
        %v6648 = vrot.slane %v6517, 5
        %v6649 = vsel %vm902, %v6647, %v6648
        %v6650 = vrot.slane %v6518, 5
        %v6651 = vrot.slane %v6650, 4
        %v6652 = vrot.slane %v6519, 5
        %v6653 = vsel %vm902, %v6651, %v6652
        %v6654 = vrot.slane %v6652, 4
        %v6655 = vrot.slane %v6520, 5
        %v6656 = vsel %vm902, %v6654, %v6655
        %v6657 = vrot.slane %v6521, 5
        %v6658 = vrot.slane %v6657, 4
        %v6659 = vrot.slane %v6522, 5
        %v6660 = vsel %vm902, %v6658, %v6659
        %v6661 = vrot.slane %v6659, 4
        %v6662 = vrot.slane %v6523, 5
        %v6663 = vsel %vm902, %v6661, %v6662
        %v6664 = vrot.slane %v6524, 5
        %v6665 = vrot.slane %v6664, 4
        %v6666 = vrot.slane %v6525, 5
        %v6667 = vsel %vm902, %v6665, %v6666
        %v6668 = vrot.slane %v6666, 4
        %v6669 = vrot.slane %v6526, 5
        %v6670 = vsel %vm902, %v6668, %v6669
        %v6671 = vrot.slane %v6527, 5
        %v6672 = vrot.slane %v6671, 4
        %v6673 = vrot.slane %v6528, 5
        %v6674 = vsel %vm902, %v6672, %v6673
        %v6675 = vrot.slane %v6673, 4
        %v6676 = vrot.slane %v6529, 5
        %v6677 = vsel %vm902, %v6675, %v6676
        %v6678 = vrot.slane %v6530, 5
        %v6679 = vrot.slane %v6678, 4
        %v6680 = vrot.slane %v6531, 5
        %v6681 = vsel %vm902, %v6679, %v6680
        %v6682 = vrot.slane %v6680, 4
        %v6683 = vrot.slane %v6532, 5
        %v6684 = vsel %vm902, %v6682, %v6683
        %v6685 = vrot.slane %v6533, 5
        %v6686 = vrot.slane %v6685, 4
        %v6687 = vrot.slane %v6534, 5
        %v6688 = vsel %vm902, %v6686, %v6687
        %v6689 = vrot.slane %v6687, 4
        %v6690 = vrot.slane %v6535, 5
        %v6691 = vsel %vm902, %v6689, %v6690
        %v6692 = vrot.slane %v6536, 5
        %v6693 = vrot.slane %v6692, 4
        %v6694 = vrot.slane %v6537, 5
        %v6695 = vsel %vm902, %v6693, %v6694
        %v6696 = vrot.slane %v6694, 4
        %v6697 = vrot.slane %v6538, 5
        %v6698 = vsel %vm902, %v6696, %v6697
        %6731 = vst [vmem:[#allocation4 + $0x8] sm:$0xf] %v6590
        %6732 = vst [vmem:[#allocation4 + $0x2c] sm:$0xf] %v6593
        %6733 = vst [vmem:[#allocation4 + $0x50] sm:$0xf] %v6597
        %6734 = vst [vmem:[#allocation4 + $0x74] sm:$0xf] %v6600
        %6735 = vst [vmem:[#allocation4 + $0x98] sm:$0xf] %v6604
        %6736 = vst [vmem:[#allocation4 + $0xbc] sm:$0xf] %v6607
        %6737 = vst [vmem:[#allocation4 + $0xe0] sm:$0xf] %v6611
        %6738 = vst [vmem:[#allocation4 + $0x104] sm:$0xf] %v6614
        %6739 = vst [vmem:[#allocation4 + $0x128] sm:$0xf] %v6618
        %6740 = vst [vmem:[#allocation4 + $0x14c] sm:$0xf] %v6621
        %6741 = vst [vmem:[#allocation4 + $0x170] sm:$0xf] %v6625
        %6742 = vst [vmem:[#allocation4 + $0x194] sm:$0xf] %v6628
        %6743 = vst [vmem:[#allocation4 + $0x1b8] sm:$0xf] %v6632
        %6744 = vst [vmem:[#allocation4 + $0x1dc] sm:$0xf] %v6635
        %6745 = vst [vmem:[#allocation4 + $0x200] sm:$0xf] %v6639
        %6746 = vst [vmem:[#allocation4 + $0x224] sm:$0xf] %v6642
        %6747 = vst [vmem:[#allocation4 + $0x248] sm:$0xf] %v6646
        %6748 = vst [vmem:[#allocation4 + $0x26c] sm:$0xf] %v6649
        %6749 = vst [vmem:[#allocation4 + $0x290] sm:$0xf] %v6653
        %6750 = vst [vmem:[#allocation4 + $0x2b4] sm:$0xf] %v6656
        %6751 = vst [vmem:[#allocation4 + $0x2d8] sm:$0xf] %v6660
        %6752 = vst [vmem:[#allocation4 + $0x2fc] sm:$0xf] %v6663
        %6753 = vst [vmem:[#allocation4 + $0x320] sm:$0xf] %v6667
        %6754 = vst [vmem:[#allocation4 + $0x344] sm:$0xf] %v6670
        %6755 = vst [vmem:[#allocation4 + $0x368] sm:$0xf] %v6674
        %6756 = vst [vmem:[#allocation4 + $0x38c] sm:$0xf] %v6677
        %6757 = vst [vmem:[#allocation4 + $0x3b0] sm:$0xf] %v6681
        %6758 = vst [vmem:[#allocation4 + $0x3d4] sm:$0xf] %v6684
        %6759 = vst [vmem:[#allocation4 + $0x3f8] sm:$0xf] %v6688
        %6760 = vst [vmem:[#allocation4 + $0x41c] sm:$0xf] %v6691
        %6761 = vst [vmem:[#allocation4 + $0x440] sm:$0xf] %v6695
        %6762 = vst [vmem:[#allocation4 + $0x464] sm:$0xf] %v6698
        %v6763 = vld [vmem:[%s5816] sm:$0xf]
        %v6764 = vld [vmem:[%s5816 + $0x4] sm:$0xf]
        %v6765 = vld [vmem:[%s5816 + $0xc] sm:$0xf]
        %v6766 = vld [vmem:[%s5816 + $0x10] sm:$0xf]
        %v6767 = vld [vmem:[%s5816 + $0x18] sm:$0xf]
        %v6768 = vld [vmem:[%s5816 + $0x1c] sm:$0xf]
        %v6769 = vld [vmem:[%s5816 + $0x24] sm:$0xf]
        %v6770 = vld [vmem:[%s5816 + $0x28] sm:$0xf]
        %v6771 = vld [vmem:[%s5816 + $0x30] sm:$0xf]
        %v6772 = vld [vmem:[%s5816 + $0x34] sm:$0xf]
        %v6773 = vld [vmem:[%s5816 + $0x3c] sm:$0xf]
        %v6774 = vld [vmem:[%s5816 + $0x40] sm:$0xf]
        %v6775 = vld [vmem:[%s5816 + $0x48] sm:$0xf]
        %v6776 = vld [vmem:[%s5816 + $0x4c] sm:$0xf]
        %v6777 = vld [vmem:[%s5816 + $0x54] sm:$0xf]
        %v6778 = vld [vmem:[%s5816 + $0x58] sm:$0xf]
        %v6779 = vld [vmem:[%s5816 + $0x60] sm:$0xf]
        %v6780 = vld [vmem:[%s5816 + $0x64] sm:$0xf]
        %v6781 = vld [vmem:[%s5816 + $0x6c] sm:$0xf]
        %v6782 = vld [vmem:[%s5816 + $0x70] sm:$0xf]
        %v6783 = vld [vmem:[%s5816 + $0x78] sm:$0xf]
        %v6784 = vld [vmem:[%s5816 + $0x7c] sm:$0xf]
        %v6785 = vld [vmem:[%s5816 + $0x84] sm:$0xf]
        %v6786 = vld [vmem:[%s5816 + $0x88] sm:$0xf]
        %v6787 = vld [vmem:[%s5816 + $0x90] sm:$0xf]
        %v6788 = vld [vmem:[%s5816 + $0x94] sm:$0xf]
        %v6789 = vld [vmem:[%s5816 + $0x9c] sm:$0xf]
        %v6790 = vld [vmem:[%s5816 + $0xa0] sm:$0xf]
        %v6791 = vld [vmem:[%s5816 + $0xa8] sm:$0xf]
        %v6792 = vld [vmem:[%s5816 + $0xac] sm:$0xf]
        %v6793 = vld [vmem:[%s5816 + $0xb4] sm:$0xf]
        %v6794 = vld [vmem:[%s5816 + $0xb8] sm:$0xf]
        %6795 = vst [vmem:[#allocation4 + $0xc] sm:$0xf] %v6763
        %6796 = vst [vmem:[#allocation4 + $0x30] sm:$0xf] %v6764
        %6797 = vst [vmem:[#allocation4 + $0x54] sm:$0xf] %v6765
        %6798 = vst [vmem:[#allocation4 + $0x78] sm:$0xf] %v6766
        %6799 = vst [vmem:[#allocation4 + $0x9c] sm:$0xf] %v6767
        %6800 = vst [vmem:[#allocation4 + $0xc0] sm:$0xf] %v6768
        %6801 = vst [vmem:[#allocation4 + $0xe4] sm:$0xf] %v6769
        %6802 = vst [vmem:[#allocation4 + $0x108] sm:$0xf] %v6770
        %6803 = vst [vmem:[#allocation4 + $0x12c] sm:$0xf] %v6771
        %6804 = vst [vmem:[#allocation4 + $0x150] sm:$0xf] %v6772
        %6805 = vst [vmem:[#allocation4 + $0x174] sm:$0xf] %v6773
        %6806 = vst [vmem:[#allocation4 + $0x198] sm:$0xf] %v6774
        %6807 = vst [vmem:[#allocation4 + $0x1bc] sm:$0xf] %v6775
        %6808 = vst [vmem:[#allocation4 + $0x1e0] sm:$0xf] %v6776
        %6809 = vst [vmem:[#allocation4 + $0x204] sm:$0xf] %v6777
        %6810 = vst [vmem:[#allocation4 + $0x228] sm:$0xf] %v6778
        %6811 = vst [vmem:[#allocation4 + $0x24c] sm:$0xf] %v6779
        %6812 = vst [vmem:[#allocation4 + $0x270] sm:$0xf] %v6780
        %6813 = vst [vmem:[#allocation4 + $0x294] sm:$0xf] %v6781
        %6814 = vst [vmem:[#allocation4 + $0x2b8] sm:$0xf] %v6782
        %6815 = vst [vmem:[#allocation4 + $0x2dc] sm:$0xf] %v6783
        %6816 = vst [vmem:[#allocation4 + $0x300] sm:$0xf] %v6784
        %6817 = vst [vmem:[#allocation4 + $0x324] sm:$0xf] %v6785
        %6818 = vst [vmem:[#allocation4 + $0x348] sm:$0xf] %v6786
        %6819 = vst [vmem:[#allocation4 + $0x36c] sm:$0xf] %v6787
        %6820 = vst [vmem:[#allocation4 + $0x390] sm:$0xf] %v6788
        %6821 = vst [vmem:[#allocation4 + $0x3b4] sm:$0xf] %v6789
        %6822 = vst [vmem:[#allocation4 + $0x3d8] sm:$0xf] %v6790
        %6823 = vst [vmem:[#allocation4 + $0x3fc] sm:$0xf] %v6791
        %6824 = vst [vmem:[#allocation4 + $0x420] sm:$0xf] %v6792
        %6825 = vst [vmem:[#allocation4 + $0x444] sm:$0xf] %v6793
        %6826 = vst [vmem:[#allocation4 + $0x468] sm:$0xf] %v6794
        %v6827 = vld [vmem:[%s5816] sm:$0xf]
        %v6828 = vld [vmem:[%s5816 + $0x4] sm:$0xf]
        %v6829 = vld [vmem:[%s5816 + $0x8] sm:$0x1]
        %v6830 = vld [vmem:[%s5816 + $0xc] sm:$0xf]
        %v6831 = vld [vmem:[%s5816 + $0x10] sm:$0xf]
        %v6832 = vld [vmem:[%s5816 + $0x14] sm:$0x1]
        %v6833 = vld [vmem:[%s5816 + $0x18] sm:$0xf]
        %v6834 = vld [vmem:[%s5816 + $0x1c] sm:$0xf]
        %v6835 = vld [vmem:[%s5816 + $0x20] sm:$0x1]
        %v6836 = vld [vmem:[%s5816 + $0x24] sm:$0xf]
        %v6837 = vld [vmem:[%s5816 + $0x28] sm:$0xf]
        %v6838 = vld [vmem:[%s5816 + $0x2c] sm:$0x1]
        %v6839 = vld [vmem:[%s5816 + $0x30] sm:$0xf]
        %v6840 = vld [vmem:[%s5816 + $0x34] sm:$0xf]
        %v6841 = vld [vmem:[%s5816 + $0x38] sm:$0x1]
        %v6842 = vld [vmem:[%s5816 + $0x3c] sm:$0xf]
        %v6843 = vld [vmem:[%s5816 + $0x40] sm:$0xf]
        %v6844 = vld [vmem:[%s5816 + $0x44] sm:$0x1]
        %v6845 = vld [vmem:[%s5816 + $0x48] sm:$0xf]
        %v6846 = vld [vmem:[%s5816 + $0x4c] sm:$0xf]
        %v6847 = vld [vmem:[%s5816 + $0x50] sm:$0x1]
        %v6848 = vld [vmem:[%s5816 + $0x54] sm:$0xf]
        %v6849 = vld [vmem:[%s5816 + $0x58] sm:$0xf]
        %v6850 = vld [vmem:[%s5816 + $0x5c] sm:$0x1]
        %v6851 = vld [vmem:[%s5816 + $0x60] sm:$0xf]
        %v6852 = vld [vmem:[%s5816 + $0x64] sm:$0xf]
        %v6853 = vld [vmem:[%s5816 + $0x68] sm:$0x1]
        %v6854 = vld [vmem:[%s5816 + $0x6c] sm:$0xf]
        %v6855 = vld [vmem:[%s5816 + $0x70] sm:$0xf]
        %v6856 = vld [vmem:[%s5816 + $0x74] sm:$0x1]
        %v6857 = vld [vmem:[%s5816 + $0x78] sm:$0xf]
        %v6858 = vld [vmem:[%s5816 + $0x7c] sm:$0xf]
        %v6859 = vld [vmem:[%s5816 + $0x80] sm:$0x1]
        %v6860 = vld [vmem:[%s5816 + $0x84] sm:$0xf]
        %v6861 = vld [vmem:[%s5816 + $0x88] sm:$0xf]
        %v6862 = vld [vmem:[%s5816 + $0x8c] sm:$0x1]
        %v6863 = vld [vmem:[%s5816 + $0x90] sm:$0xf]
        %v6864 = vld [vmem:[%s5816 + $0x94] sm:$0xf]
        %v6865 = vld [vmem:[%s5816 + $0x98] sm:$0x1]
        %v6866 = vld [vmem:[%s5816 + $0x9c] sm:$0xf]
        %v6867 = vld [vmem:[%s5816 + $0xa0] sm:$0xf]
        %v6868 = vld [vmem:[%s5816 + $0xa4] sm:$0x1]
        %v6869 = vld [vmem:[%s5816 + $0xa8] sm:$0xf]
        %v6870 = vld [vmem:[%s5816 + $0xac] sm:$0xf]
        %v6871 = vld [vmem:[%s5816 + $0xb0] sm:$0x1]
        %v6872 = vld [vmem:[%s5816 + $0xb4] sm:$0xf]
        %v6873 = vld [vmem:[%s5816 + $0xb8] sm:$0xf]
        %v6874 = vld [vmem:[%s5816 + $0xbc] sm:$0x1]
        %v6876 = vshrl.u32 %v6827, 16
        %v6878 = vrot.slane %v6876, 4
        %v6879 = vshll.u32 %v6827, 16
        %v6881 = vrot.slane %v6879, 5
        %v6882 = vor.u32 %v6878, %v6881
        %v6883 = vrot.slane %v6882, 4
        %v6885 = vshll.u32 %v6828, 16
        %v6887 = vrot.slane %v6885, 5
        %v6888 = vsel %vm355, %v6883, %v6887
        %v6889 = vshrl.u32 %v6828, 16
        %v6891 = vrot.slane %v6889, 4
        %v6892 = vor.u32 %v6891, %v6887
        %v6893 = vrot.slane %v6892, 4
        %v6895 = vshll.u32 %v6829, 16
        %v6897 = vrot.slane %v6895, 5
        %v6898 = vsel %vm355, %v6893, %v6897
        %v6900 = vshrl.u32 %v6830, 16
        %v6902 = vrot.slane %v6900, 4
        %v6903 = vshll.u32 %v6830, 16
        %v6905 = vrot.slane %v6903, 5
        %v6906 = vor.u32 %v6902, %v6905
        %v6907 = vrot.slane %v6906, 4
        %v6909 = vshll.u32 %v6831, 16
        %v6911 = vrot.slane %v6909, 5
        %v6912 = vsel %vm355, %v6907, %v6911
        %v6913 = vshrl.u32 %v6831, 16
        %v6915 = vrot.slane %v6913, 4
        %v6916 = vor.u32 %v6915, %v6911
        %v6917 = vrot.slane %v6916, 4
        %v6919 = vshll.u32 %v6832, 16
        %v6921 = vrot.slane %v6919, 5
        %v6922 = vsel %vm355, %v6917, %v6921
        %v6924 = vshrl.u32 %v6833, 16
        %v6926 = vrot.slane %v6924, 4
        %v6927 = vshll.u32 %v6833, 16
        %v6929 = vrot.slane %v6927, 5
        %v6930 = vor.u32 %v6926, %v6929
        %v6931 = vrot.slane %v6930, 4
        %v6933 = vshll.u32 %v6834, 16
        %v6935 = vrot.slane %v6933, 5
        %v6936 = vsel %vm355, %v6931, %v6935
        %v6937 = vshrl.u32 %v6834, 16
        %v6939 = vrot.slane %v6937, 4
        %v6940 = vor.u32 %v6939, %v6935
        %v6941 = vrot.slane %v6940, 4
        %v6943 = vshll.u32 %v6835, 16
        %v6945 = vrot.slane %v6943, 5
        %v6946 = vsel %vm355, %v6941, %v6945
        %v6948 = vshrl.u32 %v6836, 16
        %v6950 = vrot.slane %v6948, 4
        %v6951 = vshll.u32 %v6836, 16
        %v6953 = vrot.slane %v6951, 5
        %v6954 = vor.u32 %v6950, %v6953
        %v6955 = vrot.slane %v6954, 4
        %v6957 = vshll.u32 %v6837, 16
        %v6959 = vrot.slane %v6957, 5
        %v6960 = vsel %vm355, %v6955, %v6959
        %v6961 = vshrl.u32 %v6837, 16
        %v6963 = vrot.slane %v6961, 4
        %v6964 = vor.u32 %v6963, %v6959
        %v6965 = vrot.slane %v6964, 4
        %v6967 = vshll.u32 %v6838, 16
        %v6969 = vrot.slane %v6967, 5
        %v6970 = vsel %vm355, %v6965, %v6969
        %v6972 = vshrl.u32 %v6839, 16
        %v6974 = vrot.slane %v6972, 4
        %v6975 = vshll.u32 %v6839, 16
        %v6977 = vrot.slane %v6975, 5
        %v6978 = vor.u32 %v6974, %v6977
        %v6979 = vrot.slane %v6978, 4
        %v6981 = vshll.u32 %v6840, 16
        %v6983 = vrot.slane %v6981, 5
        %v6984 = vsel %vm355, %v6979, %v6983
        %v6985 = vshrl.u32 %v6840, 16
        %v6987 = vrot.slane %v6985, 4
        %v6988 = vor.u32 %v6987, %v6983
        %v6989 = vrot.slane %v6988, 4
        %v6991 = vshll.u32 %v6841, 16
        %v6993 = vrot.slane %v6991, 5
        %v6994 = vsel %vm355, %v6989, %v6993
        %v6996 = vshrl.u32 %v6842, 16
        %v6998 = vrot.slane %v6996, 4
        %v6999 = vshll.u32 %v6842, 16
        %v7001 = vrot.slane %v6999, 5
        %v7002 = vor.u32 %v6998, %v7001
        %v7003 = vrot.slane %v7002, 4
        %v7005 = vshll.u32 %v6843, 16
        %v7007 = vrot.slane %v7005, 5
        %v7008 = vsel %vm355, %v7003, %v7007
        %v7009 = vshrl.u32 %v6843, 16
        %v7011 = vrot.slane %v7009, 4
        %v7012 = vor.u32 %v7011, %v7007
        %v7013 = vrot.slane %v7012, 4
        %v7015 = vshll.u32 %v6844, 16
        %v7017 = vrot.slane %v7015, 5
        %v7018 = vsel %vm355, %v7013, %v7017
        %v7020 = vshrl.u32 %v6845, 16
        %v7022 = vrot.slane %v7020, 4
        %v7023 = vshll.u32 %v6845, 16
        %v7025 = vrot.slane %v7023, 5
        %v7026 = vor.u32 %v7022, %v7025
        %v7027 = vrot.slane %v7026, 4
        %v7029 = vshll.u32 %v6846, 16
        %v7031 = vrot.slane %v7029, 5
        %v7032 = vsel %vm355, %v7027, %v7031
        %v7033 = vshrl.u32 %v6846, 16
        %v7035 = vrot.slane %v7033, 4
        %v7036 = vor.u32 %v7035, %v7031
        %v7037 = vrot.slane %v7036, 4
        %v7039 = vshll.u32 %v6847, 16
        %v7041 = vrot.slane %v7039, 5
        %v7042 = vsel %vm355, %v7037, %v7041
        %v7044 = vshrl.u32 %v6848, 16
        %v7046 = vrot.slane %v7044, 4
        %v7047 = vshll.u32 %v6848, 16
        %v7049 = vrot.slane %v7047, 5
        %v7050 = vor.u32 %v7046, %v7049
        %v7051 = vrot.slane %v7050, 4
        %v7053 = vshll.u32 %v6849, 16
        %v7055 = vrot.slane %v7053, 5
        %v7056 = vsel %vm355, %v7051, %v7055
        %v7057 = vshrl.u32 %v6849, 16
        %v7059 = vrot.slane %v7057, 4
        %v7060 = vor.u32 %v7059, %v7055
        %v7061 = vrot.slane %v7060, 4
        %v7063 = vshll.u32 %v6850, 16
        %v7065 = vrot.slane %v7063, 5
        %v7066 = vsel %vm355, %v7061, %v7065
        %v7068 = vshrl.u32 %v6851, 16
        %v7070 = vrot.slane %v7068, 4
        %v7071 = vshll.u32 %v6851, 16
        %v7073 = vrot.slane %v7071, 5
        %v7074 = vor.u32 %v7070, %v7073
        %v7075 = vrot.slane %v7074, 4
        %v7077 = vshll.u32 %v6852, 16
        %v7079 = vrot.slane %v7077, 5
        %v7080 = vsel %vm355, %v7075, %v7079
        %v7081 = vshrl.u32 %v6852, 16
        %v7083 = vrot.slane %v7081, 4
        %v7084 = vor.u32 %v7083, %v7079
        %v7085 = vrot.slane %v7084, 4
        %v7087 = vshll.u32 %v6853, 16
        %v7089 = vrot.slane %v7087, 5
        %v7090 = vsel %vm355, %v7085, %v7089
        %v7092 = vshrl.u32 %v6854, 16
        %v7094 = vrot.slane %v7092, 4
        %v7095 = vshll.u32 %v6854, 16
        %v7097 = vrot.slane %v7095, 5
        %v7098 = vor.u32 %v7094, %v7097
        %v7099 = vrot.slane %v7098, 4
        %v7101 = vshll.u32 %v6855, 16
        %v7103 = vrot.slane %v7101, 5
        %v7104 = vsel %vm355, %v7099, %v7103
        %v7105 = vshrl.u32 %v6855, 16
        %v7107 = vrot.slane %v7105, 4
        %v7108 = vor.u32 %v7107, %v7103
        %v7109 = vrot.slane %v7108, 4
        %v7111 = vshll.u32 %v6856, 16
        %v7113 = vrot.slane %v7111, 5
        %v7114 = vsel %vm355, %v7109, %v7113
        %v7116 = vshrl.u32 %v6857, 16
        %v7118 = vrot.slane %v7116, 4
        %v7119 = vshll.u32 %v6857, 16
        %v7121 = vrot.slane %v7119, 5
        %v7122 = vor.u32 %v7118, %v7121
        %v7123 = vrot.slane %v7122, 4
        %v7125 = vshll.u32 %v6858, 16
        %v7127 = vrot.slane %v7125, 5
        %v7128 = vsel %vm355, %v7123, %v7127
        %v7129 = vshrl.u32 %v6858, 16
        %v7131 = vrot.slane %v7129, 4
        %v7132 = vor.u32 %v7131, %v7127
        %v7133 = vrot.slane %v7132, 4
        %v7135 = vshll.u32 %v6859, 16
        %v7137 = vrot.slane %v7135, 5
        %v7138 = vsel %vm355, %v7133, %v7137
        %v7140 = vshrl.u32 %v6860, 16
        %v7142 = vrot.slane %v7140, 4
        %v7143 = vshll.u32 %v6860, 16
        %v7145 = vrot.slane %v7143, 5
        %v7146 = vor.u32 %v7142, %v7145
        %v7147 = vrot.slane %v7146, 4
        %v7149 = vshll.u32 %v6861, 16
        %v7151 = vrot.slane %v7149, 5
        %v7152 = vsel %vm355, %v7147, %v7151
        %v7153 = vshrl.u32 %v6861, 16
        %v7155 = vrot.slane %v7153, 4
        %v7156 = vor.u32 %v7155, %v7151
        %v7157 = vrot.slane %v7156, 4
        %v7159 = vshll.u32 %v6862, 16
        %v7161 = vrot.slane %v7159, 5
        %v7162 = vsel %vm355, %v7157, %v7161
        %v7164 = vshrl.u32 %v6863, 16
        %v7166 = vrot.slane %v7164, 4
        %v7167 = vshll.u32 %v6863, 16
        %v7169 = vrot.slane %v7167, 5
        %v7170 = vor.u32 %v7166, %v7169
        %v7171 = vrot.slane %v7170, 4
        %v7173 = vshll.u32 %v6864, 16
        %v7175 = vrot.slane %v7173, 5
        %v7176 = vsel %vm355, %v7171, %v7175
        %v7177 = vshrl.u32 %v6864, 16
        %v7179 = vrot.slane %v7177, 4
        %v7180 = vor.u32 %v7179, %v7175
        %v7181 = vrot.slane %v7180, 4
        %v7183 = vshll.u32 %v6865, 16
        %v7185 = vrot.slane %v7183, 5
        %v7186 = vsel %vm355, %v7181, %v7185
        %v7188 = vshrl.u32 %v6866, 16
        %v7190 = vrot.slane %v7188, 4
        %v7191 = vshll.u32 %v6866, 16
        %v7193 = vrot.slane %v7191, 5
        %v7194 = vor.u32 %v7190, %v7193
        %v7195 = vrot.slane %v7194, 4
        %v7197 = vshll.u32 %v6867, 16
        %v7199 = vrot.slane %v7197, 5
        %v7200 = vsel %vm355, %v7195, %v7199
        %v7201 = vshrl.u32 %v6867, 16
        %v7203 = vrot.slane %v7201, 4
        %v7204 = vor.u32 %v7203, %v7199
        %v7205 = vrot.slane %v7204, 4
        %v7207 = vshll.u32 %v6868, 16
        %v7209 = vrot.slane %v7207, 5
        %v7210 = vsel %vm355, %v7205, %v7209
        %v7212 = vshrl.u32 %v6869, 16
        %v7214 = vrot.slane %v7212, 4
        %v7215 = vshll.u32 %v6869, 16
        %v7217 = vrot.slane %v7215, 5
        %v7218 = vor.u32 %v7214, %v7217
        %v7219 = vrot.slane %v7218, 4
        %v7221 = vshll.u32 %v6870, 16
        %v7223 = vrot.slane %v7221, 5
        %v7224 = vsel %vm355, %v7219, %v7223
        %v7225 = vshrl.u32 %v6870, 16
        %v7227 = vrot.slane %v7225, 4
        %v7228 = vor.u32 %v7227, %v7223
        %v7229 = vrot.slane %v7228, 4
        %v7231 = vshll.u32 %v6871, 16
        %v7233 = vrot.slane %v7231, 5
        %v7234 = vsel %vm355, %v7229, %v7233
        %v7236 = vshrl.u32 %v6872, 16
        %v7238 = vrot.slane %v7236, 4
        %v7239 = vshll.u32 %v6872, 16
        %v7241 = vrot.slane %v7239, 5
        %v7242 = vor.u32 %v7238, %v7241
        %v7243 = vrot.slane %v7242, 4
        %v7245 = vshll.u32 %v6873, 16
        %v7247 = vrot.slane %v7245, 5
        %v7248 = vsel %vm355, %v7243, %v7247
        %v7249 = vshrl.u32 %v6873, 16
        %v7251 = vrot.slane %v7249, 4
        %v7252 = vor.u32 %v7251, %v7247
        %v7253 = vrot.slane %v7252, 4
        %v7255 = vshll.u32 %v6874, 16
        %v7257 = vrot.slane %v7255, 5
        %v7258 = vsel %vm355, %v7253, %v7257
        %7291 = vst [vmem:[#allocation4 + $0x10] sm:$0xf] %v6888
        %7292 = vst [vmem:[#allocation4 + $0x34] sm:$0xf] %v6898
        %7293 = vst [vmem:[#allocation4 + $0x58] sm:$0xf] %v6912
        %7294 = vst [vmem:[#allocation4 + $0x7c] sm:$0xf] %v6922
        %7295 = vst [vmem:[#allocation4 + $0xa0] sm:$0xf] %v6936
        %7296 = vst [vmem:[#allocation4 + $0xc4] sm:$0xf] %v6946
        %7297 = vst [vmem:[#allocation4 + $0xe8] sm:$0xf] %v6960
        %7298 = vst [vmem:[#allocation4 + $0x10c] sm:$0xf] %v6970
        %7299 = vst [vmem:[#allocation4 + $0x130] sm:$0xf] %v6984
        %7300 = vst [vmem:[#allocation4 + $0x154] sm:$0xf] %v6994
        %7301 = vst [vmem:[#allocation4 + $0x178] sm:$0xf] %v7008
        %7302 = vst [vmem:[#allocation4 + $0x19c] sm:$0xf] %v7018
        %7303 = vst [vmem:[#allocation4 + $0x1c0] sm:$0xf] %v7032
        %7304 = vst [vmem:[#allocation4 + $0x1e4] sm:$0xf] %v7042
        %7305 = vst [vmem:[#allocation4 + $0x208] sm:$0xf] %v7056
        %7306 = vst [vmem:[#allocation4 + $0x22c] sm:$0xf] %v7066
        %7307 = vst [vmem:[#allocation4 + $0x250] sm:$0xf] %v7080
        %7308 = vst [vmem:[#allocation4 + $0x274] sm:$0xf] %v7090
        %7309 = vst [vmem:[#allocation4 + $0x298] sm:$0xf] %v7104
        %7310 = vst [vmem:[#allocation4 + $0x2bc] sm:$0xf] %v7114
        %7311 = vst [vmem:[#allocation4 + $0x2e0] sm:$0xf] %v7128
        %7312 = vst [vmem:[#allocation4 + $0x304] sm:$0xf] %v7138
        %7313 = vst [vmem:[#allocation4 + $0x328] sm:$0xf] %v7152
        %7314 = vst [vmem:[#allocation4 + $0x34c] sm:$0xf] %v7162
        %7315 = vst [vmem:[#allocation4 + $0x370] sm:$0xf] %v7176
        %7316 = vst [vmem:[#allocation4 + $0x394] sm:$0xf] %v7186
        %7317 = vst [vmem:[#allocation4 + $0x3b8] sm:$0xf] %v7200
        %7318 = vst [vmem:[#allocation4 + $0x3dc] sm:$0xf] %v7210
        %7319 = vst [vmem:[#allocation4 + $0x400] sm:$0xf] %v7224
        %7320 = vst [vmem:[#allocation4 + $0x424] sm:$0xf] %v7234
        %7321 = vst [vmem:[#allocation4 + $0x448] sm:$0xf] %v7248
        %7322 = vst [vmem:[#allocation4 + $0x46c] sm:$0xf] %v7258
        %v7323 = vld [vmem:[%s5816] sm:$0xe]
        %v7324 = vld [vmem:[%s5816 + $0x4] sm:$0xf]
        %v7325 = vld [vmem:[%s5816 + $0x8] sm:$0x1]
        %v7326 = vld [vmem:[%s5816 + $0xc] sm:$0xe]
        %v7327 = vld [vmem:[%s5816 + $0x10] sm:$0xf]
        %v7328 = vld [vmem:[%s5816 + $0x14] sm:$0x1]
        %v7329 = vld [vmem:[%s5816 + $0x18] sm:$0xe]
        %v7330 = vld [vmem:[%s5816 + $0x1c] sm:$0xf]
        %v7331 = vld [vmem:[%s5816 + $0x20] sm:$0x1]
        %v7332 = vld [vmem:[%s5816 + $0x24] sm:$0xe]
        %v7333 = vld [vmem:[%s5816 + $0x28] sm:$0xf]
        %v7334 = vld [vmem:[%s5816 + $0x2c] sm:$0x1]
        %v7335 = vld [vmem:[%s5816 + $0x30] sm:$0xe]
        %v7336 = vld [vmem:[%s5816 + $0x34] sm:$0xf]
        %v7337 = vld [vmem:[%s5816 + $0x38] sm:$0x1]
        %v7338 = vld [vmem:[%s5816 + $0x3c] sm:$0xe]
        %v7339 = vld [vmem:[%s5816 + $0x40] sm:$0xf]
        %v7340 = vld [vmem:[%s5816 + $0x44] sm:$0x1]
        %v7341 = vld [vmem:[%s5816 + $0x48] sm:$0xe]
        %v7342 = vld [vmem:[%s5816 + $0x4c] sm:$0xf]
        %v7343 = vld [vmem:[%s5816 + $0x50] sm:$0x1]
        %v7344 = vld [vmem:[%s5816 + $0x54] sm:$0xe]
        %v7345 = vld [vmem:[%s5816 + $0x58] sm:$0xf]
        %v7346 = vld [vmem:[%s5816 + $0x5c] sm:$0x1]
        %v7347 = vld [vmem:[%s5816 + $0x60] sm:$0xe]
        %v7348 = vld [vmem:[%s5816 + $0x64] sm:$0xf]
        %v7349 = vld [vmem:[%s5816 + $0x68] sm:$0x1]
        %v7350 = vld [vmem:[%s5816 + $0x6c] sm:$0xe]
        %v7351 = vld [vmem:[%s5816 + $0x70] sm:$0xf]
        %v7352 = vld [vmem:[%s5816 + $0x74] sm:$0x1]
        %v7353 = vld [vmem:[%s5816 + $0x78] sm:$0xe]
        %v7354 = vld [vmem:[%s5816 + $0x7c] sm:$0xf]
        %v7355 = vld [vmem:[%s5816 + $0x80] sm:$0x1]
        %v7356 = vld [vmem:[%s5816 + $0x84] sm:$0xe]
        %v7357 = vld [vmem:[%s5816 + $0x88] sm:$0xf]
        %v7358 = vld [vmem:[%s5816 + $0x8c] sm:$0x1]
        %v7359 = vld [vmem:[%s5816 + $0x90] sm:$0xe]
        %v7360 = vld [vmem:[%s5816 + $0x94] sm:$0xf]
        %v7361 = vld [vmem:[%s5816 + $0x98] sm:$0x1]
        %v7362 = vld [vmem:[%s5816 + $0x9c] sm:$0xe]
        %v7363 = vld [vmem:[%s5816 + $0xa0] sm:$0xf]
        %v7364 = vld [vmem:[%s5816 + $0xa4] sm:$0x1]
        %v7365 = vld [vmem:[%s5816 + $0xa8] sm:$0xe]
        %v7366 = vld [vmem:[%s5816 + $0xac] sm:$0xf]
        %v7367 = vld [vmem:[%s5816 + $0xb0] sm:$0x1]
        %v7368 = vld [vmem:[%s5816 + $0xb4] sm:$0xe]
        %v7369 = vld [vmem:[%s5816 + $0xb8] sm:$0xf]
        %v7370 = vld [vmem:[%s5816 + $0xbc] sm:$0x1]
        %v7419 = vrot.slane %v7323, 5
        %v7420 = vrot.slane %v7419, 4
        %v7421 = vrot.slane %v7324, 5
        %v7422 = vsel %vm902, %v7420, %v7421
        %v7423 = vrot.slane %v7421, 4
        %v7424 = vrot.slane %v7325, 5
        %v7425 = vsel %vm902, %v7423, %v7424
        %v7426 = vrot.slane %v7326, 5
        %v7427 = vrot.slane %v7426, 4
        %v7428 = vrot.slane %v7327, 5
        %v7429 = vsel %vm902, %v7427, %v7428
        %v7430 = vrot.slane %v7428, 4
        %v7431 = vrot.slane %v7328, 5
        %v7432 = vsel %vm902, %v7430, %v7431
        %v7433 = vrot.slane %v7329, 5
        %v7434 = vrot.slane %v7433, 4
        %v7435 = vrot.slane %v7330, 5
        %v7436 = vsel %vm902, %v7434, %v7435
        %v7437 = vrot.slane %v7435, 4
        %v7438 = vrot.slane %v7331, 5
        %v7439 = vsel %vm902, %v7437, %v7438
        %v7440 = vrot.slane %v7332, 5
        %v7441 = vrot.slane %v7440, 4
        %v7442 = vrot.slane %v7333, 5
        %v7443 = vsel %vm902, %v7441, %v7442
        %v7444 = vrot.slane %v7442, 4
        %v7445 = vrot.slane %v7334, 5
        %v7446 = vsel %vm902, %v7444, %v7445
        %v7447 = vrot.slane %v7335, 5
        %v7448 = vrot.slane %v7447, 4
        %v7449 = vrot.slane %v7336, 5
        %v7450 = vsel %vm902, %v7448, %v7449
        %v7451 = vrot.slane %v7449, 4
        %v7452 = vrot.slane %v7337, 5
        %v7453 = vsel %vm902, %v7451, %v7452
        %v7454 = vrot.slane %v7338, 5
        %v7455 = vrot.slane %v7454, 4
        %v7456 = vrot.slane %v7339, 5
        %v7457 = vsel %vm902, %v7455, %v7456
        %v7458 = vrot.slane %v7456, 4
        %v7459 = vrot.slane %v7340, 5
        %v7460 = vsel %vm902, %v7458, %v7459
        %v7461 = vrot.slane %v7341, 5
        %v7462 = vrot.slane %v7461, 4
        %v7463 = vrot.slane %v7342, 5
        %v7464 = vsel %vm902, %v7462, %v7463
        %v7465 = vrot.slane %v7463, 4
        %v7466 = vrot.slane %v7343, 5
        %v7467 = vsel %vm902, %v7465, %v7466
        %v7468 = vrot.slane %v7344, 5
        %v7469 = vrot.slane %v7468, 4
        %v7470 = vrot.slane %v7345, 5
        %v7471 = vsel %vm902, %v7469, %v7470
        %v7472 = vrot.slane %v7470, 4
        %v7473 = vrot.slane %v7346, 5
        %v7474 = vsel %vm902, %v7472, %v7473
        %v7475 = vrot.slane %v7347, 5
        %v7476 = vrot.slane %v7475, 4
        %v7477 = vrot.slane %v7348, 5
        %v7478 = vsel %vm902, %v7476, %v7477
        %v7479 = vrot.slane %v7477, 4
        %v7480 = vrot.slane %v7349, 5
        %v7481 = vsel %vm902, %v7479, %v7480
        %v7482 = vrot.slane %v7350, 5
        %v7483 = vrot.slane %v7482, 4
        %v7484 = vrot.slane %v7351, 5
        %v7485 = vsel %vm902, %v7483, %v7484
        %v7486 = vrot.slane %v7484, 4
        %v7487 = vrot.slane %v7352, 5
        %v7488 = vsel %vm902, %v7486, %v7487
        %v7489 = vrot.slane %v7353, 5
        %v7490 = vrot.slane %v7489, 4
        %v7491 = vrot.slane %v7354, 5
        %v7492 = vsel %vm902, %v7490, %v7491
        %v7493 = vrot.slane %v7491, 4
        %v7494 = vrot.slane %v7355, 5
        %v7495 = vsel %vm902, %v7493, %v7494
        %v7496 = vrot.slane %v7356, 5
        %v7497 = vrot.slane %v7496, 4
        %v7498 = vrot.slane %v7357, 5
        %v7499 = vsel %vm902, %v7497, %v7498
        %v7500 = vrot.slane %v7498, 4
        %v7501 = vrot.slane %v7358, 5
        %v7502 = vsel %vm902, %v7500, %v7501
        %v7503 = vrot.slane %v7359, 5
        %v7504 = vrot.slane %v7503, 4
        %v7505 = vrot.slane %v7360, 5
        %v7506 = vsel %vm902, %v7504, %v7505
        %v7507 = vrot.slane %v7505, 4
        %v7508 = vrot.slane %v7361, 5
        %v7509 = vsel %vm902, %v7507, %v7508
        %v7510 = vrot.slane %v7362, 5
        %v7511 = vrot.slane %v7510, 4
        %v7512 = vrot.slane %v7363, 5
        %v7513 = vsel %vm902, %v7511, %v7512
        %v7514 = vrot.slane %v7512, 4
        %v7515 = vrot.slane %v7364, 5
        %v7516 = vsel %vm902, %v7514, %v7515
        %v7517 = vrot.slane %v7365, 5
        %v7518 = vrot.slane %v7517, 4
        %v7519 = vrot.slane %v7366, 5
        %v7520 = vsel %vm902, %v7518, %v7519
        %v7521 = vrot.slane %v7519, 4
        %v7522 = vrot.slane %v7367, 5
        %v7523 = vsel %vm902, %v7521, %v7522
        %v7524 = vrot.slane %v7368, 5
        %v7525 = vrot.slane %v7524, 4
        %v7526 = vrot.slane %v7369, 5
        %v7527 = vsel %vm902, %v7525, %v7526
        %v7528 = vrot.slane %v7526, 4
        %v7529 = vrot.slane %v7370, 5
        %v7530 = vsel %vm902, %v7528, %v7529
        %7563 = vst [vmem:[#allocation4 + $0x14] sm:$0xf] %v7422
        %7564 = vst [vmem:[#allocation4 + $0x38] sm:$0xf] %v7425
        %7565 = vst [vmem:[#allocation4 + $0x5c] sm:$0xf] %v7429
        %7566 = vst [vmem:[#allocation4 + $0x80] sm:$0xf] %v7432
        %7567 = vst [vmem:[#allocation4 + $0xa4] sm:$0xf] %v7436
        %7568 = vst [vmem:[#allocation4 + $0xc8] sm:$0xf] %v7439
        %7569 = vst [vmem:[#allocation4 + $0xec] sm:$0xf] %v7443
        %7570 = vst [vmem:[#allocation4 + $0x110] sm:$0xf] %v7446
        %7571 = vst [vmem:[#allocation4 + $0x134] sm:$0xf] %v7450
        %7572 = vst [vmem:[#allocation4 + $0x158] sm:$0xf] %v7453
        %7573 = vst [vmem:[#allocation4 + $0x17c] sm:$0xf] %v7457
        %7574 = vst [vmem:[#allocation4 + $0x1a0] sm:$0xf] %v7460
        %7575 = vst [vmem:[#allocation4 + $0x1c4] sm:$0xf] %v7464
        %7576 = vst [vmem:[#allocation4 + $0x1e8] sm:$0xf] %v7467
        %7577 = vst [vmem:[#allocation4 + $0x20c] sm:$0xf] %v7471
        %7578 = vst [vmem:[#allocation4 + $0x230] sm:$0xf] %v7474
        %7579 = vst [vmem:[#allocation4 + $0x254] sm:$0xf] %v7478
        %7580 = vst [vmem:[#allocation4 + $0x278] sm:$0xf] %v7481
        %7581 = vst [vmem:[#allocation4 + $0x29c] sm:$0xf] %v7485
        %7582 = vst [vmem:[#allocation4 + $0x2c0] sm:$0xf] %v7488
        %7583 = vst [vmem:[#allocation4 + $0x2e4] sm:$0xf] %v7492
        %7584 = vst [vmem:[#allocation4 + $0x308] sm:$0xf] %v7495
        %7585 = vst [vmem:[#allocation4 + $0x32c] sm:$0xf] %v7499
        %7586 = vst [vmem:[#allocation4 + $0x350] sm:$0xf] %v7502
        %7587 = vst [vmem:[#allocation4 + $0x374] sm:$0xf] %v7506
        %7588 = vst [vmem:[#allocation4 + $0x398] sm:$0xf] %v7509
        %7589 = vst [vmem:[#allocation4 + $0x3bc] sm:$0xf] %v7513
        %7590 = vst [vmem:[#allocation4 + $0x3e0] sm:$0xf] %v7516
        %7591 = vst [vmem:[#allocation4 + $0x404] sm:$0xf] %v7520
        %7592 = vst [vmem:[#allocation4 + $0x428] sm:$0xf] %v7523
        %7593 = vst [vmem:[#allocation4 + $0x44c] sm:$0xf] %v7527
        %7594 = vst [vmem:[#allocation4 + $0x470] sm:$0xf] %v7530
        %s7595 = scalar_lea.vmem [#allocation2], 24
        %v7596 = vld [vmem:[%s7595] sm:$0xf]
        %v7597 = vld [vmem:[%s7595 + $0x4] sm:$0xf]
        %v7598 = vld [vmem:[%s7595 + $0xc] sm:$0xf]
        %v7599 = vld [vmem:[%s7595 + $0x10] sm:$0xf]
        %v7600 = vld [vmem:[%s7595 + $0x18] sm:$0xf]
        %v7601 = vld [vmem:[%s7595 + $0x1c] sm:$0xf]
        %v7602 = vld [vmem:[%s7595 + $0x24] sm:$0xf]
        %v7603 = vld [vmem:[%s7595 + $0x28] sm:$0xf]
        %v7604 = vld [vmem:[%s7595 + $0x30] sm:$0xf]
        %v7605 = vld [vmem:[%s7595 + $0x34] sm:$0xf]
        %v7606 = vld [vmem:[%s7595 + $0x3c] sm:$0xf]
        %v7607 = vld [vmem:[%s7595 + $0x40] sm:$0xf]
        %v7608 = vld [vmem:[%s7595 + $0x48] sm:$0xf]
        %v7609 = vld [vmem:[%s7595 + $0x4c] sm:$0xf]
        %v7610 = vld [vmem:[%s7595 + $0x54] sm:$0xf]
        %v7611 = vld [vmem:[%s7595 + $0x58] sm:$0xf]
        %v7612 = vld [vmem:[%s7595 + $0x60] sm:$0xf]
        %v7613 = vld [vmem:[%s7595 + $0x64] sm:$0xf]
        %v7614 = vld [vmem:[%s7595 + $0x6c] sm:$0xf]
        %v7615 = vld [vmem:[%s7595 + $0x70] sm:$0xf]
        %v7616 = vld [vmem:[%s7595 + $0x78] sm:$0xf]
        %v7617 = vld [vmem:[%s7595 + $0x7c] sm:$0xf]
        %v7618 = vld [vmem:[%s7595 + $0x84] sm:$0xf]
        %v7619 = vld [vmem:[%s7595 + $0x88] sm:$0xf]
        %v7620 = vld [vmem:[%s7595 + $0x90] sm:$0xf]
        %v7621 = vld [vmem:[%s7595 + $0x94] sm:$0xf]
        %v7622 = vld [vmem:[%s7595 + $0x9c] sm:$0xf]
        %v7623 = vld [vmem:[%s7595 + $0xa0] sm:$0xf]
        %v7624 = vld [vmem:[%s7595 + $0xa8] sm:$0xf]
        %v7625 = vld [vmem:[%s7595 + $0xac] sm:$0xf]
        %v7626 = vld [vmem:[%s7595 + $0xb4] sm:$0xf]
        %v7627 = vld [vmem:[%s7595 + $0xb8] sm:$0xf]
        %7628 = vst [vmem:[#allocation4 + $0x18] sm:$0xf] %v7596
        %7629 = vst [vmem:[#allocation4 + $0x3c] sm:$0xf] %v7597
        %7630 = vst [vmem:[#allocation4 + $0x60] sm:$0xf] %v7598
        %7631 = vst [vmem:[#allocation4 + $0x84] sm:$0xf] %v7599
        %7632 = vst [vmem:[#allocation4 + $0xa8] sm:$0xf] %v7600
        %7633 = vst [vmem:[#allocation4 + $0xcc] sm:$0xf] %v7601
        %7634 = vst [vmem:[#allocation4 + $0xf0] sm:$0xf] %v7602
        %7635 = vst [vmem:[#allocation4 + $0x114] sm:$0xf] %v7603
        %7636 = vst [vmem:[#allocation4 + $0x138] sm:$0xf] %v7604
        %7637 = vst [vmem:[#allocation4 + $0x15c] sm:$0xf] %v7605
        %7638 = vst [vmem:[#allocation4 + $0x180] sm:$0xf] %v7606
        %7639 = vst [vmem:[#allocation4 + $0x1a4] sm:$0xf] %v7607
        %7640 = vst [vmem:[#allocation4 + $0x1c8] sm:$0xf] %v7608
        %7641 = vst [vmem:[#allocation4 + $0x1ec] sm:$0xf] %v7609
        %7642 = vst [vmem:[#allocation4 + $0x210] sm:$0xf] %v7610
        %7643 = vst [vmem:[#allocation4 + $0x234] sm:$0xf] %v7611
        %7644 = vst [vmem:[#allocation4 + $0x258] sm:$0xf] %v7612
        %7645 = vst [vmem:[#allocation4 + $0x27c] sm:$0xf] %v7613
        %7646 = vst [vmem:[#allocation4 + $0x2a0] sm:$0xf] %v7614
        %7647 = vst [vmem:[#allocation4 + $0x2c4] sm:$0xf] %v7615
        %7648 = vst [vmem:[#allocation4 + $0x2e8] sm:$0xf] %v7616
        %7649 = vst [vmem:[#allocation4 + $0x30c] sm:$0xf] %v7617
        %7650 = vst [vmem:[#allocation4 + $0x330] sm:$0xf] %v7618
        %7651 = vst [vmem:[#allocation4 + $0x354] sm:$0xf] %v7619
        %7652 = vst [vmem:[#allocation4 + $0x378] sm:$0xf] %v7620
        %7653 = vst [vmem:[#allocation4 + $0x39c] sm:$0xf] %v7621
        %7654 = vst [vmem:[#allocation4 + $0x3c0] sm:$0xf] %v7622
        %7655 = vst [vmem:[#allocation4 + $0x3e4] sm:$0xf] %v7623
        %7656 = vst [vmem:[#allocation4 + $0x408] sm:$0xf] %v7624
        %7657 = vst [vmem:[#allocation4 + $0x42c] sm:$0xf] %v7625
        %7658 = vst [vmem:[#allocation4 + $0x450] sm:$0xf] %v7626
        %7659 = vst [vmem:[#allocation4 + $0x474] sm:$0xf] %v7627
        %v7660 = vld [vmem:[%s7595] sm:$0xf]
        %v7661 = vld [vmem:[%s7595 + $0x4] sm:$0xf]
        %v7662 = vld [vmem:[%s7595 + $0x8] sm:$0x1]
        %v7663 = vld [vmem:[%s7595 + $0xc] sm:$0xf]
        %v7664 = vld [vmem:[%s7595 + $0x10] sm:$0xf]
        %v7665 = vld [vmem:[%s7595 + $0x14] sm:$0x1]
        %v7666 = vld [vmem:[%s7595 + $0x18] sm:$0xf]
        %v7667 = vld [vmem:[%s7595 + $0x1c] sm:$0xf]
        %v7668 = vld [vmem:[%s7595 + $0x20] sm:$0x1]
        %v7669 = vld [vmem:[%s7595 + $0x24] sm:$0xf]
        %v7670 = vld [vmem:[%s7595 + $0x28] sm:$0xf]
        %v7671 = vld [vmem:[%s7595 + $0x2c] sm:$0x1]
        %v7672 = vld [vmem:[%s7595 + $0x30] sm:$0xf]
        %v7673 = vld [vmem:[%s7595 + $0x34] sm:$0xf]
        %v7674 = vld [vmem:[%s7595 + $0x38] sm:$0x1]
        %v7675 = vld [vmem:[%s7595 + $0x3c] sm:$0xf]
        %v7676 = vld [vmem:[%s7595 + $0x40] sm:$0xf]
        %v7677 = vld [vmem:[%s7595 + $0x44] sm:$0x1]
        %v7678 = vld [vmem:[%s7595 + $0x48] sm:$0xf]
        %v7679 = vld [vmem:[%s7595 + $0x4c] sm:$0xf]
        %v7680 = vld [vmem:[%s7595 + $0x50] sm:$0x1]
        %v7681 = vld [vmem:[%s7595 + $0x54] sm:$0xf]
        %v7682 = vld [vmem:[%s7595 + $0x58] sm:$0xf]
        %v7683 = vld [vmem:[%s7595 + $0x5c] sm:$0x1]
        %v7684 = vld [vmem:[%s7595 + $0x60] sm:$0xf]
        %v7685 = vld [vmem:[%s7595 + $0x64] sm:$0xf]
        %v7686 = vld [vmem:[%s7595 + $0x68] sm:$0x1]
        %v7687 = vld [vmem:[%s7595 + $0x6c] sm:$0xf]
        %v7688 = vld [vmem:[%s7595 + $0x70] sm:$0xf]
        %v7689 = vld [vmem:[%s7595 + $0x74] sm:$0x1]
        %v7690 = vld [vmem:[%s7595 + $0x78] sm:$0xf]
        %v7691 = vld [vmem:[%s7595 + $0x7c] sm:$0xf]
        %v7692 = vld [vmem:[%s7595 + $0x80] sm:$0x1]
        %v7693 = vld [vmem:[%s7595 + $0x84] sm:$0xf]
        %v7694 = vld [vmem:[%s7595 + $0x88] sm:$0xf]
        %v7695 = vld [vmem:[%s7595 + $0x8c] sm:$0x1]
        %v7696 = vld [vmem:[%s7595 + $0x90] sm:$0xf]
        %v7697 = vld [vmem:[%s7595 + $0x94] sm:$0xf]
        %v7698 = vld [vmem:[%s7595 + $0x98] sm:$0x1]
        %v7699 = vld [vmem:[%s7595 + $0x9c] sm:$0xf]
        %v7700 = vld [vmem:[%s7595 + $0xa0] sm:$0xf]
        %v7701 = vld [vmem:[%s7595 + $0xa4] sm:$0x1]
        %v7702 = vld [vmem:[%s7595 + $0xa8] sm:$0xf]
        %v7703 = vld [vmem:[%s7595 + $0xac] sm:$0xf]
        %v7704 = vld [vmem:[%s7595 + $0xb0] sm:$0x1]
        %v7705 = vld [vmem:[%s7595 + $0xb4] sm:$0xf]
        %v7706 = vld [vmem:[%s7595 + $0xb8] sm:$0xf]
        %v7707 = vld [vmem:[%s7595 + $0xbc] sm:$0x1]
        %v7709 = vshrl.u32 %v7660, 16
        %v7711 = vrot.slane %v7709, 4
        %v7712 = vshll.u32 %v7660, 16
        %v7714 = vrot.slane %v7712, 5
        %v7715 = vor.u32 %v7711, %v7714
        %v7716 = vrot.slane %v7715, 4
        %v7718 = vshll.u32 %v7661, 16
        %v7720 = vrot.slane %v7718, 5
        %v7721 = vsel %vm355, %v7716, %v7720
        %v7722 = vshrl.u32 %v7661, 16
        %v7724 = vrot.slane %v7722, 4
        %v7725 = vor.u32 %v7724, %v7720
        %v7726 = vrot.slane %v7725, 4
        %v7728 = vshll.u32 %v7662, 16
        %v7730 = vrot.slane %v7728, 5
        %v7731 = vsel %vm355, %v7726, %v7730
        %v7733 = vshrl.u32 %v7663, 16
        %v7735 = vrot.slane %v7733, 4
        %v7736 = vshll.u32 %v7663, 16
        %v7738 = vrot.slane %v7736, 5
        %v7739 = vor.u32 %v7735, %v7738
        %v7740 = vrot.slane %v7739, 4
        %v7742 = vshll.u32 %v7664, 16
        %v7744 = vrot.slane %v7742, 5
        %v7745 = vsel %vm355, %v7740, %v7744
        %v7746 = vshrl.u32 %v7664, 16
        %v7748 = vrot.slane %v7746, 4
        %v7749 = vor.u32 %v7748, %v7744
        %v7750 = vrot.slane %v7749, 4
        %v7752 = vshll.u32 %v7665, 16
        %v7754 = vrot.slane %v7752, 5
        %v7755 = vsel %vm355, %v7750, %v7754
        %v7757 = vshrl.u32 %v7666, 16
        %v7759 = vrot.slane %v7757, 4
        %v7760 = vshll.u32 %v7666, 16
        %v7762 = vrot.slane %v7760, 5
        %v7763 = vor.u32 %v7759, %v7762
        %v7764 = vrot.slane %v7763, 4
        %v7766 = vshll.u32 %v7667, 16
        %v7768 = vrot.slane %v7766, 5
        %v7769 = vsel %vm355, %v7764, %v7768
        %v7770 = vshrl.u32 %v7667, 16
        %v7772 = vrot.slane %v7770, 4
        %v7773 = vor.u32 %v7772, %v7768
        %v7774 = vrot.slane %v7773, 4
        %v7776 = vshll.u32 %v7668, 16
        %v7778 = vrot.slane %v7776, 5
        %v7779 = vsel %vm355, %v7774, %v7778
        %v7781 = vshrl.u32 %v7669, 16
        %v7783 = vrot.slane %v7781, 4
        %v7784 = vshll.u32 %v7669, 16
        %v7786 = vrot.slane %v7784, 5
        %v7787 = vor.u32 %v7783, %v7786
        %v7788 = vrot.slane %v7787, 4
        %v7790 = vshll.u32 %v7670, 16
        %v7792 = vrot.slane %v7790, 5
        %v7793 = vsel %vm355, %v7788, %v7792
        %v7794 = vshrl.u32 %v7670, 16
        %v7796 = vrot.slane %v7794, 4
        %v7797 = vor.u32 %v7796, %v7792
        %v7798 = vrot.slane %v7797, 4
        %v7800 = vshll.u32 %v7671, 16
        %v7802 = vrot.slane %v7800, 5
        %v7803 = vsel %vm355, %v7798, %v7802
        %v7805 = vshrl.u32 %v7672, 16
        %v7807 = vrot.slane %v7805, 4
        %v7808 = vshll.u32 %v7672, 16
        %v7810 = vrot.slane %v7808, 5
        %v7811 = vor.u32 %v7807, %v7810
        %v7812 = vrot.slane %v7811, 4
        %v7814 = vshll.u32 %v7673, 16
        %v7816 = vrot.slane %v7814, 5
        %v7817 = vsel %vm355, %v7812, %v7816
        %v7818 = vshrl.u32 %v7673, 16
        %v7820 = vrot.slane %v7818, 4
        %v7821 = vor.u32 %v7820, %v7816
        %v7822 = vrot.slane %v7821, 4
        %v7824 = vshll.u32 %v7674, 16
        %v7826 = vrot.slane %v7824, 5
        %v7827 = vsel %vm355, %v7822, %v7826
        %v7829 = vshrl.u32 %v7675, 16
        %v7831 = vrot.slane %v7829, 4
        %v7832 = vshll.u32 %v7675, 16
        %v7834 = vrot.slane %v7832, 5
        %v7835 = vor.u32 %v7831, %v7834
        %v7836 = vrot.slane %v7835, 4
        %v7838 = vshll.u32 %v7676, 16
        %v7840 = vrot.slane %v7838, 5
        %v7841 = vsel %vm355, %v7836, %v7840
        %v7842 = vshrl.u32 %v7676, 16
        %v7844 = vrot.slane %v7842, 4
        %v7845 = vor.u32 %v7844, %v7840
        %v7846 = vrot.slane %v7845, 4
        %v7848 = vshll.u32 %v7677, 16
        %v7850 = vrot.slane %v7848, 5
        %v7851 = vsel %vm355, %v7846, %v7850
        %v7853 = vshrl.u32 %v7678, 16
        %v7855 = vrot.slane %v7853, 4
        %v7856 = vshll.u32 %v7678, 16
        %v7858 = vrot.slane %v7856, 5
        %v7859 = vor.u32 %v7855, %v7858
        %v7860 = vrot.slane %v7859, 4
        %v7862 = vshll.u32 %v7679, 16
        %v7864 = vrot.slane %v7862, 5
        %v7865 = vsel %vm355, %v7860, %v7864
        %v7866 = vshrl.u32 %v7679, 16
        %v7868 = vrot.slane %v7866, 4
        %v7869 = vor.u32 %v7868, %v7864
        %v7870 = vrot.slane %v7869, 4
        %v7872 = vshll.u32 %v7680, 16
        %v7874 = vrot.slane %v7872, 5
        %v7875 = vsel %vm355, %v7870, %v7874
        %v7877 = vshrl.u32 %v7681, 16
        %v7879 = vrot.slane %v7877, 4
        %v7880 = vshll.u32 %v7681, 16
        %v7882 = vrot.slane %v7880, 5
        %v7883 = vor.u32 %v7879, %v7882
        %v7884 = vrot.slane %v7883, 4
        %v7886 = vshll.u32 %v7682, 16
        %v7888 = vrot.slane %v7886, 5
        %v7889 = vsel %vm355, %v7884, %v7888
        %v7890 = vshrl.u32 %v7682, 16
        %v7892 = vrot.slane %v7890, 4
        %v7893 = vor.u32 %v7892, %v7888
        %v7894 = vrot.slane %v7893, 4
        %v7896 = vshll.u32 %v7683, 16
        %v7898 = vrot.slane %v7896, 5
        %v7899 = vsel %vm355, %v7894, %v7898
        %v7901 = vshrl.u32 %v7684, 16
        %v7903 = vrot.slane %v7901, 4
        %v7904 = vshll.u32 %v7684, 16
        %v7906 = vrot.slane %v7904, 5
        %v7907 = vor.u32 %v7903, %v7906
        %v7908 = vrot.slane %v7907, 4
        %v7910 = vshll.u32 %v7685, 16
        %v7912 = vrot.slane %v7910, 5
        %v7913 = vsel %vm355, %v7908, %v7912
        %v7914 = vshrl.u32 %v7685, 16
        %v7916 = vrot.slane %v7914, 4
        %v7917 = vor.u32 %v7916, %v7912
        %v7918 = vrot.slane %v7917, 4
        %v7920 = vshll.u32 %v7686, 16
        %v7922 = vrot.slane %v7920, 5
        %v7923 = vsel %vm355, %v7918, %v7922
        %v7925 = vshrl.u32 %v7687, 16
        %v7927 = vrot.slane %v7925, 4
        %v7928 = vshll.u32 %v7687, 16
        %v7930 = vrot.slane %v7928, 5
        %v7931 = vor.u32 %v7927, %v7930
        %v7932 = vrot.slane %v7931, 4
        %v7934 = vshll.u32 %v7688, 16
        %v7936 = vrot.slane %v7934, 5
        %v7937 = vsel %vm355, %v7932, %v7936
        %v7938 = vshrl.u32 %v7688, 16
        %v7940 = vrot.slane %v7938, 4
        %v7941 = vor.u32 %v7940, %v7936
        %v7942 = vrot.slane %v7941, 4
        %v7944 = vshll.u32 %v7689, 16
        %v7946 = vrot.slane %v7944, 5
        %v7947 = vsel %vm355, %v7942, %v7946
        %v7949 = vshrl.u32 %v7690, 16
        %v7951 = vrot.slane %v7949, 4
        %v7952 = vshll.u32 %v7690, 16
        %v7954 = vrot.slane %v7952, 5
        %v7955 = vor.u32 %v7951, %v7954
        %v7956 = vrot.slane %v7955, 4
        %v7958 = vshll.u32 %v7691, 16
        %v7960 = vrot.slane %v7958, 5
        %v7961 = vsel %vm355, %v7956, %v7960
        %v7962 = vshrl.u32 %v7691, 16
        %v7964 = vrot.slane %v7962, 4
        %v7965 = vor.u32 %v7964, %v7960
        %v7966 = vrot.slane %v7965, 4
        %v7968 = vshll.u32 %v7692, 16
        %v7970 = vrot.slane %v7968, 5
        %v7971 = vsel %vm355, %v7966, %v7970
        %v7973 = vshrl.u32 %v7693, 16
        %v7975 = vrot.slane %v7973, 4
        %v7976 = vshll.u32 %v7693, 16
        %v7978 = vrot.slane %v7976, 5
        %v7979 = vor.u32 %v7975, %v7978
        %v7980 = vrot.slane %v7979, 4
        %v7982 = vshll.u32 %v7694, 16
        %v7984 = vrot.slane %v7982, 5
        %v7985 = vsel %vm355, %v7980, %v7984
        %v7986 = vshrl.u32 %v7694, 16
        %v7988 = vrot.slane %v7986, 4
        %v7989 = vor.u32 %v7988, %v7984
        %v7990 = vrot.slane %v7989, 4
        %v7992 = vshll.u32 %v7695, 16
        %v7994 = vrot.slane %v7992, 5
        %v7995 = vsel %vm355, %v7990, %v7994
        %v7997 = vshrl.u32 %v7696, 16
        %v7999 = vrot.slane %v7997, 4
        %v8000 = vshll.u32 %v7696, 16
        %v8002 = vrot.slane %v8000, 5
        %v8003 = vor.u32 %v7999, %v8002
        %v8004 = vrot.slane %v8003, 4
        %v8006 = vshll.u32 %v7697, 16
        %v8008 = vrot.slane %v8006, 5
        %v8009 = vsel %vm355, %v8004, %v8008
        %v8010 = vshrl.u32 %v7697, 16
        %v8012 = vrot.slane %v8010, 4
        %v8013 = vor.u32 %v8012, %v8008
        %v8014 = vrot.slane %v8013, 4
        %v8016 = vshll.u32 %v7698, 16
        %v8018 = vrot.slane %v8016, 5
        %v8019 = vsel %vm355, %v8014, %v8018
        %v8021 = vshrl.u32 %v7699, 16
        %v8023 = vrot.slane %v8021, 4
        %v8024 = vshll.u32 %v7699, 16
        %v8026 = vrot.slane %v8024, 5
        %v8027 = vor.u32 %v8023, %v8026
        %v8028 = vrot.slane %v8027, 4
        %v8030 = vshll.u32 %v7700, 16
        %v8032 = vrot.slane %v8030, 5
        %v8033 = vsel %vm355, %v8028, %v8032
        %v8034 = vshrl.u32 %v7700, 16
        %v8036 = vrot.slane %v8034, 4
        %v8037 = vor.u32 %v8036, %v8032
        %v8038 = vrot.slane %v8037, 4
        %v8040 = vshll.u32 %v7701, 16
        %v8042 = vrot.slane %v8040, 5
        %v8043 = vsel %vm355, %v8038, %v8042
        %v8045 = vshrl.u32 %v7702, 16
        %v8047 = vrot.slane %v8045, 4
        %v8048 = vshll.u32 %v7702, 16
        %v8050 = vrot.slane %v8048, 5
        %v8051 = vor.u32 %v8047, %v8050
        %v8052 = vrot.slane %v8051, 4
        %v8054 = vshll.u32 %v7703, 16
        %v8056 = vrot.slane %v8054, 5
        %v8057 = vsel %vm355, %v8052, %v8056
        %v8058 = vshrl.u32 %v7703, 16
        %v8060 = vrot.slane %v8058, 4
        %v8061 = vor.u32 %v8060, %v8056
        %v8062 = vrot.slane %v8061, 4
        %v8064 = vshll.u32 %v7704, 16
        %v8066 = vrot.slane %v8064, 5
        %v8067 = vsel %vm355, %v8062, %v8066
        %v8069 = vshrl.u32 %v7705, 16
        %v8071 = vrot.slane %v8069, 4
        %v8072 = vshll.u32 %v7705, 16
        %v8074 = vrot.slane %v8072, 5
        %v8075 = vor.u32 %v8071, %v8074
        %v8076 = vrot.slane %v8075, 4
        %v8078 = vshll.u32 %v7706, 16
        %v8080 = vrot.slane %v8078, 5
        %v8081 = vsel %vm355, %v8076, %v8080
        %v8082 = vshrl.u32 %v7706, 16
        %v8084 = vrot.slane %v8082, 4
        %v8085 = vor.u32 %v8084, %v8080
        %v8086 = vrot.slane %v8085, 4
        %v8088 = vshll.u32 %v7707, 16
        %v8090 = vrot.slane %v8088, 5
        %v8091 = vsel %vm355, %v8086, %v8090
        %8124 = vst [vmem:[#allocation4 + $0x1c] sm:$0xf] %v7721
        %8125 = vst [vmem:[#allocation4 + $0x40] sm:$0xf] %v7731
        %8126 = vst [vmem:[#allocation4 + $0x64] sm:$0xf] %v7745
        %8127 = vst [vmem:[#allocation4 + $0x88] sm:$0xf] %v7755
        %8128 = vst [vmem:[#allocation4 + $0xac] sm:$0xf] %v7769
        %8129 = vst [vmem:[#allocation4 + $0xd0] sm:$0xf] %v7779
        %8130 = vst [vmem:[#allocation4 + $0xf4] sm:$0xf] %v7793
        %8131 = vst [vmem:[#allocation4 + $0x118] sm:$0xf] %v7803
        %8132 = vst [vmem:[#allocation4 + $0x13c] sm:$0xf] %v7817
        %8133 = vst [vmem:[#allocation4 + $0x160] sm:$0xf] %v7827
        %8134 = vst [vmem:[#allocation4 + $0x184] sm:$0xf] %v7841
        %8135 = vst [vmem:[#allocation4 + $0x1a8] sm:$0xf] %v7851
        %8136 = vst [vmem:[#allocation4 + $0x1cc] sm:$0xf] %v7865
        %8137 = vst [vmem:[#allocation4 + $0x1f0] sm:$0xf] %v7875
        %8138 = vst [vmem:[#allocation4 + $0x214] sm:$0xf] %v7889
        %8139 = vst [vmem:[#allocation4 + $0x238] sm:$0xf] %v7899
        %8140 = vst [vmem:[#allocation4 + $0x25c] sm:$0xf] %v7913
        %8141 = vst [vmem:[#allocation4 + $0x280] sm:$0xf] %v7923
        %8142 = vst [vmem:[#allocation4 + $0x2a4] sm:$0xf] %v7937
        %8143 = vst [vmem:[#allocation4 + $0x2c8] sm:$0xf] %v7947
        %8144 = vst [vmem:[#allocation4 + $0x2ec] sm:$0xf] %v7961
        %8145 = vst [vmem:[#allocation4 + $0x310] sm:$0xf] %v7971
        %8146 = vst [vmem:[#allocation4 + $0x334] sm:$0xf] %v7985
        %8147 = vst [vmem:[#allocation4 + $0x358] sm:$0xf] %v7995
        %8148 = vst [vmem:[#allocation4 + $0x37c] sm:$0xf] %v8009
        %8149 = vst [vmem:[#allocation4 + $0x3a0] sm:$0xf] %v8019
        %8150 = vst [vmem:[#allocation4 + $0x3c4] sm:$0xf] %v8033
        %8151 = vst [vmem:[#allocation4 + $0x3e8] sm:$0xf] %v8043
        %8152 = vst [vmem:[#allocation4 + $0x40c] sm:$0xf] %v8057
        %8153 = vst [vmem:[#allocation4 + $0x430] sm:$0xf] %v8067
        %8154 = vst [vmem:[#allocation4 + $0x454] sm:$0xf] %v8081
        %8155 = vst [vmem:[#allocation4 + $0x478] sm:$0xf] %v8091
        %v8156 = vld [vmem:[%s7595] sm:$0xe]
        %v8157 = vld [vmem:[%s7595 + $0x4] sm:$0xf]
        %v8158 = vld [vmem:[%s7595 + $0x8] sm:$0x1]
        %v8159 = vld [vmem:[%s7595 + $0xc] sm:$0xe]
        %v8160 = vld [vmem:[%s7595 + $0x10] sm:$0xf]
        %v8161 = vld [vmem:[%s7595 + $0x14] sm:$0x1]
        %v8162 = vld [vmem:[%s7595 + $0x18] sm:$0xe]
        %v8163 = vld [vmem:[%s7595 + $0x1c] sm:$0xf]
        %v8164 = vld [vmem:[%s7595 + $0x20] sm:$0x1]
        %v8165 = vld [vmem:[%s7595 + $0x24] sm:$0xe]
        %v8166 = vld [vmem:[%s7595 + $0x28] sm:$0xf]
        %v8167 = vld [vmem:[%s7595 + $0x2c] sm:$0x1]
        %v8168 = vld [vmem:[%s7595 + $0x30] sm:$0xe]
        %v8169 = vld [vmem:[%s7595 + $0x34] sm:$0xf]
        %v8170 = vld [vmem:[%s7595 + $0x38] sm:$0x1]
        %v8171 = vld [vmem:[%s7595 + $0x3c] sm:$0xe]
        %v8172 = vld [vmem:[%s7595 + $0x40] sm:$0xf]
        %v8173 = vld [vmem:[%s7595 + $0x44] sm:$0x1]
        %v8174 = vld [vmem:[%s7595 + $0x48] sm:$0xe]
        %v8175 = vld [vmem:[%s7595 + $0x4c] sm:$0xf]
        %v8176 = vld [vmem:[%s7595 + $0x50] sm:$0x1]
        %v8177 = vld [vmem:[%s7595 + $0x54] sm:$0xe]
        %v8178 = vld [vmem:[%s7595 + $0x58] sm:$0xf]
        %v8179 = vld [vmem:[%s7595 + $0x5c] sm:$0x1]
        %v8180 = vld [vmem:[%s7595 + $0x60] sm:$0xe]
        %v8181 = vld [vmem:[%s7595 + $0x64] sm:$0xf]
        %v8182 = vld [vmem:[%s7595 + $0x68] sm:$0x1]
        %v8183 = vld [vmem:[%s7595 + $0x6c] sm:$0xe]
        %v8184 = vld [vmem:[%s7595 + $0x70] sm:$0xf]
        %v8185 = vld [vmem:[%s7595 + $0x74] sm:$0x1]
        %v8186 = vld [vmem:[%s7595 + $0x78] sm:$0xe]
        %v8187 = vld [vmem:[%s7595 + $0x7c] sm:$0xf]
        %v8188 = vld [vmem:[%s7595 + $0x80] sm:$0x1]
        %v8189 = vld [vmem:[%s7595 + $0x84] sm:$0xe]
        %v8190 = vld [vmem:[%s7595 + $0x88] sm:$0xf]
        %v8191 = vld [vmem:[%s7595 + $0x8c] sm:$0x1]
        %v8192 = vld [vmem:[%s7595 + $0x90] sm:$0xe]
        %v8193 = vld [vmem:[%s7595 + $0x94] sm:$0xf]
        %v8194 = vld [vmem:[%s7595 + $0x98] sm:$0x1]
        %v8195 = vld [vmem:[%s7595 + $0x9c] sm:$0xe]
        %v8196 = vld [vmem:[%s7595 + $0xa0] sm:$0xf]
        %v8197 = vld [vmem:[%s7595 + $0xa4] sm:$0x1]
        %v8198 = vld [vmem:[%s7595 + $0xa8] sm:$0xe]
        %v8199 = vld [vmem:[%s7595 + $0xac] sm:$0xf]
        %v8200 = vld [vmem:[%s7595 + $0xb0] sm:$0x1]
        %v8201 = vld [vmem:[%s7595 + $0xb4] sm:$0xe]
        %v8202 = vld [vmem:[%s7595 + $0xb8] sm:$0xf]
        %v8203 = vld [vmem:[%s7595 + $0xbc] sm:$0x1]
        %v8252 = vrot.slane %v8156, 5
        %v8253 = vrot.slane %v8252, 4
        %v8254 = vrot.slane %v8157, 5
        %v8255 = vsel %vm902, %v8253, %v8254
        %v8256 = vrot.slane %v8254, 4
        %v8257 = vrot.slane %v8158, 5
        %v8258 = vsel %vm902, %v8256, %v8257
        %v8259 = vrot.slane %v8159, 5
        %v8260 = vrot.slane %v8259, 4
        %v8261 = vrot.slane %v8160, 5
        %v8262 = vsel %vm902, %v8260, %v8261
        %v8263 = vrot.slane %v8261, 4
        %v8264 = vrot.slane %v8161, 5
        %v8265 = vsel %vm902, %v8263, %v8264
        %v8266 = vrot.slane %v8162, 5
        %v8267 = vrot.slane %v8266, 4
        %v8268 = vrot.slane %v8163, 5
        %v8269 = vsel %vm902, %v8267, %v8268
        %v8270 = vrot.slane %v8268, 4
        %v8271 = vrot.slane %v8164, 5
        %v8272 = vsel %vm902, %v8270, %v8271
        %v8273 = vrot.slane %v8165, 5
        %v8274 = vrot.slane %v8273, 4
        %v8275 = vrot.slane %v8166, 5
        %v8276 = vsel %vm902, %v8274, %v8275
        %v8277 = vrot.slane %v8275, 4
        %v8278 = vrot.slane %v8167, 5
        %v8279 = vsel %vm902, %v8277, %v8278
        %v8280 = vrot.slane %v8168, 5
        %v8281 = vrot.slane %v8280, 4
        %v8282 = vrot.slane %v8169, 5
        %v8283 = vsel %vm902, %v8281, %v8282
        %v8284 = vrot.slane %v8282, 4
        %v8285 = vrot.slane %v8170, 5
        %v8286 = vsel %vm902, %v8284, %v8285
        %v8287 = vrot.slane %v8171, 5
        %v8288 = vrot.slane %v8287, 4
        %v8289 = vrot.slane %v8172, 5
        %v8290 = vsel %vm902, %v8288, %v8289
        %v8291 = vrot.slane %v8289, 4
        %v8292 = vrot.slane %v8173, 5
        %v8293 = vsel %vm902, %v8291, %v8292
        %v8294 = vrot.slane %v8174, 5
        %v8295 = vrot.slane %v8294, 4
        %v8296 = vrot.slane %v8175, 5
        %v8297 = vsel %vm902, %v8295, %v8296
        %v8298 = vrot.slane %v8296, 4
        %v8299 = vrot.slane %v8176, 5
        %v8300 = vsel %vm902, %v8298, %v8299
        %v8301 = vrot.slane %v8177, 5
        %v8302 = vrot.slane %v8301, 4
        %v8303 = vrot.slane %v8178, 5
        %v8304 = vsel %vm902, %v8302, %v8303
        %v8305 = vrot.slane %v8303, 4
        %v8306 = vrot.slane %v8179, 5
        %v8307 = vsel %vm902, %v8305, %v8306
        %v8308 = vrot.slane %v8180, 5
        %v8309 = vrot.slane %v8308, 4
        %v8310 = vrot.slane %v8181, 5
        %v8311 = vsel %vm902, %v8309, %v8310
        %v8312 = vrot.slane %v8310, 4
        %v8313 = vrot.slane %v8182, 5
        %v8314 = vsel %vm902, %v8312, %v8313
        %v8315 = vrot.slane %v8183, 5
        %v8316 = vrot.slane %v8315, 4
        %v8317 = vrot.slane %v8184, 5
        %v8318 = vsel %vm902, %v8316, %v8317
        %v8319 = vrot.slane %v8317, 4
        %v8320 = vrot.slane %v8185, 5
        %v8321 = vsel %vm902, %v8319, %v8320
        %v8322 = vrot.slane %v8186, 5
        %v8323 = vrot.slane %v8322, 4
        %v8324 = vrot.slane %v8187, 5
        %v8325 = vsel %vm902, %v8323, %v8324
        %v8326 = vrot.slane %v8324, 4
        %v8327 = vrot.slane %v8188, 5
        %v8328 = vsel %vm902, %v8326, %v8327
        %v8329 = vrot.slane %v8189, 5
        %v8330 = vrot.slane %v8329, 4
        %v8331 = vrot.slane %v8190, 5
        %v8332 = vsel %vm902, %v8330, %v8331
        %v8333 = vrot.slane %v8331, 4
        %v8334 = vrot.slane %v8191, 5
        %v8335 = vsel %vm902, %v8333, %v8334
        %v8336 = vrot.slane %v8192, 5
        %v8337 = vrot.slane %v8336, 4
        %v8338 = vrot.slane %v8193, 5
        %v8339 = vsel %vm902, %v8337, %v8338
        %v8340 = vrot.slane %v8338, 4
        %v8341 = vrot.slane %v8194, 5
        %v8342 = vsel %vm902, %v8340, %v8341
        %v8343 = vrot.slane %v8195, 5
        %v8344 = vrot.slane %v8343, 4
        %v8345 = vrot.slane %v8196, 5
        %v8346 = vsel %vm902, %v8344, %v8345
        %v8347 = vrot.slane %v8345, 4
        %v8348 = vrot.slane %v8197, 5
        %v8349 = vsel %vm902, %v8347, %v8348
        %v8350 = vrot.slane %v8198, 5
        %v8351 = vrot.slane %v8350, 4
        %v8352 = vrot.slane %v8199, 5
        %v8353 = vsel %vm902, %v8351, %v8352
        %v8354 = vrot.slane %v8352, 4
        %v8355 = vrot.slane %v8200, 5
        %v8356 = vsel %vm902, %v8354, %v8355
        %v8357 = vrot.slane %v8201, 5
        %v8358 = vrot.slane %v8357, 4
        %v8359 = vrot.slane %v8202, 5
        %v8360 = vsel %vm902, %v8358, %v8359
        %v8361 = vrot.slane %v8359, 4
        %v8362 = vrot.slane %v8203, 5
        %v8363 = vsel %vm902, %v8361, %v8362
        %8396 = vst [vmem:[#allocation4 + $0x20] sm:$0xf] %v8255
        %8397 = vst [vmem:[#allocation4 + $0x44] sm:$0xf] %v8258
        %8398 = vst [vmem:[#allocation4 + $0x68] sm:$0xf] %v8262
        %8399 = vst [vmem:[#allocation4 + $0x8c] sm:$0xf] %v8265
        %8400 = vst [vmem:[#allocation4 + $0xb0] sm:$0xf] %v8269
        %8401 = vst [vmem:[#allocation4 + $0xd4] sm:$0xf] %v8272
        %8402 = vst [vmem:[#allocation4 + $0xf8] sm:$0xf] %v8276
        %8403 = vst [vmem:[#allocation4 + $0x11c] sm:$0xf] %v8279
        %8404 = vst [vmem:[#allocation4 + $0x140] sm:$0xf] %v8283
        %8405 = vst [vmem:[#allocation4 + $0x164] sm:$0xf] %v8286
        %8406 = vst [vmem:[#allocation4 + $0x188] sm:$0xf] %v8290
        %8407 = vst [vmem:[#allocation4 + $0x1ac] sm:$0xf] %v8293
        %8408 = vst [vmem:[#allocation4 + $0x1d0] sm:$0xf] %v8297
        %8409 = vst [vmem:[#allocation4 + $0x1f4] sm:$0xf] %v8300
        %8410 = vst [vmem:[#allocation4 + $0x218] sm:$0xf] %v8304
        %8411 = vst [vmem:[#allocation4 + $0x23c] sm:$0xf] %v8307
        %8412 = vst [vmem:[#allocation4 + $0x260] sm:$0xf] %v8311
        %8413 = vst [vmem:[#allocation4 + $0x284] sm:$0xf] %v8314
        %8414 = vst [vmem:[#allocation4 + $0x2a8] sm:$0xf] %v8318
        %8415 = vst [vmem:[#allocation4 + $0x2cc] sm:$0xf] %v8321
        %8416 = vst [vmem:[#allocation4 + $0x2f0] sm:$0xf] %v8325
        %8417 = vst [vmem:[#allocation4 + $0x314] sm:$0xf] %v8328
        %8418 = vst [vmem:[#allocation4 + $0x338] sm:$0xf] %v8332
        %8419 = vst [vmem:[#allocation4 + $0x35c] sm:$0xf] %v8335
        %8420 = vst [vmem:[#allocation4 + $0x380] sm:$0xf] %v8339
        %8421 = vst [vmem:[#allocation4 + $0x3a4] sm:$0xf] %v8342
        %8422 = vst [vmem:[#allocation4 + $0x3c8] sm:$0xf] %v8346
        %8423 = vst [vmem:[#allocation4 + $0x3ec] sm:$0xf] %v8349
        %8424 = vst [vmem:[#allocation4 + $0x410] sm:$0xf] %v8353
        %8425 = vst [vmem:[#allocation4 + $0x434] sm:$0xf] %v8356
        %8426 = vst [vmem:[#allocation4 + $0x458] sm:$0xf] %v8360
        %8427 = vst [vmem:[#allocation4 + $0x47c] sm:$0xf] %v8363
        %v8428 = vld [vmem:[#allocation4] sm:$0xff]
        %v8429 = vld [vmem:[#allocation4 + $0x8] sm:$0xff]
        %v8430 = vld [vmem:[#allocation4 + $0x10] sm:$0xff]
        %v8431 = vld [vmem:[#allocation4 + $0x18] sm:$0xff]
        %v8432 = vld [vmem:[#allocation4 + $0x20] sm:$0xf]
        %v8433 = vld [vmem:[#allocation4 + $0x24] sm:$0xff]
        %v8434 = vld [vmem:[#allocation4 + $0x2c] sm:$0xff]
        %v8435 = vld [vmem:[#allocation4 + $0x34] sm:$0xff]
        %v8436 = vld [vmem:[#allocation4 + $0x3c] sm:$0xff]
        %v8437 = vld [vmem:[#allocation4 + $0x44] sm:$0xf]
        %v8438 = vld [vmem:[#allocation4 + $0x48] sm:$0xff]
        %v8439 = vld [vmem:[#allocation4 + $0x50] sm:$0xff]
        %v8440 = vld [vmem:[#allocation4 + $0x58] sm:$0xff]
        %v8441 = vld [vmem:[#allocation4 + $0x60] sm:$0xff]
        %v8442 = vld [vmem:[#allocation4 + $0x68] sm:$0xf]
        %v8443 = vld [vmem:[#allocation4 + $0x6c] sm:$0xff]
        %v8444 = vld [vmem:[#allocation4 + $0x74] sm:$0xff]
        %v8445 = vld [vmem:[#allocation4 + $0x7c] sm:$0xff]
        %v8446 = vld [vmem:[#allocation4 + $0x84] sm:$0xff]
        %v8447 = vld [vmem:[#allocation4 + $0x8c] sm:$0xf]
        %v8448 = vld [vmem:[#allocation4 + $0x90] sm:$0xff]
        %v8449 = vld [vmem:[#allocation4 + $0x98] sm:$0xff]
        %v8450 = vld [vmem:[#allocation4 + $0xa0] sm:$0xff]
        %v8451 = vld [vmem:[#allocation4 + $0xa8] sm:$0xff]
        %v8452 = vld [vmem:[#allocation4 + $0xb0] sm:$0xf]
        %v8453 = vld [vmem:[#allocation4 + $0xb4] sm:$0xff]
        %v8454 = vld [vmem:[#allocation4 + $0xbc] sm:$0xff]
        %v8455 = vld [vmem:[#allocation4 + $0xc4] sm:$0xff]
        %v8456 = vld [vmem:[#allocation4 + $0xcc] sm:$0xff]
        %v8457 = vld [vmem:[#allocation4 + $0xd4] sm:$0xf]
        %v8458 = vld [vmem:[#allocation4 + $0xd8] sm:$0xff]
        %v8459 = vld [vmem:[#allocation4 + $0xe0] sm:$0xff]
        %v8460 = vld [vmem:[#allocation4 + $0xe8] sm:$0xff]
        %v8461 = vld [vmem:[#allocation4 + $0xf0] sm:$0xff]
        %v8462 = vld [vmem:[#allocation4 + $0xf8] sm:$0xf]
        %v8463 = vld [vmem:[#allocation4 + $0xfc] sm:$0xff]
        %v8464 = vld [vmem:[#allocation4 + $0x104] sm:$0xff]
        %v8465 = vld [vmem:[#allocation4 + $0x10c] sm:$0xff]
        %v8466 = vld [vmem:[#allocation4 + $0x114] sm:$0xff]
        %v8467 = vld [vmem:[#allocation4 + $0x11c] sm:$0xf]
        %v8468 = vld [vmem:[#allocation4 + $0x120] sm:$0xff]
        %v8469 = vld [vmem:[#allocation4 + $0x128] sm:$0xff]
        %v8470 = vld [vmem:[#allocation4 + $0x130] sm:$0xff]
        %v8471 = vld [vmem:[#allocation4 + $0x138] sm:$0xff]
        %v8472 = vld [vmem:[#allocation4 + $0x140] sm:$0xf]
        %v8473 = vld [vmem:[#allocation4 + $0x144] sm:$0xff]
        %v8474 = vld [vmem:[#allocation4 + $0x14c] sm:$0xff]
        %v8475 = vld [vmem:[#allocation4 + $0x154] sm:$0xff]
        %v8476 = vld [vmem:[#allocation4 + $0x15c] sm:$0xff]
        %v8477 = vld [vmem:[#allocation4 + $0x164] sm:$0xf]
        %v8478 = vld [vmem:[#allocation4 + $0x168] sm:$0xff]
        %v8479 = vld [vmem:[#allocation4 + $0x170] sm:$0xff]
        %v8480 = vld [vmem:[#allocation4 + $0x178] sm:$0xff]
        %v8481 = vld [vmem:[#allocation4 + $0x180] sm:$0xff]
        %v8482 = vld [vmem:[#allocation4 + $0x188] sm:$0xf]
        %v8483 = vld [vmem:[#allocation4 + $0x18c] sm:$0xff]
        %v8484 = vld [vmem:[#allocation4 + $0x194] sm:$0xff]
        %v8485 = vld [vmem:[#allocation4 + $0x19c] sm:$0xff]
        %v8486 = vld [vmem:[#allocation4 + $0x1a4] sm:$0xff]
        %v8487 = vld [vmem:[#allocation4 + $0x1ac] sm:$0xf]
        %v8488 = vld [vmem:[#allocation4 + $0x1b0] sm:$0xff]
        %v8489 = vld [vmem:[#allocation4 + $0x1b8] sm:$0xff]
        %v8490 = vld [vmem:[#allocation4 + $0x1c0] sm:$0xff]
        %v8491 = vld [vmem:[#allocation4 + $0x1c8] sm:$0xff]
        %v8492 = vld [vmem:[#allocation4 + $0x1d0] sm:$0xf]
        %v8493 = vld [vmem:[#allocation4 + $0x1d4] sm:$0xff]
        %v8494 = vld [vmem:[#allocation4 + $0x1dc] sm:$0xff]
        %v8495 = vld [vmem:[#allocation4 + $0x1e4] sm:$0xff]
        %v8496 = vld [vmem:[#allocation4 + $0x1ec] sm:$0xff]
        %v8497 = vld [vmem:[#allocation4 + $0x1f4] sm:$0xf]
        %v8498 = vld [vmem:[#allocation4 + $0x1f8] sm:$0xff]
        %v8499 = vld [vmem:[#allocation4 + $0x200] sm:$0xff]
        %v8500 = vld [vmem:[#allocation4 + $0x208] sm:$0xff]
        %v8501 = vld [vmem:[#allocation4 + $0x210] sm:$0xff]
        %v8502 = vld [vmem:[#allocation4 + $0x218] sm:$0xf]
        %v8503 = vld [vmem:[#allocation4 + $0x21c] sm:$0xff]
        %v8504 = vld [vmem:[#allocation4 + $0x224] sm:$0xff]
        %v8505 = vld [vmem:[#allocation4 + $0x22c] sm:$0xff]
        %v8506 = vld [vmem:[#allocation4 + $0x234] sm:$0xff]
        %v8507 = vld [vmem:[#allocation4 + $0x23c] sm:$0xf]
        %v8508 = vld [vmem:[#allocation4 + $0x240] sm:$0xff]
        %v8509 = vld [vmem:[#allocation4 + $0x248] sm:$0xff]
        %v8510 = vld [vmem:[#allocation4 + $0x250] sm:$0xff]
        %v8511 = vld [vmem:[#allocation4 + $0x258] sm:$0xff]
        %v8512 = vld [vmem:[#allocation4 + $0x260] sm:$0xf]
        %v8513 = vld [vmem:[#allocation4 + $0x264] sm:$0xff]
        %v8514 = vld [vmem:[#allocation4 + $0x26c] sm:$0xff]
        %v8515 = vld [vmem:[#allocation4 + $0x274] sm:$0xff]
        %v8516 = vld [vmem:[#allocation4 + $0x27c] sm:$0xff]
        %v8517 = vld [vmem:[#allocation4 + $0x284] sm:$0xf]
        %v8518 = vld [vmem:[#allocation4 + $0x288] sm:$0xff]
        %v8519 = vld [vmem:[#allocation4 + $0x290] sm:$0xff]
        %v8520 = vld [vmem:[#allocation4 + $0x298] sm:$0xff]
        %v8521 = vld [vmem:[#allocation4 + $0x2a0] sm:$0xff]
        %v8522 = vld [vmem:[#allocation4 + $0x2a8] sm:$0xf]
        %v8523 = vld [vmem:[#allocation4 + $0x2ac] sm:$0xff]
        %v8524 = vld [vmem:[#allocation4 + $0x2b4] sm:$0xff]
        %v8525 = vld [vmem:[#allocation4 + $0x2bc] sm:$0xff]
        %v8526 = vld [vmem:[#allocation4 + $0x2c4] sm:$0xff]
        %v8527 = vld [vmem:[#allocation4 + $0x2cc] sm:$0xf]
        %v8528 = vld [vmem:[#allocation4 + $0x2d0] sm:$0xff]
        %v8529 = vld [vmem:[#allocation4 + $0x2d8] sm:$0xff]
        %v8530 = vld [vmem:[#allocation4 + $0x2e0] sm:$0xff]
        %v8531 = vld [vmem:[#allocation4 + $0x2e8] sm:$0xff]
        %v8532 = vld [vmem:[#allocation4 + $0x2f0] sm:$0xf]
        %v8533 = vld [vmem:[#allocation4 + $0x2f4] sm:$0xff]
        %v8534 = vld [vmem:[#allocation4 + $0x2fc] sm:$0xff]
        %v8535 = vld [vmem:[#allocation4 + $0x304] sm:$0xff]
        %v8536 = vld [vmem:[#allocation4 + $0x30c] sm:$0xff]
        %v8537 = vld [vmem:[#allocation4 + $0x314] sm:$0xf]
        %v8538 = vld [vmem:[#allocation4 + $0x318] sm:$0xff]
        %v8539 = vld [vmem:[#allocation4 + $0x320] sm:$0xff]
        %v8540 = vld [vmem:[#allocation4 + $0x328] sm:$0xff]
        %v8541 = vld [vmem:[#allocation4 + $0x330] sm:$0xff]
        %v8542 = vld [vmem:[#allocation4 + $0x338] sm:$0xf]
        %v8543 = vld [vmem:[#allocation4 + $0x33c] sm:$0xff]
        %v8544 = vld [vmem:[#allocation4 + $0x344] sm:$0xff]
        %v8545 = vld [vmem:[#allocation4 + $0x34c] sm:$0xff]
        %v8546 = vld [vmem:[#allocation4 + $0x354] sm:$0xff]
        %v8547 = vld [vmem:[#allocation4 + $0x35c] sm:$0xf]
        %v8548 = vld [vmem:[#allocation4 + $0x360] sm:$0xff]
        %v8549 = vld [vmem:[#allocation4 + $0x368] sm:$0xff]
        %v8550 = vld [vmem:[#allocation4 + $0x370] sm:$0xff]
        %v8551 = vld [vmem:[#allocation4 + $0x378] sm:$0xff]
        %v8552 = vld [vmem:[#allocation4 + $0x380] sm:$0xf]
        %v8553 = vld [vmem:[#allocation4 + $0x384] sm:$0xff]
        %v8554 = vld [vmem:[#allocation4 + $0x38c] sm:$0xff]
        %v8555 = vld [vmem:[#allocation4 + $0x394] sm:$0xff]
        %v8556 = vld [vmem:[#allocation4 + $0x39c] sm:$0xff]
        %v8557 = vld [vmem:[#allocation4 + $0x3a4] sm:$0xf]
        %v8558 = vld [vmem:[#allocation4 + $0x3a8] sm:$0xff]
        %v8559 = vld [vmem:[#allocation4 + $0x3b0] sm:$0xff]
        %v8560 = vld [vmem:[#allocation4 + $0x3b8] sm:$0xff]
        %v8561 = vld [vmem:[#allocation4 + $0x3c0] sm:$0xff]
        %v8562 = vld [vmem:[#allocation4 + $0x3c8] sm:$0xf]
        %v8563 = vld [vmem:[#allocation4 + $0x3cc] sm:$0xff]
        %v8564 = vld [vmem:[#allocation4 + $0x3d4] sm:$0xff]
        %v8565 = vld [vmem:[#allocation4 + $0x3dc] sm:$0xff]
        %v8566 = vld [vmem:[#allocation4 + $0x3e4] sm:$0xff]
        %v8567 = vld [vmem:[#allocation4 + $0x3ec] sm:$0xf]
        %v8568 = vld [vmem:[#allocation4 + $0x3f0] sm:$0xff]
        %v8569 = vld [vmem:[#allocation4 + $0x3f8] sm:$0xff]
        %v8570 = vld [vmem:[#allocation4 + $0x400] sm:$0xff]
        %v8571 = vld [vmem:[#allocation4 + $0x408] sm:$0xff]
        %v8572 = vld [vmem:[#allocation4 + $0x410] sm:$0xf]
        %v8573 = vld [vmem:[#allocation4 + $0x414] sm:$0xff]
        %v8574 = vld [vmem:[#allocation4 + $0x41c] sm:$0xff]
        %v8575 = vld [vmem:[#allocation4 + $0x424] sm:$0xff]
        %v8576 = vld [vmem:[#allocation4 + $0x42c] sm:$0xff]
        %v8577 = vld [vmem:[#allocation4 + $0x434] sm:$0xf]
        %v8578 = vld [vmem:[#allocation4 + $0x438] sm:$0xff]
        %v8579 = vld [vmem:[#allocation4 + $0x440] sm:$0xff]
        %v8580 = vld [vmem:[#allocation4 + $0x448] sm:$0xff]
        %v8581 = vld [vmem:[#allocation4 + $0x450] sm:$0xff]
        %v8582 = vld [vmem:[#allocation4 + $0x458] sm:$0xf]
        %v8583 = vld [vmem:[#allocation4 + $0x45c] sm:$0xff]
        %v8584 = vld [vmem:[#allocation4 + $0x464] sm:$0xff]
        %v8585 = vld [vmem:[#allocation4 + $0x46c] sm:$0xff]
        %v8586 = vld [vmem:[#allocation4 + $0x474] sm:$0xff]
        %v8587 = vld [vmem:[#allocation4 + $0x47c] sm:$0xf]
        %v8588 = vld [vmem:[#allocation5] sm:$0xf]
        %v8589 = vld [vmem:[#allocation5 + $0x4] sm:$0xf]
        %v8590 = vld [vmem:[#allocation5 + $0x8] sm:$0xf]
        %v8591 = vld [vmem:[#allocation5 + $0xc] sm:$0xf]
        %v8592 = vld [vmem:[#allocation5 + $0x10] sm:$0xf]
        %v8593 = vld [vmem:[#allocation5 + $0x14] sm:$0xf]
        %v8594 = vld [vmem:[#allocation5 + $0x18] sm:$0xf]
        %v8595 = vld [vmem:[#allocation5 + $0x1c] sm:$0xf]
        %v8596 = vld [vmem:[#allocation5 + $0x20] sm:$0xf]
        %v8597 = vld [vmem:[#allocation5 + $0x24] sm:$0xf]
        %v8598 = vld [vmem:[#allocation5 + $0x28] sm:$0xf]
        %v8599 = vld [vmem:[#allocation5 + $0x2c] sm:$0xf]
        %v8600 = vld [vmem:[#allocation5 + $0x30] sm:$0xf]
        %v8601 = vld [vmem:[#allocation5 + $0x34] sm:$0xf]
        %v8602 = vld [vmem:[#allocation5 + $0x38] sm:$0xf]
        %v8603 = vld [vmem:[#allocation5 + $0x3c] sm:$0xf]
        %v8604 = vld [vmem:[#allocation5 + $0x40] sm:$0xf]
        %v8605 = vld [vmem:[#allocation5 + $0x44] sm:$0xf]
        %v8606 = vld [vmem:[#allocation5 + $0x48] sm:$0xf]
        %v8607 = vld [vmem:[#allocation5 + $0x4c] sm:$0xf]
        %v8608 = vld [vmem:[#allocation5 + $0x50] sm:$0xf]
        %v8609 = vld [vmem:[#allocation5 + $0x54] sm:$0xf]
        %v8610 = vld [vmem:[#allocation5 + $0x58] sm:$0xf]
        %v8611 = vld [vmem:[#allocation5 + $0x5c] sm:$0xf]
        %v8612 = vld [vmem:[#allocation5 + $0x60] sm:$0xf]
        %v8613 = vld [vmem:[#allocation5 + $0x64] sm:$0xf]
        %v8614 = vld [vmem:[#allocation5 + $0x68] sm:$0xf]
        %v8615 = vld [vmem:[#allocation5 + $0x6c] sm:$0xf]
        %v8616 = vld [vmem:[#allocation5 + $0x70] sm:$0xf]
        %v8617 = vld [vmem:[#allocation5 + $0x74] sm:$0xf]
        %v8618 = vld [vmem:[#allocation5 + $0x78] sm:$0xf]
        %v8619 = vld [vmem:[#allocation5 + $0x7c] sm:$0xf]
        %v8620 = vld [vmem:[#allocation5 + $0x80] sm:$0xf]
        %v8621 = vld [vmem:[#allocation5 + $0x84] sm:$0xf]
        %v8622 = vld [vmem:[#allocation5 + $0x88] sm:$0xf]
        %v8623 = vld [vmem:[#allocation5 + $0x8c] sm:$0xf]
        %v8624 = vld [vmem:[#allocation5 + $0x90] sm:$0xf]
        %v8625 = vld [vmem:[#allocation5 + $0x94] sm:$0xf]
        %v8626 = vld [vmem:[#allocation5 + $0x98] sm:$0xf]
        %v8627 = vld [vmem:[#allocation5 + $0x9c] sm:$0xf]
        %v8628 = vld [vmem:[#allocation5 + $0xa0] sm:$0xf]
        %v8629 = vld [vmem:[#allocation5 + $0xa4] sm:$0xf]
        %v8630 = vld [vmem:[#allocation5 + $0xa8] sm:$0xf]
        %v8631 = vld [vmem:[#allocation5 + $0xac] sm:$0xf]
        %v8632 = vld [vmem:[#allocation5 + $0xb0] sm:$0xf]
        %v8633 = vld [vmem:[#allocation5 + $0xb4] sm:$0xf]
        %v8634 = vld [vmem:[#allocation5 + $0xb8] sm:$0xf]
        %v8635 = vld [vmem:[#allocation5 + $0xbc] sm:$0xf]
        %v8636 = vld [vmem:[#allocation5 + $0xc0] sm:$0xf]
        %v8637 = vld [vmem:[#allocation5 + $0xc4] sm:$0xf]
        %v8638 = vld [vmem:[#allocation5 + $0xc8] sm:$0xf]
        %v8639 = vld [vmem:[#allocation5 + $0xcc] sm:$0xf]
        %v8640 = vld [vmem:[#allocation5 + $0xd0] sm:$0xf]
        %v8641 = vld [vmem:[#allocation5 + $0xd4] sm:$0xf]
        %v8642 = vld [vmem:[#allocation5 + $0xd8] sm:$0xf]
        %v8643 = vld [vmem:[#allocation5 + $0xdc] sm:$0xf]
        %v8644 = vld [vmem:[#allocation5 + $0xe0] sm:$0xf]
        %v8645 = vld [vmem:[#allocation5 + $0xe4] sm:$0xf]
        %v8646 = vld [vmem:[#allocation5 + $0xe8] sm:$0xf]
        %v8647 = vld [vmem:[#allocation5 + $0xec] sm:$0xf]
        %v8648 = vld [vmem:[#allocation5 + $0xf0] sm:$0xf]
        %v8649 = vld [vmem:[#allocation5 + $0xf4] sm:$0xf]
        %v8650 = vld [vmem:[#allocation5 + $0xf8] sm:$0xf]
        %v8651 = vld [vmem:[#allocation5 + $0xfc] sm:$0xf]
        %v8652 = vld [vmem:[#allocation5 + $0x100] sm:$0xf]
        %v8653 = vld [vmem:[#allocation5 + $0x104] sm:$0xf]
        %v8654 = vld [vmem:[#allocation5 + $0x108] sm:$0xf]
        %v8655 = vld [vmem:[#allocation5 + $0x10c] sm:$0xf]
        %v8656 = vld [vmem:[#allocation5 + $0x110] sm:$0xf]
        %v8657 = vld [vmem:[#allocation5 + $0x114] sm:$0xf]
        %v8658 = vld [vmem:[#allocation5 + $0x118] sm:$0xf]
        %v8659 = vld [vmem:[#allocation5 + $0x11c] sm:$0xf]
        %v8660 = vld [vmem:[#allocation5 + $0x120] sm:$0xf]
        %v8661 = vld [vmem:[#allocation5 + $0x124] sm:$0xf]
        %v8662 = vld [vmem:[#allocation5 + $0x128] sm:$0xf]
        %v8663 = vld [vmem:[#allocation5 + $0x12c] sm:$0xf]
        %v8664 = vld [vmem:[#allocation5 + $0x130] sm:$0xf]
        %v8665 = vld [vmem:[#allocation5 + $0x134] sm:$0xf]
        %v8666 = vld [vmem:[#allocation5 + $0x138] sm:$0xf]
        %v8667 = vld [vmem:[#allocation5 + $0x13c] sm:$0xf]
        %v8668 = vld [vmem:[#allocation5 + $0x140] sm:$0xf]
        %v8669 = vld [vmem:[#allocation5 + $0x144] sm:$0xf]
        %v8670 = vld [vmem:[#allocation5 + $0x148] sm:$0xf]
        %v8671 = vld [vmem:[#allocation5 + $0x14c] sm:$0xf]
        %v8672 = vld [vmem:[#allocation5 + $0x150] sm:$0xf]
        %v8673 = vld [vmem:[#allocation5 + $0x154] sm:$0xf]
        %v8674 = vld [vmem:[#allocation5 + $0x158] sm:$0xf]
        %v8675 = vld [vmem:[#allocation5 + $0x15c] sm:$0xf]
        %v8676 = vld [vmem:[#allocation5 + $0x160] sm:$0xf]
        %v8677 = vld [vmem:[#allocation5 + $0x164] sm:$0xf]
        %v8678 = vld [vmem:[#allocation5 + $0x168] sm:$0xf]
        %v8679 = vld [vmem:[#allocation5 + $0x16c] sm:$0xf]
        %v8680 = vld [vmem:[#allocation5 + $0x170] sm:$0xf]
        %v8681 = vld [vmem:[#allocation5 + $0x174] sm:$0xf]
        %v8682 = vld [vmem:[#allocation5 + $0x178] sm:$0xf]
        %v8683 = vld [vmem:[#allocation5 + $0x17c] sm:$0xf]
        %v8684 = vld [vmem:[#allocation5 + $0x180] sm:$0xf]
        %v8685 = vld [vmem:[#allocation5 + $0x184] sm:$0xf]
        %v8686 = vld [vmem:[#allocation5 + $0x188] sm:$0xf]
        %v8687 = vld [vmem:[#allocation5 + $0x18c] sm:$0xf]
        %v8688 = vld [vmem:[#allocation5 + $0x190] sm:$0xf]
        %v8689 = vld [vmem:[#allocation5 + $0x194] sm:$0xf]
        %v8690 = vld [vmem:[#allocation5 + $0x198] sm:$0xf]
        %v8691 = vld [vmem:[#allocation5 + $0x19c] sm:$0xf]
        %v8692 = vld [vmem:[#allocation5 + $0x1a0] sm:$0xf]
        %v8693 = vld [vmem:[#allocation5 + $0x1a4] sm:$0xf]
        %v8694 = vld [vmem:[#allocation5 + $0x1a8] sm:$0xf]
        %v8695 = vld [vmem:[#allocation5 + $0x1ac] sm:$0xf]
        %v8696 = vld [vmem:[#allocation5 + $0x1b0] sm:$0xf]
        %v8697 = vld [vmem:[#allocation5 + $0x1b4] sm:$0xf]
        %v8698 = vld [vmem:[#allocation5 + $0x1b8] sm:$0xf]
        %v8699 = vld [vmem:[#allocation5 + $0x1bc] sm:$0xf]
        %v8700 = vld [vmem:[#allocation5 + $0x1c0] sm:$0xf]
        %v8701 = vld [vmem:[#allocation5 + $0x1c4] sm:$0xf]
        %v8702 = vld [vmem:[#allocation5 + $0x1c8] sm:$0xf]
        %v8703 = vld [vmem:[#allocation5 + $0x1cc] sm:$0xf]
        %v8704 = vld [vmem:[#allocation5 + $0x1d0] sm:$0xf]
        %v8705 = vld [vmem:[#allocation5 + $0x1d4] sm:$0xf]
        %v8706 = vld [vmem:[#allocation5 + $0x1d8] sm:$0xf]
        %v8707 = vld [vmem:[#allocation5 + $0x1dc] sm:$0xf]
        %v8708 = vld [vmem:[#allocation5 + $0x1e0] sm:$0xf]
        %v8709 = vld [vmem:[#allocation5 + $0x1e4] sm:$0xf]
        %v8710 = vld [vmem:[#allocation5 + $0x1e8] sm:$0xf]
        %v8711 = vld [vmem:[#allocation5 + $0x1ec] sm:$0xf]
        %v8712 = vld [vmem:[#allocation5 + $0x1f0] sm:$0xf]
        %v8713 = vld [vmem:[#allocation5 + $0x1f4] sm:$0xf]
        %v8714 = vld [vmem:[#allocation5 + $0x1f8] sm:$0xf]
        %v8715 = vld [vmem:[#allocation5 + $0x1fc] sm:$0xf]
        %v8716 = vld [vmem:[#allocation5 + $0x200] sm:$0xf]
        %v8717 = vld [vmem:[#allocation5 + $0x204] sm:$0xf]
        %v8718 = vld [vmem:[#allocation5 + $0x208] sm:$0xf]
        %v8719 = vld [vmem:[#allocation5 + $0x20c] sm:$0xf]
        %v8720 = vld [vmem:[#allocation5 + $0x210] sm:$0xf]
        %v8721 = vld [vmem:[#allocation5 + $0x214] sm:$0xf]
        %v8722 = vld [vmem:[#allocation5 + $0x218] sm:$0xf]
        %v8723 = vld [vmem:[#allocation5 + $0x21c] sm:$0xf]
        %v8724 = vld [vmem:[#allocation5 + $0x220] sm:$0xf]
        %v8725 = vld [vmem:[#allocation5 + $0x224] sm:$0xf]
        %v8726 = vld [vmem:[#allocation5 + $0x228] sm:$0xf]
        %v8727 = vld [vmem:[#allocation5 + $0x22c] sm:$0xf]
        %v8728 = vld [vmem:[#allocation5 + $0x230] sm:$0xf]
        %v8729 = vld [vmem:[#allocation5 + $0x234] sm:$0xf]
        %v8730 = vld [vmem:[#allocation5 + $0x238] sm:$0xf]
        %v8731 = vld [vmem:[#allocation5 + $0x23c] sm:$0xf]
        %v8732 = vld [vmem:[%s4] sm:$0x1]
        %v8734 = vperm.slane %v8732, 0
        %v8896 = vunpack.c.l.b16 %v8428
        %v8897 = vunpack.c.h.b16 %v8428
        %v8898 = vunpack.c.l.b16 %v8429
        %v8899 = vunpack.c.h.b16 %v8429
        %v8900 = vunpack.c.l.b16 %v8430
        %v8901 = vunpack.c.h.b16 %v8430
        %v8902 = vunpack.c.l.b16 %v8431
        %v8903 = vunpack.c.h.b16 %v8431
        %v8904 = vunpack.c.l.b16 %v8432
        %v8905 = vunpack.c.l.b16 %v8433
        %v8906 = vunpack.c.h.b16 %v8433
        %v8907 = vunpack.c.l.b16 %v8434
        %v8908 = vunpack.c.h.b16 %v8434
        %v8909 = vunpack.c.l.b16 %v8435
        %v8910 = vunpack.c.h.b16 %v8435
        %v8911 = vunpack.c.l.b16 %v8436
        %v8912 = vunpack.c.h.b16 %v8436
        %v8913 = vunpack.c.l.b16 %v8437
        %v8914 = vunpack.c.l.b16 %v8438
        %v8915 = vunpack.c.h.b16 %v8438
        %v8916 = vunpack.c.l.b16 %v8439
        %v8917 = vunpack.c.h.b16 %v8439
        %v8918 = vunpack.c.l.b16 %v8440
        %v8919 = vunpack.c.h.b16 %v8440
        %v8920 = vunpack.c.l.b16 %v8441
        %v8921 = vunpack.c.h.b16 %v8441
        %v8922 = vunpack.c.l.b16 %v8442
        %v8923 = vunpack.c.l.b16 %v8443
        %v8924 = vunpack.c.h.b16 %v8443
        %v8925 = vunpack.c.l.b16 %v8444
        %v8926 = vunpack.c.h.b16 %v8444
        %v8927 = vunpack.c.l.b16 %v8445
        %v8928 = vunpack.c.h.b16 %v8445
        %v8929 = vunpack.c.l.b16 %v8446
        %v8930 = vunpack.c.h.b16 %v8446
        %v8931 = vunpack.c.l.b16 %v8447
        %v8932 = vunpack.c.l.b16 %v8448
        %v8933 = vunpack.c.h.b16 %v8448
        %v8934 = vunpack.c.l.b16 %v8449
        %v8935 = vunpack.c.h.b16 %v8449
        %v8936 = vunpack.c.l.b16 %v8450
        %v8937 = vunpack.c.h.b16 %v8450
        %v8938 = vunpack.c.l.b16 %v8451
        %v8939 = vunpack.c.h.b16 %v8451
        %v8940 = vunpack.c.l.b16 %v8452
        %v8941 = vunpack.c.l.b16 %v8453
        %v8942 = vunpack.c.h.b16 %v8453
        %v8943 = vunpack.c.l.b16 %v8454
        %v8944 = vunpack.c.h.b16 %v8454
        %v8945 = vunpack.c.l.b16 %v8455
        %v8946 = vunpack.c.h.b16 %v8455
        %v8947 = vunpack.c.l.b16 %v8456
        %v8948 = vunpack.c.h.b16 %v8456
        %v8949 = vunpack.c.l.b16 %v8457
        %v8950 = vunpack.c.l.b16 %v8458
        %v8951 = vunpack.c.h.b16 %v8458
        %v8952 = vunpack.c.l.b16 %v8459
        %v8953 = vunpack.c.h.b16 %v8459
        %v8954 = vunpack.c.l.b16 %v8460
        %v8955 = vunpack.c.h.b16 %v8460
        %v8956 = vunpack.c.l.b16 %v8461
        %v8957 = vunpack.c.h.b16 %v8461
        %v8958 = vunpack.c.l.b16 %v8462
        %v8959 = vunpack.c.l.b16 %v8463
        %v8960 = vunpack.c.h.b16 %v8463
        %v8961 = vunpack.c.l.b16 %v8464
        %v8962 = vunpack.c.h.b16 %v8464
        %v8963 = vunpack.c.l.b16 %v8465
        %v8964 = vunpack.c.h.b16 %v8465
        %v8965 = vunpack.c.l.b16 %v8466
        %v8966 = vunpack.c.h.b16 %v8466
        %v8967 = vunpack.c.l.b16 %v8467
        %v8968 = vunpack.c.l.b16 %v8468
        %v8969 = vunpack.c.h.b16 %v8468
        %v8970 = vunpack.c.l.b16 %v8469
        %v8971 = vunpack.c.h.b16 %v8469
        %v8972 = vunpack.c.l.b16 %v8470
        %v8973 = vunpack.c.h.b16 %v8470
        %v8974 = vunpack.c.l.b16 %v8471
        %v8975 = vunpack.c.h.b16 %v8471
        %v8976 = vunpack.c.l.b16 %v8472
        %v8977 = vunpack.c.l.b16 %v8473
        %v8978 = vunpack.c.h.b16 %v8473
        %v8979 = vunpack.c.l.b16 %v8474
        %v8980 = vunpack.c.h.b16 %v8474
        %v8981 = vunpack.c.l.b16 %v8475
        %v8982 = vunpack.c.h.b16 %v8475
        %v8983 = vunpack.c.l.b16 %v8476
        %v8984 = vunpack.c.h.b16 %v8476
        %v8985 = vunpack.c.l.b16 %v8477
        %v8986 = vunpack.c.l.b16 %v8478
        %v8987 = vunpack.c.h.b16 %v8478
        %v8988 = vunpack.c.l.b16 %v8479
        %v8989 = vunpack.c.h.b16 %v8479
        %v8990 = vunpack.c.l.b16 %v8480
        %v8991 = vunpack.c.h.b16 %v8480
        %v8992 = vunpack.c.l.b16 %v8481
        %v8993 = vunpack.c.h.b16 %v8481
        %v8994 = vunpack.c.l.b16 %v8482
        %v8995 = vunpack.c.l.b16 %v8483
        %v8996 = vunpack.c.h.b16 %v8483
        %v8997 = vunpack.c.l.b16 %v8484
        %v8998 = vunpack.c.h.b16 %v8484
        %v8999 = vunpack.c.l.b16 %v8485
        %v9000 = vunpack.c.h.b16 %v8485
        %v9001 = vunpack.c.l.b16 %v8486
        %v9002 = vunpack.c.h.b16 %v8486
        %v9003 = vunpack.c.l.b16 %v8487
        %v9004 = vunpack.c.l.b16 %v8488
        %v9005 = vunpack.c.h.b16 %v8488
        %v9006 = vunpack.c.l.b16 %v8489
        %v9007 = vunpack.c.h.b16 %v8489
        %v9008 = vunpack.c.l.b16 %v8490
        %v9009 = vunpack.c.h.b16 %v8490
        %v9010 = vunpack.c.l.b16 %v8491
        %v9011 = vunpack.c.h.b16 %v8491
        %v9012 = vunpack.c.l.b16 %v8492
        %v9013 = vunpack.c.l.b16 %v8493
        %v9014 = vunpack.c.h.b16 %v8493
        %v9015 = vunpack.c.l.b16 %v8494
        %v9016 = vunpack.c.h.b16 %v8494
        %v9017 = vunpack.c.l.b16 %v8495
        %v9018 = vunpack.c.h.b16 %v8495
        %v9019 = vunpack.c.l.b16 %v8496
        %v9020 = vunpack.c.h.b16 %v8496
        %v9021 = vunpack.c.l.b16 %v8497
        %v9022 = vunpack.c.l.b16 %v8498
        %v9023 = vunpack.c.h.b16 %v8498
        %v9024 = vunpack.c.l.b16 %v8499
        %v9025 = vunpack.c.h.b16 %v8499
        %v9026 = vunpack.c.l.b16 %v8500
        %v9027 = vunpack.c.h.b16 %v8500
        %v9028 = vunpack.c.l.b16 %v8501
        %v9029 = vunpack.c.h.b16 %v8501
        %v9030 = vunpack.c.l.b16 %v8502
        %v9031 = vunpack.c.l.b16 %v8503
        %v9032 = vunpack.c.h.b16 %v8503
        %v9033 = vunpack.c.l.b16 %v8504
        %v9034 = vunpack.c.h.b16 %v8504
        %v9035 = vunpack.c.l.b16 %v8505
        %v9036 = vunpack.c.h.b16 %v8505
        %v9037 = vunpack.c.l.b16 %v8506
        %v9038 = vunpack.c.h.b16 %v8506
        %v9039 = vunpack.c.l.b16 %v8507
        %v9040 = vunpack.c.l.b16 %v8508
        %v9041 = vunpack.c.h.b16 %v8508
        %v9042 = vunpack.c.l.b16 %v8509
        %v9043 = vunpack.c.h.b16 %v8509
        %v9044 = vunpack.c.l.b16 %v8510
        %v9045 = vunpack.c.h.b16 %v8510
        %v9046 = vunpack.c.l.b16 %v8511
        %v9047 = vunpack.c.h.b16 %v8511
        %v9048 = vunpack.c.l.b16 %v8512
        %v9049 = vunpack.c.l.b16 %v8513
        %v9050 = vunpack.c.h.b16 %v8513
        %v9051 = vunpack.c.l.b16 %v8514
        %v9052 = vunpack.c.h.b16 %v8514
        %v9053 = vunpack.c.l.b16 %v8515
        %v9054 = vunpack.c.h.b16 %v8515
        %v9055 = vunpack.c.l.b16 %v8516
        %v9056 = vunpack.c.h.b16 %v8516
        %v9057 = vunpack.c.l.b16 %v8517
        %v9058 = vunpack.c.l.b16 %v8518
        %v9059 = vunpack.c.h.b16 %v8518
        %v9060 = vunpack.c.l.b16 %v8519
        %v9061 = vunpack.c.h.b16 %v8519
        %v9062 = vunpack.c.l.b16 %v8520
        %v9063 = vunpack.c.h.b16 %v8520
        %v9064 = vunpack.c.l.b16 %v8521
        %v9065 = vunpack.c.h.b16 %v8521
        %v9066 = vunpack.c.l.b16 %v8522
        %v9067 = vunpack.c.l.b16 %v8523
        %v9068 = vunpack.c.h.b16 %v8523
        %v9069 = vunpack.c.l.b16 %v8524
        %v9070 = vunpack.c.h.b16 %v8524
        %v9071 = vunpack.c.l.b16 %v8525
        %v9072 = vunpack.c.h.b16 %v8525
        %v9073 = vunpack.c.l.b16 %v8526
        %v9074 = vunpack.c.h.b16 %v8526
        %v9075 = vunpack.c.l.b16 %v8527
        %v9076 = vunpack.c.l.b16 %v8528
        %v9077 = vunpack.c.h.b16 %v8528
        %v9078 = vunpack.c.l.b16 %v8529
        %v9079 = vunpack.c.h.b16 %v8529
        %v9080 = vunpack.c.l.b16 %v8530
        %v9081 = vunpack.c.h.b16 %v8530
        %v9082 = vunpack.c.l.b16 %v8531
        %v9083 = vunpack.c.h.b16 %v8531
        %v9084 = vunpack.c.l.b16 %v8532
        %v9085 = vunpack.c.l.b16 %v8533
        %v9086 = vunpack.c.h.b16 %v8533
        %v9087 = vunpack.c.l.b16 %v8534
        %v9088 = vunpack.c.h.b16 %v8534
        %v9089 = vunpack.c.l.b16 %v8535
        %v9090 = vunpack.c.h.b16 %v8535
        %v9091 = vunpack.c.l.b16 %v8536
        %v9092 = vunpack.c.h.b16 %v8536
        %v9093 = vunpack.c.l.b16 %v8537
        %v9094 = vunpack.c.l.b16 %v8538
        %v9095 = vunpack.c.h.b16 %v8538
        %v9096 = vunpack.c.l.b16 %v8539
        %v9097 = vunpack.c.h.b16 %v8539
        %v9098 = vunpack.c.l.b16 %v8540
        %v9099 = vunpack.c.h.b16 %v8540
        %v9100 = vunpack.c.l.b16 %v8541
        %v9101 = vunpack.c.h.b16 %v8541
        %v9102 = vunpack.c.l.b16 %v8542
        %v9103 = vunpack.c.l.b16 %v8543
        %v9104 = vunpack.c.h.b16 %v8543
        %v9105 = vunpack.c.l.b16 %v8544
        %v9106 = vunpack.c.h.b16 %v8544
        %v9107 = vunpack.c.l.b16 %v8545
        %v9108 = vunpack.c.h.b16 %v8545
        %v9109 = vunpack.c.l.b16 %v8546
        %v9110 = vunpack.c.h.b16 %v8546
        %v9111 = vunpack.c.l.b16 %v8547
        %v9112 = vunpack.c.l.b16 %v8548
        %v9113 = vunpack.c.h.b16 %v8548
        %v9114 = vunpack.c.l.b16 %v8549
        %v9115 = vunpack.c.h.b16 %v8549
        %v9116 = vunpack.c.l.b16 %v8550
        %v9117 = vunpack.c.h.b16 %v8550
        %v9118 = vunpack.c.l.b16 %v8551
        %v9119 = vunpack.c.h.b16 %v8551
        %v9120 = vunpack.c.l.b16 %v8552
        %v9121 = vunpack.c.l.b16 %v8553
        %v9122 = vunpack.c.h.b16 %v8553
        %v9123 = vunpack.c.l.b16 %v8554
        %v9124 = vunpack.c.h.b16 %v8554
        %v9125 = vunpack.c.l.b16 %v8555
        %v9126 = vunpack.c.h.b16 %v8555
        %v9127 = vunpack.c.l.b16 %v8556
        %v9128 = vunpack.c.h.b16 %v8556
        %v9129 = vunpack.c.l.b16 %v8557
        %v9130 = vunpack.c.l.b16 %v8558
        %v9131 = vunpack.c.h.b16 %v8558
        %v9132 = vunpack.c.l.b16 %v8559
        %v9133 = vunpack.c.h.b16 %v8559
        %v9134 = vunpack.c.l.b16 %v8560
        %v9135 = vunpack.c.h.b16 %v8560
        %v9136 = vunpack.c.l.b16 %v8561
        %v9137 = vunpack.c.h.b16 %v8561
        %v9138 = vunpack.c.l.b16 %v8562
        %v9139 = vunpack.c.l.b16 %v8563
        %v9140 = vunpack.c.h.b16 %v8563
        %v9141 = vunpack.c.l.b16 %v8564
        %v9142 = vunpack.c.h.b16 %v8564
        %v9143 = vunpack.c.l.b16 %v8565
        %v9144 = vunpack.c.h.b16 %v8565
        %v9145 = vunpack.c.l.b16 %v8566
        %v9146 = vunpack.c.h.b16 %v8566
        %v9147 = vunpack.c.l.b16 %v8567
        %v9148 = vunpack.c.l.b16 %v8568
        %v9149 = vunpack.c.h.b16 %v8568
        %v9150 = vunpack.c.l.b16 %v8569
        %v9151 = vunpack.c.h.b16 %v8569
        %v9152 = vunpack.c.l.b16 %v8570
        %v9153 = vunpack.c.h.b16 %v8570
        %v9154 = vunpack.c.l.b16 %v8571
        %v9155 = vunpack.c.h.b16 %v8571
        %v9156 = vunpack.c.l.b16 %v8572
        %v9157 = vunpack.c.l.b16 %v8573
        %v9158 = vunpack.c.h.b16 %v8573
        %v9159 = vunpack.c.l.b16 %v8574
        %v9160 = vunpack.c.h.b16 %v8574
        %v9161 = vunpack.c.l.b16 %v8575
        %v9162 = vunpack.c.h.b16 %v8575
        %v9163 = vunpack.c.l.b16 %v8576
        %v9164 = vunpack.c.h.b16 %v8576
        %v9165 = vunpack.c.l.b16 %v8577
        %v9166 = vunpack.c.l.b16 %v8578
        %v9167 = vunpack.c.h.b16 %v8578
        %v9168 = vunpack.c.l.b16 %v8579
        %v9169 = vunpack.c.h.b16 %v8579
        %v9170 = vunpack.c.l.b16 %v8580
        %v9171 = vunpack.c.h.b16 %v8580
        %v9172 = vunpack.c.l.b16 %v8581
        %v9173 = vunpack.c.h.b16 %v8581
        %v9174 = vunpack.c.l.b16 %v8582
        %v9175 = vunpack.c.l.b16 %v8583
        %v9176 = vunpack.c.h.b16 %v8583
        %v9177 = vunpack.c.l.b16 %v8584
        %v9178 = vunpack.c.h.b16 %v8584
        %v9179 = vunpack.c.l.b16 %v8585
        %v9180 = vunpack.c.h.b16 %v8585
        %v9181 = vunpack.c.l.b16 %v8586
        %v9182 = vunpack.c.h.b16 %v8586
        %v9183 = vunpack.c.l.b16 %v8587
        %v9184 = vpack.c.b16 %v8905, %v8896
        %v9185 = vpack.c.b16 %v8906, %v8897
        %v9186 = vpack.c.b16 %v8907, %v8898
        %v9187 = vpack.c.b16 %v8908, %v8899
        %v9188 = vpack.c.b16 %v8909, %v8900
        %v9189 = vpack.c.b16 %v8910, %v8901
        %v9190 = vpack.c.b16 %v8911, %v8902
        %v9191 = vpack.c.b16 %v8912, %v8903
        %v9192 = vpack.c.b16 %v8913, %v8904
        %v9193 = vpack.c.b16 %v8923, %v8914
        %v9194 = vpack.c.b16 %v8924, %v8915
        %v9195 = vpack.c.b16 %v8925, %v8916
        %v9196 = vpack.c.b16 %v8926, %v8917
        %v9197 = vpack.c.b16 %v8927, %v8918
        %v9198 = vpack.c.b16 %v8928, %v8919
        %v9199 = vpack.c.b16 %v8929, %v8920
        %v9200 = vpack.c.b16 %v8930, %v8921
        %v9201 = vpack.c.b16 %v8931, %v8922
        %v9202 = vpack.c.b16 %v8941, %v8932
        %v9203 = vpack.c.b16 %v8942, %v8933
        %v9204 = vpack.c.b16 %v8943, %v8934
        %v9205 = vpack.c.b16 %v8944, %v8935
        %v9206 = vpack.c.b16 %v8945, %v8936
        %v9207 = vpack.c.b16 %v8946, %v8937
        %v9208 = vpack.c.b16 %v8947, %v8938
        %v9209 = vpack.c.b16 %v8948, %v8939
        %v9210 = vpack.c.b16 %v8949, %v8940
        %v9211 = vpack.c.b16 %v8959, %v8950
        %v9212 = vpack.c.b16 %v8960, %v8951
        %v9213 = vpack.c.b16 %v8961, %v8952
        %v9214 = vpack.c.b16 %v8962, %v8953
        %v9215 = vpack.c.b16 %v8963, %v8954
        %v9216 = vpack.c.b16 %v8964, %v8955
        %v9217 = vpack.c.b16 %v8965, %v8956
        %v9218 = vpack.c.b16 %v8966, %v8957
        %v9219 = vpack.c.b16 %v8967, %v8958
        %v9220 = vpack.c.b16 %v8977, %v8968
        %v9221 = vpack.c.b16 %v8978, %v8969
        %v9222 = vpack.c.b16 %v8979, %v8970
        %v9223 = vpack.c.b16 %v8980, %v8971
        %v9224 = vpack.c.b16 %v8981, %v8972
        %v9225 = vpack.c.b16 %v8982, %v8973
        %v9226 = vpack.c.b16 %v8983, %v8974
        %v9227 = vpack.c.b16 %v8984, %v8975
        %v9228 = vpack.c.b16 %v8985, %v8976
        %v9229 = vpack.c.b16 %v8995, %v8986
        %v9230 = vpack.c.b16 %v8996, %v8987
        %v9231 = vpack.c.b16 %v8997, %v8988
        %v9232 = vpack.c.b16 %v8998, %v8989
        %v9233 = vpack.c.b16 %v8999, %v8990
        %v9234 = vpack.c.b16 %v9000, %v8991
        %v9235 = vpack.c.b16 %v9001, %v8992
        %v9236 = vpack.c.b16 %v9002, %v8993
        %v9237 = vpack.c.b16 %v9003, %v8994
        %v9238 = vpack.c.b16 %v9013, %v9004
        %v9239 = vpack.c.b16 %v9014, %v9005
        %v9240 = vpack.c.b16 %v9015, %v9006
        %v9241 = vpack.c.b16 %v9016, %v9007
        %v9242 = vpack.c.b16 %v9017, %v9008
        %v9243 = vpack.c.b16 %v9018, %v9009
        %v9244 = vpack.c.b16 %v9019, %v9010
        %v9245 = vpack.c.b16 %v9020, %v9011
        %v9246 = vpack.c.b16 %v9021, %v9012
        %v9247 = vpack.c.b16 %v9031, %v9022
        %v9248 = vpack.c.b16 %v9032, %v9023
        %v9249 = vpack.c.b16 %v9033, %v9024
        %v9250 = vpack.c.b16 %v9034, %v9025
        %v9251 = vpack.c.b16 %v9035, %v9026
        %v9252 = vpack.c.b16 %v9036, %v9027
        %v9253 = vpack.c.b16 %v9037, %v9028
        %v9254 = vpack.c.b16 %v9038, %v9029
        %v9255 = vpack.c.b16 %v9039, %v9030
        %v9256 = vpack.c.b16 %v9049, %v9040
        %v9257 = vpack.c.b16 %v9050, %v9041
        %v9258 = vpack.c.b16 %v9051, %v9042
        %v9259 = vpack.c.b16 %v9052, %v9043
        %v9260 = vpack.c.b16 %v9053, %v9044
        %v9261 = vpack.c.b16 %v9054, %v9045
        %v9262 = vpack.c.b16 %v9055, %v9046
        %v9263 = vpack.c.b16 %v9056, %v9047
        %v9264 = vpack.c.b16 %v9057, %v9048
        %v9265 = vpack.c.b16 %v9067, %v9058
        %v9266 = vpack.c.b16 %v9068, %v9059
        %v9267 = vpack.c.b16 %v9069, %v9060
        %v9268 = vpack.c.b16 %v9070, %v9061
        %v9269 = vpack.c.b16 %v9071, %v9062
        %v9270 = vpack.c.b16 %v9072, %v9063
        %v9271 = vpack.c.b16 %v9073, %v9064
        %v9272 = vpack.c.b16 %v9074, %v9065
        %v9273 = vpack.c.b16 %v9075, %v9066
        %v9274 = vpack.c.b16 %v9085, %v9076
        %v9275 = vpack.c.b16 %v9086, %v9077
        %v9276 = vpack.c.b16 %v9087, %v9078
        %v9277 = vpack.c.b16 %v9088, %v9079
        %v9278 = vpack.c.b16 %v9089, %v9080
        %v9279 = vpack.c.b16 %v9090, %v9081
        %v9280 = vpack.c.b16 %v9091, %v9082
        %v9281 = vpack.c.b16 %v9092, %v9083
        %v9282 = vpack.c.b16 %v9093, %v9084
        %v9283 = vpack.c.b16 %v9103, %v9094
        %v9284 = vpack.c.b16 %v9104, %v9095
        %v9285 = vpack.c.b16 %v9105, %v9096
        %v9286 = vpack.c.b16 %v9106, %v9097
        %v9287 = vpack.c.b16 %v9107, %v9098
        %v9288 = vpack.c.b16 %v9108, %v9099
        %v9289 = vpack.c.b16 %v9109, %v9100
        %v9290 = vpack.c.b16 %v9110, %v9101
        %v9291 = vpack.c.b16 %v9111, %v9102
        %v9292 = vpack.c.b16 %v9121, %v9112
        %v9293 = vpack.c.b16 %v9122, %v9113
        %v9294 = vpack.c.b16 %v9123, %v9114
        %v9295 = vpack.c.b16 %v9124, %v9115
        %v9296 = vpack.c.b16 %v9125, %v9116
        %v9297 = vpack.c.b16 %v9126, %v9117
        %v9298 = vpack.c.b16 %v9127, %v9118
        %v9299 = vpack.c.b16 %v9128, %v9119
        %v9300 = vpack.c.b16 %v9129, %v9120
        %v9301 = vpack.c.b16 %v9139, %v9130
        %v9302 = vpack.c.b16 %v9140, %v9131
        %v9303 = vpack.c.b16 %v9141, %v9132
        %v9304 = vpack.c.b16 %v9142, %v9133
        %v9305 = vpack.c.b16 %v9143, %v9134
        %v9306 = vpack.c.b16 %v9144, %v9135
        %v9307 = vpack.c.b16 %v9145, %v9136
        %v9308 = vpack.c.b16 %v9146, %v9137
        %v9309 = vpack.c.b16 %v9147, %v9138
        %v9310 = vpack.c.b16 %v9157, %v9148
        %v9311 = vpack.c.b16 %v9158, %v9149
        %v9312 = vpack.c.b16 %v9159, %v9150
        %v9313 = vpack.c.b16 %v9160, %v9151
        %v9314 = vpack.c.b16 %v9161, %v9152
        %v9315 = vpack.c.b16 %v9162, %v9153
        %v9316 = vpack.c.b16 %v9163, %v9154
        %v9317 = vpack.c.b16 %v9164, %v9155
        %v9318 = vpack.c.b16 %v9165, %v9156
        %v9319 = vpack.c.b16 %v9175, %v9166
        %v9320 = vpack.c.b16 %v9176, %v9167
        %v9321 = vpack.c.b16 %v9177, %v9168
        %v9322 = vpack.c.b16 %v9178, %v9169
        %v9323 = vpack.c.b16 %v9179, %v9170
        %v9324 = vpack.c.b16 %v9180, %v9171
        %v9325 = vpack.c.b16 %v9181, %v9172
        %v9326 = vpack.c.b16 %v9182, %v9173
        %v9327 = vpack.c.b16 %v9183, %v9174
        %v9616 = vunpack.c.l.b16 %v8588
        %v9617 = vunpack.c.l.b16 %v8589
        %v9618 = vunpack.c.l.b16 %v8590
        %v9619 = vunpack.c.l.b16 %v8591
        %v9620 = vunpack.c.l.b16 %v8592
        %v9621 = vunpack.c.l.b16 %v8593
        %v9622 = vunpack.c.l.b16 %v8594
        %v9623 = vunpack.c.l.b16 %v8595
        %v9624 = vunpack.c.l.b16 %v8596
        %v9625 = vunpack.c.l.b16 %v8597
        %v9626 = vunpack.c.l.b16 %v8598
        %v9627 = vunpack.c.l.b16 %v8599
        %v9628 = vunpack.c.l.b16 %v8600
        %v9629 = vunpack.c.l.b16 %v8601
        %v9630 = vunpack.c.l.b16 %v8602
        %v9631 = vunpack.c.l.b16 %v8603
        %v9632 = vunpack.c.l.b16 %v8604
        %v9633 = vunpack.c.l.b16 %v8605
        %v9634 = vunpack.c.l.b16 %v8606
        %v9635 = vunpack.c.l.b16 %v8607
        %v9636 = vunpack.c.l.b16 %v8608
        %v9637 = vunpack.c.l.b16 %v8609
        %v9638 = vunpack.c.l.b16 %v8610
        %v9639 = vunpack.c.l.b16 %v8611
        %v9640 = vunpack.c.l.b16 %v8612
        %v9641 = vunpack.c.l.b16 %v8613
        %v9642 = vunpack.c.l.b16 %v8614
        %v9643 = vunpack.c.l.b16 %v8615
        %v9644 = vunpack.c.l.b16 %v8616
        %v9645 = vunpack.c.l.b16 %v8617
        %v9646 = vunpack.c.l.b16 %v8618
        %v9647 = vunpack.c.l.b16 %v8619
        %v9648 = vunpack.c.l.b16 %v8620
        %v9649 = vunpack.c.l.b16 %v8621
        %v9650 = vunpack.c.l.b16 %v8622
        %v9651 = vunpack.c.l.b16 %v8623
        %v9652 = vunpack.c.l.b16 %v8624
        %v9653 = vunpack.c.l.b16 %v8625
        %v9654 = vunpack.c.l.b16 %v8626
        %v9655 = vunpack.c.l.b16 %v8627
        %v9656 = vunpack.c.l.b16 %v8628
        %v9657 = vunpack.c.l.b16 %v8629
        %v9658 = vunpack.c.l.b16 %v8630
        %v9659 = vunpack.c.l.b16 %v8631
        %v9660 = vunpack.c.l.b16 %v8632
        %v9661 = vunpack.c.l.b16 %v8633
        %v9662 = vunpack.c.l.b16 %v8634
        %v9663 = vunpack.c.l.b16 %v8635
        %v9664 = vunpack.c.l.b16 %v8636
        %v9665 = vunpack.c.l.b16 %v8637
        %v9666 = vunpack.c.l.b16 %v8638
        %v9667 = vunpack.c.l.b16 %v8639
        %v9668 = vunpack.c.l.b16 %v8640
        %v9669 = vunpack.c.l.b16 %v8641
        %v9670 = vunpack.c.l.b16 %v8642
        %v9671 = vunpack.c.l.b16 %v8643
        %v9672 = vunpack.c.l.b16 %v8644
        %v9673 = vunpack.c.l.b16 %v8645
        %v9674 = vunpack.c.l.b16 %v8646
        %v9675 = vunpack.c.l.b16 %v8647
        %v9676 = vunpack.c.l.b16 %v8648
        %v9677 = vunpack.c.l.b16 %v8649
        %v9678 = vunpack.c.l.b16 %v8650
        %v9679 = vunpack.c.l.b16 %v8651
        %v9680 = vunpack.c.l.b16 %v8652
        %v9681 = vunpack.c.l.b16 %v8653
        %v9682 = vunpack.c.l.b16 %v8654
        %v9683 = vunpack.c.l.b16 %v8655
        %v9684 = vunpack.c.l.b16 %v8656
        %v9685 = vunpack.c.l.b16 %v8657
        %v9686 = vunpack.c.l.b16 %v8658
        %v9687 = vunpack.c.l.b16 %v8659
        %v9688 = vunpack.c.l.b16 %v8660
        %v9689 = vunpack.c.l.b16 %v8661
        %v9690 = vunpack.c.l.b16 %v8662
        %v9691 = vunpack.c.l.b16 %v8663
        %v9692 = vunpack.c.l.b16 %v8664
        %v9693 = vunpack.c.l.b16 %v8665
        %v9694 = vunpack.c.l.b16 %v8666
        %v9695 = vunpack.c.l.b16 %v8667
        %v9696 = vunpack.c.l.b16 %v8668
        %v9697 = vunpack.c.l.b16 %v8669
        %v9698 = vunpack.c.l.b16 %v8670
        %v9699 = vunpack.c.l.b16 %v8671
        %v9700 = vunpack.c.l.b16 %v8672
        %v9701 = vunpack.c.l.b16 %v8673
        %v9702 = vunpack.c.l.b16 %v8674
        %v9703 = vunpack.c.l.b16 %v8675
        %v9704 = vunpack.c.l.b16 %v8676
        %v9705 = vunpack.c.l.b16 %v8677
        %v9706 = vunpack.c.l.b16 %v8678
        %v9707 = vunpack.c.l.b16 %v8679
        %v9708 = vunpack.c.l.b16 %v8680
        %v9709 = vunpack.c.l.b16 %v8681
        %v9710 = vunpack.c.l.b16 %v8682
        %v9711 = vunpack.c.l.b16 %v8683
        %v9712 = vunpack.c.l.b16 %v8684
        %v9713 = vunpack.c.l.b16 %v8685
        %v9714 = vunpack.c.l.b16 %v8686
        %v9715 = vunpack.c.l.b16 %v8687
        %v9716 = vunpack.c.l.b16 %v8688
        %v9717 = vunpack.c.l.b16 %v8689
        %v9718 = vunpack.c.l.b16 %v8690
        %v9719 = vunpack.c.l.b16 %v8691
        %v9720 = vunpack.c.l.b16 %v8692
        %v9721 = vunpack.c.l.b16 %v8693
        %v9722 = vunpack.c.l.b16 %v8694
        %v9723 = vunpack.c.l.b16 %v8695
        %v9724 = vunpack.c.l.b16 %v8696
        %v9725 = vunpack.c.l.b16 %v8697
        %v9726 = vunpack.c.l.b16 %v8698
        %v9727 = vunpack.c.l.b16 %v8699
        %v9728 = vunpack.c.l.b16 %v8700
        %v9729 = vunpack.c.l.b16 %v8701
        %v9730 = vunpack.c.l.b16 %v8702
        %v9731 = vunpack.c.l.b16 %v8703
        %v9732 = vunpack.c.l.b16 %v8704
        %v9733 = vunpack.c.l.b16 %v8705
        %v9734 = vunpack.c.l.b16 %v8706
        %v9735 = vunpack.c.l.b16 %v8707
        %v9736 = vunpack.c.l.b16 %v8708
        %v9737 = vunpack.c.l.b16 %v8709
        %v9738 = vunpack.c.l.b16 %v8710
        %v9739 = vunpack.c.l.b16 %v8711
        %v9740 = vunpack.c.l.b16 %v8712
        %v9741 = vunpack.c.l.b16 %v8713
        %v9742 = vunpack.c.l.b16 %v8714
        %v9743 = vunpack.c.l.b16 %v8715
        %v9744 = vunpack.c.l.b16 %v8716
        %v9745 = vunpack.c.l.b16 %v8717
        %v9746 = vunpack.c.l.b16 %v8718
        %v9747 = vunpack.c.l.b16 %v8719
        %v9748 = vunpack.c.l.b16 %v8720
        %v9749 = vunpack.c.l.b16 %v8721
        %v9750 = vunpack.c.l.b16 %v8722
        %v9751 = vunpack.c.l.b16 %v8723
        %v9752 = vunpack.c.l.b16 %v8724
        %v9753 = vunpack.c.l.b16 %v8725
        %v9754 = vunpack.c.l.b16 %v8726
        %v9755 = vunpack.c.l.b16 %v8727
        %v9756 = vunpack.c.l.b16 %v8728
        %v9757 = vunpack.c.l.b16 %v8729
        %v9758 = vunpack.c.l.b16 %v8730
        %v9759 = vunpack.c.l.b16 %v8731
        %v9760 = vpack.c.b16 %v9617, %v9616
        %v9761 = vpack.c.b16 %v9619, %v9618
        %v9762 = vpack.c.b16 %v9621, %v9620
        %v9763 = vpack.c.b16 %v9623, %v9622
        %v9764 = vpack.c.b16 %v9625, %v9624
        %v9765 = vpack.c.b16 %v9627, %v9626
        %v9766 = vpack.c.b16 %v9629, %v9628
        %v9767 = vpack.c.b16 %v9631, %v9630
        %v9768 = vpack.c.b16 %v9633, %v9632
        %v9769 = vpack.c.b16 %v9635, %v9634
        %v9770 = vpack.c.b16 %v9637, %v9636
        %v9771 = vpack.c.b16 %v9639, %v9638
        %v9772 = vpack.c.b16 %v9641, %v9640
        %v9773 = vpack.c.b16 %v9643, %v9642
        %v9774 = vpack.c.b16 %v9645, %v9644
        %v9775 = vpack.c.b16 %v9647, %v9646
        %v9776 = vpack.c.b16 %v9649, %v9648
        %v9777 = vpack.c.b16 %v9651, %v9650
        %v9778 = vpack.c.b16 %v9653, %v9652
        %v9779 = vpack.c.b16 %v9655, %v9654
        %v9780 = vpack.c.b16 %v9657, %v9656
        %v9781 = vpack.c.b16 %v9659, %v9658
        %v9782 = vpack.c.b16 %v9661, %v9660
        %v9783 = vpack.c.b16 %v9663, %v9662
        %v9784 = vpack.c.b16 %v9665, %v9664
        %v9785 = vpack.c.b16 %v9667, %v9666
        %v9786 = vpack.c.b16 %v9669, %v9668
        %v9787 = vpack.c.b16 %v9671, %v9670
        %v9788 = vpack.c.b16 %v9673, %v9672
        %v9789 = vpack.c.b16 %v9675, %v9674
        %v9790 = vpack.c.b16 %v9677, %v9676
        %v9791 = vpack.c.b16 %v9679, %v9678
        %v9792 = vpack.c.b16 %v9681, %v9680
        %v9793 = vpack.c.b16 %v9683, %v9682
        %v9794 = vpack.c.b16 %v9685, %v9684
        %v9795 = vpack.c.b16 %v9687, %v9686
        %v9796 = vpack.c.b16 %v9689, %v9688
        %v9797 = vpack.c.b16 %v9691, %v9690
        %v9798 = vpack.c.b16 %v9693, %v9692
        %v9799 = vpack.c.b16 %v9695, %v9694
        %v9800 = vpack.c.b16 %v9697, %v9696
        %v9801 = vpack.c.b16 %v9699, %v9698
        %v9802 = vpack.c.b16 %v9701, %v9700
        %v9803 = vpack.c.b16 %v9703, %v9702
        %v9804 = vpack.c.b16 %v9705, %v9704
        %v9805 = vpack.c.b16 %v9707, %v9706
        %v9806 = vpack.c.b16 %v9709, %v9708
        %v9807 = vpack.c.b16 %v9711, %v9710
        %v9808 = vpack.c.b16 %v9713, %v9712
        %v9809 = vpack.c.b16 %v9715, %v9714
        %v9810 = vpack.c.b16 %v9717, %v9716
        %v9811 = vpack.c.b16 %v9719, %v9718
        %v9812 = vpack.c.b16 %v9721, %v9720
        %v9813 = vpack.c.b16 %v9723, %v9722
        %v9814 = vpack.c.b16 %v9725, %v9724
        %v9815 = vpack.c.b16 %v9727, %v9726
        %v9816 = vpack.c.b16 %v9729, %v9728
        %v9817 = vpack.c.b16 %v9731, %v9730
        %v9818 = vpack.c.b16 %v9733, %v9732
        %v9819 = vpack.c.b16 %v9735, %v9734
        %v9820 = vpack.c.b16 %v9737, %v9736
        %v9821 = vpack.c.b16 %v9739, %v9738
        %v9822 = vpack.c.b16 %v9741, %v9740
        %v9823 = vpack.c.b16 %v9743, %v9742
        %v9824 = vpack.c.b16 %v9745, %v9744
        %v9825 = vpack.c.b16 %v9747, %v9746
        %v9826 = vpack.c.b16 %v9749, %v9748
        %v9827 = vpack.c.b16 %v9751, %v9750
        %v9828 = vpack.c.b16 %v9753, %v9752
        %v9829 = vpack.c.b16 %v9755, %v9754
        %v9830 = vpack.c.b16 %v9757, %v9756
        %v9831 = vpack.c.b16 %v9759, %v9758
        %9904 = vmatpush.bf16.msra.mxu0 %v9767
        %9905 = vmatpush.bf16.msra.mxu0 %v9766
        %9906 = vmatpush.bf16.msra.mxu0 %v9765
        %9907 = vmatpush.bf16.msra.mxu0 %v9764
        %9908 = vmatpush.bf16.msra.mxu0 %v9763
        %9909 = vmatpush.bf16.msra.mxu0 %v9762
        %9910 = vmatpush.bf16.msra.mxu0 %v9761
        %9911 = vmatpush.bf16.msra.mxu0 %v9760
        %9912 = vmatmul.bf16.gmra.mxu0 %v9184
        %v9913 = vpop.f32.mrf.mxu0
        %v9914 = vadd.f32 %v8734, %v9913
        %v9915 = vpop.f32.mrf.mxu0
        %v9916 = vadd.f32 %v8734, %v9915
        %9917 = vmatmul.bf16.gmra.mxu0 %v9193
        %v9918 = vpop.f32.mrf.mxu0
        %v9919 = vadd.f32 %v8734, %v9918
        %v9920 = vpop.f32.mrf.mxu0
        %v9921 = vadd.f32 %v8734, %v9920
        %9922 = vmatmul.bf16.gmra.mxu0 %v9202
        %v9923 = vpop.f32.mrf.mxu0
        %v9924 = vadd.f32 %v8734, %v9923
        %v9925 = vpop.f32.mrf.mxu0
        %v9926 = vadd.f32 %v8734, %v9925
        %9927 = vmatmul.bf16.gmra.mxu0 %v9211
        %v9928 = vpop.f32.mrf.mxu0
        %v9929 = vadd.f32 %v8734, %v9928
        %v9930 = vpop.f32.mrf.mxu0
        %v9931 = vadd.f32 %v8734, %v9930
        %9932 = vmatmul.bf16.gmra.mxu0 %v9220
        %v9933 = vpop.f32.mrf.mxu0
        %v9934 = vadd.f32 %v8734, %v9933
        %v9935 = vpop.f32.mrf.mxu0
        %v9936 = vadd.f32 %v8734, %v9935
        %9937 = vmatmul.bf16.gmra.mxu0 %v9229
        %v9938 = vpop.f32.mrf.mxu0
        %v9939 = vadd.f32 %v8734, %v9938
        %v9940 = vpop.f32.mrf.mxu0
        %v9941 = vadd.f32 %v8734, %v9940
        %9942 = vmatmul.bf16.gmra.mxu0 %v9238
        %v9943 = vpop.f32.mrf.mxu0
        %v9944 = vadd.f32 %v8734, %v9943
        %v9945 = vpop.f32.mrf.mxu0
        %v9946 = vadd.f32 %v8734, %v9945
        %9947 = vmatmul.bf16.gmra.mxu0 %v9247
        %v9948 = vpop.f32.mrf.mxu0
        %v9949 = vadd.f32 %v8734, %v9948
        %v9950 = vpop.f32.mrf.mxu0
        %v9951 = vadd.f32 %v8734, %v9950
        %9952 = vmatmul.bf16.gmra.mxu0 %v9256
        %v9953 = vpop.f32.mrf.mxu0
        %v9954 = vadd.f32 %v8734, %v9953
        %v9955 = vpop.f32.mrf.mxu0
        %v9956 = vadd.f32 %v8734, %v9955
        %9957 = vmatmul.bf16.gmra.mxu0 %v9265
        %v9958 = vpop.f32.mrf.mxu0
        %v9959 = vadd.f32 %v8734, %v9958
        %v9960 = vpop.f32.mrf.mxu0
        %v9961 = vadd.f32 %v8734, %v9960
        %9962 = vmatmul.bf16.gmra.mxu0 %v9274
        %v9963 = vpop.f32.mrf.mxu0
        %v9964 = vadd.f32 %v8734, %v9963
        %v9965 = vpop.f32.mrf.mxu0
        %v9966 = vadd.f32 %v8734, %v9965
        %9967 = vmatmul.bf16.gmra.mxu0 %v9283
        %v9968 = vpop.f32.mrf.mxu0
        %v9969 = vadd.f32 %v8734, %v9968
        %v9970 = vpop.f32.mrf.mxu0
        %v9971 = vadd.f32 %v8734, %v9970
        %9972 = vmatmul.bf16.gmra.mxu0 %v9292
        %v9973 = vpop.f32.mrf.mxu0
        %v9974 = vadd.f32 %v8734, %v9973
        %v9975 = vpop.f32.mrf.mxu0
        %v9976 = vadd.f32 %v8734, %v9975
        %9977 = vmatmul.bf16.gmra.mxu0 %v9301
        %v9978 = vpop.f32.mrf.mxu0
        %v9979 = vadd.f32 %v8734, %v9978
        %v9980 = vpop.f32.mrf.mxu0
        %v9981 = vadd.f32 %v8734, %v9980
        %9982 = vmatmul.bf16.gmra.mxu0 %v9310
        %v9983 = vpop.f32.mrf.mxu0
        %v9984 = vadd.f32 %v8734, %v9983
        %v9985 = vpop.f32.mrf.mxu0
        %v9986 = vadd.f32 %v8734, %v9985
        %9987 = vmatmul.bf16.gmra.mxu0 %v9319
        %v9988 = vpop.f32.mrf.mxu0
        %v9989 = vadd.f32 %v8734, %v9988
        %v9990 = vpop.f32.mrf.mxu0
        %v9991 = vadd.f32 %v8734, %v9990
        %9992 = vdwg.mxu0
        %9993 = vmatpush.bf16.msra.mxu0 %v9775
        %9994 = vmatpush.bf16.msra.mxu0 %v9774
        %9995 = vmatpush.bf16.msra.mxu0 %v9773
        %9996 = vmatpush.bf16.msra.mxu0 %v9772
        %9997 = vmatpush.bf16.msra.mxu0 %v9771
        %9998 = vmatpush.bf16.msra.mxu0 %v9770
        %9999 = vmatpush.bf16.msra.mxu0 %v9769
        %10000 = vmatpush.bf16.msra.mxu0 %v9768
        %10001 = vmatmul.bf16.gmra.mxu0 %v9185
        %v10002 = vpop.f32.mrf.mxu0
        %v10003 = vadd.f32 %v9914, %v10002
        %v10004 = vpop.f32.mrf.mxu0
        %v10005 = vadd.f32 %v9916, %v10004
        %10006 = vmatmul.bf16.gmra.mxu0 %v9194
        %v10007 = vpop.f32.mrf.mxu0
        %v10008 = vadd.f32 %v9919, %v10007
        %v10009 = vpop.f32.mrf.mxu0
        %v10010 = vadd.f32 %v9921, %v10009
        %10011 = vmatmul.bf16.gmra.mxu0 %v9203
        %v10012 = vpop.f32.mrf.mxu0
        %v10013 = vadd.f32 %v9924, %v10012
        %v10014 = vpop.f32.mrf.mxu0
        %v10015 = vadd.f32 %v9926, %v10014
        %10016 = vmatmul.bf16.gmra.mxu0 %v9212
        %v10017 = vpop.f32.mrf.mxu0
        %v10018 = vadd.f32 %v9929, %v10017
        %v10019 = vpop.f32.mrf.mxu0
        %v10020 = vadd.f32 %v9931, %v10019
        %10021 = vmatmul.bf16.gmra.mxu0 %v9221
        %v10022 = vpop.f32.mrf.mxu0
        %v10023 = vadd.f32 %v9934, %v10022
        %v10024 = vpop.f32.mrf.mxu0
        %v10025 = vadd.f32 %v9936, %v10024
        %10026 = vmatmul.bf16.gmra.mxu0 %v9230
        %v10027 = vpop.f32.mrf.mxu0
        %v10028 = vadd.f32 %v9939, %v10027
        %v10029 = vpop.f32.mrf.mxu0
        %v10030 = vadd.f32 %v9941, %v10029
        %10031 = vmatmul.bf16.gmra.mxu0 %v9239
        %v10032 = vpop.f32.mrf.mxu0
        %v10033 = vadd.f32 %v9944, %v10032
        %v10034 = vpop.f32.mrf.mxu0
        %v10035 = vadd.f32 %v9946, %v10034
        %10036 = vmatmul.bf16.gmra.mxu0 %v9248
        %v10037 = vpop.f32.mrf.mxu0
        %v10038 = vadd.f32 %v9949, %v10037
        %v10039 = vpop.f32.mrf.mxu0
        %v10040 = vadd.f32 %v9951, %v10039
        %10041 = vmatmul.bf16.gmra.mxu0 %v9257
        %v10042 = vpop.f32.mrf.mxu0
        %v10043 = vadd.f32 %v9954, %v10042
        %v10044 = vpop.f32.mrf.mxu0
        %v10045 = vadd.f32 %v9956, %v10044
        %10046 = vmatmul.bf16.gmra.mxu0 %v9266
        %v10047 = vpop.f32.mrf.mxu0
        %v10048 = vadd.f32 %v9959, %v10047
        %v10049 = vpop.f32.mrf.mxu0
        %v10050 = vadd.f32 %v9961, %v10049
        %10051 = vmatmul.bf16.gmra.mxu0 %v9275
        %v10052 = vpop.f32.mrf.mxu0
        %v10053 = vadd.f32 %v9964, %v10052
        %v10054 = vpop.f32.mrf.mxu0
        %v10055 = vadd.f32 %v9966, %v10054
        %10056 = vmatmul.bf16.gmra.mxu0 %v9284
        %v10057 = vpop.f32.mrf.mxu0
        %v10058 = vadd.f32 %v9969, %v10057
        %v10059 = vpop.f32.mrf.mxu0
        %v10060 = vadd.f32 %v9971, %v10059
        %10061 = vmatmul.bf16.gmra.mxu0 %v9293
        %v10062 = vpop.f32.mrf.mxu0
        %v10063 = vadd.f32 %v9974, %v10062
        %v10064 = vpop.f32.mrf.mxu0
        %v10065 = vadd.f32 %v9976, %v10064
        %10066 = vmatmul.bf16.gmra.mxu0 %v9302
        %v10067 = vpop.f32.mrf.mxu0
        %v10068 = vadd.f32 %v9979, %v10067
        %v10069 = vpop.f32.mrf.mxu0
        %v10070 = vadd.f32 %v9981, %v10069
        %10071 = vmatmul.bf16.gmra.mxu0 %v9311
        %v10072 = vpop.f32.mrf.mxu0
        %v10073 = vadd.f32 %v9984, %v10072
        %v10074 = vpop.f32.mrf.mxu0
        %v10075 = vadd.f32 %v9986, %v10074
        %10076 = vmatmul.bf16.gmra.mxu0 %v9320
        %v10077 = vpop.f32.mrf.mxu0
        %v10078 = vadd.f32 %v9989, %v10077
        %v10079 = vpop.f32.mrf.mxu0
        %v10080 = vadd.f32 %v9991, %v10079
        %10081 = vdwg.mxu0
        %10082 = vmatpush.bf16.msra.mxu0 %v9783
        %10083 = vmatpush.bf16.msra.mxu0 %v9782
        %10084 = vmatpush.bf16.msra.mxu0 %v9781
        %10085 = vmatpush.bf16.msra.mxu0 %v9780
        %10086 = vmatpush.bf16.msra.mxu0 %v9779
        %10087 = vmatpush.bf16.msra.mxu0 %v9778
        %10088 = vmatpush.bf16.msra.mxu0 %v9777
        %10089 = vmatpush.bf16.msra.mxu0 %v9776
        %10090 = vmatmul.bf16.gmra.mxu0 %v9186
        %v10091 = vpop.f32.mrf.mxu0
        %v10092 = vadd.f32 %v10003, %v10091
        %v10093 = vpop.f32.mrf.mxu0
        %v10094 = vadd.f32 %v10005, %v10093
        %10095 = vmatmul.bf16.gmra.mxu0 %v9195
        %v10096 = vpop.f32.mrf.mxu0
        %v10097 = vadd.f32 %v10008, %v10096
        %v10098 = vpop.f32.mrf.mxu0
        %v10099 = vadd.f32 %v10010, %v10098
        %10100 = vmatmul.bf16.gmra.mxu0 %v9204
        %v10101 = vpop.f32.mrf.mxu0
        %v10102 = vadd.f32 %v10013, %v10101
        %v10103 = vpop.f32.mrf.mxu0
        %v10104 = vadd.f32 %v10015, %v10103
        %10105 = vmatmul.bf16.gmra.mxu0 %v9213
        %v10106 = vpop.f32.mrf.mxu0
        %v10107 = vadd.f32 %v10018, %v10106
        %v10108 = vpop.f32.mrf.mxu0
        %v10109 = vadd.f32 %v10020, %v10108
        %10110 = vmatmul.bf16.gmra.mxu0 %v9222
        %v10111 = vpop.f32.mrf.mxu0
        %v10112 = vadd.f32 %v10023, %v10111
        %v10113 = vpop.f32.mrf.mxu0
        %v10114 = vadd.f32 %v10025, %v10113
        %10115 = vmatmul.bf16.gmra.mxu0 %v9231
        %v10116 = vpop.f32.mrf.mxu0
        %v10117 = vadd.f32 %v10028, %v10116
        %v10118 = vpop.f32.mrf.mxu0
        %v10119 = vadd.f32 %v10030, %v10118
        %10120 = vmatmul.bf16.gmra.mxu0 %v9240
        %v10121 = vpop.f32.mrf.mxu0
        %v10122 = vadd.f32 %v10033, %v10121
        %v10123 = vpop.f32.mrf.mxu0
        %v10124 = vadd.f32 %v10035, %v10123
        %10125 = vmatmul.bf16.gmra.mxu0 %v9249
        %v10126 = vpop.f32.mrf.mxu0
        %v10127 = vadd.f32 %v10038, %v10126
        %v10128 = vpop.f32.mrf.mxu0
        %v10129 = vadd.f32 %v10040, %v10128
        %10130 = vmatmul.bf16.gmra.mxu0 %v9258
        %v10131 = vpop.f32.mrf.mxu0
        %v10132 = vadd.f32 %v10043, %v10131
        %v10133 = vpop.f32.mrf.mxu0
        %v10134 = vadd.f32 %v10045, %v10133
        %10135 = vmatmul.bf16.gmra.mxu0 %v9267
        %v10136 = vpop.f32.mrf.mxu0
        %v10137 = vadd.f32 %v10048, %v10136
        %v10138 = vpop.f32.mrf.mxu0
        %v10139 = vadd.f32 %v10050, %v10138
        %10140 = vmatmul.bf16.gmra.mxu0 %v9276
        %v10141 = vpop.f32.mrf.mxu0
        %v10142 = vadd.f32 %v10053, %v10141
        %v10143 = vpop.f32.mrf.mxu0
        %v10144 = vadd.f32 %v10055, %v10143
        %10145 = vmatmul.bf16.gmra.mxu0 %v9285
        %v10146 = vpop.f32.mrf.mxu0
        %v10147 = vadd.f32 %v10058, %v10146
        %v10148 = vpop.f32.mrf.mxu0
        %v10149 = vadd.f32 %v10060, %v10148
        %10150 = vmatmul.bf16.gmra.mxu0 %v9294
        %v10151 = vpop.f32.mrf.mxu0
        %v10152 = vadd.f32 %v10063, %v10151
        %v10153 = vpop.f32.mrf.mxu0
        %v10154 = vadd.f32 %v10065, %v10153
        %10155 = vmatmul.bf16.gmra.mxu0 %v9303
        %v10156 = vpop.f32.mrf.mxu0
        %v10157 = vadd.f32 %v10068, %v10156
        %v10158 = vpop.f32.mrf.mxu0
        %v10159 = vadd.f32 %v10070, %v10158
        %10160 = vmatmul.bf16.gmra.mxu0 %v9312
        %v10161 = vpop.f32.mrf.mxu0
        %v10162 = vadd.f32 %v10073, %v10161
        %v10163 = vpop.f32.mrf.mxu0
        %v10164 = vadd.f32 %v10075, %v10163
        %10165 = vmatmul.bf16.gmra.mxu0 %v9321
        %v10166 = vpop.f32.mrf.mxu0
        %v10167 = vadd.f32 %v10078, %v10166
        %v10168 = vpop.f32.mrf.mxu0
        %v10169 = vadd.f32 %v10080, %v10168
        %10170 = vdwg.mxu0
        %10171 = vmatpush.bf16.msra.mxu0 %v9791
        %10172 = vmatpush.bf16.msra.mxu0 %v9790
        %10173 = vmatpush.bf16.msra.mxu0 %v9789
        %10174 = vmatpush.bf16.msra.mxu0 %v9788
        %10175 = vmatpush.bf16.msra.mxu0 %v9787
        %10176 = vmatpush.bf16.msra.mxu0 %v9786
        %10177 = vmatpush.bf16.msra.mxu0 %v9785
        %10178 = vmatpush.bf16.msra.mxu0 %v9784
        %10179 = vmatmul.bf16.gmra.mxu0 %v9187
        %v10180 = vpop.f32.mrf.mxu0
        %v10181 = vadd.f32 %v10092, %v10180
        %v10182 = vpop.f32.mrf.mxu0
        %v10183 = vadd.f32 %v10094, %v10182
        %10184 = vmatmul.bf16.gmra.mxu0 %v9196
        %v10185 = vpop.f32.mrf.mxu0
        %v10186 = vadd.f32 %v10097, %v10185
        %v10187 = vpop.f32.mrf.mxu0
        %v10188 = vadd.f32 %v10099, %v10187
        %10189 = vmatmul.bf16.gmra.mxu0 %v9205
        %v10190 = vpop.f32.mrf.mxu0
        %v10191 = vadd.f32 %v10102, %v10190
        %v10192 = vpop.f32.mrf.mxu0
        %v10193 = vadd.f32 %v10104, %v10192
        %10194 = vmatmul.bf16.gmra.mxu0 %v9214
        %v10195 = vpop.f32.mrf.mxu0
        %v10196 = vadd.f32 %v10107, %v10195
        %v10197 = vpop.f32.mrf.mxu0
        %v10198 = vadd.f32 %v10109, %v10197
        %10199 = vmatmul.bf16.gmra.mxu0 %v9223
        %v10200 = vpop.f32.mrf.mxu0
        %v10201 = vadd.f32 %v10112, %v10200
        %v10202 = vpop.f32.mrf.mxu0
        %v10203 = vadd.f32 %v10114, %v10202
        %10204 = vmatmul.bf16.gmra.mxu0 %v9232
        %v10205 = vpop.f32.mrf.mxu0
        %v10206 = vadd.f32 %v10117, %v10205
        %v10207 = vpop.f32.mrf.mxu0
        %v10208 = vadd.f32 %v10119, %v10207
        %10209 = vmatmul.bf16.gmra.mxu0 %v9241
        %v10210 = vpop.f32.mrf.mxu0
        %v10211 = vadd.f32 %v10122, %v10210
        %v10212 = vpop.f32.mrf.mxu0
        %v10213 = vadd.f32 %v10124, %v10212
        %10214 = vmatmul.bf16.gmra.mxu0 %v9250
        %v10215 = vpop.f32.mrf.mxu0
        %v10216 = vadd.f32 %v10127, %v10215
        %v10217 = vpop.f32.mrf.mxu0
        %v10218 = vadd.f32 %v10129, %v10217
        %10219 = vmatmul.bf16.gmra.mxu0 %v9259
        %v10220 = vpop.f32.mrf.mxu0
        %v10221 = vadd.f32 %v10132, %v10220
        %v10222 = vpop.f32.mrf.mxu0
        %v10223 = vadd.f32 %v10134, %v10222
        %10224 = vmatmul.bf16.gmra.mxu0 %v9268
        %v10225 = vpop.f32.mrf.mxu0
        %v10226 = vadd.f32 %v10137, %v10225
        %v10227 = vpop.f32.mrf.mxu0
        %v10228 = vadd.f32 %v10139, %v10227
        %10229 = vmatmul.bf16.gmra.mxu0 %v9277
        %v10230 = vpop.f32.mrf.mxu0
        %v10231 = vadd.f32 %v10142, %v10230
        %v10232 = vpop.f32.mrf.mxu0
        %v10233 = vadd.f32 %v10144, %v10232
        %10234 = vmatmul.bf16.gmra.mxu0 %v9286
        %v10235 = vpop.f32.mrf.mxu0
        %v10236 = vadd.f32 %v10147, %v10235
        %v10237 = vpop.f32.mrf.mxu0
        %v10238 = vadd.f32 %v10149, %v10237
        %10239 = vmatmul.bf16.gmra.mxu0 %v9295
        %v10240 = vpop.f32.mrf.mxu0
        %v10241 = vadd.f32 %v10152, %v10240
        %v10242 = vpop.f32.mrf.mxu0
        %v10243 = vadd.f32 %v10154, %v10242
        %10244 = vmatmul.bf16.gmra.mxu0 %v9304
        %v10245 = vpop.f32.mrf.mxu0
        %v10246 = vadd.f32 %v10157, %v10245
        %v10247 = vpop.f32.mrf.mxu0
        %v10248 = vadd.f32 %v10159, %v10247
        %10249 = vmatmul.bf16.gmra.mxu0 %v9313
        %v10250 = vpop.f32.mrf.mxu0
        %v10251 = vadd.f32 %v10162, %v10250
        %v10252 = vpop.f32.mrf.mxu0
        %v10253 = vadd.f32 %v10164, %v10252
        %10254 = vmatmul.bf16.gmra.mxu0 %v9322
        %v10255 = vpop.f32.mrf.mxu0
        %v10256 = vadd.f32 %v10167, %v10255
        %v10257 = vpop.f32.mrf.mxu0
        %v10258 = vadd.f32 %v10169, %v10257
        %10259 = vdwg.mxu0
        %10260 = vmatpush.bf16.msra.mxu0 %v9799
        %10261 = vmatpush.bf16.msra.mxu0 %v9798
        %10262 = vmatpush.bf16.msra.mxu0 %v9797
        %10263 = vmatpush.bf16.msra.mxu0 %v9796
        %10264 = vmatpush.bf16.msra.mxu0 %v9795
        %10265 = vmatpush.bf16.msra.mxu0 %v9794
        %10266 = vmatpush.bf16.msra.mxu0 %v9793
        %10267 = vmatpush.bf16.msra.mxu0 %v9792
        %10268 = vmatmul.bf16.gmra.mxu0 %v9188
        %v10269 = vpop.f32.mrf.mxu0
        %v10270 = vadd.f32 %v10181, %v10269
        %v10271 = vpop.f32.mrf.mxu0
        %v10272 = vadd.f32 %v10183, %v10271
        %10273 = vmatmul.bf16.gmra.mxu0 %v9197
        %v10274 = vpop.f32.mrf.mxu0
        %v10275 = vadd.f32 %v10186, %v10274
        %v10276 = vpop.f32.mrf.mxu0
        %v10277 = vadd.f32 %v10188, %v10276
        %10278 = vmatmul.bf16.gmra.mxu0 %v9206
        %v10279 = vpop.f32.mrf.mxu0
        %v10280 = vadd.f32 %v10191, %v10279
        %v10281 = vpop.f32.mrf.mxu0
        %v10282 = vadd.f32 %v10193, %v10281
        %10283 = vmatmul.bf16.gmra.mxu0 %v9215
        %v10284 = vpop.f32.mrf.mxu0
        %v10285 = vadd.f32 %v10196, %v10284
        %v10286 = vpop.f32.mrf.mxu0
        %v10287 = vadd.f32 %v10198, %v10286
        %10288 = vmatmul.bf16.gmra.mxu0 %v9224
        %v10289 = vpop.f32.mrf.mxu0
        %v10290 = vadd.f32 %v10201, %v10289
        %v10291 = vpop.f32.mrf.mxu0
        %v10292 = vadd.f32 %v10203, %v10291
        %10293 = vmatmul.bf16.gmra.mxu0 %v9233
        %v10294 = vpop.f32.mrf.mxu0
        %v10295 = vadd.f32 %v10206, %v10294
        %v10296 = vpop.f32.mrf.mxu0
        %v10297 = vadd.f32 %v10208, %v10296
        %10298 = vmatmul.bf16.gmra.mxu0 %v9242
        %v10299 = vpop.f32.mrf.mxu0
        %v10300 = vadd.f32 %v10211, %v10299
        %v10301 = vpop.f32.mrf.mxu0
        %v10302 = vadd.f32 %v10213, %v10301
        %10303 = vmatmul.bf16.gmra.mxu0 %v9251
        %v10304 = vpop.f32.mrf.mxu0
        %v10305 = vadd.f32 %v10216, %v10304
        %v10306 = vpop.f32.mrf.mxu0
        %v10307 = vadd.f32 %v10218, %v10306
        %10308 = vmatmul.bf16.gmra.mxu0 %v9260
        %v10309 = vpop.f32.mrf.mxu0
        %v10310 = vadd.f32 %v10221, %v10309
        %v10311 = vpop.f32.mrf.mxu0
        %v10312 = vadd.f32 %v10223, %v10311
        %10313 = vmatmul.bf16.gmra.mxu0 %v9269
        %v10314 = vpop.f32.mrf.mxu0
        %v10315 = vadd.f32 %v10226, %v10314
        %v10316 = vpop.f32.mrf.mxu0
        %v10317 = vadd.f32 %v10228, %v10316
        %10318 = vmatmul.bf16.gmra.mxu0 %v9278
        %v10319 = vpop.f32.mrf.mxu0
        %v10320 = vadd.f32 %v10231, %v10319
        %v10321 = vpop.f32.mrf.mxu0
        %v10322 = vadd.f32 %v10233, %v10321
        %10323 = vmatmul.bf16.gmra.mxu0 %v9287
        %v10324 = vpop.f32.mrf.mxu0
        %v10325 = vadd.f32 %v10236, %v10324
        %v10326 = vpop.f32.mrf.mxu0
        %v10327 = vadd.f32 %v10238, %v10326
        %10328 = vmatmul.bf16.gmra.mxu0 %v9296
        %v10329 = vpop.f32.mrf.mxu0
        %v10330 = vadd.f32 %v10241, %v10329
        %v10331 = vpop.f32.mrf.mxu0
        %v10332 = vadd.f32 %v10243, %v10331
        %10333 = vmatmul.bf16.gmra.mxu0 %v9305
        %v10334 = vpop.f32.mrf.mxu0
        %v10335 = vadd.f32 %v10246, %v10334
        %v10336 = vpop.f32.mrf.mxu0
        %v10337 = vadd.f32 %v10248, %v10336
        %10338 = vmatmul.bf16.gmra.mxu0 %v9314
        %v10339 = vpop.f32.mrf.mxu0
        %v10340 = vadd.f32 %v10251, %v10339
        %v10341 = vpop.f32.mrf.mxu0
        %v10342 = vadd.f32 %v10253, %v10341
        %10343 = vmatmul.bf16.gmra.mxu0 %v9323
        %v10344 = vpop.f32.mrf.mxu0
        %v10345 = vadd.f32 %v10256, %v10344
        %v10346 = vpop.f32.mrf.mxu0
        %v10347 = vadd.f32 %v10258, %v10346
        %10348 = vdwg.mxu0
        %10349 = vmatpush.bf16.msra.mxu0 %v9807
        %10350 = vmatpush.bf16.msra.mxu0 %v9806
        %10351 = vmatpush.bf16.msra.mxu0 %v9805
        %10352 = vmatpush.bf16.msra.mxu0 %v9804
        %10353 = vmatpush.bf16.msra.mxu0 %v9803
        %10354 = vmatpush.bf16.msra.mxu0 %v9802
        %10355 = vmatpush.bf16.msra.mxu0 %v9801
        %10356 = vmatpush.bf16.msra.mxu0 %v9800
        %10357 = vmatmul.bf16.gmra.mxu0 %v9189
        %v10358 = vpop.f32.mrf.mxu0
        %v10359 = vadd.f32 %v10270, %v10358
        %v10360 = vpop.f32.mrf.mxu0
        %v10361 = vadd.f32 %v10272, %v10360
        %10362 = vmatmul.bf16.gmra.mxu0 %v9198
        %v10363 = vpop.f32.mrf.mxu0
        %v10364 = vadd.f32 %v10275, %v10363
        %v10365 = vpop.f32.mrf.mxu0
        %v10366 = vadd.f32 %v10277, %v10365
        %10367 = vmatmul.bf16.gmra.mxu0 %v9207
        %v10368 = vpop.f32.mrf.mxu0
        %v10369 = vadd.f32 %v10280, %v10368
        %v10370 = vpop.f32.mrf.mxu0
        %v10371 = vadd.f32 %v10282, %v10370
        %10372 = vmatmul.bf16.gmra.mxu0 %v9216
        %v10373 = vpop.f32.mrf.mxu0
        %v10374 = vadd.f32 %v10285, %v10373
        %v10375 = vpop.f32.mrf.mxu0
        %v10376 = vadd.f32 %v10287, %v10375
        %10377 = vmatmul.bf16.gmra.mxu0 %v9225
        %v10378 = vpop.f32.mrf.mxu0
        %v10379 = vadd.f32 %v10290, %v10378
        %v10380 = vpop.f32.mrf.mxu0
        %v10381 = vadd.f32 %v10292, %v10380
        %10382 = vmatmul.bf16.gmra.mxu0 %v9234
        %v10383 = vpop.f32.mrf.mxu0
        %v10384 = vadd.f32 %v10295, %v10383
        %v10385 = vpop.f32.mrf.mxu0
        %v10386 = vadd.f32 %v10297, %v10385
        %10387 = vmatmul.bf16.gmra.mxu0 %v9243
        %v10388 = vpop.f32.mrf.mxu0
        %v10389 = vadd.f32 %v10300, %v10388
        %v10390 = vpop.f32.mrf.mxu0
        %v10391 = vadd.f32 %v10302, %v10390
        %10392 = vmatmul.bf16.gmra.mxu0 %v9252
        %v10393 = vpop.f32.mrf.mxu0
        %v10394 = vadd.f32 %v10305, %v10393
        %v10395 = vpop.f32.mrf.mxu0
        %v10396 = vadd.f32 %v10307, %v10395
        %10397 = vmatmul.bf16.gmra.mxu0 %v9261
        %v10398 = vpop.f32.mrf.mxu0
        %v10399 = vadd.f32 %v10310, %v10398
        %v10400 = vpop.f32.mrf.mxu0
        %v10401 = vadd.f32 %v10312, %v10400
        %10402 = vmatmul.bf16.gmra.mxu0 %v9270
        %v10403 = vpop.f32.mrf.mxu0
        %v10404 = vadd.f32 %v10315, %v10403
        %v10405 = vpop.f32.mrf.mxu0
        %v10406 = vadd.f32 %v10317, %v10405
        %10407 = vmatmul.bf16.gmra.mxu0 %v9279
        %v10408 = vpop.f32.mrf.mxu0
        %v10409 = vadd.f32 %v10320, %v10408
        %v10410 = vpop.f32.mrf.mxu0
        %v10411 = vadd.f32 %v10322, %v10410
        %10412 = vmatmul.bf16.gmra.mxu0 %v9288
        %v10413 = vpop.f32.mrf.mxu0
        %v10414 = vadd.f32 %v10325, %v10413
        %v10415 = vpop.f32.mrf.mxu0
        %v10416 = vadd.f32 %v10327, %v10415
        %10417 = vmatmul.bf16.gmra.mxu0 %v9297
        %v10418 = vpop.f32.mrf.mxu0
        %v10419 = vadd.f32 %v10330, %v10418
        %v10420 = vpop.f32.mrf.mxu0
        %v10421 = vadd.f32 %v10332, %v10420
        %10422 = vmatmul.bf16.gmra.mxu0 %v9306
        %v10423 = vpop.f32.mrf.mxu0
        %v10424 = vadd.f32 %v10335, %v10423
        %v10425 = vpop.f32.mrf.mxu0
        %v10426 = vadd.f32 %v10337, %v10425
        %10427 = vmatmul.bf16.gmra.mxu0 %v9315
        %v10428 = vpop.f32.mrf.mxu0
        %v10429 = vadd.f32 %v10340, %v10428
        %v10430 = vpop.f32.mrf.mxu0
        %v10431 = vadd.f32 %v10342, %v10430
        %10432 = vmatmul.bf16.gmra.mxu0 %v9324
        %v10433 = vpop.f32.mrf.mxu0
        %v10434 = vadd.f32 %v10345, %v10433
        %v10435 = vpop.f32.mrf.mxu0
        %v10436 = vadd.f32 %v10347, %v10435
        %10437 = vdwg.mxu0
        %10438 = vmatpush.bf16.msra.mxu0 %v9815
        %10439 = vmatpush.bf16.msra.mxu0 %v9814
        %10440 = vmatpush.bf16.msra.mxu0 %v9813
        %10441 = vmatpush.bf16.msra.mxu0 %v9812
        %10442 = vmatpush.bf16.msra.mxu0 %v9811
        %10443 = vmatpush.bf16.msra.mxu0 %v9810
        %10444 = vmatpush.bf16.msra.mxu0 %v9809
        %10445 = vmatpush.bf16.msra.mxu0 %v9808
        %10446 = vmatmul.bf16.gmra.mxu0 %v9190
        %v10447 = vpop.f32.mrf.mxu0
        %v10448 = vadd.f32 %v10359, %v10447
        %v10449 = vpop.f32.mrf.mxu0
        %v10450 = vadd.f32 %v10361, %v10449
        %10451 = vmatmul.bf16.gmra.mxu0 %v9199
        %v10452 = vpop.f32.mrf.mxu0
        %v10453 = vadd.f32 %v10364, %v10452
        %v10454 = vpop.f32.mrf.mxu0
        %v10455 = vadd.f32 %v10366, %v10454
        %10456 = vmatmul.bf16.gmra.mxu0 %v9208
        %v10457 = vpop.f32.mrf.mxu0
        %v10458 = vadd.f32 %v10369, %v10457
        %v10459 = vpop.f32.mrf.mxu0
        %v10460 = vadd.f32 %v10371, %v10459
        %10461 = vmatmul.bf16.gmra.mxu0 %v9217
        %v10462 = vpop.f32.mrf.mxu0
        %v10463 = vadd.f32 %v10374, %v10462
        %v10464 = vpop.f32.mrf.mxu0
        %v10465 = vadd.f32 %v10376, %v10464
        %10466 = vmatmul.bf16.gmra.mxu0 %v9226
        %v10467 = vpop.f32.mrf.mxu0
        %v10468 = vadd.f32 %v10379, %v10467
        %v10469 = vpop.f32.mrf.mxu0
        %v10470 = vadd.f32 %v10381, %v10469
        %10471 = vmatmul.bf16.gmra.mxu0 %v9235
        %v10472 = vpop.f32.mrf.mxu0
        %v10473 = vadd.f32 %v10384, %v10472
        %v10474 = vpop.f32.mrf.mxu0
        %v10475 = vadd.f32 %v10386, %v10474
        %10476 = vmatmul.bf16.gmra.mxu0 %v9244
        %v10477 = vpop.f32.mrf.mxu0
        %v10478 = vadd.f32 %v10389, %v10477
        %v10479 = vpop.f32.mrf.mxu0
        %v10480 = vadd.f32 %v10391, %v10479
        %10481 = vmatmul.bf16.gmra.mxu0 %v9253
        %v10482 = vpop.f32.mrf.mxu0
        %v10483 = vadd.f32 %v10394, %v10482
        %v10484 = vpop.f32.mrf.mxu0
        %v10485 = vadd.f32 %v10396, %v10484
        %10486 = vmatmul.bf16.gmra.mxu0 %v9262
        %v10487 = vpop.f32.mrf.mxu0
        %v10488 = vadd.f32 %v10399, %v10487
        %v10489 = vpop.f32.mrf.mxu0
        %v10490 = vadd.f32 %v10401, %v10489
        %10491 = vmatmul.bf16.gmra.mxu0 %v9271
        %v10492 = vpop.f32.mrf.mxu0
        %v10493 = vadd.f32 %v10404, %v10492
        %v10494 = vpop.f32.mrf.mxu0
        %v10495 = vadd.f32 %v10406, %v10494
        %10496 = vmatmul.bf16.gmra.mxu0 %v9280
        %v10497 = vpop.f32.mrf.mxu0
        %v10498 = vadd.f32 %v10409, %v10497
        %v10499 = vpop.f32.mrf.mxu0
        %v10500 = vadd.f32 %v10411, %v10499
        %10501 = vmatmul.bf16.gmra.mxu0 %v9289
        %v10502 = vpop.f32.mrf.mxu0
        %v10503 = vadd.f32 %v10414, %v10502
        %v10504 = vpop.f32.mrf.mxu0
        %v10505 = vadd.f32 %v10416, %v10504
        %10506 = vmatmul.bf16.gmra.mxu0 %v9298
        %v10507 = vpop.f32.mrf.mxu0
        %v10508 = vadd.f32 %v10419, %v10507
        %v10509 = vpop.f32.mrf.mxu0
        %v10510 = vadd.f32 %v10421, %v10509
        %10511 = vmatmul.bf16.gmra.mxu0 %v9307
        %v10512 = vpop.f32.mrf.mxu0
        %v10513 = vadd.f32 %v10424, %v10512
        %v10514 = vpop.f32.mrf.mxu0
        %v10515 = vadd.f32 %v10426, %v10514
        %10516 = vmatmul.bf16.gmra.mxu0 %v9316
        %v10517 = vpop.f32.mrf.mxu0
        %v10518 = vadd.f32 %v10429, %v10517
        %v10519 = vpop.f32.mrf.mxu0
        %v10520 = vadd.f32 %v10431, %v10519
        %10521 = vmatmul.bf16.gmra.mxu0 %v9325
        %v10522 = vpop.f32.mrf.mxu0
        %v10523 = vadd.f32 %v10434, %v10522
        %v10524 = vpop.f32.mrf.mxu0
        %v10525 = vadd.f32 %v10436, %v10524
        %10526 = vdwg.mxu0
        %10527 = vmatpush.bf16.msra.mxu0 %v9823
        %10528 = vmatpush.bf16.msra.mxu0 %v9822
        %10529 = vmatpush.bf16.msra.mxu0 %v9821
        %10530 = vmatpush.bf16.msra.mxu0 %v9820
        %10531 = vmatpush.bf16.msra.mxu0 %v9819
        %10532 = vmatpush.bf16.msra.mxu0 %v9818
        %10533 = vmatpush.bf16.msra.mxu0 %v9817
        %10534 = vmatpush.bf16.msra.mxu0 %v9816
        %10535 = vmatmul.bf16.gmra.mxu0 %v9191
        %v10536 = vpop.f32.mrf.mxu0
        %v10537 = vadd.f32 %v10448, %v10536
        %v10538 = vpop.f32.mrf.mxu0
        %v10539 = vadd.f32 %v10450, %v10538
        %10540 = vmatmul.bf16.gmra.mxu0 %v9200
        %v10541 = vpop.f32.mrf.mxu0
        %v10542 = vadd.f32 %v10453, %v10541
        %v10543 = vpop.f32.mrf.mxu0
        %v10544 = vadd.f32 %v10455, %v10543
        %10545 = vmatmul.bf16.gmra.mxu0 %v9209
        %v10546 = vpop.f32.mrf.mxu0
        %v10547 = vadd.f32 %v10458, %v10546
        %v10548 = vpop.f32.mrf.mxu0
        %v10549 = vadd.f32 %v10460, %v10548
        %10550 = vmatmul.bf16.gmra.mxu0 %v9218
        %v10551 = vpop.f32.mrf.mxu0
        %v10552 = vadd.f32 %v10463, %v10551
        %v10553 = vpop.f32.mrf.mxu0
        %v10554 = vadd.f32 %v10465, %v10553
        %10555 = vmatmul.bf16.gmra.mxu0 %v9227
        %v10556 = vpop.f32.mrf.mxu0
        %v10557 = vadd.f32 %v10468, %v10556
        %v10558 = vpop.f32.mrf.mxu0
        %v10559 = vadd.f32 %v10470, %v10558
        %10560 = vmatmul.bf16.gmra.mxu0 %v9236
        %v10561 = vpop.f32.mrf.mxu0
        %v10562 = vadd.f32 %v10473, %v10561
        %v10563 = vpop.f32.mrf.mxu0
        %v10564 = vadd.f32 %v10475, %v10563
        %10565 = vmatmul.bf16.gmra.mxu0 %v9245
        %v10566 = vpop.f32.mrf.mxu0
        %v10567 = vadd.f32 %v10478, %v10566
        %v10568 = vpop.f32.mrf.mxu0
        %v10569 = vadd.f32 %v10480, %v10568
        %10570 = vmatmul.bf16.gmra.mxu0 %v9254
        %v10571 = vpop.f32.mrf.mxu0
        %v10572 = vadd.f32 %v10483, %v10571
        %v10573 = vpop.f32.mrf.mxu0
        %v10574 = vadd.f32 %v10485, %v10573
        %10575 = vmatmul.bf16.gmra.mxu0 %v9263
        %v10576 = vpop.f32.mrf.mxu0
        %v10577 = vadd.f32 %v10488, %v10576
        %v10578 = vpop.f32.mrf.mxu0
        %v10579 = vadd.f32 %v10490, %v10578
        %10580 = vmatmul.bf16.gmra.mxu0 %v9272
        %v10581 = vpop.f32.mrf.mxu0
        %v10582 = vadd.f32 %v10493, %v10581
        %v10583 = vpop.f32.mrf.mxu0
        %v10584 = vadd.f32 %v10495, %v10583
        %10585 = vmatmul.bf16.gmra.mxu0 %v9281
        %v10586 = vpop.f32.mrf.mxu0
        %v10587 = vadd.f32 %v10498, %v10586
        %v10588 = vpop.f32.mrf.mxu0
        %v10589 = vadd.f32 %v10500, %v10588
        %10590 = vmatmul.bf16.gmra.mxu0 %v9290
        %v10591 = vpop.f32.mrf.mxu0
        %v10592 = vadd.f32 %v10503, %v10591
        %v10593 = vpop.f32.mrf.mxu0
        %v10594 = vadd.f32 %v10505, %v10593
        %10595 = vmatmul.bf16.gmra.mxu0 %v9299
        %v10596 = vpop.f32.mrf.mxu0
        %v10597 = vadd.f32 %v10508, %v10596
        %v10598 = vpop.f32.mrf.mxu0
        %v10599 = vadd.f32 %v10510, %v10598
        %10600 = vmatmul.bf16.gmra.mxu0 %v9308
        %v10601 = vpop.f32.mrf.mxu0
        %v10602 = vadd.f32 %v10513, %v10601
        %v10603 = vpop.f32.mrf.mxu0
        %v10604 = vadd.f32 %v10515, %v10603
        %10605 = vmatmul.bf16.gmra.mxu0 %v9317
        %v10606 = vpop.f32.mrf.mxu0
        %v10607 = vadd.f32 %v10518, %v10606
        %v10608 = vpop.f32.mrf.mxu0
        %v10609 = vadd.f32 %v10520, %v10608
        %10610 = vmatmul.bf16.gmra.mxu0 %v9326
        %v10611 = vpop.f32.mrf.mxu0
        %v10612 = vadd.f32 %v10523, %v10611
        %v10613 = vpop.f32.mrf.mxu0
        %v10614 = vadd.f32 %v10525, %v10613
        %10615 = vdwg.mxu0
        %10616 = vmatpush.bf16.msra.mxu0 %v9831
        %10617 = vmatpush.bf16.msra.mxu0 %v9830
        %10618 = vmatpush.bf16.msra.mxu0 %v9829
        %10619 = vmatpush.bf16.msra.mxu0 %v9828
        %10620 = vmatpush.bf16.msra.mxu0 %v9827
        %10621 = vmatpush.bf16.msra.mxu0 %v9826
        %10622 = vmatpush.bf16.msra.mxu0 %v9825
        %10623 = vmatpush.bf16.msra.mxu0 %v9824
        %10624 = vmatmul.bf16.gmra.mxu0 %v9192
        %v10625 = vpop.f32.mrf.mxu0
        %v10626 = vadd.f32 %v10537, %v10625
        %v10627 = vpop.f32.mrf.mxu0
        %v10628 = vadd.f32 %v10539, %v10627
        %10629 = vmatmul.bf16.gmra.mxu0 %v9201
        %v10630 = vpop.f32.mrf.mxu0
        %v10631 = vadd.f32 %v10542, %v10630
        %v10632 = vpop.f32.mrf.mxu0
        %v10633 = vadd.f32 %v10544, %v10632
        %10634 = vmatmul.bf16.gmra.mxu0 %v9210
        %v10635 = vpop.f32.mrf.mxu0
        %v10636 = vadd.f32 %v10547, %v10635
        %v10637 = vpop.f32.mrf.mxu0
        %v10638 = vadd.f32 %v10549, %v10637
        %10639 = vmatmul.bf16.gmra.mxu0 %v9219
        %v10640 = vpop.f32.mrf.mxu0
        %v10641 = vadd.f32 %v10552, %v10640
        %v10642 = vpop.f32.mrf.mxu0
        %v10643 = vadd.f32 %v10554, %v10642
        %10644 = vmatmul.bf16.gmra.mxu0 %v9228
        %v10645 = vpop.f32.mrf.mxu0
        %v10646 = vadd.f32 %v10557, %v10645
        %v10647 = vpop.f32.mrf.mxu0
        %v10648 = vadd.f32 %v10559, %v10647
        %10649 = vmatmul.bf16.gmra.mxu0 %v9237
        %v10650 = vpop.f32.mrf.mxu0
        %v10651 = vadd.f32 %v10562, %v10650
        %v10652 = vpop.f32.mrf.mxu0
        %v10653 = vadd.f32 %v10564, %v10652
        %10654 = vmatmul.bf16.gmra.mxu0 %v9246
        %v10655 = vpop.f32.mrf.mxu0
        %v10656 = vadd.f32 %v10567, %v10655
        %v10657 = vpop.f32.mrf.mxu0
        %v10658 = vadd.f32 %v10569, %v10657
        %10659 = vmatmul.bf16.gmra.mxu0 %v9255
        %v10660 = vpop.f32.mrf.mxu0
        %v10661 = vadd.f32 %v10572, %v10660
        %v10662 = vpop.f32.mrf.mxu0
        %v10663 = vadd.f32 %v10574, %v10662
        %10664 = vmatmul.bf16.gmra.mxu0 %v9264
        %v10665 = vpop.f32.mrf.mxu0
        %v10666 = vadd.f32 %v10577, %v10665
        %v10667 = vpop.f32.mrf.mxu0
        %v10668 = vadd.f32 %v10579, %v10667
        %10669 = vmatmul.bf16.gmra.mxu0 %v9273
        %v10670 = vpop.f32.mrf.mxu0
        %v10671 = vadd.f32 %v10582, %v10670
        %v10672 = vpop.f32.mrf.mxu0
        %v10673 = vadd.f32 %v10584, %v10672
        %10674 = vmatmul.bf16.gmra.mxu0 %v9282
        %v10675 = vpop.f32.mrf.mxu0
        %v10676 = vadd.f32 %v10587, %v10675
        %v10677 = vpop.f32.mrf.mxu0
        %v10678 = vadd.f32 %v10589, %v10677
        %10679 = vmatmul.bf16.gmra.mxu0 %v9291
        %v10680 = vpop.f32.mrf.mxu0
        %v10681 = vadd.f32 %v10592, %v10680
        %v10682 = vpop.f32.mrf.mxu0
        %v10683 = vadd.f32 %v10594, %v10682
        %10684 = vmatmul.bf16.gmra.mxu0 %v9300
        %v10685 = vpop.f32.mrf.mxu0
        %v10686 = vadd.f32 %v10597, %v10685
        %v10687 = vpop.f32.mrf.mxu0
        %v10688 = vadd.f32 %v10599, %v10687
        %10689 = vmatmul.bf16.gmra.mxu0 %v9309
        %v10690 = vpop.f32.mrf.mxu0
        %v10691 = vadd.f32 %v10602, %v10690
        %v10692 = vpop.f32.mrf.mxu0
        %v10693 = vadd.f32 %v10604, %v10692
        %10694 = vmatmul.bf16.gmra.mxu0 %v9318
        %v10695 = vpop.f32.mrf.mxu0
        %v10696 = vadd.f32 %v10607, %v10695
        %v10697 = vpop.f32.mrf.mxu0
        %v10698 = vadd.f32 %v10609, %v10697
        %10699 = vmatmul.bf16.gmra.mxu0 %v9327
        %v10700 = vpop.f32.mrf.mxu0
        %v10701 = vadd.f32 %v10612, %v10700
        %v10702 = vpop.f32.mrf.mxu0
        %v10703 = vadd.f32 %v10614, %v10702
        %10704 = vdwg.mxu0
        %v10705 = vmin.f32 %v10626, 20.0
        %v10706 = vmin.f32 %v10628, 20.0
        %v10707 = vmin.f32 %v10631, 20.0
        %v10708 = vmin.f32 %v10633, 20.0
        %v10709 = vmin.f32 %v10636, 20.0
        %v10710 = vmin.f32 %v10638, 20.0
        %v10711 = vmin.f32 %v10641, 20.0
        %v10712 = vmin.f32 %v10643, 20.0
        %v10713 = vmin.f32 %v10646, 20.0
        %v10714 = vmin.f32 %v10648, 20.0
        %v10715 = vmin.f32 %v10651, 20.0
        %v10716 = vmin.f32 %v10653, 20.0
        %v10717 = vmin.f32 %v10656, 20.0
        %v10718 = vmin.f32 %v10658, 20.0
        %v10719 = vmin.f32 %v10661, 20.0
        %v10720 = vmin.f32 %v10663, 20.0
        %v10721 = vmin.f32 %v10666, 20.0
        %v10722 = vmin.f32 %v10668, 20.0
        %v10723 = vmin.f32 %v10671, 20.0
        %v10724 = vmin.f32 %v10673, 20.0
        %v10725 = vmin.f32 %v10676, 20.0
        %v10726 = vmin.f32 %v10678, 20.0
        %v10727 = vmin.f32 %v10681, 20.0
        %v10728 = vmin.f32 %v10683, 20.0
        %v10729 = vmin.f32 %v10686, 20.0
        %v10730 = vmin.f32 %v10688, 20.0
        %v10731 = vmin.f32 %v10691, 20.0
        %v10732 = vmin.f32 %v10693, 20.0
        %v10733 = vmin.f32 %v10696, 20.0
        %v10734 = vmin.f32 %v10698, 20.0
        %v10735 = vmin.f32 %v10701, 20.0
        %v10736 = vmin.f32 %v10703, 20.0
        %v10737 = vmul.f32 %v10705, 1.442695
        %v10738 = vpow.pop %v10737
        %v10739 = vmul.f32 %v10706, 1.442695
        %v10740 = vpow.pop %v10739
        %v10741 = vmul.f32 %v10707, 1.442695
        %v10742 = vpow.pop %v10741
        %v10743 = vmul.f32 %v10708, 1.442695
        %v10744 = vpow.pop %v10743
        %v10745 = vmul.f32 %v10709, 1.442695
        %v10746 = vpow.pop %v10745
        %v10747 = vmul.f32 %v10710, 1.442695
        %v10748 = vpow.pop %v10747
        %v10749 = vmul.f32 %v10711, 1.442695
        %v10750 = vpow.pop %v10749
        %v10751 = vmul.f32 %v10712, 1.442695
        %v10752 = vpow.pop %v10751
        %v10753 = vmul.f32 %v10713, 1.442695
        %v10754 = vpow.pop %v10753
        %v10755 = vmul.f32 %v10714, 1.442695
        %v10756 = vpow.pop %v10755
        %v10757 = vmul.f32 %v10715, 1.442695
        %v10758 = vpow.pop %v10757
        %v10759 = vmul.f32 %v10716, 1.442695
        %v10760 = vpow.pop %v10759
        %v10761 = vmul.f32 %v10717, 1.442695
        %v10762 = vpow.pop %v10761
        %v10763 = vmul.f32 %v10718, 1.442695
        %v10764 = vpow.pop %v10763
        %v10765 = vmul.f32 %v10719, 1.442695
        %v10766 = vpow.pop %v10765
        %v10767 = vmul.f32 %v10720, 1.442695
        %v10768 = vpow.pop %v10767
        %v10769 = vmul.f32 %v10721, 1.442695
        %v10770 = vpow.pop %v10769
        %v10771 = vmul.f32 %v10722, 1.442695
        %v10772 = vpow.pop %v10771
        %v10773 = vmul.f32 %v10723, 1.442695
        %v10774 = vpow.pop %v10773
        %v10775 = vmul.f32 %v10724, 1.442695
        %v10776 = vpow.pop %v10775
        %v10777 = vmul.f32 %v10725, 1.442695
        %v10778 = vpow.pop %v10777
        %v10779 = vmul.f32 %v10726, 1.442695
        %v10780 = vpow.pop %v10779
        %v10781 = vmul.f32 %v10727, 1.442695
        %v10782 = vpow.pop %v10781
        %v10783 = vmul.f32 %v10728, 1.442695
        %v10784 = vpow.pop %v10783
        %v10785 = vmul.f32 %v10729, 1.442695
        %v10786 = vpow.pop %v10785
        %v10787 = vmul.f32 %v10730, 1.442695
        %v10788 = vpow.pop %v10787
        %v10789 = vmul.f32 %v10731, 1.442695
        %v10790 = vpow.pop %v10789
        %v10791 = vmul.f32 %v10732, 1.442695
        %v10792 = vpow.pop %v10791
        %v10793 = vmul.f32 %v10733, 1.442695
        %v10794 = vpow.pop %v10793
        %v10795 = vmul.f32 %v10734, 1.442695
        %v10796 = vpow.pop %v10795
        %v10797 = vmul.f32 %v10735, 1.442695
        %v10798 = vpow.pop %v10797
        %v10799 = vmul.f32 %v10736, 1.442695
        %v10800 = vpow.pop %v10799
        %v10801 = vadd.f32 %v10738, 1.0
        %v10802 = vadd.f32 %v10740, 1.0
        %v10803 = vadd.f32 %v10742, 1.0
        %v10804 = vadd.f32 %v10744, 1.0
        %v10805 = vadd.f32 %v10746, 1.0
        %v10806 = vadd.f32 %v10748, 1.0
        %v10807 = vadd.f32 %v10750, 1.0
        %v10808 = vadd.f32 %v10752, 1.0
        %v10809 = vadd.f32 %v10754, 1.0
        %v10810 = vadd.f32 %v10756, 1.0
        %v10811 = vadd.f32 %v10758, 1.0
        %v10812 = vadd.f32 %v10760, 1.0
        %v10813 = vadd.f32 %v10762, 1.0
        %v10814 = vadd.f32 %v10764, 1.0
        %v10815 = vadd.f32 %v10766, 1.0
        %v10816 = vadd.f32 %v10768, 1.0
        %v10817 = vadd.f32 %v10770, 1.0
        %v10818 = vadd.f32 %v10772, 1.0
        %v10819 = vadd.f32 %v10774, 1.0
        %v10820 = vadd.f32 %v10776, 1.0
        %v10821 = vadd.f32 %v10778, 1.0
        %v10822 = vadd.f32 %v10780, 1.0
        %v10823 = vadd.f32 %v10782, 1.0
        %v10824 = vadd.f32 %v10784, 1.0
        %v10825 = vadd.f32 %v10786, 1.0
        %v10826 = vadd.f32 %v10788, 1.0
        %v10827 = vadd.f32 %v10790, 1.0
        %v10828 = vadd.f32 %v10792, 1.0
        %v10829 = vadd.f32 %v10794, 1.0
        %v10830 = vadd.f32 %v10796, 1.0
        %v10831 = vadd.f32 %v10798, 1.0
        %v10832 = vadd.f32 %v10800, 1.0
        %v10833 = vmul.f32 %v10801, %v10801
        %v10834 = vmul.f32 %v10802, %v10802
        %v10835 = vmul.f32 %v10803, %v10803
        %v10836 = vmul.f32 %v10804, %v10804
        %v10837 = vmul.f32 %v10805, %v10805
        %v10838 = vmul.f32 %v10806, %v10806
        %v10839 = vmul.f32 %v10807, %v10807
        %v10840 = vmul.f32 %v10808, %v10808
        %v10841 = vmul.f32 %v10809, %v10809
        %v10842 = vmul.f32 %v10810, %v10810
        %v10843 = vmul.f32 %v10811, %v10811
        %v10844 = vmul.f32 %v10812, %v10812
        %v10845 = vmul.f32 %v10813, %v10813
        %v10846 = vmul.f32 %v10814, %v10814
        %v10847 = vmul.f32 %v10815, %v10815
        %v10848 = vmul.f32 %v10816, %v10816
        %v10849 = vmul.f32 %v10817, %v10817
        %v10850 = vmul.f32 %v10818, %v10818
        %v10851 = vmul.f32 %v10819, %v10819
        %v10852 = vmul.f32 %v10820, %v10820
        %v10853 = vmul.f32 %v10821, %v10821
        %v10854 = vmul.f32 %v10822, %v10822
        %v10855 = vmul.f32 %v10823, %v10823
        %v10856 = vmul.f32 %v10824, %v10824
        %v10857 = vmul.f32 %v10825, %v10825
        %v10858 = vmul.f32 %v10826, %v10826
        %v10859 = vmul.f32 %v10827, %v10827
        %v10860 = vmul.f32 %v10828, %v10828
        %v10861 = vmul.f32 %v10829, %v10829
        %v10862 = vmul.f32 %v10830, %v10830
        %v10863 = vmul.f32 %v10831, %v10831
        %v10864 = vmul.f32 %v10832, %v10832
        %v10865 = vsub.f32 %v10833, 1.0
        %v10866 = vsub.f32 %v10834, 1.0
        %v10867 = vsub.f32 %v10835, 1.0
        %v10868 = vsub.f32 %v10836, 1.0
        %v10869 = vsub.f32 %v10837, 1.0
        %v10870 = vsub.f32 %v10838, 1.0
        %v10871 = vsub.f32 %v10839, 1.0
        %v10872 = vsub.f32 %v10840, 1.0
        %v10873 = vsub.f32 %v10841, 1.0
        %v10874 = vsub.f32 %v10842, 1.0
        %v10875 = vsub.f32 %v10843, 1.0
        %v10876 = vsub.f32 %v10844, 1.0
        %v10877 = vsub.f32 %v10845, 1.0
        %v10878 = vsub.f32 %v10846, 1.0
        %v10879 = vsub.f32 %v10847, 1.0
        %v10880 = vsub.f32 %v10848, 1.0
        %v10881 = vsub.f32 %v10849, 1.0
        %v10882 = vsub.f32 %v10850, 1.0
        %v10883 = vsub.f32 %v10851, 1.0
        %v10884 = vsub.f32 %v10852, 1.0
        %v10885 = vsub.f32 %v10853, 1.0
        %v10886 = vsub.f32 %v10854, 1.0
        %v10887 = vsub.f32 %v10855, 1.0
        %v10888 = vsub.f32 %v10856, 1.0
        %v10889 = vsub.f32 %v10857, 1.0
        %v10890 = vsub.f32 %v10858, 1.0
        %v10891 = vsub.f32 %v10859, 1.0
        %v10892 = vsub.f32 %v10860, 1.0
        %v10893 = vsub.f32 %v10861, 1.0
        %v10894 = vsub.f32 %v10862, 1.0
        %v10895 = vsub.f32 %v10863, 1.0
        %v10896 = vsub.f32 %v10864, 1.0
        %v10897 = vmul.f32 %v10626, %v10865
        %v10898 = vmul.f32 %v10628, %v10866
        %v10899 = vmul.f32 %v10631, %v10867
        %v10900 = vmul.f32 %v10633, %v10868
        %v10901 = vmul.f32 %v10636, %v10869
        %v10902 = vmul.f32 %v10638, %v10870
        %v10903 = vmul.f32 %v10641, %v10871
        %v10904 = vmul.f32 %v10643, %v10872
        %v10905 = vmul.f32 %v10646, %v10873
        %v10906 = vmul.f32 %v10648, %v10874
        %v10907 = vmul.f32 %v10651, %v10875
        %v10908 = vmul.f32 %v10653, %v10876
        %v10909 = vmul.f32 %v10656, %v10877
        %v10910 = vmul.f32 %v10658, %v10878
        %v10911 = vmul.f32 %v10661, %v10879
        %v10912 = vmul.f32 %v10663, %v10880
        %v10913 = vmul.f32 %v10666, %v10881
        %v10914 = vmul.f32 %v10668, %v10882
        %v10915 = vmul.f32 %v10671, %v10883
        %v10916 = vmul.f32 %v10673, %v10884
        %v10917 = vmul.f32 %v10676, %v10885
        %v10918 = vmul.f32 %v10678, %v10886
        %v10919 = vmul.f32 %v10681, %v10887
        %v10920 = vmul.f32 %v10683, %v10888
        %v10921 = vmul.f32 %v10686, %v10889
        %v10922 = vmul.f32 %v10688, %v10890
        %v10923 = vmul.f32 %v10691, %v10891
        %v10924 = vmul.f32 %v10693, %v10892
        %v10925 = vmul.f32 %v10696, %v10893
        %v10926 = vmul.f32 %v10698, %v10894
        %v10927 = vmul.f32 %v10701, %v10895
        %v10928 = vmul.f32 %v10703, %v10896
        %v10929 = vadd.f32 %v10833, 1.0
        %v10930 = vadd.f32 %v10834, 1.0
        %v10931 = vadd.f32 %v10835, 1.0
        %v10932 = vadd.f32 %v10836, 1.0
        %v10933 = vadd.f32 %v10837, 1.0
        %v10934 = vadd.f32 %v10838, 1.0
        %v10935 = vadd.f32 %v10839, 1.0
        %v10936 = vadd.f32 %v10840, 1.0
        %v10937 = vadd.f32 %v10841, 1.0
        %v10938 = vadd.f32 %v10842, 1.0
        %v10939 = vadd.f32 %v10843, 1.0
        %v10940 = vadd.f32 %v10844, 1.0
        %v10941 = vadd.f32 %v10845, 1.0
        %v10942 = vadd.f32 %v10846, 1.0
        %v10943 = vadd.f32 %v10847, 1.0
        %v10944 = vadd.f32 %v10848, 1.0
        %v10945 = vadd.f32 %v10849, 1.0
        %v10946 = vadd.f32 %v10850, 1.0
        %v10947 = vadd.f32 %v10851, 1.0
        %v10948 = vadd.f32 %v10852, 1.0
        %v10949 = vadd.f32 %v10853, 1.0
        %v10950 = vadd.f32 %v10854, 1.0
        %v10951 = vadd.f32 %v10855, 1.0
        %v10952 = vadd.f32 %v10856, 1.0
        %v10953 = vadd.f32 %v10857, 1.0
        %v10954 = vadd.f32 %v10858, 1.0
        %v10955 = vadd.f32 %v10859, 1.0
        %v10956 = vadd.f32 %v10860, 1.0
        %v10957 = vadd.f32 %v10861, 1.0
        %v10958 = vadd.f32 %v10862, 1.0
        %v10959 = vadd.f32 %v10863, 1.0
        %v10960 = vadd.f32 %v10864, 1.0
        %v10961 = vrcp.pop %v10929
        %v10962 = vrcp.pop %v10930
        %v10963 = vrcp.pop %v10931
        %v10964 = vrcp.pop %v10932
        %v10965 = vrcp.pop %v10933
        %v10966 = vrcp.pop %v10934
        %v10967 = vrcp.pop %v10935
        %v10968 = vrcp.pop %v10936
        %v10969 = vrcp.pop %v10937
        %v10970 = vrcp.pop %v10938
        %v10971 = vrcp.pop %v10939
        %v10972 = vrcp.pop %v10940
        %v10973 = vrcp.pop %v10941
        %v10974 = vrcp.pop %v10942
        %v10975 = vrcp.pop %v10943
        %v10976 = vrcp.pop %v10944
        %v10977 = vrcp.pop %v10945
        %v10978 = vrcp.pop %v10946
        %v10979 = vrcp.pop %v10947
        %v10980 = vrcp.pop %v10948
        %v10981 = vrcp.pop %v10949
        %v10982 = vrcp.pop %v10950
        %v10983 = vrcp.pop %v10951
        %v10984 = vrcp.pop %v10952
        %v10985 = vrcp.pop %v10953
        %v10986 = vrcp.pop %v10954
        %v10987 = vrcp.pop %v10955
        %v10988 = vrcp.pop %v10956
        %v10989 = vrcp.pop %v10957
        %v10990 = vrcp.pop %v10958
        %v10991 = vrcp.pop %v10959
        %v10992 = vrcp.pop %v10960
        %v10993 = vmul.f32 %v10897, %v10961
        %v10994 = vmul.f32 %v10898, %v10962
        %v10995 = vmul.f32 %v10899, %v10963
        %v10996 = vmul.f32 %v10900, %v10964
        %v10997 = vmul.f32 %v10901, %v10965
        %v10998 = vmul.f32 %v10902, %v10966
        %v10999 = vmul.f32 %v10903, %v10967
        %v11000 = vmul.f32 %v10904, %v10968
        %v11001 = vmul.f32 %v10905, %v10969
        %v11002 = vmul.f32 %v10906, %v10970
        %v11003 = vmul.f32 %v10907, %v10971
        %v11004 = vmul.f32 %v10908, %v10972
        %v11005 = vmul.f32 %v10909, %v10973
        %v11006 = vmul.f32 %v10910, %v10974
        %v11007 = vmul.f32 %v10911, %v10975
        %v11008 = vmul.f32 %v10912, %v10976
        %v11009 = vmul.f32 %v10913, %v10977
        %v11010 = vmul.f32 %v10914, %v10978
        %v11011 = vmul.f32 %v10915, %v10979
        %v11012 = vmul.f32 %v10916, %v10980
        %v11013 = vmul.f32 %v10917, %v10981
        %v11014 = vmul.f32 %v10918, %v10982
        %v11015 = vmul.f32 %v10919, %v10983
        %v11016 = vmul.f32 %v10920, %v10984
        %v11017 = vmul.f32 %v10921, %v10985
        %v11018 = vmul.f32 %v10922, %v10986
        %v11019 = vmul.f32 %v10923, %v10987
        %v11020 = vmul.f32 %v10924, %v10988
        %v11021 = vmul.f32 %v10925, %v10989
        %v11022 = vmul.f32 %v10926, %v10990
        %v11023 = vmul.f32 %v10927, %v10991
        %v11024 = vmul.f32 %v10928, %v10992
        %v11025 = vld [vmem:[%s1079] sm:$0xf]
        %v11026 = vld [vmem:[%s1079 + $0x4] sm:$0xf]
        %v11027 = vld [vmem:[%s1079 + $0x8] sm:$0x1]
        %v11028 = vld [vmem:[%s1079 + $0xc] sm:$0xf]
        %v11029 = vld [vmem:[%s1079 + $0x10] sm:$0xf]
        %v11030 = vld [vmem:[%s1079 + $0x14] sm:$0x1]
        %v11031 = vld [vmem:[%s1079 + $0x18] sm:$0xf]
        %v11032 = vld [vmem:[%s1079 + $0x1c] sm:$0xf]
        %v11033 = vld [vmem:[%s1079 + $0x20] sm:$0x1]
        %v11034 = vld [vmem:[%s1079 + $0x24] sm:$0xf]
        %v11035 = vld [vmem:[%s1079 + $0x28] sm:$0xf]
        %v11036 = vld [vmem:[%s1079 + $0x2c] sm:$0x1]
        %v11037 = vld [vmem:[%s1079 + $0x30] sm:$0xf]
        %v11038 = vld [vmem:[%s1079 + $0x34] sm:$0xf]
        %v11039 = vld [vmem:[%s1079 + $0x38] sm:$0x1]
        %v11040 = vld [vmem:[%s1079 + $0x3c] sm:$0xf]
        %v11041 = vld [vmem:[%s1079 + $0x40] sm:$0xf]
        %v11042 = vld [vmem:[%s1079 + $0x44] sm:$0x1]
        %v11043 = vld [vmem:[%s1079 + $0x48] sm:$0xf]
        %v11044 = vld [vmem:[%s1079 + $0x4c] sm:$0xf]
        %v11045 = vld [vmem:[%s1079 + $0x50] sm:$0x1]
        %v11046 = vld [vmem:[%s1079 + $0x54] sm:$0xf]
        %v11047 = vld [vmem:[%s1079 + $0x58] sm:$0xf]
        %v11048 = vld [vmem:[%s1079 + $0x5c] sm:$0x1]
        %v11049 = vld [vmem:[%s1079 + $0x60] sm:$0xf]
        %v11050 = vld [vmem:[%s1079 + $0x64] sm:$0xf]
        %v11051 = vld [vmem:[%s1079 + $0x68] sm:$0x1]
        %v11052 = vld [vmem:[%s1079 + $0x6c] sm:$0xf]
        %v11053 = vld [vmem:[%s1079 + $0x70] sm:$0xf]
        %v11054 = vld [vmem:[%s1079 + $0x74] sm:$0x1]
        %v11055 = vld [vmem:[%s1079 + $0x78] sm:$0xf]
        %v11056 = vld [vmem:[%s1079 + $0x7c] sm:$0xf]
        %v11057 = vld [vmem:[%s1079 + $0x80] sm:$0x1]
        %v11058 = vld [vmem:[%s1079 + $0x84] sm:$0xf]
        %v11059 = vld [vmem:[%s1079 + $0x88] sm:$0xf]
        %v11060 = vld [vmem:[%s1079 + $0x8c] sm:$0x1]
        %v11061 = vld [vmem:[%s1079 + $0x90] sm:$0xf]
        %v11062 = vld [vmem:[%s1079 + $0x94] sm:$0xf]
        %v11063 = vld [vmem:[%s1079 + $0x98] sm:$0x1]
        %v11064 = vld [vmem:[%s1079 + $0x9c] sm:$0xf]
        %v11065 = vld [vmem:[%s1079 + $0xa0] sm:$0xf]
        %v11066 = vld [vmem:[%s1079 + $0xa4] sm:$0x1]
        %v11067 = vld [vmem:[%s1079 + $0xa8] sm:$0xf]
        %v11068 = vld [vmem:[%s1079 + $0xac] sm:$0xf]
        %v11069 = vld [vmem:[%s1079 + $0xb0] sm:$0x1]
        %v11070 = vld [vmem:[%s1079 + $0xb4] sm:$0xf]
        %v11071 = vld [vmem:[%s1079 + $0xb8] sm:$0xf]
        %v11072 = vld [vmem:[%s1079 + $0xbc] sm:$0x1]
        %v11074 = vshrl.u32 %v11025, 16
        %v11076 = vrot.slane %v11074, 4
        %v11077 = vshll.u32 %v11025, 16
        %v11079 = vrot.slane %v11077, 5
        %v11080 = vor.u32 %v11076, %v11079
        %v11081 = vrot.slane %v11080, 4
        %v11083 = vshll.u32 %v11026, 16
        %v11085 = vrot.slane %v11083, 5
        %v11086 = vsel %vm355, %v11081, %v11085
        %v11087 = vshrl.u32 %v11026, 16
        %v11089 = vrot.slane %v11087, 4
        %v11090 = vor.u32 %v11089, %v11085
        %v11091 = vrot.slane %v11090, 4
        %v11093 = vshll.u32 %v11027, 16
        %v11095 = vrot.slane %v11093, 5
        %v11096 = vsel %vm355, %v11091, %v11095
        %v11098 = vshrl.u32 %v11028, 16
        %v11100 = vrot.slane %v11098, 4
        %v11101 = vshll.u32 %v11028, 16
        %v11103 = vrot.slane %v11101, 5
        %v11104 = vor.u32 %v11100, %v11103
        %v11105 = vrot.slane %v11104, 4
        %v11107 = vshll.u32 %v11029, 16
        %v11109 = vrot.slane %v11107, 5
        %v11110 = vsel %vm355, %v11105, %v11109
        %v11111 = vshrl.u32 %v11029, 16
        %v11113 = vrot.slane %v11111, 4
        %v11114 = vor.u32 %v11113, %v11109
        %v11115 = vrot.slane %v11114, 4
        %v11117 = vshll.u32 %v11030, 16
        %v11119 = vrot.slane %v11117, 5
        %v11120 = vsel %vm355, %v11115, %v11119
        %v11122 = vshrl.u32 %v11031, 16
        %v11124 = vrot.slane %v11122, 4
        %v11125 = vshll.u32 %v11031, 16
        %v11127 = vrot.slane %v11125, 5
        %v11128 = vor.u32 %v11124, %v11127
        %v11129 = vrot.slane %v11128, 4
        %v11131 = vshll.u32 %v11032, 16
        %v11133 = vrot.slane %v11131, 5
        %v11134 = vsel %vm355, %v11129, %v11133
        %v11135 = vshrl.u32 %v11032, 16
        %v11137 = vrot.slane %v11135, 4
        %v11138 = vor.u32 %v11137, %v11133
        %v11139 = vrot.slane %v11138, 4
        %v11141 = vshll.u32 %v11033, 16
        %v11143 = vrot.slane %v11141, 5
        %v11144 = vsel %vm355, %v11139, %v11143
        %v11146 = vshrl.u32 %v11034, 16
        %v11148 = vrot.slane %v11146, 4
        %v11149 = vshll.u32 %v11034, 16
        %v11151 = vrot.slane %v11149, 5
        %v11152 = vor.u32 %v11148, %v11151
        %v11153 = vrot.slane %v11152, 4
        %v11155 = vshll.u32 %v11035, 16
        %v11157 = vrot.slane %v11155, 5
        %v11158 = vsel %vm355, %v11153, %v11157
        %v11159 = vshrl.u32 %v11035, 16
        %v11161 = vrot.slane %v11159, 4
        %v11162 = vor.u32 %v11161, %v11157
        %v11163 = vrot.slane %v11162, 4
        %v11165 = vshll.u32 %v11036, 16
        %v11167 = vrot.slane %v11165, 5
        %v11168 = vsel %vm355, %v11163, %v11167
        %v11170 = vshrl.u32 %v11037, 16
        %v11172 = vrot.slane %v11170, 4
        %v11173 = vshll.u32 %v11037, 16
        %v11175 = vrot.slane %v11173, 5
        %v11176 = vor.u32 %v11172, %v11175
        %v11177 = vrot.slane %v11176, 4
        %v11179 = vshll.u32 %v11038, 16
        %v11181 = vrot.slane %v11179, 5
        %v11182 = vsel %vm355, %v11177, %v11181
        %v11183 = vshrl.u32 %v11038, 16
        %v11185 = vrot.slane %v11183, 4
        %v11186 = vor.u32 %v11185, %v11181
        %v11187 = vrot.slane %v11186, 4
        %v11189 = vshll.u32 %v11039, 16
        %v11191 = vrot.slane %v11189, 5
        %v11192 = vsel %vm355, %v11187, %v11191
        %v11194 = vshrl.u32 %v11040, 16
        %v11196 = vrot.slane %v11194, 4
        %v11197 = vshll.u32 %v11040, 16
        %v11199 = vrot.slane %v11197, 5
        %v11200 = vor.u32 %v11196, %v11199
        %v11201 = vrot.slane %v11200, 4
        %v11203 = vshll.u32 %v11041, 16
        %v11205 = vrot.slane %v11203, 5
        %v11206 = vsel %vm355, %v11201, %v11205
        %v11207 = vshrl.u32 %v11041, 16
        %v11209 = vrot.slane %v11207, 4
        %v11210 = vor.u32 %v11209, %v11205
        %v11211 = vrot.slane %v11210, 4
        %v11213 = vshll.u32 %v11042, 16
        %v11215 = vrot.slane %v11213, 5
        %v11216 = vsel %vm355, %v11211, %v11215
        %v11218 = vshrl.u32 %v11043, 16
        %v11220 = vrot.slane %v11218, 4
        %v11221 = vshll.u32 %v11043, 16
        %v11223 = vrot.slane %v11221, 5
        %v11224 = vor.u32 %v11220, %v11223
        %v11225 = vrot.slane %v11224, 4
        %v11227 = vshll.u32 %v11044, 16
        %v11229 = vrot.slane %v11227, 5
        %v11230 = vsel %vm355, %v11225, %v11229
        %v11231 = vshrl.u32 %v11044, 16
        %v11233 = vrot.slane %v11231, 4
        %v11234 = vor.u32 %v11233, %v11229
        %v11235 = vrot.slane %v11234, 4
        %v11237 = vshll.u32 %v11045, 16
        %v11239 = vrot.slane %v11237, 5
        %v11240 = vsel %vm355, %v11235, %v11239
        %v11242 = vshrl.u32 %v11046, 16
        %v11244 = vrot.slane %v11242, 4
        %v11245 = vshll.u32 %v11046, 16
        %v11247 = vrot.slane %v11245, 5
        %v11248 = vor.u32 %v11244, %v11247
        %v11249 = vrot.slane %v11248, 4
        %v11251 = vshll.u32 %v11047, 16
        %v11253 = vrot.slane %v11251, 5
        %v11254 = vsel %vm355, %v11249, %v11253
        %v11255 = vshrl.u32 %v11047, 16
        %v11257 = vrot.slane %v11255, 4
        %v11258 = vor.u32 %v11257, %v11253
        %v11259 = vrot.slane %v11258, 4
        %v11261 = vshll.u32 %v11048, 16
        %v11263 = vrot.slane %v11261, 5
        %v11264 = vsel %vm355, %v11259, %v11263
        %v11266 = vshrl.u32 %v11049, 16
        %v11268 = vrot.slane %v11266, 4
        %v11269 = vshll.u32 %v11049, 16
        %v11271 = vrot.slane %v11269, 5
        %v11272 = vor.u32 %v11268, %v11271
        %v11273 = vrot.slane %v11272, 4
        %v11275 = vshll.u32 %v11050, 16
        %v11277 = vrot.slane %v11275, 5
        %v11278 = vsel %vm355, %v11273, %v11277
        %v11279 = vshrl.u32 %v11050, 16
        %v11281 = vrot.slane %v11279, 4
        %v11282 = vor.u32 %v11281, %v11277
        %v11283 = vrot.slane %v11282, 4
        %v11285 = vshll.u32 %v11051, 16
        %v11287 = vrot.slane %v11285, 5
        %v11288 = vsel %vm355, %v11283, %v11287
        %v11290 = vshrl.u32 %v11052, 16
        %v11292 = vrot.slane %v11290, 4
        %v11293 = vshll.u32 %v11052, 16
        %v11295 = vrot.slane %v11293, 5
        %v11296 = vor.u32 %v11292, %v11295
        %v11297 = vrot.slane %v11296, 4
        %v11299 = vshll.u32 %v11053, 16
        %v11301 = vrot.slane %v11299, 5
        %v11302 = vsel %vm355, %v11297, %v11301
        %v11303 = vshrl.u32 %v11053, 16
        %v11305 = vrot.slane %v11303, 4
        %v11306 = vor.u32 %v11305, %v11301
        %v11307 = vrot.slane %v11306, 4
        %v11309 = vshll.u32 %v11054, 16
        %v11311 = vrot.slane %v11309, 5
        %v11312 = vsel %vm355, %v11307, %v11311
        %v11314 = vshrl.u32 %v11055, 16
        %v11316 = vrot.slane %v11314, 4
        %v11317 = vshll.u32 %v11055, 16
        %v11319 = vrot.slane %v11317, 5
        %v11320 = vor.u32 %v11316, %v11319
        %v11321 = vrot.slane %v11320, 4
        %v11323 = vshll.u32 %v11056, 16
        %v11325 = vrot.slane %v11323, 5
        %v11326 = vsel %vm355, %v11321, %v11325
        %v11327 = vshrl.u32 %v11056, 16
        %v11329 = vrot.slane %v11327, 4
        %v11330 = vor.u32 %v11329, %v11325
        %v11331 = vrot.slane %v11330, 4
        %v11333 = vshll.u32 %v11057, 16
        %v11335 = vrot.slane %v11333, 5
        %v11336 = vsel %vm355, %v11331, %v11335
        %v11338 = vshrl.u32 %v11058, 16
        %v11340 = vrot.slane %v11338, 4
        %v11341 = vshll.u32 %v11058, 16
        %v11343 = vrot.slane %v11341, 5
        %v11344 = vor.u32 %v11340, %v11343
        %v11345 = vrot.slane %v11344, 4
        %v11347 = vshll.u32 %v11059, 16
        %v11349 = vrot.slane %v11347, 5
        %v11350 = vsel %vm355, %v11345, %v11349
        %v11351 = vshrl.u32 %v11059, 16
        %v11353 = vrot.slane %v11351, 4
        %v11354 = vor.u32 %v11353, %v11349
        %v11355 = vrot.slane %v11354, 4
        %v11357 = vshll.u32 %v11060, 16
        %v11359 = vrot.slane %v11357, 5
        %v11360 = vsel %vm355, %v11355, %v11359
        %v11362 = vshrl.u32 %v11061, 16
        %v11364 = vrot.slane %v11362, 4
        %v11365 = vshll.u32 %v11061, 16
        %v11367 = vrot.slane %v11365, 5
        %v11368 = vor.u32 %v11364, %v11367
        %v11369 = vrot.slane %v11368, 4
        %v11371 = vshll.u32 %v11062, 16
        %v11373 = vrot.slane %v11371, 5
        %v11374 = vsel %vm355, %v11369, %v11373
        %v11375 = vshrl.u32 %v11062, 16
        %v11377 = vrot.slane %v11375, 4
        %v11378 = vor.u32 %v11377, %v11373
        %v11379 = vrot.slane %v11378, 4
        %v11381 = vshll.u32 %v11063, 16
        %v11383 = vrot.slane %v11381, 5
        %v11384 = vsel %vm355, %v11379, %v11383
        %v11386 = vshrl.u32 %v11064, 16
        %v11388 = vrot.slane %v11386, 4
        %v11389 = vshll.u32 %v11064, 16
        %v11391 = vrot.slane %v11389, 5
        %v11392 = vor.u32 %v11388, %v11391
        %v11393 = vrot.slane %v11392, 4
        %v11395 = vshll.u32 %v11065, 16
        %v11397 = vrot.slane %v11395, 5
        %v11398 = vsel %vm355, %v11393, %v11397
        %v11399 = vshrl.u32 %v11065, 16
        %v11401 = vrot.slane %v11399, 4
        %v11402 = vor.u32 %v11401, %v11397
        %v11403 = vrot.slane %v11402, 4
        %v11405 = vshll.u32 %v11066, 16
        %v11407 = vrot.slane %v11405, 5
        %v11408 = vsel %vm355, %v11403, %v11407
        %v11410 = vshrl.u32 %v11067, 16
        %v11412 = vrot.slane %v11410, 4
        %v11413 = vshll.u32 %v11067, 16
        %v11415 = vrot.slane %v11413, 5
        %v11416 = vor.u32 %v11412, %v11415
        %v11417 = vrot.slane %v11416, 4
        %v11419 = vshll.u32 %v11068, 16
        %v11421 = vrot.slane %v11419, 5
        %v11422 = vsel %vm355, %v11417, %v11421
        %v11423 = vshrl.u32 %v11068, 16
        %v11425 = vrot.slane %v11423, 4
        %v11426 = vor.u32 %v11425, %v11421
        %v11427 = vrot.slane %v11426, 4
        %v11429 = vshll.u32 %v11069, 16
        %v11431 = vrot.slane %v11429, 5
        %v11432 = vsel %vm355, %v11427, %v11431
        %v11434 = vshrl.u32 %v11070, 16
        %v11436 = vrot.slane %v11434, 4
        %v11437 = vshll.u32 %v11070, 16
        %v11439 = vrot.slane %v11437, 5
        %v11440 = vor.u32 %v11436, %v11439
        %v11441 = vrot.slane %v11440, 4
        %v11443 = vshll.u32 %v11071, 16
        %v11445 = vrot.slane %v11443, 5
        %v11446 = vsel %vm355, %v11441, %v11445
        %v11447 = vshrl.u32 %v11071, 16
        %v11449 = vrot.slane %v11447, 4
        %v11450 = vor.u32 %v11449, %v11445
        %v11451 = vrot.slane %v11450, 4
        %v11453 = vshll.u32 %v11072, 16
        %v11455 = vrot.slane %v11453, 5
        %v11456 = vsel %vm355, %v11451, %v11455
        %v11489 = vunpack.c.l.bf16 %v11086
        %v11490 = vunpack.c.l.bf16 %v11096
        %v11491 = vunpack.c.l.bf16 %v11110
        %v11492 = vunpack.c.l.bf16 %v11120
        %v11493 = vunpack.c.l.bf16 %v11134
        %v11494 = vunpack.c.l.bf16 %v11144
        %v11495 = vunpack.c.l.bf16 %v11158
        %v11496 = vunpack.c.l.bf16 %v11168
        %v11497 = vunpack.c.l.bf16 %v11182
        %v11498 = vunpack.c.l.bf16 %v11192
        %v11499 = vunpack.c.l.bf16 %v11206
        %v11500 = vunpack.c.l.bf16 %v11216
        %v11501 = vunpack.c.l.bf16 %v11230
        %v11502 = vunpack.c.l.bf16 %v11240
        %v11503 = vunpack.c.l.bf16 %v11254
        %v11504 = vunpack.c.l.bf16 %v11264
        %v11505 = vunpack.c.l.bf16 %v11278
        %v11506 = vunpack.c.l.bf16 %v11288
        %v11507 = vunpack.c.l.bf16 %v11302
        %v11508 = vunpack.c.l.bf16 %v11312
        %v11509 = vunpack.c.l.bf16 %v11326
        %v11510 = vunpack.c.l.bf16 %v11336
        %v11511 = vunpack.c.l.bf16 %v11350
        %v11512 = vunpack.c.l.bf16 %v11360
        %v11513 = vunpack.c.l.bf16 %v11374
        %v11514 = vunpack.c.l.bf16 %v11384
        %v11515 = vunpack.c.l.bf16 %v11398
        %v11516 = vunpack.c.l.bf16 %v11408
        %v11517 = vunpack.c.l.bf16 %v11422
        %v11518 = vunpack.c.l.bf16 %v11432
        %v11519 = vunpack.c.l.bf16 %v11446
        %v11520 = vunpack.c.l.bf16 %v11456
        %v11521 = vadd.f32 %v10993, %v11489
        %v11522 = vadd.f32 %v10994, %v11490
        %v11523 = vadd.f32 %v10995, %v11491
        %v11524 = vadd.f32 %v10996, %v11492
        %v11525 = vadd.f32 %v10997, %v11493
        %v11526 = vadd.f32 %v10998, %v11494
        %v11527 = vadd.f32 %v10999, %v11495
        %v11528 = vadd.f32 %v11000, %v11496
        %v11529 = vadd.f32 %v11001, %v11497
        %v11530 = vadd.f32 %v11002, %v11498
        %v11531 = vadd.f32 %v11003, %v11499
        %v11532 = vadd.f32 %v11004, %v11500
        %v11533 = vadd.f32 %v11005, %v11501
        %v11534 = vadd.f32 %v11006, %v11502
        %v11535 = vadd.f32 %v11007, %v11503
        %v11536 = vadd.f32 %v11008, %v11504
        %v11537 = vadd.f32 %v11009, %v11505
        %v11538 = vadd.f32 %v11010, %v11506
        %v11539 = vadd.f32 %v11011, %v11507
        %v11540 = vadd.f32 %v11012, %v11508
        %v11541 = vadd.f32 %v11013, %v11509
        %v11542 = vadd.f32 %v11014, %v11510
        %v11543 = vadd.f32 %v11015, %v11511
        %v11544 = vadd.f32 %v11016, %v11512
        %v11545 = vadd.f32 %v11017, %v11513
        %v11546 = vadd.f32 %v11018, %v11514
        %v11547 = vadd.f32 %v11019, %v11515
        %v11548 = vadd.f32 %v11020, %v11516
        %v11549 = vadd.f32 %v11021, %v11517
        %v11550 = vadd.f32 %v11022, %v11518
        %v11551 = vadd.f32 %v11023, %v11519
        %v11552 = vadd.f32 %v11024, %v11520
        %v11553 = vmin.f32 %v11521, 20.0
        %v11554 = vmin.f32 %v11522, 20.0
        %v11555 = vmin.f32 %v11523, 20.0
        %v11556 = vmin.f32 %v11524, 20.0
        %v11557 = vmin.f32 %v11525, 20.0
        %v11558 = vmin.f32 %v11526, 20.0
        %v11559 = vmin.f32 %v11527, 20.0
        %v11560 = vmin.f32 %v11528, 20.0
        %v11561 = vmin.f32 %v11529, 20.0
        %v11562 = vmin.f32 %v11530, 20.0
        %v11563 = vmin.f32 %v11531, 20.0
        %v11564 = vmin.f32 %v11532, 20.0
        %v11565 = vmin.f32 %v11533, 20.0
        %v11566 = vmin.f32 %v11534, 20.0
        %v11567 = vmin.f32 %v11535, 20.0
        %v11568 = vmin.f32 %v11536, 20.0
        %v11569 = vmin.f32 %v11537, 20.0
        %v11570 = vmin.f32 %v11538, 20.0
        %v11571 = vmin.f32 %v11539, 20.0
        %v11572 = vmin.f32 %v11540, 20.0
        %v11573 = vmin.f32 %v11541, 20.0
        %v11574 = vmin.f32 %v11542, 20.0
        %v11575 = vmin.f32 %v11543, 20.0
        %v11576 = vmin.f32 %v11544, 20.0
        %v11577 = vmin.f32 %v11545, 20.0
        %v11578 = vmin.f32 %v11546, 20.0
        %v11579 = vmin.f32 %v11547, 20.0
        %v11580 = vmin.f32 %v11548, 20.0
        %v11581 = vmin.f32 %v11549, 20.0
        %v11582 = vmin.f32 %v11550, 20.0
        %v11583 = vmin.f32 %v11551, 20.0
        %v11584 = vmin.f32 %v11552, 20.0
        %v11585 = vmul.f32 %v11553, 1.442695
        %v11586 = vpow.pop %v11585
        %v11587 = vmul.f32 %v11554, 1.442695
        %v11588 = vpow.pop %v11587
        %v11589 = vmul.f32 %v11555, 1.442695
        %v11590 = vpow.pop %v11589
        %v11591 = vmul.f32 %v11556, 1.442695
        %v11592 = vpow.pop %v11591
        %v11593 = vmul.f32 %v11557, 1.442695
        %v11594 = vpow.pop %v11593
        %v11595 = vmul.f32 %v11558, 1.442695
        %v11596 = vpow.pop %v11595
        %v11597 = vmul.f32 %v11559, 1.442695
        %v11598 = vpow.pop %v11597
        %v11599 = vmul.f32 %v11560, 1.442695
        %v11600 = vpow.pop %v11599
        %v11601 = vmul.f32 %v11561, 1.442695
        %v11602 = vpow.pop %v11601
        %v11603 = vmul.f32 %v11562, 1.442695
        %v11604 = vpow.pop %v11603
        %v11605 = vmul.f32 %v11563, 1.442695
        %v11606 = vpow.pop %v11605
        %v11607 = vmul.f32 %v11564, 1.442695
        %v11608 = vpow.pop %v11607
        %v11609 = vmul.f32 %v11565, 1.442695
        %v11610 = vpow.pop %v11609
        %v11611 = vmul.f32 %v11566, 1.442695
        %v11612 = vpow.pop %v11611
        %v11613 = vmul.f32 %v11567, 1.442695
        %v11614 = vpow.pop %v11613
        %v11615 = vmul.f32 %v11568, 1.442695
        %v11616 = vpow.pop %v11615
        %v11617 = vmul.f32 %v11569, 1.442695
        %v11618 = vpow.pop %v11617
        %v11619 = vmul.f32 %v11570, 1.442695
        %v11620 = vpow.pop %v11619
        %v11621 = vmul.f32 %v11571, 1.442695
        %v11622 = vpow.pop %v11621
        %v11623 = vmul.f32 %v11572, 1.442695
        %v11624 = vpow.pop %v11623
        %v11625 = vmul.f32 %v11573, 1.442695
        %v11626 = vpow.pop %v11625
        %v11627 = vmul.f32 %v11574, 1.442695
        %v11628 = vpow.pop %v11627
        %v11629 = vmul.f32 %v11575, 1.442695
        %v11630 = vpow.pop %v11629
        %v11631 = vmul.f32 %v11576, 1.442695
        %v11632 = vpow.pop %v11631
        %v11633 = vmul.f32 %v11577, 1.442695
        %v11634 = vpow.pop %v11633
        %v11635 = vmul.f32 %v11578, 1.442695
        %v11636 = vpow.pop %v11635
        %v11637 = vmul.f32 %v11579, 1.442695
        %v11638 = vpow.pop %v11637
        %v11639 = vmul.f32 %v11580, 1.442695
        %v11640 = vpow.pop %v11639
        %v11641 = vmul.f32 %v11581, 1.442695
        %v11642 = vpow.pop %v11641
        %v11643 = vmul.f32 %v11582, 1.442695
        %v11644 = vpow.pop %v11643
        %v11645 = vmul.f32 %v11583, 1.442695
        %v11646 = vpow.pop %v11645
        %v11647 = vmul.f32 %v11584, 1.442695
        %v11648 = vpow.pop %v11647
        %v11649 = vadd.f32 %v11586, 1.0
        %v11650 = vadd.f32 %v11588, 1.0
        %v11651 = vadd.f32 %v11590, 1.0
        %v11652 = vadd.f32 %v11592, 1.0
        %v11653 = vadd.f32 %v11594, 1.0
        %v11654 = vadd.f32 %v11596, 1.0
        %v11655 = vadd.f32 %v11598, 1.0
        %v11656 = vadd.f32 %v11600, 1.0
        %v11657 = vadd.f32 %v11602, 1.0
        %v11658 = vadd.f32 %v11604, 1.0
        %v11659 = vadd.f32 %v11606, 1.0
        %v11660 = vadd.f32 %v11608, 1.0
        %v11661 = vadd.f32 %v11610, 1.0
        %v11662 = vadd.f32 %v11612, 1.0
        %v11663 = vadd.f32 %v11614, 1.0
        %v11664 = vadd.f32 %v11616, 1.0
        %v11665 = vadd.f32 %v11618, 1.0
        %v11666 = vadd.f32 %v11620, 1.0
        %v11667 = vadd.f32 %v11622, 1.0
        %v11668 = vadd.f32 %v11624, 1.0
        %v11669 = vadd.f32 %v11626, 1.0
        %v11670 = vadd.f32 %v11628, 1.0
        %v11671 = vadd.f32 %v11630, 1.0
        %v11672 = vadd.f32 %v11632, 1.0
        %v11673 = vadd.f32 %v11634, 1.0
        %v11674 = vadd.f32 %v11636, 1.0
        %v11675 = vadd.f32 %v11638, 1.0
        %v11676 = vadd.f32 %v11640, 1.0
        %v11677 = vadd.f32 %v11642, 1.0
        %v11678 = vadd.f32 %v11644, 1.0
        %v11679 = vadd.f32 %v11646, 1.0
        %v11680 = vadd.f32 %v11648, 1.0
        %v11681 = vmul.f32 %v11649, %v11649
        %v11682 = vmul.f32 %v11650, %v11650
        %v11683 = vmul.f32 %v11651, %v11651
        %v11684 = vmul.f32 %v11652, %v11652
        %v11685 = vmul.f32 %v11653, %v11653
        %v11686 = vmul.f32 %v11654, %v11654
        %v11687 = vmul.f32 %v11655, %v11655
        %v11688 = vmul.f32 %v11656, %v11656
        %v11689 = vmul.f32 %v11657, %v11657
        %v11690 = vmul.f32 %v11658, %v11658
        %v11691 = vmul.f32 %v11659, %v11659
        %v11692 = vmul.f32 %v11660, %v11660
        %v11693 = vmul.f32 %v11661, %v11661
        %v11694 = vmul.f32 %v11662, %v11662
        %v11695 = vmul.f32 %v11663, %v11663
        %v11696 = vmul.f32 %v11664, %v11664
        %v11697 = vmul.f32 %v11665, %v11665
        %v11698 = vmul.f32 %v11666, %v11666
        %v11699 = vmul.f32 %v11667, %v11667
        %v11700 = vmul.f32 %v11668, %v11668
        %v11701 = vmul.f32 %v11669, %v11669
        %v11702 = vmul.f32 %v11670, %v11670
        %v11703 = vmul.f32 %v11671, %v11671
        %v11704 = vmul.f32 %v11672, %v11672
        %v11705 = vmul.f32 %v11673, %v11673
        %v11706 = vmul.f32 %v11674, %v11674
        %v11707 = vmul.f32 %v11675, %v11675
        %v11708 = vmul.f32 %v11676, %v11676
        %v11709 = vmul.f32 %v11677, %v11677
        %v11710 = vmul.f32 %v11678, %v11678
        %v11711 = vmul.f32 %v11679, %v11679
        %v11712 = vmul.f32 %v11680, %v11680
        %v11713 = vsub.f32 %v11681, 1.0
        %v11714 = vsub.f32 %v11682, 1.0
        %v11715 = vsub.f32 %v11683, 1.0
        %v11716 = vsub.f32 %v11684, 1.0
        %v11717 = vsub.f32 %v11685, 1.0
        %v11718 = vsub.f32 %v11686, 1.0
        %v11719 = vsub.f32 %v11687, 1.0
        %v11720 = vsub.f32 %v11688, 1.0
        %v11721 = vsub.f32 %v11689, 1.0
        %v11722 = vsub.f32 %v11690, 1.0
        %v11723 = vsub.f32 %v11691, 1.0
        %v11724 = vsub.f32 %v11692, 1.0
        %v11725 = vsub.f32 %v11693, 1.0
        %v11726 = vsub.f32 %v11694, 1.0
        %v11727 = vsub.f32 %v11695, 1.0
        %v11728 = vsub.f32 %v11696, 1.0
        %v11729 = vsub.f32 %v11697, 1.0
        %v11730 = vsub.f32 %v11698, 1.0
        %v11731 = vsub.f32 %v11699, 1.0
        %v11732 = vsub.f32 %v11700, 1.0
        %v11733 = vsub.f32 %v11701, 1.0
        %v11734 = vsub.f32 %v11702, 1.0
        %v11735 = vsub.f32 %v11703, 1.0
        %v11736 = vsub.f32 %v11704, 1.0
        %v11737 = vsub.f32 %v11705, 1.0
        %v11738 = vsub.f32 %v11706, 1.0
        %v11739 = vsub.f32 %v11707, 1.0
        %v11740 = vsub.f32 %v11708, 1.0
        %v11741 = vsub.f32 %v11709, 1.0
        %v11742 = vsub.f32 %v11710, 1.0
        %v11743 = vsub.f32 %v11711, 1.0
        %v11744 = vsub.f32 %v11712, 1.0
        %v11745 = vmul.f32 %v11521, %v11713
        %v11746 = vmul.f32 %v11522, %v11714
        %v11747 = vmul.f32 %v11523, %v11715
        %v11748 = vmul.f32 %v11524, %v11716
        %v11749 = vmul.f32 %v11525, %v11717
        %v11750 = vmul.f32 %v11526, %v11718
        %v11751 = vmul.f32 %v11527, %v11719
        %v11752 = vmul.f32 %v11528, %v11720
        %v11753 = vmul.f32 %v11529, %v11721
        %v11754 = vmul.f32 %v11530, %v11722
        %v11755 = vmul.f32 %v11531, %v11723
        %v11756 = vmul.f32 %v11532, %v11724
        %v11757 = vmul.f32 %v11533, %v11725
        %v11758 = vmul.f32 %v11534, %v11726
        %v11759 = vmul.f32 %v11535, %v11727
        %v11760 = vmul.f32 %v11536, %v11728
        %v11761 = vmul.f32 %v11537, %v11729
        %v11762 = vmul.f32 %v11538, %v11730
        %v11763 = vmul.f32 %v11539, %v11731
        %v11764 = vmul.f32 %v11540, %v11732
        %v11765 = vmul.f32 %v11541, %v11733
        %v11766 = vmul.f32 %v11542, %v11734
        %v11767 = vmul.f32 %v11543, %v11735
        %v11768 = vmul.f32 %v11544, %v11736
        %v11769 = vmul.f32 %v11545, %v11737
        %v11770 = vmul.f32 %v11546, %v11738
        %v11771 = vmul.f32 %v11547, %v11739
        %v11772 = vmul.f32 %v11548, %v11740
        %v11773 = vmul.f32 %v11549, %v11741
        %v11774 = vmul.f32 %v11550, %v11742
        %v11775 = vmul.f32 %v11551, %v11743
        %v11776 = vmul.f32 %v11552, %v11744
        %v11777 = vadd.f32 %v11681, 1.0
        %v11778 = vadd.f32 %v11682, 1.0
        %v11779 = vadd.f32 %v11683, 1.0
        %v11780 = vadd.f32 %v11684, 1.0
        %v11781 = vadd.f32 %v11685, 1.0
        %v11782 = vadd.f32 %v11686, 1.0
        %v11783 = vadd.f32 %v11687, 1.0
        %v11784 = vadd.f32 %v11688, 1.0
        %v11785 = vadd.f32 %v11689, 1.0
        %v11786 = vadd.f32 %v11690, 1.0
        %v11787 = vadd.f32 %v11691, 1.0
        %v11788 = vadd.f32 %v11692, 1.0
        %v11789 = vadd.f32 %v11693, 1.0
        %v11790 = vadd.f32 %v11694, 1.0
        %v11791 = vadd.f32 %v11695, 1.0
        %v11792 = vadd.f32 %v11696, 1.0
        %v11793 = vadd.f32 %v11697, 1.0
        %v11794 = vadd.f32 %v11698, 1.0
        %v11795 = vadd.f32 %v11699, 1.0
        %v11796 = vadd.f32 %v11700, 1.0
        %v11797 = vadd.f32 %v11701, 1.0
        %v11798 = vadd.f32 %v11702, 1.0
        %v11799 = vadd.f32 %v11703, 1.0
        %v11800 = vadd.f32 %v11704, 1.0
        %v11801 = vadd.f32 %v11705, 1.0
        %v11802 = vadd.f32 %v11706, 1.0
        %v11803 = vadd.f32 %v11707, 1.0
        %v11804 = vadd.f32 %v11708, 1.0
        %v11805 = vadd.f32 %v11709, 1.0
        %v11806 = vadd.f32 %v11710, 1.0
        %v11807 = vadd.f32 %v11711, 1.0
        %v11808 = vadd.f32 %v11712, 1.0
        %v11809 = vrcp.pop %v11777
        %v11810 = vrcp.pop %v11778
        %v11811 = vrcp.pop %v11779
        %v11812 = vrcp.pop %v11780
        %v11813 = vrcp.pop %v11781
        %v11814 = vrcp.pop %v11782
        %v11815 = vrcp.pop %v11783
        %v11816 = vrcp.pop %v11784
        %v11817 = vrcp.pop %v11785
        %v11818 = vrcp.pop %v11786
        %v11819 = vrcp.pop %v11787
        %v11820 = vrcp.pop %v11788
        %v11821 = vrcp.pop %v11789
        %v11822 = vrcp.pop %v11790
        %v11823 = vrcp.pop %v11791
        %v11824 = vrcp.pop %v11792
        %v11825 = vrcp.pop %v11793
        %v11826 = vrcp.pop %v11794
        %v11827 = vrcp.pop %v11795
        %v11828 = vrcp.pop %v11796
        %v11829 = vrcp.pop %v11797
        %v11830 = vrcp.pop %v11798
        %v11831 = vrcp.pop %v11799
        %v11832 = vrcp.pop %v11800
        %v11833 = vrcp.pop %v11801
        %v11834 = vrcp.pop %v11802
        %v11835 = vrcp.pop %v11803
        %v11836 = vrcp.pop %v11804
        %v11837 = vrcp.pop %v11805
        %v11838 = vrcp.pop %v11806
        %v11839 = vrcp.pop %v11807
        %v11840 = vrcp.pop %v11808
        %v11841 = vmul.f32 %v11745, %v11809
        %v11842 = vmul.f32 %v11746, %v11810
        %v11843 = vmul.f32 %v11747, %v11811
        %v11844 = vmul.f32 %v11748, %v11812
        %v11845 = vmul.f32 %v11749, %v11813
        %v11846 = vmul.f32 %v11750, %v11814
        %v11847 = vmul.f32 %v11751, %v11815
        %v11848 = vmul.f32 %v11752, %v11816
        %v11849 = vmul.f32 %v11753, %v11817
        %v11850 = vmul.f32 %v11754, %v11818
        %v11851 = vmul.f32 %v11755, %v11819
        %v11852 = vmul.f32 %v11756, %v11820
        %v11853 = vmul.f32 %v11757, %v11821
        %v11854 = vmul.f32 %v11758, %v11822
        %v11855 = vmul.f32 %v11759, %v11823
        %v11856 = vmul.f32 %v11760, %v11824
        %v11857 = vmul.f32 %v11761, %v11825
        %v11858 = vmul.f32 %v11762, %v11826
        %v11859 = vmul.f32 %v11763, %v11827
        %v11860 = vmul.f32 %v11764, %v11828
        %v11861 = vmul.f32 %v11765, %v11829
        %v11862 = vmul.f32 %v11766, %v11830
        %v11863 = vmul.f32 %v11767, %v11831
        %v11864 = vmul.f32 %v11768, %v11832
        %v11865 = vmul.f32 %v11769, %v11833
        %v11866 = vmul.f32 %v11770, %v11834
        %v11867 = vmul.f32 %v11771, %v11835
        %v11868 = vmul.f32 %v11772, %v11836
        %v11869 = vmul.f32 %v11773, %v11837
        %v11870 = vmul.f32 %v11774, %v11838
        %v11871 = vmul.f32 %v11775, %v11839
        %v11872 = vmul.f32 %v11776, %v11840
        %v11873 = vpack.c.bf16 %v11841, %v11841
        %v11874 = vpack.c.bf16 %v11842, %v11842
        %v11875 = vpack.c.bf16 %v11843, %v11843
        %v11876 = vpack.c.bf16 %v11844, %v11844
        %v11877 = vpack.c.bf16 %v11845, %v11845
        %v11878 = vpack.c.bf16 %v11846, %v11846
        %v11879 = vpack.c.bf16 %v11847, %v11847
        %v11880 = vpack.c.bf16 %v11848, %v11848
        %v11881 = vpack.c.bf16 %v11849, %v11849
        %v11882 = vpack.c.bf16 %v11850, %v11850
        %v11883 = vpack.c.bf16 %v11851, %v11851
        %v11884 = vpack.c.bf16 %v11852, %v11852
        %v11885 = vpack.c.bf16 %v11853, %v11853
        %v11886 = vpack.c.bf16 %v11854, %v11854
        %v11887 = vpack.c.bf16 %v11855, %v11855
        %v11888 = vpack.c.bf16 %v11856, %v11856
        %v11889 = vpack.c.bf16 %v11857, %v11857
        %v11890 = vpack.c.bf16 %v11858, %v11858
        %v11891 = vpack.c.bf16 %v11859, %v11859
        %v11892 = vpack.c.bf16 %v11860, %v11860
        %v11893 = vpack.c.bf16 %v11861, %v11861
        %v11894 = vpack.c.bf16 %v11862, %v11862
        %v11895 = vpack.c.bf16 %v11863, %v11863
        %v11896 = vpack.c.bf16 %v11864, %v11864
        %v11897 = vpack.c.bf16 %v11865, %v11865
        %v11898 = vpack.c.bf16 %v11866, %v11866
        %v11899 = vpack.c.bf16 %v11867, %v11867
        %v11900 = vpack.c.bf16 %v11868, %v11868
        %v11901 = vpack.c.bf16 %v11869, %v11869
        %v11902 = vpack.c.bf16 %v11870, %v11870
        %v11903 = vpack.c.bf16 %v11871, %v11871
        %v11904 = vpack.c.bf16 %v11872, %v11872
        %11905 = vst [vmem:[%s234] sm:$0xf] %v11873
        %11906 = vst [vmem:[%s234 + $0x4] sm:$0xf] %v11874
        %11907 = vst [vmem:[%s234 + $0x8] sm:$0xf] %v11875
        %11908 = vst [vmem:[%s234 + $0xc] sm:$0xf] %v11876
        %11909 = vst [vmem:[%s234 + $0x10] sm:$0xf] %v11877
        %11910 = vst [vmem:[%s234 + $0x14] sm:$0xf] %v11878
        %11911 = vst [vmem:[%s234 + $0x18] sm:$0xf] %v11879
        %11912 = vst [vmem:[%s234 + $0x1c] sm:$0xf] %v11880
        %11913 = vst [vmem:[%s234 + $0x20] sm:$0xf] %v11881
        %11914 = vst [vmem:[%s234 + $0x24] sm:$0xf] %v11882
        %11915 = vst [vmem:[%s234 + $0x28] sm:$0xf] %v11883
        %11916 = vst [vmem:[%s234 + $0x2c] sm:$0xf] %v11884
        %11917 = vst [vmem:[%s234 + $0x30] sm:$0xf] %v11885
        %11918 = vst [vmem:[%s234 + $0x34] sm:$0xf] %v11886
        %11919 = vst [vmem:[%s234 + $0x38] sm:$0xf] %v11887
        %11920 = vst [vmem:[%s234 + $0x3c] sm:$0xf] %v11888
        %11921 = vst [vmem:[%s234 + $0x40] sm:$0xf] %v11889
        %11922 = vst [vmem:[%s234 + $0x44] sm:$0xf] %v11890
        %11923 = vst [vmem:[%s234 + $0x48] sm:$0xf] %v11891
        %11924 = vst [vmem:[%s234 + $0x4c] sm:$0xf] %v11892
        %11925 = vst [vmem:[%s234 + $0x50] sm:$0xf] %v11893
        %11926 = vst [vmem:[%s234 + $0x54] sm:$0xf] %v11894
        %11927 = vst [vmem:[%s234 + $0x58] sm:$0xf] %v11895
        %11928 = vst [vmem:[%s234 + $0x5c] sm:$0xf] %v11896
        %11929 = vst [vmem:[%s234 + $0x60] sm:$0xf] %v11897
        %11930 = vst [vmem:[%s234 + $0x64] sm:$0xf] %v11898
        %11931 = vst [vmem:[%s234 + $0x68] sm:$0xf] %v11899
        %11932 = vst [vmem:[%s234 + $0x6c] sm:$0xf] %v11900
        %11933 = vst [vmem:[%s234 + $0x70] sm:$0xf] %v11901
        %11934 = vst [vmem:[%s234 + $0x74] sm:$0xf] %v11902
        %11935 = vst [vmem:[%s234 + $0x78] sm:$0xf] %v11903
        %11936 = vst [vmem:[%s234 + $0x7c] sm:$0xf] %v11904
        %s11937 = sand.u32 %s138, 1
        %s11938 = scalar_lea.sflag [#allocation7], %s11937
        %s11939 = sand.u32 %s138, 1
        %s11940 = smul.addr %s11939, 128
        %s11941 = scalar_lea.vmem [#allocation8], %s11940
        // Predicated region
        $region45: #{tpu_custom_call.1} parent=39 // pred_check
          %p11942 = pneg %p148
        $region46: #{tpu_custom_call.1} parent=39 // pred_check_branch
          %11944 = sbr.rel (%p11942) target = $region48
        $region47: #{tpu_custom_call.1} parent=39 // pred_region
          %11946 = vsyncadd %s11938, 0
          %s11947 = smul.addr %s20, 32
          %s11948 = smul.addr %s11947, 4
          %s11949 = scalar_lea.hbm %s5, %s11948
          %s11950 = sshll.u32 %s11941, 4
          %s11951 = int_to_ptr.vmem [resolvable:$true] %s11950
          %s11952 = sshll.u32 %s11949, 4
          %s11953 = int_to_ptr.hbm [resolvable:$true] %s11952
          %11958 = dma.vmem_to_hbm [thread:$0]  %s11951, 2048, %s11953, %s11938, 64, 64, 4
        $region48: #{tpu_custom_call.1} parent=39 // pred_fallthru
          _
      $region40: #{tpu_custom_call.1} parent=5 // pred_fallthru
        _
      %p11959 = scmp.le.s32.totalorder 2, %s15
      // Predicated region
      $region49: #{tpu_custom_call.1} parent=5 // pred_check
        %p11960 = pneg %p11959
      $region50: #{tpu_custom_call.1} parent=5 // pred_check_branch
        %11962 = sbr.rel (%p11960) target = $region52
      $region51: #{tpu_custom_call.1} parent=5 // pred_region
        %s11963 = ssub.s32 %s15, 2
        // Predicated region
        $region53: #{tpu_custom_call.1} parent=51 // pred_check
          %p11964 = pneg %p154
        $region54: #{tpu_custom_call.1} parent=51 // pred_check_branch
          %11966 = sbr.rel (%p11964) target = $region56
        $region55: #{tpu_custom_call.1} parent=51 // pred_region
          %s11967 = sand.u32 %s139, 1
          %s11968 = scalar_lea.sflag [#allocation7], %s11967
          %s11969 = sand.u32 %s139, 1
          %s11970 = smul.addr %s11969, 128
          %s11971 = scalar_lea.vmem [#allocation8], %s11970
          %11973 = dma.done %s11968, 2048
        $region56: #{tpu_custom_call.1} parent=51 // pred_fallthru
          _
      $region52: #{tpu_custom_call.1} parent=5 // pred_fallthru
        _
    $region6: #{tpu_custom_call.1} parent=1 // loop_footer
      %s19 = sadd.s32 1, %s15
    $region7: #{tpu_custom_call.1} parent=1 // loop_footer_branch
      %14 = sbr.rel target = $region3
    $region8: #{tpu_custom_call.1} parent=1 // loop_exit
      _
    %11974 = vsyncpa [#allocation6], 1
    %s11975 = scalar_lea.sflag [#allocation6], 1
    %11976 = vsyncpa %s11975, 1
    %11977 = vsyncpa [#allocation7], 1
    %s11978 = scalar_lea.sflag [#allocation7], 1
    %11979 = vsyncpa %s11978, 1

</llo_original>
